<compile_context>
chip_gen: v5e
topology: v5e:2x2
jax: 0.10.0
libtpu: 0.0.40
codegen_flags: <defaults>
</compile_context>

<pallas_src>
import functools

import jax
import jax.numpy as jnp
from jax.experimental import pallas as pl
from jax.experimental.pallas import tpu as pltpu


# ----------------------------------------------------------------------------
# In-kernel helpers
# ----------------------------------------------------------------------------
def _gn_silu(xs, A, gamma, beta, eps, cnt):
    """GroupNorm (affine) + SiLU.

    xs:    (HW, C) f32 activations.
    A:     (C, C) f32 group-membership matrix (constant input, VMEM resident).
    gamma/beta: (1, C) f32.
    cnt:   elements per group (HW * C/groups), Python float.
    """
    s1 = jnp.sum(xs, axis=0, keepdims=True)             # (1, C)
    s2 = jnp.sum(xs * xs, axis=0, keepdims=True)        # (1, C)
    s = jnp.concatenate([s1, s2], axis=0)                # (2, C)
    g = jnp.dot(s, A, preferred_element_type=jnp.float32) * (1.0 / cnt)
    mean_c = g[0:1, :]
    msq_c = g[1:2, :]
    # Clamp: E[x^2] - E[x]^2 can go slightly negative (cancellation).
    var_c = jnp.maximum(msq_c - mean_c * mean_c, 0.0)
    inv = jax.lax.rsqrt(var_c + eps)
    y = (xs - mean_c) * (inv * gamma) + beta
    return y * jax.nn.sigmoid(y)                         # SiLU


def _conv3x3_taps(pad_ref, w_ref, b_ref):
    """3x3 conv as 9 shifted (HW, C) x (C, Cout) MXU dots (no im2col scratch).

    pad_ref: (H+2, W+2, C) bf16 VMEM, halo zeroed, center = activation.
    w_ref:   (9*C, Cout)   bf16 weights laid out as [tap*C + ci, co].
    b_ref:   (1, Cout)     f32 bias.
    Returns (H*W, Cout) f32.
    """
    Hp, Wp, C = pad_ref.shape
    H, W = Hp - 2, Wp - 2
    acc = None
    for k in range(9):
        dy, dx = divmod(k, 3)
        lhs = pad_ref[dy:dy + H, dx:dx + W, :].reshape(H * W, C)   # bf16
        wk = w_ref[k * C:(k + 1) * C, :]                           # (C, Cout) bf16
        d = jnp.dot(lhs, wk, preferred_element_type=jnp.float32)
        acc = d if acc is None else acc + d
    return acc + b_ref[...]


# ----------------------------------------------------------------------------
# Fused ResnetBlock kernel (one batch sample per grid step)
# ----------------------------------------------------------------------------
def _resnet_block_kernel(x_ref, A1_ref, g1_ref, bt1_ref, w1_ref, b1_ref,
                         A2_ref, g2_ref, bt2_ref, w2_ref, b2_ref,
                         ws_ref, bs_ref,
                         o_ref,
                         pad1_ref, pad2_ref,
                         *, groups, eps, skip_scale, mxu_dtype, lane_dense_out):
    _, H, W, Cin = x_ref.shape
    Cout = w1_ref.shape[1]

    # Zero ONLY the 1-pixel halo (center is fully overwritten right after).
    # Done every grid step so it stays safe under megacore grid sharding.
    pad1_ref[0:1, :, :] = jnp.zeros((1, W + 2, Cin), pad1_ref.dtype)
    pad1_ref[H + 1:H + 2, :, :] = jnp.zeros((1, W + 2, Cin), pad1_ref.dtype)
    pad1_ref[:, 0:1, :] = jnp.zeros((H + 2, 1, Cin), pad1_ref.dtype)
    pad1_ref[:, W + 1:W + 2, :] = jnp.zeros((H + 2, 1, Cin), pad1_ref.dtype)
    pad2_ref[0:1, :, :] = jnp.zeros((1, W + 2, Cout), pad2_ref.dtype)
    pad2_ref[H + 1:H + 2, :, :] = jnp.zeros((1, W + 2, Cout), pad2_ref.dtype)
    pad2_ref[:, 0:1, :] = jnp.zeros((H + 2, 1, Cout), pad2_ref.dtype)
    pad2_ref[:, W + 1:W + 2, :] = jnp.zeros((H + 2, 1, Cout), pad2_ref.dtype)

    xs = x_ref[0].reshape(H * W, Cin).astype(jnp.float32)          # (HW, Cin)

    # --- GroupNorm1 + SiLU -> padded bf16 VMEM tile ---------------------------
    h1 = _gn_silu(xs, A1_ref[...], g1_ref[...], bt1_ref[...], eps,
                  float(H * W * (Cin // groups)))
    pad1_ref[1:H + 1, 1:W + 1, :] = h1.reshape(H, W, Cin).astype(pad1_ref.dtype)

    # --- conv1: 9 shifted MXU dots --------------------------------------------
    a1 = _conv3x3_taps(pad1_ref, w1_ref, b1_ref)                   # (HW, Cout) f32

    # --- GroupNorm2 + SiLU -> padded bf16 VMEM tile ---------------------------
    h2 = _gn_silu(a1, A2_ref[...], g2_ref[...], bt2_ref[...], eps,
                  float(H * W * (Cout // groups)))
    pad2_ref[1:H + 1, 1:W + 1, :] = h2.reshape(H, W, Cout).astype(pad2_ref.dtype)

    # --- conv2 + fused 1x1 shortcut + residual scale ---------------------------
    a2 = _conv3x3_taps(pad2_ref, w2_ref, b2_ref)                   # (HW, Cout) f32
    sc = jnp.dot(xs.astype(mxu_dtype), ws_ref[...],
                 preferred_element_type=jnp.float32) + bs_ref[...]
    out = (a2 + sc) * skip_scale                                   # (HW, Cout) f32

    if lane_dense_out:
        # Cout is a multiple of 128: one wide unmasked store of the whole slab.
        o_ref[0] = out.astype(o_ref.dtype)
    else:
        # Small Cout (demo): fold W into the lane axis so the output slab stays
        # lane-dense (last dim W*Cout >= 128) instead of masked Cout-wide stores.
        out3 = out.reshape(H, W, Cout)
        for w in range(W):
            o_ref[0, :, w * Cout:(w + 1) * Cout] = out3[:, w, :].astype(o_ref.dtype)


# ----------------------------------------------------------------------------
# ResnetBlock forward (NCHW in / NCHW out, like the PyTorch module)
# ----------------------------------------------------------------------------
def _group_matrix(C, groups):
    """(C, C) 0/1 matrix: A[i, j] = 1 iff channels i, j are in the same group."""
    gid = jnp.arange(C, dtype=jnp.int32) // (C // groups)
    return (gid[:, None] == gid[None, :]).astype(jnp.float32)


def resnet_block_forward(x_nchw, params, *, groups, eps, skip_scale,
                         mxu_dtype=jnp.bfloat16):
    N, Cin, H, W = x_nchw.shape
    Cout = params["w1"].shape[-1]
    lane_dense_out = (Cout % 128 == 0)

    x = jnp.transpose(x_nchw, (0, 2, 3, 1)).astype(jnp.float32)    # NCHW -> NHWC

    # Per-tap weight layout: HWIO (3,3,Ci,Co) -> (9*Ci, Co); bf16 MXU operands.
    w1 = params["w1"].reshape(9 * Cin, Cout).astype(mxu_dtype)
    w2 = params["w2"].reshape(9 * Cout, Cout).astype(mxu_dtype)
    ws = params["ws"].astype(mxu_dtype)

    # Group-membership matrices for the segment-sum GroupNorm stats (constant
    # index_map -> DMA'd once and VMEM resident; no per-step iota/compare).
    A1 = _group_matrix(Cin, groups)
    A2 = _group_matrix(Cout, groups)

    g1 = params["gamma1"].reshape(1, Cin).astype(jnp.float32)
    bt1 = params["beta1"].reshape(1, Cin).astype(jnp.float32)
    g2 = params["gamma2"].reshape(1, Cout).astype(jnp.float32)
    bt2 = params["beta2"].reshape(1, Cout).astype(jnp.float32)
    b1 = params["b1"].reshape(1, Cout).astype(jnp.float32)
    b2 = params["b2"].reshape(1, Cout).astype(jnp.float32)
    bs = params["bs"].reshape(1, Cout).astype(jnp.float32)

    # VMEM footprint estimate; raise the scoped limit above the 16/32 MiB
    # defaults (v5e/v6e) only when the per-sample working set needs it.
    bfb = jnp.dtype(mxu_dtype).itemsize
    est = ((H + 2) * (W + 2) * (Cin + Cout) * bfb                  # padded tiles
           + 2 * H * W * (Cin + Cout) * 4                          # dbl-buf x / out
           + 2 * (9 * Cin * Cout + 9 * Cout * Cout + Cin * Cout) * bfb
           + 2 * (Cin * Cin + Cout * Cout) * 4
           + H * W * (2 * Cin + 3 * Cout) * 4)                     # live values
    vmem_limit = None
    if est > (12 << 20):
        vmem_limit = min(110 << 20, int(1.5 * est) + (8 << 20))

    kernel = functools.partial(
        _resnet_block_kernel, groups=groups, eps=float(eps),
        skip_scale=float(skip_scale), mxu_dtype=mxu_dtype,
        lane_dense_out=lane_dense_out)

    if lane_dense_out:
        out_shape = jax.ShapeDtypeStruct((N, H * W, Cout), jnp.float32)
        out_spec = pl.BlockSpec((1, H * W, Cout), lambda n: (n, 0, 0))
    else:
        out_shape = jax.ShapeDtypeStruct((N, H, W * Cout), jnp.float32)
        out_spec = pl.BlockSpec((1, H, W * Cout), lambda n: (n, 0, 0))

    out = pl.pallas_call(
        kernel,
        out_shape=out_shape,
        grid=(N,),
        in_specs=[
            pl.BlockSpec((1, H, W, Cin), lambda n: (n, 0, 0, 0)),   # x
            pl.BlockSpec((Cin, Cin), lambda n: (0, 0)),             # A1 (group mat)
            pl.BlockSpec((1, Cin), lambda n: (0, 0)),               # gamma1
            pl.BlockSpec((1, Cin), lambda n: (0, 0)),               # beta1
            pl.BlockSpec((9 * Cin, Cout), lambda n: (0, 0)),        # w1 (per tap)
            pl.BlockSpec((1, Cout), lambda n: (0, 0)),              # b1
            pl.BlockSpec((Cout, Cout), lambda n: (0, 0)),           # A2 (group mat)
            pl.BlockSpec((1, Cout), lambda n: (0, 0)),              # gamma2
            pl.BlockSpec((1, Cout), lambda n: (0, 0)),              # beta2
            pl.BlockSpec((9 * Cout, Cout), lambda n: (0, 0)),       # w2 (per tap)
            pl.BlockSpec((1, Cout), lambda n: (0, 0)),              # b2
            pl.BlockSpec((Cin, Cout), lambda n: (0, 0)),            # ws (1x1 shortcut)
            pl.BlockSpec((1, Cout), lambda n: (0, 0)),              # bs
        ],
        out_specs=out_spec,
        scratch_shapes=[
            pltpu.VMEM((H + 2, W + 2, Cin), mxu_dtype),    # padded GN1/SiLU act (bf16)
            pltpu.VMEM((H + 2, W + 2, Cout), mxu_dtype),   # padded GN2/SiLU act (bf16)
        ],
        compiler_params=pltpu.CompilerParams(
            dimension_semantics=("parallel",),
            vmem_limit_bytes=vmem_limit),
    )(x, A1, g1, bt1, w1, b1, A2, g2, bt2, w2, b2, ws, bs)

    out = out.reshape(N, H, W, Cout)                 # un-fold lanes (free in XLA)
    return jnp.transpose(out, (0, 3, 1, 2))          # NHWC -> NCHW


# ----------------------------------------------------------------------------
# Pure-JAX f32 reference (for sanity check)
# ----------------------------------------------------------------------------
def _ref_forward(x, params, *, groups, eps, skip_scale):
    def gn(v, gamma, beta):
        N, C, H, W = v.shape
        vg = v.reshape(N, groups, C // groups, H, W)
        mean = vg.mean(axis=(2, 3, 4), keepdims=True)
        var = vg.var(axis=(2, 3, 4), keepdims=True)
        vn = ((vg - mean) / jnp.sqrt(var + eps)).reshape(N, C, H, W)
        return vn * gamma[None, :, None, None] + beta[None, :, None, None]

    def conv(v, w_hwio, b, pad):
        w_oihw = jnp.transpose(w_hwio, (3, 2, 0, 1))
        y = jax.lax.conv_general_dilated(
            v, w_oihw, (1, 1), [(pad, pad), (pad, pad)],
            dimension_numbers=("NCHW", "OIHW", "NCHW"))
        return y + b[None, :, None, None]

    silu = lambda v: v * jax.nn.sigmoid(v)
    res = x
    h = silu(gn(x, params["gamma1"], params["beta1"]))
    h = conv(h, params["w1"], params["b1"], 1)
    h = silu(gn(h, params["gamma2"], params["beta2"]))
    h = conv(h, params["w2"], params["b2"], 1)
    sc = conv(res, params["ws"].reshape(1, 1, *params["ws"].shape), params["bs"], 0)
    return (h + sc) * skip_scale


# ----------------------------------------------------------------------------
if __name__ == "__main__":
    N, Cin, Cout, H, W = 2, 8, 16, 16, 16
    groups, eps, skip_scale = 4, 1e-5, 0.70710678

    key = jax.random.PRNGKey(0)
    kx, k1, k2, k3, k4, k5, k6 = jax.random.split(key, 7)

    x = jax.random.normal(kx, (N, Cin, H, W), jnp.float32)

    params = {
        "gamma1": 1.0 + 0.1 * jax.random.normal(k1, (Cin,), jnp.float32),
        "beta1": 0.1 * jax.random.normal(k2, (Cin,), jnp.float32),
        "w1": 0.2 * jax.random.normal(k3, (3, 3, Cin, Cout), jnp.float32),   # HWIO
        "b1": 0.05 * jnp.arange(Cout, dtype=jnp.float32) / Cout,
        "gamma2": 1.0 + 0.1 * jax.random.normal(k4, (Cout,), jnp.float32),
        "beta2": 0.1 * jax.random.normal(k5, (Cout,), jnp.float32),
        "w2": 0.2 * jax.random.normal(k6, (3, 3, Cout, Cout), jnp.float32),  # HWIO
        "b2": 0.03 * jnp.arange(Cout, dtype=jnp.float32) / Cout,
        "ws": 0.3 * jax.random.normal(jax.random.PRNGKey(7), (Cin, Cout), jnp.float32),
        "bs": 0.02 * jnp.arange(Cout, dtype=jnp.float32) / Cout,
    }

    out = resnet_block_forward(x, params, groups=groups, eps=eps,
                               skip_scale=skip_scale)
    out = jax.block_until_ready(out)

    ref = _ref_forward(x, params, groups=groups, eps=eps, skip_scale=skip_scale)

    assert out.shape == (N, Cout, H, W)
    assert bool(jnp.all(jnp.isfinite(out)))
    # bf16 MXU operands with f32 accumulation: check relative L2 error.
    rel = float(jnp.linalg.norm(out - ref) / jnp.linalg.norm(ref))
    assert rel < 5e-2, f"relative L2 error too large: {rel}"

    print("KERNEL_OK")
</pallas_src>

<mosaic_0001>
module attributes {stable_mosaic.version = 11 : i64} {
  func.func @_resnet_block_kernel(%arg0: i32, %arg1: memref<1x16x16x8xf32, #tpu.memory_space<vmem>>, %arg2: memref<8x8xf32, #tpu.memory_space<vmem>>, %arg3: memref<1x8xf32, #tpu.memory_space<vmem>>, %arg4: memref<1x8xf32, #tpu.memory_space<vmem>>, %arg5: memref<72x16xbf16, #tpu.memory_space<vmem>>, %arg6: memref<1x16xf32, #tpu.memory_space<vmem>>, %arg7: memref<16x16xf32, #tpu.memory_space<vmem>>, %arg8: memref<1x16xf32, #tpu.memory_space<vmem>>, %arg9: memref<1x16xf32, #tpu.memory_space<vmem>>, %arg10: memref<144x16xbf16, #tpu.memory_space<vmem>>, %arg11: memref<1x16xf32, #tpu.memory_space<vmem>>, %arg12: memref<8x16xbf16, #tpu.memory_space<vmem>>, %arg13: memref<1x16xf32, #tpu.memory_space<vmem>>, %arg14: memref<1x16x256xf32, #tpu.memory_space<vmem>>, %arg15: memref<18x18x8xbf16, #tpu.memory_space<vmem>>, %arg16: memref<18x18x16xbf16, #tpu.memory_space<vmem>>) attributes {dimension_semantics = [#tpu.dimension_semantics<parallel>], iteration_bounds = array<i64: 2>, scalar_prefetch = 0 : i64, scratch_operands = 2 : i64, tpu.core_type = #tpu.core_type<tc>, window_params = [{transform_indices = @transform_0, window_bounds = array<i64: 1, 16, 16, 8>}, {pipeline_mode = #tpu.pipeline_mode<synchronous>, transform_indices = @transform_1, window_bounds = array<i64: 8, 8>}, {pipeline_mode = #tpu.pipeline_mode<synchronous>, transform_indices = @transform_2, window_bounds = array<i64: 1, 8>}, {pipeline_mode = #tpu.pipeline_mode<synchronous>, transform_indices = @transform_3, window_bounds = array<i64: 1, 8>}, {pipeline_mode = #tpu.pipeline_mode<synchronous>, transform_indices = @transform_4, window_bounds = array<i64: 72, 16>}, {pipeline_mode = #tpu.pipeline_mode<synchronous>, transform_indices = @transform_5, window_bounds = array<i64: 1, 16>}, {pipeline_mode = #tpu.pipeline_mode<synchronous>, transform_indices = @transform_6, window_bounds = array<i64: 16, 16>}, {pipeline_mode = #tpu.pipeline_mode<synchronous>, transform_indices = @transform_7, window_bounds = array<i64: 1, 16>}, {pipeline_mode = #tpu.pipeline_mode<synchronous>, transform_indices = @transform_8, window_bounds = array<i64: 1, 16>}, {pipeline_mode = #tpu.pipeline_mode<synchronous>, transform_indices = @transform_9, window_bounds = array<i64: 144, 16>}, {pipeline_mode = #tpu.pipeline_mode<synchronous>, transform_indices = @transform_10, window_bounds = array<i64: 1, 16>}, {pipeline_mode = #tpu.pipeline_mode<synchronous>, transform_indices = @transform_11, window_bounds = array<i64: 8, 16>}, {pipeline_mode = #tpu.pipeline_mode<synchronous>, transform_indices = @transform_12, window_bounds = array<i64: 1, 16>}, {transform_indices = @transform_13, window_bounds = array<i64: 1, 16, 256>}]} {
    %cst = arith.constant 0.000000e+00 : bf16
    %0 = vector.broadcast %cst : bf16 to vector<1x18x8xbf16>
    %c0 = arith.constant 0 : index
    %c0_0 = arith.constant 0 : index
    %c0_1 = arith.constant 0 : index
    %1 = vector.load %arg15[%c0, %c0_0, %c0_1] : memref<18x18x8xbf16, #tpu.memory_space<vmem>>, vector<1x18x8xbf16>
    tpu.vector_store %arg15[%c0, %c0_0, %c0_1], %0 {strides = array<i32>} : memref<18x18x8xbf16, #tpu.memory_space<vmem>>, vector<1x18x8xbf16>,
    %cst_2 = arith.constant 0.000000e+00 : bf16
    %2 = vector.broadcast %cst_2 : bf16 to vector<1x18x8xbf16>
    %c17 = arith.constant 17 : index
    %c0_3 = arith.constant 0 : index
    %c0_4 = arith.constant 0 : index
    %3 = vector.load %arg15[%c17, %c0_3, %c0_4] : memref<18x18x8xbf16, #tpu.memory_space<vmem>>, vector<1x18x8xbf16>
    tpu.vector_store %arg15[%c17, %c0_3, %c0_4], %2 {strides = array<i32>} : memref<18x18x8xbf16, #tpu.memory_space<vmem>>, vector<1x18x8xbf16>,
    %cst_5 = arith.constant 0.000000e+00 : bf16
    %4 = vector.broadcast %cst_5 : bf16 to vector<18x1x8xbf16>
    %c0_6 = arith.constant 0 : index
    %c0_7 = arith.constant 0 : index
    %c0_8 = arith.constant 0 : index
    %5 = vector.load %arg15[%c0_6, %c0_7, %c0_8] : memref<18x18x8xbf16, #tpu.memory_space<vmem>>, vector<18x1x8xbf16>
    tpu.vector_store %arg15[%c0_6, %c0_7, %c0_8], %4 {strides = array<i32>} : memref<18x18x8xbf16, #tpu.memory_space<vmem>>, vector<18x1x8xbf16>,
    %cst_9 = arith.constant 0.000000e+00 : bf16
    %6 = vector.broadcast %cst_9 : bf16 to vector<18x1x8xbf16>
    %c0_10 = arith.constant 0 : index
    %c17_11 = arith.constant 17 : index
    %c0_12 = arith.constant 0 : index
    %7 = vector.load %arg15[%c0_10, %c17_11, %c0_12] : memref<18x18x8xbf16, #tpu.memory_space<vmem>>, vector<18x1x8xbf16>
    tpu.vector_store %arg15[%c0_10, %c17_11, %c0_12], %6 {strides = array<i32>} : memref<18x18x8xbf16, #tpu.memory_space<vmem>>, vector<18x1x8xbf16>,
    %cst_13 = arith.constant 0.000000e+00 : bf16
    %8 = vector.broadcast %cst_13 : bf16 to vector<1x18x16xbf16>
    %c0_14 = arith.constant 0 : index
    %c0_15 = arith.constant 0 : index
    %c0_16 = arith.constant 0 : index
    %9 = vector.load %arg16[%c0_14, %c0_15, %c0_16] : memref<18x18x16xbf16, #tpu.memory_space<vmem>>, vector<1x18x16xbf16>
    tpu.vector_store %arg16[%c0_14, %c0_15, %c0_16], %8 {strides = array<i32>} : memref<18x18x16xbf16, #tpu.memory_space<vmem>>, vector<1x18x16xbf16>,
    %cst_17 = arith.constant 0.000000e+00 : bf16
    %10 = vector.broadcast %cst_17 : bf16 to vector<1x18x16xbf16>
    %c17_18 = arith.constant 17 : index
    %c0_19 = arith.constant 0 : index
    %c0_20 = arith.constant 0 : index
    %11 = vector.load %arg16[%c17_18, %c0_19, %c0_20] : memref<18x18x16xbf16, #tpu.memory_space<vmem>>, vector<1x18x16xbf16>
    tpu.vector_store %arg16[%c17_18, %c0_19, %c0_20], %10 {strides = array<i32>} : memref<18x18x16xbf16, #tpu.memory_space<vmem>>, vector<1x18x16xbf16>,
    %cst_21 = arith.constant 0.000000e+00 : bf16
    %12 = vector.broadcast %cst_21 : bf16 to vector<18x1x16xbf16>
    %c0_22 = arith.constant 0 : index
    %c0_23 = arith.constant 0 : index
    %c0_24 = arith.constant 0 : index
    %13 = vector.load %arg16[%c0_22, %c0_23, %c0_24] : memref<18x18x16xbf16, #tpu.memory_space<vmem>>, vector<18x1x16xbf16>
    tpu.vector_store %arg16[%c0_22, %c0_23, %c0_24], %12 {strides = array<i32>} : memref<18x18x16xbf16, #tpu.memory_space<vmem>>, vector<18x1x16xbf16>,
    %cst_25 = arith.constant 0.000000e+00 : bf16
    %14 = vector.broadcast %cst_25 : bf16 to vector<18x1x16xbf16>
    %c0_26 = arith.constant 0 : index
    %c17_27 = arith.constant 17 : index
    %c0_28 = arith.constant 0 : index
    %15 = vector.load %arg16[%c0_26, %c17_27, %c0_28] : memref<18x18x16xbf16, #tpu.memory_space<vmem>>, vector<18x1x16xbf16>
    tpu.vector_store %arg16[%c0_26, %c17_27, %c0_28], %14 {strides = array<i32>} : memref<18x18x16xbf16, #tpu.memory_space<vmem>>, vector<18x1x16xbf16>,
    %c0_29 = arith.constant 0 : index
    %c0_30 = arith.constant 0 : index
    %c0_31 = arith.constant 0 : index
    %c0_32 = arith.constant 0 : index
    %16 = vector.load %arg1[%c0_29, %c0_30, %c0_31, %c0_32] : memref<1x16x16x8xf32, #tpu.memory_space<vmem>>, vector<1x16x16x8xf32>
    %17 = vector.shape_cast %16 : vector<1x16x16x8xf32> to vector<16x16x8xf32>
    %18 = vector.shape_cast %17 : vector<16x16x8xf32> to vector<256x8xf32>
    %c0_33 = arith.constant 0 : index
    %c0_34 = arith.constant 0 : index
    %19 = vector.load %arg2[%c0_33, %c0_34] : memref<8x8xf32, #tpu.memory_space<vmem>>, vector<8x8xf32>
    %c0_35 = arith.constant 0 : index
    %c0_36 = arith.constant 0 : index
    %20 = vector.load %arg3[%c0_35, %c0_36] : memref<1x8xf32, #tpu.memory_space<vmem>>, vector<1x8xf32>
    %c0_37 = arith.constant 0 : index
    %c0_38 = arith.constant 0 : index
    %21 = vector.load %arg4[%c0_37, %c0_38] : memref<1x8xf32, #tpu.memory_space<vmem>>, vector<1x8xf32>
    %cst_39 = arith.constant dense<0.000000e+00> : vector<8xf32>
    %22 = vector.multi_reduction <add>, %18, %cst_39 [0] : vector<256x8xf32> to vector<8xf32>
    %23 = vector.shape_cast %22 : vector<8xf32> to vector<1x8xf32>
    %24 = arith.mulf %18, %18 : vector<256x8xf32>
    %cst_40 = arith.constant dense<0.000000e+00> : vector<8xf32>
    %25 = vector.multi_reduction <add>, %24, %cst_40 [0] : vector<256x8xf32> to vector<8xf32>
    %26 = vector.shape_cast %25 : vector<8xf32> to vector<1x8xf32>
    %27 = tpu.concatenate %23, %26 in 0 : vector<1x8xf32>, vector<1x8xf32> -> vector<2x8xf32>
    %cst_41 = arith.constant dense<0.000000e+00> : vector<2x8xf32>
    %28 = tpu.matmul %27, %19, %cst_41 {dimension_numbers = #tpu.dot_dimension_numbers<[1], [0], [0], [1], [0, 0, 1, 1], [], []>} : vector<2x8xf32>, vector<8x8xf32>, vector<2x8xf32> -> vector<2x8xf32>
    %cst_42 = arith.constant 0.001953125 : f32
    %29 = vector.broadcast %cst_42 : f32 to vector<2x8xf32>
    %30 = arith.mulf %28, %29 : vector<2x8xf32>
    %31 = vector.extract_strided_slice %30 {offsets = [0, 0], sizes = [1, 8], strides = [1, 1]} : vector<2x8xf32> to vector<1x8xf32>
    %32 = vector.extract_strided_slice %30 {offsets = [1, 0], sizes = [1, 8], strides = [1, 1]} : vector<2x8xf32> to vector<1x8xf32>
    %33 = arith.mulf %31, %31 : vector<1x8xf32>
    %34 = arith.subf %32, %33 : vector<1x8xf32>
    %cst_43 = arith.constant 0.000000e+00 : f32
    %35 = vector.broadcast %cst_43 : f32 to vector<1x8xf32>
    %36 = arith.maximumf %34, %35 : vector<1x8xf32>
    %cst_44 = arith.constant 9.99999974E-6 : f32
    %37 = vector.broadcast %cst_44 : f32 to vector<1x8xf32>
    %38 = arith.addf %36, %37 : vector<1x8xf32>
    %39 = math.rsqrt %38 : vector<1x8xf32>
    %40 = vector.broadcast %31 : vector<1x8xf32> to vector<256x8xf32>
    %41 = arith.subf %18, %40 : vector<256x8xf32>
    %42 = arith.mulf %39, %20 : vector<1x8xf32>
    %43 = vector.broadcast %42 : vector<1x8xf32> to vector<256x8xf32>
    %44 = arith.mulf %41, %43 : vector<256x8xf32>
    %45 = vector.broadcast %21 : vector<1x8xf32> to vector<256x8xf32>
    %46 = arith.addf %44, %45 : vector<256x8xf32>
    %47 = arith.negf %46 : vector<256x8xf32>
    %48 = math.exp %47 : vector<256x8xf32>
    %cst_45 = arith.constant 1.000000e+00 : f32
    %49 = vector.broadcast %cst_45 : f32 to vector<256x8xf32>
    %50 = arith.addf %49, %48 : vector<256x8xf32>
    %51 = arith.divf %49, %50 : vector<256x8xf32>
    %52 = arith.mulf %46, %51 : vector<256x8xf32>
    %53 = vector.shape_cast %52 : vector<256x8xf32> to vector<16x16x8xf32>
    %54 = arith.truncf %53 : vector<16x16x8xf32> to vector<16x16x8xbf16>
    %c1 = arith.constant 1 : index
    %c1_46 = arith.constant 1 : index
    %c0_47 = arith.constant 0 : index
    %55 = vector.load %arg15[%c1, %c1_46, %c0_47] : memref<18x18x8xbf16, #tpu.memory_space<vmem>>, vector<16x16x8xbf16>
    tpu.vector_store %arg15[%c1, %c1_46, %c0_47], %54 {strides = array<i32>} : memref<18x18x8xbf16, #tpu.memory_space<vmem>>, vector<16x16x8xbf16>,
    %c0_48 = arith.constant 0 : index
    %c0_49 = arith.constant 0 : index
    %c0_50 = arith.constant 0 : index
    %56 = vector.load %arg15[%c0_48, %c0_49, %c0_50] : memref<18x18x8xbf16, #tpu.memory_space<vmem>>, vector<16x16x8xbf16>
    %57 = vector.shape_cast %56 : vector<16x16x8xbf16> to vector<256x8xbf16>
    %c0_51 = arith.constant 0 : index
    %c0_52 = arith.constant 0 : index
    %58 = vector.load %arg5[%c0_51, %c0_52] : memref<72x16xbf16, #tpu.memory_space<vmem>>, vector<8x16xbf16>
    %cst_53 = arith.constant dense<0.000000e+00> : vector<256x16xf32>
    %59 = tpu.matmul %57, %58, %cst_53 {dimension_numbers = #tpu.dot_dimension_numbers<[1], [0], [0], [1], [0, 0, 1, 1], [], []>} : vector<256x8xbf16>, vector<8x16xbf16>, vector<256x16xf32> -> vector<256x16xf32>
    %c0_54 = arith.constant 0 : index
    %c1_55 = arith.constant 1 : index
    %c0_56 = arith.constant 0 : index
    %60 = vector.load %arg15[%c0_54, %c1_55, %c0_56] : memref<18x18x8xbf16, #tpu.memory_space<vmem>>, vector<16x16x8xbf16>
    %61 = vector.shape_cast %60 : vector<16x16x8xbf16> to vector<256x8xbf16>
    %c8 = arith.constant 8 : index
    %c0_57 = arith.constant 0 : index
    %62 = vector.load %arg5[%c8, %c0_57] : memref<72x16xbf16, #tpu.memory_space<vmem>>, vector<8x16xbf16>
    %cst_58 = arith.constant dense<0.000000e+00> : vector<256x16xf32>
    %63 = tpu.matmul %61, %62, %cst_58 {dimension_numbers = #tpu.dot_dimension_numbers<[1], [0], [0], [1], [0, 0, 1, 1], [], []>} : vector<256x8xbf16>, vector<8x16xbf16>, vector<256x16xf32> -> vector<256x16xf32>
    %64 = arith.addf %59, %63 : vector<256x16xf32>
    %c0_59 = arith.constant 0 : index
    %c2 = arith.constant 2 : index
    %c0_60 = arith.constant 0 : index
    %65 = vector.load %arg15[%c0_59, %c2, %c0_60] : memref<18x18x8xbf16, #tpu.memory_space<vmem>>, vector<16x16x8xbf16>
    %66 = vector.shape_cast %65 : vector<16x16x8xbf16> to vector<256x8xbf16>
    %c16 = arith.constant 16 : index
    %c0_61 = arith.constant 0 : index
    %67 = vector.load %arg5[%c16, %c0_61] : memref<72x16xbf16, #tpu.memory_space<vmem>>, vector<8x16xbf16>
    %cst_62 = arith.constant dense<0.000000e+00> : vector<256x16xf32>
    %68 = tpu.matmul %66, %67, %cst_62 {dimension_numbers = #tpu.dot_dimension_numbers<[1], [0], [0], [1], [0, 0, 1, 1], [], []>} : vector<256x8xbf16>, vector<8x16xbf16>, vector<256x16xf32> -> vector<256x16xf32>
    %69 = arith.addf %64, %68 : vector<256x16xf32>
    %c1_63 = arith.constant 1 : index
    %c0_64 = arith.constant 0 : index
    %c0_65 = arith.constant 0 : index
    %70 = vector.load %arg15[%c1_63, %c0_64, %c0_65] : memref<18x18x8xbf16, #tpu.memory_space<vmem>>, vector<16x16x8xbf16>
    %71 = vector.shape_cast %70 : vector<16x16x8xbf16> to vector<256x8xbf16>
    %c24 = arith.constant 24 : index
    %c0_66 = arith.constant 0 : index
    %72 = vector.load %arg5[%c24, %c0_66] : memref<72x16xbf16, #tpu.memory_space<vmem>>, vector<8x16xbf16>
    %cst_67 = arith.constant dense<0.000000e+00> : vector<256x16xf32>
    %73 = tpu.matmul %71, %72, %cst_67 {dimension_numbers = #tpu.dot_dimension_numbers<[1], [0], [0], [1], [0, 0, 1, 1], [], []>} : vector<256x8xbf16>, vector<8x16xbf16>, vector<256x16xf32> -> vector<256x16xf32>
    %74 = arith.addf %69, %73 : vector<256x16xf32>
    %c1_68 = arith.constant 1 : index
    %c1_69 = arith.constant 1 : index
    %c0_70 = arith.constant 0 : index
    %75 = vector.load %arg15[%c1_68, %c1_69, %c0_70] : memref<18x18x8xbf16, #tpu.memory_space<vmem>>, vector<16x16x8xbf16>
    %76 = vector.shape_cast %75 : vector<16x16x8xbf16> to vector<256x8xbf16>
    %c32 = arith.constant 32 : index
    %c0_71 = arith.constant 0 : index
    %77 = vector.load %arg5[%c32, %c0_71] : memref<72x16xbf16, #tpu.memory_space<vmem>>, vector<8x16xbf16>
    %cst_72 = arith.constant dense<0.000000e+00> : vector<256x16xf32>
    %78 = tpu.matmul %76, %77, %cst_72 {dimension_numbers = #tpu.dot_dimension_numbers<[1], [0], [0], [1], [0, 0, 1, 1], [], []>} : vector<256x8xbf16>, vector<8x16xbf16>, vector<256x16xf32> -> vector<256x16xf32>
    %79 = arith.addf %74, %78 : vector<256x16xf32>
    %c1_73 = arith.constant 1 : index
    %c2_74 = arith.constant 2 : index
    %c0_75 = arith.constant 0 : index
    %80 = vector.load %arg15[%c1_73, %c2_74, %c0_75] : memref<18x18x8xbf16, #tpu.memory_space<vmem>>, vector<16x16x8xbf16>
    %81 = vector.shape_cast %80 : vector<16x16x8xbf16> to vector<256x8xbf16>
    %c40 = arith.constant 40 : index
    %c0_76 = arith.constant 0 : index
    %82 = vector.load %arg5[%c40, %c0_76] : memref<72x16xbf16, #tpu.memory_space<vmem>>, vector<8x16xbf16>
    %cst_77 = arith.constant dense<0.000000e+00> : vector<256x16xf32>
    %83 = tpu.matmul %81, %82, %cst_77 {dimension_numbers = #tpu.dot_dimension_numbers<[1], [0], [0], [1], [0, 0, 1, 1], [], []>} : vector<256x8xbf16>, vector<8x16xbf16>, vector<256x16xf32> -> vector<256x16xf32>
    %84 = arith.addf %79, %83 : vector<256x16xf32>
    %c2_78 = arith.constant 2 : index
    %c0_79 = arith.constant 0 : index
    %c0_80 = arith.constant 0 : index
    %85 = vector.load %arg15[%c2_78, %c0_79, %c0_80] : memref<18x18x8xbf16, #tpu.memory_space<vmem>>, vector<16x16x8xbf16>
    %86 = vector.shape_cast %85 : vector<16x16x8xbf16> to vector<256x8xbf16>
    %c48 = arith.constant 48 : index
    %c0_81 = arith.constant 0 : index
    %87 = vector.load %arg5[%c48, %c0_81] : memref<72x16xbf16, #tpu.memory_space<vmem>>, vector<8x16xbf16>
    %cst_82 = arith.constant dense<0.000000e+00> : vector<256x16xf32>
    %88 = tpu.matmul %86, %87, %cst_82 {dimension_numbers = #tpu.dot_dimension_numbers<[1], [0], [0], [1], [0, 0, 1, 1], [], []>} : vector<256x8xbf16>, vector<8x16xbf16>, vector<256x16xf32> -> vector<256x16xf32>
    %89 = arith.addf %84, %88 : vector<256x16xf32>
    %c2_83 = arith.constant 2 : index
    %c1_84 = arith.constant 1 : index
    %c0_85 = arith.constant 0 : index
    %90 = vector.load %arg15[%c2_83, %c1_84, %c0_85] : memref<18x18x8xbf16, #tpu.memory_space<vmem>>, vector<16x16x8xbf16>
    %91 = vector.shape_cast %90 : vector<16x16x8xbf16> to vector<256x8xbf16>
    %c56 = arith.constant 56 : index
    %c0_86 = arith.constant 0 : index
    %92 = vector.load %arg5[%c56, %c0_86] : memref<72x16xbf16, #tpu.memory_space<vmem>>, vector<8x16xbf16>
    %cst_87 = arith.constant dense<0.000000e+00> : vector<256x16xf32>
    %93 = tpu.matmul %91, %92, %cst_87 {dimension_numbers = #tpu.dot_dimension_numbers<[1], [0], [0], [1], [0, 0, 1, 1], [], []>} : vector<256x8xbf16>, vector<8x16xbf16>, vector<256x16xf32> -> vector<256x16xf32>
    %94 = arith.addf %89, %93 : vector<256x16xf32>
    %c2_88 = arith.constant 2 : index
    %c2_89 = arith.constant 2 : index
    %c0_90 = arith.constant 0 : index
    %95 = vector.load %arg15[%c2_88, %c2_89, %c0_90] : memref<18x18x8xbf16, #tpu.memory_space<vmem>>, vector<16x16x8xbf16>
    %96 = vector.shape_cast %95 : vector<16x16x8xbf16> to vector<256x8xbf16>
    %c64 = arith.constant 64 : index
    %c0_91 = arith.constant 0 : index
    %97 = vector.load %arg5[%c64, %c0_91] : memref<72x16xbf16, #tpu.memory_space<vmem>>, vector<8x16xbf16>
    %cst_92 = arith.constant dense<0.000000e+00> : vector<256x16xf32>
    %98 = tpu.matmul %96, %97, %cst_92 {dimension_numbers = #tpu.dot_dimension_numbers<[1], [0], [0], [1], [0, 0, 1, 1], [], []>} : vector<256x8xbf16>, vector<8x16xbf16>, vector<256x16xf32> -> vector<256x16xf32>
    %99 = arith.addf %94, %98 : vector<256x16xf32>
    %c0_93 = arith.constant 0 : index
    %c0_94 = arith.constant 0 : index
    %100 = vector.load %arg6[%c0_93, %c0_94] : memref<1x16xf32, #tpu.memory_space<vmem>>, vector<1x16xf32>
    %101 = vector.broadcast %100 : vector<1x16xf32> to vector<256x16xf32>
    %102 = arith.addf %99, %101 : vector<256x16xf32>
    %c0_95 = arith.constant 0 : index
    %c0_96 = arith.constant 0 : index
    %103 = vector.load %arg7[%c0_95, %c0_96] : memref<16x16xf32, #tpu.memory_space<vmem>>, vector<16x16xf32>
    %c0_97 = arith.constant 0 : index
    %c0_98 = arith.constant 0 : index
    %104 = vector.load %arg8[%c0_97, %c0_98] : memref<1x16xf32, #tpu.memory_space<vmem>>, vector<1x16xf32>
    %c0_99 = arith.constant 0 : index
    %c0_100 = arith.constant 0 : index
    %105 = vector.load %arg9[%c0_99, %c0_100] : memref<1x16xf32, #tpu.memory_space<vmem>>, vector<1x16xf32>
    %cst_101 = arith.constant dense<0.000000e+00> : vector<16xf32>
    %106 = vector.multi_reduction <add>, %102, %cst_101 [0] : vector<256x16xf32> to vector<16xf32>
    %107 = vector.shape_cast %106 : vector<16xf32> to vector<1x16xf32>
    %108 = arith.mulf %102, %102 : vector<256x16xf32>
    %cst_102 = arith.constant dense<0.000000e+00> : vector<16xf32>
    %109 = vector.multi_reduction <add>, %108, %cst_102 [0] : vector<256x16xf32> to vector<16xf32>
    %110 = vector.shape_cast %109 : vector<16xf32> to vector<1x16xf32>
    %111 = tpu.concatenate %107, %110 in 0 : vector<1x16xf32>, vector<1x16xf32> -> vector<2x16xf32>
    %cst_103 = arith.constant dense<0.000000e+00> : vector<2x16xf32>
    %112 = tpu.matmul %111, %103, %cst_103 {dimension_numbers = #tpu.dot_dimension_numbers<[1], [0], [0], [1], [0, 0, 1, 1], [], []>} : vector<2x16xf32>, vector<16x16xf32>, vector<2x16xf32> -> vector<2x16xf32>
    %cst_104 = arith.constant 9.765625E-4 : f32
    %113 = vector.broadcast %cst_104 : f32 to vector<2x16xf32>
    %114 = arith.mulf %112, %113 : vector<2x16xf32>
    %115 = vector.extract_strided_slice %114 {offsets = [0, 0], sizes = [1, 16], strides = [1, 1]} : vector<2x16xf32> to vector<1x16xf32>
    %116 = vector.extract_strided_slice %114 {offsets = [1, 0], sizes = [1, 16], strides = [1, 1]} : vector<2x16xf32> to vector<1x16xf32>
    %117 = arith.mulf %115, %115 : vector<1x16xf32>
    %118 = arith.subf %116, %117 : vector<1x16xf32>
    %cst_105 = arith.constant 0.000000e+00 : f32
    %119 = vector.broadcast %cst_105 : f32 to vector<1x16xf32>
    %120 = arith.maximumf %118, %119 : vector<1x16xf32>
    %cst_106 = arith.constant 9.99999974E-6 : f32
    %121 = vector.broadcast %cst_106 : f32 to vector<1x16xf32>
    %122 = arith.addf %120, %121 : vector<1x16xf32>
    %123 = math.rsqrt %122 : vector<1x16xf32>
    %124 = vector.broadcast %115 : vector<1x16xf32> to vector<256x16xf32>
    %125 = arith.subf %102, %124 : vector<256x16xf32>
    %126 = arith.mulf %123, %104 : vector<1x16xf32>
    %127 = vector.broadcast %126 : vector<1x16xf32> to vector<256x16xf32>
    %128 = arith.mulf %125, %127 : vector<256x16xf32>
    %129 = vector.broadcast %105 : vector<1x16xf32> to vector<256x16xf32>
    %130 = arith.addf %128, %129 : vector<256x16xf32>
    %131 = arith.negf %130 : vector<256x16xf32>
    %132 = math.exp %131 : vector<256x16xf32>
    %cst_107 = arith.constant 1.000000e+00 : f32
    %133 = vector.broadcast %cst_107 : f32 to vector<256x16xf32>
    %134 = arith.addf %133, %132 : vector<256x16xf32>
    %135 = arith.divf %133, %134 : vector<256x16xf32>
    %136 = arith.mulf %130, %135 : vector<256x16xf32>
    %137 = vector.shape_cast %136 : vector<256x16xf32> to vector<16x16x16xf32>
    %138 = arith.truncf %137 : vector<16x16x16xf32> to vector<16x16x16xbf16>
    %c1_108 = arith.constant 1 : index
    %c1_109 = arith.constant 1 : index
    %c0_110 = arith.constant 0 : index
    %139 = vector.load %arg16[%c1_108, %c1_109, %c0_110] : memref<18x18x16xbf16, #tpu.memory_space<vmem>>, vector<16x16x16xbf16>
    tpu.vector_store %arg16[%c1_108, %c1_109, %c0_110], %138 {strides = array<i32>} : memref<18x18x16xbf16, #tpu.memory_space<vmem>>, vector<16x16x16xbf16>,
    %c0_111 = arith.constant 0 : index
    %c0_112 = arith.constant 0 : index
    %c0_113 = arith.constant 0 : index
    %140 = vector.load %arg16[%c0_111, %c0_112, %c0_113] : memref<18x18x16xbf16, #tpu.memory_space<vmem>>, vector<16x16x16xbf16>
    %141 = vector.shape_cast %140 : vector<16x16x16xbf16> to vector<256x16xbf16>
    %c0_114 = arith.constant 0 : index
    %c0_115 = arith.constant 0 : index
    %142 = vector.load %arg10[%c0_114, %c0_115] : memref<144x16xbf16, #tpu.memory_space<vmem>>, vector<16x16xbf16>
    %cst_116 = arith.constant dense<0.000000e+00> : vector<256x16xf32>
    %143 = tpu.matmul %141, %142, %cst_116 {dimension_numbers = #tpu.dot_dimension_numbers<[1], [0], [0], [1], [0, 0, 1, 1], [], []>} : vector<256x16xbf16>, vector<16x16xbf16>, vector<256x16xf32> -> vector<256x16xf32>
    %c0_117 = arith.constant 0 : index
    %c1_118 = arith.constant 1 : index
    %c0_119 = arith.constant 0 : index
    %144 = vector.load %arg16[%c0_117, %c1_118, %c0_119] : memref<18x18x16xbf16, #tpu.memory_space<vmem>>, vector<16x16x16xbf16>
    %145 = vector.shape_cast %144 : vector<16x16x16xbf16> to vector<256x16xbf16>
    %c16_120 = arith.constant 16 : index
    %c0_121 = arith.constant 0 : index
    %146 = vector.load %arg10[%c16_120, %c0_121] : memref<144x16xbf16, #tpu.memory_space<vmem>>, vector<16x16xbf16>
    %cst_122 = arith.constant dense<0.000000e+00> : vector<256x16xf32>
    %147 = tpu.matmul %145, %146, %cst_122 {dimension_numbers = #tpu.dot_dimension_numbers<[1], [0], [0], [1], [0, 0, 1, 1], [], []>} : vector<256x16xbf16>, vector<16x16xbf16>, vector<256x16xf32> -> vector<256x16xf32>
    %148 = arith.addf %143, %147 : vector<256x16xf32>
    %c0_123 = arith.constant 0 : index
    %c2_124 = arith.constant 2 : index
    %c0_125 = arith.constant 0 : index
    %149 = vector.load %arg16[%c0_123, %c2_124, %c0_125] : memref<18x18x16xbf16, #tpu.memory_space<vmem>>, vector<16x16x16xbf16>
    %150 = vector.shape_cast %149 : vector<16x16x16xbf16> to vector<256x16xbf16>
    %c32_126 = arith.constant 32 : index
    %c0_127 = arith.constant 0 : index
    %151 = vector.load %arg10[%c32_126, %c0_127] : memref<144x16xbf16, #tpu.memory_space<vmem>>, vector<16x16xbf16>
    %cst_128 = arith.constant dense<0.000000e+00> : vector<256x16xf32>
    %152 = tpu.matmul %150, %151, %cst_128 {dimension_numbers = #tpu.dot_dimension_numbers<[1], [0], [0], [1], [0, 0, 1, 1], [], []>} : vector<256x16xbf16>, vector<16x16xbf16>, vector<256x16xf32> -> vector<256x16xf32>
    %153 = arith.addf %148, %152 : vector<256x16xf32>
    %c1_129 = arith.constant 1 : index
    %c0_130 = arith.constant 0 : index
    %c0_131 = arith.constant 0 : index
    %154 = vector.load %arg16[%c1_129, %c0_130, %c0_131] : memref<18x18x16xbf16, #tpu.memory_space<vmem>>, vector<16x16x16xbf16>
    %155 = vector.shape_cast %154 : vector<16x16x16xbf16> to vector<256x16xbf16>
    %c48_132 = arith.constant 48 : index
    %c0_133 = arith.constant 0 : index
    %156 = vector.load %arg10[%c48_132, %c0_133] : memref<144x16xbf16, #tpu.memory_space<vmem>>, vector<16x16xbf16>
    %cst_134 = arith.constant dense<0.000000e+00> : vector<256x16xf32>
    %157 = tpu.matmul %155, %156, %cst_134 {dimension_numbers = #tpu.dot_dimension_numbers<[1], [0], [0], [1], [0, 0, 1, 1], [], []>} : vector<256x16xbf16>, vector<16x16xbf16>, vector<256x16xf32> -> vector<256x16xf32>
    %158 = arith.addf %153, %157 : vector<256x16xf32>
    %c1_135 = arith.constant 1 : index
    %c1_136 = arith.constant 1 : index
    %c0_137 = arith.constant 0 : index
    %159 = vector.load %arg16[%c1_135, %c1_136, %c0_137] : memref<18x18x16xbf16, #tpu.memory_space<vmem>>, vector<16x16x16xbf16>
    %160 = vector.shape_cast %159 : vector<16x16x16xbf16> to vector<256x16xbf16>
    %c64_138 = arith.constant 64 : index
    %c0_139 = arith.constant 0 : index
    %161 = vector.load %arg10[%c64_138, %c0_139] : memref<144x16xbf16, #tpu.memory_space<vmem>>, vector<16x16xbf16>
    %cst_140 = arith.constant dense<0.000000e+00> : vector<256x16xf32>
    %162 = tpu.matmul %160, %161, %cst_140 {dimension_numbers = #tpu.dot_dimension_numbers<[1], [0], [0], [1], [0, 0, 1, 1], [], []>} : vector<256x16xbf16>, vector<16x16xbf16>, vector<256x16xf32> -> vector<256x16xf32>
    %163 = arith.addf %158, %162 : vector<256x16xf32>
    %c1_141 = arith.constant 1 : index
    %c2_142 = arith.constant 2 : index
    %c0_143 = arith.constant 0 : index
    %164 = vector.load %arg16[%c1_141, %c2_142, %c0_143] : memref<18x18x16xbf16, #tpu.memory_space<vmem>>, vector<16x16x16xbf16>
    %165 = vector.shape_cast %164 : vector<16x16x16xbf16> to vector<256x16xbf16>
    %c80 = arith.constant 80 : index
    %c0_144 = arith.constant 0 : index
    %166 = vector.load %arg10[%c80, %c0_144] : memref<144x16xbf16, #tpu.memory_space<vmem>>, vector<16x16xbf16>
    %cst_145 = arith.constant dense<0.000000e+00> : vector<256x16xf32>
    %167 = tpu.matmul %165, %166, %cst_145 {dimension_numbers = #tpu.dot_dimension_numbers<[1], [0], [0], [1], [0, 0, 1, 1], [], []>} : vector<256x16xbf16>, vector<16x16xbf16>, vector<256x16xf32> -> vector<256x16xf32>
    %168 = arith.addf %163, %167 : vector<256x16xf32>
    %c2_146 = arith.constant 2 : index
    %c0_147 = arith.constant 0 : index
    %c0_148 = arith.constant 0 : index
    %169 = vector.load %arg16[%c2_146, %c0_147, %c0_148] : memref<18x18x16xbf16, #tpu.memory_space<vmem>>, vector<16x16x16xbf16>
    %170 = vector.shape_cast %169 : vector<16x16x16xbf16> to vector<256x16xbf16>
    %c96 = arith.constant 96 : index
    %c0_149 = arith.constant 0 : index
    %171 = vector.load %arg10[%c96, %c0_149] : memref<144x16xbf16, #tpu.memory_space<vmem>>, vector<16x16xbf16>
    %cst_150 = arith.constant dense<0.000000e+00> : vector<256x16xf32>
    %172 = tpu.matmul %170, %171, %cst_150 {dimension_numbers = #tpu.dot_dimension_numbers<[1], [0], [0], [1], [0, 0, 1, 1], [], []>} : vector<256x16xbf16>, vector<16x16xbf16>, vector<256x16xf32> -> vector<256x16xf32>
    %173 = arith.addf %168, %172 : vector<256x16xf32>
    %c2_151 = arith.constant 2 : index
    %c1_152 = arith.constant 1 : index
    %c0_153 = arith.constant 0 : index
    %174 = vector.load %arg16[%c2_151, %c1_152, %c0_153] : memref<18x18x16xbf16, #tpu.memory_space<vmem>>, vector<16x16x16xbf16>
    %175 = vector.shape_cast %174 : vector<16x16x16xbf16> to vector<256x16xbf16>
    %c112 = arith.constant 112 : index
    %c0_154 = arith.constant 0 : index
    %176 = vector.load %arg10[%c112, %c0_154] : memref<144x16xbf16, #tpu.memory_space<vmem>>, vector<16x16xbf16>
    %cst_155 = arith.constant dense<0.000000e+00> : vector<256x16xf32>
    %177 = tpu.matmul %175, %176, %cst_155 {dimension_numbers = #tpu.dot_dimension_numbers<[1], [0], [0], [1], [0, 0, 1, 1], [], []>} : vector<256x16xbf16>, vector<16x16xbf16>, vector<256x16xf32> -> vector<256x16xf32>
    %178 = arith.addf %173, %177 : vector<256x16xf32>
    %c2_156 = arith.constant 2 : index
    %c2_157 = arith.constant 2 : index
    %c0_158 = arith.constant 0 : index
    %179 = vector.load %arg16[%c2_156, %c2_157, %c0_158] : memref<18x18x16xbf16, #tpu.memory_space<vmem>>, vector<16x16x16xbf16>
    %180 = vector.shape_cast %179 : vector<16x16x16xbf16> to vector<256x16xbf16>
    %c128 = arith.constant 128 : index
    %c0_159 = arith.constant 0 : index
    %181 = vector.load %arg10[%c128, %c0_159] : memref<144x16xbf16, #tpu.memory_space<vmem>>, vector<16x16xbf16>
    %cst_160 = arith.constant dense<0.000000e+00> : vector<256x16xf32>
    %182 = tpu.matmul %180, %181, %cst_160 {dimension_numbers = #tpu.dot_dimension_numbers<[1], [0], [0], [1], [0, 0, 1, 1], [], []>} : vector<256x16xbf16>, vector<16x16xbf16>, vector<256x16xf32> -> vector<256x16xf32>
    %183 = arith.addf %178, %182 : vector<256x16xf32>
    %c0_161 = arith.constant 0 : index
    %c0_162 = arith.constant 0 : index
    %184 = vector.load %arg11[%c0_161, %c0_162] : memref<1x16xf32, #tpu.memory_space<vmem>>, vector<1x16xf32>
    %185 = vector.broadcast %184 : vector<1x16xf32> to vector<256x16xf32>
    %186 = arith.addf %183, %185 : vector<256x16xf32>
    %187 = arith.truncf %18 : vector<256x8xf32> to vector<256x8xbf16>
    %c0_163 = arith.constant 0 : index
    %c0_164 = arith.constant 0 : index
    %188 = vector.load %arg12[%c0_163, %c0_164] : memref<8x16xbf16, #tpu.memory_space<vmem>>, vector<8x16xbf16>
    %cst_165 = arith.constant dense<0.000000e+00> : vector<256x16xf32>
    %189 = tpu.matmul %187, %188, %cst_165 {dimension_numbers = #tpu.dot_dimension_numbers<[1], [0], [0], [1], [0, 0, 1, 1], [], []>} : vector<256x8xbf16>, vector<8x16xbf16>, vector<256x16xf32> -> vector<256x16xf32>
    %c0_166 = arith.constant 0 : index
    %c0_167 = arith.constant 0 : index
    %190 = vector.load %arg13[%c0_166, %c0_167] : memref<1x16xf32, #tpu.memory_space<vmem>>, vector<1x16xf32>
    %191 = vector.broadcast %190 : vector<1x16xf32> to vector<256x16xf32>
    %192 = arith.addf %189, %191 : vector<256x16xf32>
    %193 = arith.addf %186, %192 : vector<256x16xf32>
    %cst_168 = arith.constant 0.707106769 : f32
    %194 = vector.broadcast %cst_168 : f32 to vector<256x16xf32>
    %195 = arith.mulf %193, %194 : vector<256x16xf32>
    %196 = vector.shape_cast %195 : vector<256x16xf32> to vector<16x16x16xf32>
    %197 = vector.extract_strided_slice %196 {offsets = [0, 0, 0], sizes = [16, 1, 16], strides = [1, 1, 1]} : vector<16x16x16xf32> to vector<16x1x16xf32>
    %198 = vector.shape_cast %197 : vector<16x1x16xf32> to vector<16x16xf32>
    %c0_169 = arith.constant 0 : index
    %c0_170 = arith.constant 0 : index
    %c0_171 = arith.constant 0 : index
    %199 = vector.load %arg14[%c0_169, %c0_170, %c0_171] : memref<1x16x256xf32, #tpu.memory_space<vmem>>, vector<1x16x16xf32>
    %200 = vector.shape_cast %199 : vector<1x16x16xf32> to vector<16x16xf32>
    %201 = vector.shape_cast %198 : vector<16x16xf32> to vector<1x16x16xf32>
    tpu.vector_store %arg14[%c0_169, %c0_170, %c0_171], %201 {strides = array<i32>} : memref<1x16x256xf32, #tpu.memory_space<vmem>>, vector<1x16x16xf32>,
    %202 = vector.extract_strided_slice %196 {offsets = [0, 1, 0], sizes = [16, 1, 16], strides = [1, 1, 1]} : vector<16x16x16xf32> to vector<16x1x16xf32>
    %203 = vector.shape_cast %202 : vector<16x1x16xf32> to vector<16x16xf32>
    %c0_172 = arith.constant 0 : index
    %c0_173 = arith.constant 0 : index
    %c16_174 = arith.constant 16 : index
    %204 = vector.load %arg14[%c0_172, %c0_173, %c16_174] : memref<1x16x256xf32, #tpu.memory_space<vmem>>, vector<1x16x16xf32>
    %205 = vector.shape_cast %204 : vector<1x16x16xf32> to vector<16x16xf32>
    %206 = vector.shape_cast %203 : vector<16x16xf32> to vector<1x16x16xf32>
    tpu.vector_store %arg14[%c0_172, %c0_173, %c16_174], %206 {strides = array<i32>} : memref<1x16x256xf32, #tpu.memory_space<vmem>>, vector<1x16x16xf32>,
    %207 = vector.extract_strided_slice %196 {offsets = [0, 2, 0], sizes = [16, 1, 16], strides = [1, 1, 1]} : vector<16x16x16xf32> to vector<16x1x16xf32>
    %208 = vector.shape_cast %207 : vector<16x1x16xf32> to vector<16x16xf32>
    %c0_175 = arith.constant 0 : index
    %c0_176 = arith.constant 0 : index
    %c32_177 = arith.constant 32 : index
    %209 = vector.load %arg14[%c0_175, %c0_176, %c32_177] : memref<1x16x256xf32, #tpu.memory_space<vmem>>, vector<1x16x16xf32>
    %210 = vector.shape_cast %209 : vector<1x16x16xf32> to vector<16x16xf32>
    %211 = vector.shape_cast %208 : vector<16x16xf32> to vector<1x16x16xf32>
    tpu.vector_store %arg14[%c0_175, %c0_176, %c32_177], %211 {strides = array<i32>} : memref<1x16x256xf32, #tpu.memory_space<vmem>>, vector<1x16x16xf32>,
    %212 = vector.extract_strided_slice %196 {offsets = [0, 3, 0], sizes = [16, 1, 16], strides = [1, 1, 1]} : vector<16x16x16xf32> to vector<16x1x16xf32>
    %213 = vector.shape_cast %212 : vector<16x1x16xf32> to vector<16x16xf32>
    %c0_178 = arith.constant 0 : index
    %c0_179 = arith.constant 0 : index
    %c48_180 = arith.constant 48 : index
    %214 = vector.load %arg14[%c0_178, %c0_179, %c48_180] : memref<1x16x256xf32, #tpu.memory_space<vmem>>, vector<1x16x16xf32>
    %215 = vector.shape_cast %214 : vector<1x16x16xf32> to vector<16x16xf32>
    %216 = vector.shape_cast %213 : vector<16x16xf32> to vector<1x16x16xf32>
    tpu.vector_store %arg14[%c0_178, %c0_179, %c48_180], %216 {strides = array<i32>} : memref<1x16x256xf32, #tpu.memory_space<vmem>>, vector<1x16x16xf32>,
    %217 = vector.extract_strided_slice %196 {offsets = [0, 4, 0], sizes = [16, 1, 16], strides = [1, 1, 1]} : vector<16x16x16xf32> to vector<16x1x16xf32>
    %218 = vector.shape_cast %217 : vector<16x1x16xf32> to vector<16x16xf32>
    %c0_181 = arith.constant 0 : index
    %c0_182 = arith.constant 0 : index
    %c64_183 = arith.constant 64 : index
    %219 = vector.load %arg14[%c0_181, %c0_182, %c64_183] : memref<1x16x256xf32, #tpu.memory_space<vmem>>, vector<1x16x16xf32>
    %220 = vector.shape_cast %219 : vector<1x16x16xf32> to vector<16x16xf32>
    %221 = vector.shape_cast %218 : vector<16x16xf32> to vector<1x16x16xf32>
    tpu.vector_store %arg14[%c0_181, %c0_182, %c64_183], %221 {strides = array<i32>} : memref<1x16x256xf32, #tpu.memory_space<vmem>>, vector<1x16x16xf32>,
    %222 = vector.extract_strided_slice %196 {offsets = [0, 5, 0], sizes = [16, 1, 16], strides = [1, 1, 1]} : vector<16x16x16xf32> to vector<16x1x16xf32>
    %223 = vector.shape_cast %222 : vector<16x1x16xf32> to vector<16x16xf32>
    %c0_184 = arith.constant 0 : index
    %c0_185 = arith.constant 0 : index
    %c80_186 = arith.constant 80 : index
    %224 = vector.load %arg14[%c0_184, %c0_185, %c80_186] : memref<1x16x256xf32, #tpu.memory_space<vmem>>, vector<1x16x16xf32>
    %225 = vector.shape_cast %224 : vector<1x16x16xf32> to vector<16x16xf32>
    %226 = vector.shape_cast %223 : vector<16x16xf32> to vector<1x16x16xf32>
    tpu.vector_store %arg14[%c0_184, %c0_185, %c80_186], %226 {strides = array<i32>} : memref<1x16x256xf32, #tpu.memory_space<vmem>>, vector<1x16x16xf32>,
    %227 = vector.extract_strided_slice %196 {offsets = [0, 6, 0], sizes = [16, 1, 16], strides = [1, 1, 1]} : vector<16x16x16xf32> to vector<16x1x16xf32>
    %228 = vector.shape_cast %227 : vector<16x1x16xf32> to vector<16x16xf32>
    %c0_187 = arith.constant 0 : index
    %c0_188 = arith.constant 0 : index
    %c96_189 = arith.constant 96 : index
    %229 = vector.load %arg14[%c0_187, %c0_188, %c96_189] : memref<1x16x256xf32, #tpu.memory_space<vmem>>, vector<1x16x16xf32>
    %230 = vector.shape_cast %229 : vector<1x16x16xf32> to vector<16x16xf32>
    %231 = vector.shape_cast %228 : vector<16x16xf32> to vector<1x16x16xf32>
    tpu.vector_store %arg14[%c0_187, %c0_188, %c96_189], %231 {strides = array<i32>} : memref<1x16x256xf32, #tpu.memory_space<vmem>>, vector<1x16x16xf32>,
    %232 = vector.extract_strided_slice %196 {offsets = [0, 7, 0], sizes = [16, 1, 16], strides = [1, 1, 1]} : vector<16x16x16xf32> to vector<16x1x16xf32>
    %233 = vector.shape_cast %232 : vector<16x1x16xf32> to vector<16x16xf32>
    %c0_190 = arith.constant 0 : index
    %c0_191 = arith.constant 0 : index
    %c112_192 = arith.constant 112 : index
    %234 = vector.load %arg14[%c0_190, %c0_191, %c112_192] : memref<1x16x256xf32, #tpu.memory_space<vmem>>, vector<1x16x16xf32>
    %235 = vector.shape_cast %234 : vector<1x16x16xf32> to vector<16x16xf32>
    %236 = vector.shape_cast %233 : vector<16x16xf32> to vector<1x16x16xf32>
    tpu.vector_store %arg14[%c0_190, %c0_191, %c112_192], %236 {strides = array<i32>} : memref<1x16x256xf32, #tpu.memory_space<vmem>>, vector<1x16x16xf32>,
    %237 = vector.extract_strided_slice %196 {offsets = [0, 8, 0], sizes = [16, 1, 16], strides = [1, 1, 1]} : vector<16x16x16xf32> to vector<16x1x16xf32>
    %238 = vector.shape_cast %237 : vector<16x1x16xf32> to vector<16x16xf32>
    %c0_193 = arith.constant 0 : index
    %c0_194 = arith.constant 0 : index
    %c128_195 = arith.constant 128 : index
    %239 = vector.load %arg14[%c0_193, %c0_194, %c128_195] : memref<1x16x256xf32, #tpu.memory_space<vmem>>, vector<1x16x16xf32>
    %240 = vector.shape_cast %239 : vector<1x16x16xf32> to vector<16x16xf32>
    %241 = vector.shape_cast %238 : vector<16x16xf32> to vector<1x16x16xf32>
    tpu.vector_store %arg14[%c0_193, %c0_194, %c128_195], %241 {strides = array<i32>} : memref<1x16x256xf32, #tpu.memory_space<vmem>>, vector<1x16x16xf32>,
    %242 = vector.extract_strided_slice %196 {offsets = [0, 9, 0], sizes = [16, 1, 16], strides = [1, 1, 1]} : vector<16x16x16xf32> to vector<16x1x16xf32>
    %243 = vector.shape_cast %242 : vector<16x1x16xf32> to vector<16x16xf32>
    %c0_196 = arith.constant 0 : index
    %c0_197 = arith.constant 0 : index
    %c144 = arith.constant 144 : index
    %244 = vector.load %arg14[%c0_196, %c0_197, %c144] : memref<1x16x256xf32, #tpu.memory_space<vmem>>, vector<1x16x16xf32>
    %245 = vector.shape_cast %244 : vector<1x16x16xf32> to vector<16x16xf32>
    %246 = vector.shape_cast %243 : vector<16x16xf32> to vector<1x16x16xf32>
    tpu.vector_store %arg14[%c0_196, %c0_197, %c144], %246 {strides = array<i32>} : memref<1x16x256xf32, #tpu.memory_space<vmem>>, vector<1x16x16xf32>,
    %247 = vector.extract_strided_slice %196 {offsets = [0, 10, 0], sizes = [16, 1, 16], strides = [1, 1, 1]} : vector<16x16x16xf32> to vector<16x1x16xf32>
    %248 = vector.shape_cast %247 : vector<16x1x16xf32> to vector<16x16xf32>
    %c0_198 = arith.constant 0 : index
    %c0_199 = arith.constant 0 : index
    %c160 = arith.constant 160 : index
    %249 = vector.load %arg14[%c0_198, %c0_199, %c160] : memref<1x16x256xf32, #tpu.memory_space<vmem>>, vector<1x16x16xf32>
    %250 = vector.shape_cast %249 : vector<1x16x16xf32> to vector<16x16xf32>
    %251 = vector.shape_cast %248 : vector<16x16xf32> to vector<1x16x16xf32>
    tpu.vector_store %arg14[%c0_198, %c0_199, %c160], %251 {strides = array<i32>} : memref<1x16x256xf32, #tpu.memory_space<vmem>>, vector<1x16x16xf32>,
    %252 = vector.extract_strided_slice %196 {offsets = [0, 11, 0], sizes = [16, 1, 16], strides = [1, 1, 1]} : vector<16x16x16xf32> to vector<16x1x16xf32>
    %253 = vector.shape_cast %252 : vector<16x1x16xf32> to vector<16x16xf32>
    %c0_200 = arith.constant 0 : index
    %c0_201 = arith.constant 0 : index
    %c176 = arith.constant 176 : index
    %254 = vector.load %arg14[%c0_200, %c0_201, %c176] : memref<1x16x256xf32, #tpu.memory_space<vmem>>, vector<1x16x16xf32>
    %255 = vector.shape_cast %254 : vector<1x16x16xf32> to vector<16x16xf32>
    %256 = vector.shape_cast %253 : vector<16x16xf32> to vector<1x16x16xf32>
    tpu.vector_store %arg14[%c0_200, %c0_201, %c176], %256 {strides = array<i32>} : memref<1x16x256xf32, #tpu.memory_space<vmem>>, vector<1x16x16xf32>,
    %257 = vector.extract_strided_slice %196 {offsets = [0, 12, 0], sizes = [16, 1, 16], strides = [1, 1, 1]} : vector<16x16x16xf32> to vector<16x1x16xf32>
    %258 = vector.shape_cast %257 : vector<16x1x16xf32> to vector<16x16xf32>
    %c0_202 = arith.constant 0 : index
    %c0_203 = arith.constant 0 : index
    %c192 = arith.constant 192 : index
    %259 = vector.load %arg14[%c0_202, %c0_203, %c192] : memref<1x16x256xf32, #tpu.memory_space<vmem>>, vector<1x16x16xf32>
    %260 = vector.shape_cast %259 : vector<1x16x16xf32> to vector<16x16xf32>
    %261 = vector.shape_cast %258 : vector<16x16xf32> to vector<1x16x16xf32>
    tpu.vector_store %arg14[%c0_202, %c0_203, %c192], %261 {strides = array<i32>} : memref<1x16x256xf32, #tpu.memory_space<vmem>>, vector<1x16x16xf32>,
    %262 = vector.extract_strided_slice %196 {offsets = [0, 13, 0], sizes = [16, 1, 16], strides = [1, 1, 1]} : vector<16x16x16xf32> to vector<16x1x16xf32>
    %263 = vector.shape_cast %262 : vector<16x1x16xf32> to vector<16x16xf32>
    %c0_204 = arith.constant 0 : index
    %c0_205 = arith.constant 0 : index
    %c208 = arith.constant 208 : index
    %264 = vector.load %arg14[%c0_204, %c0_205, %c208] : memref<1x16x256xf32, #tpu.memory_space<vmem>>, vector<1x16x16xf32>
    %265 = vector.shape_cast %264 : vector<1x16x16xf32> to vector<16x16xf32>
    %266 = vector.shape_cast %263 : vector<16x16xf32> to vector<1x16x16xf32>
    tpu.vector_store %arg14[%c0_204, %c0_205, %c208], %266 {strides = array<i32>} : memref<1x16x256xf32, #tpu.memory_space<vmem>>, vector<1x16x16xf32>,
    %267 = vector.extract_strided_slice %196 {offsets = [0, 14, 0], sizes = [16, 1, 16], strides = [1, 1, 1]} : vector<16x16x16xf32> to vector<16x1x16xf32>
    %268 = vector.shape_cast %267 : vector<16x1x16xf32> to vector<16x16xf32>
    %c0_206 = arith.constant 0 : index
    %c0_207 = arith.constant 0 : index
    %c224 = arith.constant 224 : index
    %269 = vector.load %arg14[%c0_206, %c0_207, %c224] : memref<1x16x256xf32, #tpu.memory_space<vmem>>, vector<1x16x16xf32>
    %270 = vector.shape_cast %269 : vector<1x16x16xf32> to vector<16x16xf32>
    %271 = vector.shape_cast %268 : vector<16x16xf32> to vector<1x16x16xf32>
    tpu.vector_store %arg14[%c0_206, %c0_207, %c224], %271 {strides = array<i32>} : memref<1x16x256xf32, #tpu.memory_space<vmem>>, vector<1x16x16xf32>,
    %272 = vector.extract_strided_slice %196 {offsets = [0, 15, 0], sizes = [16, 1, 16], strides = [1, 1, 1]} : vector<16x16x16xf32> to vector<16x1x16xf32>
    %273 = vector.shape_cast %272 : vector<16x1x16xf32> to vector<16x16xf32>
    %c0_208 = arith.constant 0 : index
    %c0_209 = arith.constant 0 : index
    %c240 = arith.constant 240 : index
    %274 = vector.load %arg14[%c0_208, %c0_209, %c240] : memref<1x16x256xf32, #tpu.memory_space<vmem>>, vector<1x16x16xf32>
    %275 = vector.shape_cast %274 : vector<1x16x16xf32> to vector<16x16xf32>
    %276 = vector.shape_cast %273 : vector<16x16xf32> to vector<1x16x16xf32>
    tpu.vector_store %arg14[%c0_208, %c0_209, %c240], %276 {strides = array<i32>} : memref<1x16x256xf32, #tpu.memory_space<vmem>>, vector<1x16x16xf32>,
    return
  }
  func.func @transform_0(%arg0: i32) -> (i32, i32, i32, i32) {
    %c0_i32 = arith.constant 0 : i32
    %c0_i32_0 = arith.constant 0 : i32
    %c0_i32_1 = arith.constant 0 : i32
    %c0_i32_2 = arith.constant 0 : i32
    return %arg0, %c0_i32, %c0_i32_0, %c0_i32_1 : i32, i32, i32, i32
  }
  func.func @transform_1(%arg0: i32) -> (i32, i32) {
    %c0_i32 = arith.constant 0 : i32
    %c0_i32_0 = arith.constant 0 : i32
    %c0_i32_1 = arith.constant 0 : i32
    return %c0_i32, %c0_i32_0 : i32, i32
  }
  func.func @transform_2(%arg0: i32) -> (i32, i32) {
    %c0_i32 = arith.constant 0 : i32
    %c0_i32_0 = arith.constant 0 : i32
    %c0_i32_1 = arith.constant 0 : i32
    return %c0_i32, %c0_i32_0 : i32, i32
  }
  func.func @transform_3(%arg0: i32) -> (i32, i32) {
    %c0_i32 = arith.constant 0 : i32
    %c0_i32_0 = arith.constant 0 : i32
    %c0_i32_1 = arith.constant 0 : i32
    return %c0_i32, %c0_i32_0 : i32, i32
  }
  func.func @transform_4(%arg0: i32) -> (i32, i32) {
    %c0_i32 = arith.constant 0 : i32
    %c0_i32_0 = arith.constant 0 : i32
    %c0_i32_1 = arith.constant 0 : i32
    return %c0_i32, %c0_i32_0 : i32, i32
  }
  func.func @transform_5(%arg0: i32) -> (i32, i32) {
    %c0_i32 = arith.constant 0 : i32
    %c0_i32_0 = arith.constant 0 : i32
    %c0_i32_1 = arith.constant 0 : i32
    return %c0_i32, %c0_i32_0 : i32, i32
  }
  func.func @transform_6(%arg0: i32) -> (i32, i32) {
    %c0_i32 = arith.constant 0 : i32
    %c0_i32_0 = arith.constant 0 : i32
    %c0_i32_1 = arith.constant 0 : i32
    return %c0_i32, %c0_i32_0 : i32, i32
  }
  func.func @transform_7(%arg0: i32) -> (i32, i32) {
    %c0_i32 = arith.constant 0 : i32
    %c0_i32_0 = arith.constant 0 : i32
    %c0_i32_1 = arith.constant 0 : i32
    return %c0_i32, %c0_i32_0 : i32, i32
  }
  func.func @transform_8(%arg0: i32) -> (i32, i32) {
    %c0_i32 = arith.constant 0 : i32
    %c0_i32_0 = arith.constant 0 : i32
    %c0_i32_1 = arith.constant 0 : i32
    return %c0_i32, %c0_i32_0 : i32, i32
  }
  func.func @transform_9(%arg0: i32) -> (i32, i32) {
    %c0_i32 = arith.constant 0 : i32
    %c0_i32_0 = arith.constant 0 : i32
    %c0_i32_1 = arith.constant 0 : i32
    return %c0_i32, %c0_i32_0 : i32, i32
  }
  func.func @transform_10(%arg0: i32) -> (i32, i32) {
    %c0_i32 = arith.constant 0 : i32
    %c0_i32_0 = arith.constant 0 : i32
    %c0_i32_1 = arith.constant 0 : i32
    return %c0_i32, %c0_i32_0 : i32, i32
  }
  func.func @transform_11(%arg0: i32) -> (i32, i32) {
    %c0_i32 = arith.constant 0 : i32
    %c0_i32_0 = arith.constant 0 : i32
    %c0_i32_1 = arith.constant 0 : i32
    return %c0_i32, %c0_i32_0 : i32, i32
  }
  func.func @transform_12(%arg0: i32) -> (i32, i32) {
    %c0_i32 = arith.constant 0 : i32
    %c0_i32_0 = arith.constant 0 : i32
    %c0_i32_1 = arith.constant 0 : i32
    return %c0_i32, %c0_i32_0 : i32, i32
  }
  func.func @transform_13(%arg0: i32) -> (i32, i32, i32) {
    %c0_i32 = arith.constant 0 : i32
    %c0_i32_0 = arith.constant 0 : i32
    %c0_i32_1 = arith.constant 0 : i32
    return %arg0, %c0_i32, %c0_i32_0 : i32, i32, i32
  }
}

</mosaic_0001>

<llo_original>
// kernel: tpu_custom_call.1
$region0: #{tpu_custom_call.1}
  #allocation0 [shape = 'u32[]', space=smem, size = 0x4, offset = 0x4, fixed_abs, tag = 'smem constant byte address 0x4 - core index']
  #allocation1 [shape = 'u32[72,128]{1,0:T(1,128)}', space=vmem, size = 0x9000, scoped, tag = 'internal scratch']
  #allocation2 [shape = 'bf16[18,18,8]{2,1,0:T(8,128)(2,1)}', space=vmem, size = 0x1b000, scoped, tag = 'scratch operand']
  #allocation3 [shape = 'bf16[18,18,16]{2,1,0:T(8,128)(2,1)}', space=vmem, size = 0x1b000, scoped, tag = 'scratch operand']
  %s0 = inlined_call_operand.vmem [shape: f32[2,16,16,8], index: 0, kind: input, shape index: {}]
  %s1 = inlined_call_operand.vmem [shape: f32[8,8], index: 1, kind: input, shape index: {}]
  %s2 = inlined_call_operand.vmem [shape: f32[1,8], index: 2, kind: input, shape index: {}]
  %s3 = inlined_call_operand.vmem [shape: f32[1,8], index: 3, kind: input, shape index: {}]
  %s4 = inlined_call_operand.vmem [shape: bf16[72,16], index: 4, kind: input, shape index: {}]
  %s5 = inlined_call_operand.vmem [shape: f32[1,16], index: 5, kind: input, shape index: {}]
  %s6 = inlined_call_operand.vmem [shape: f32[16,16], index: 6, kind: input, shape index: {}]
  %s7 = inlined_call_operand.vmem [shape: f32[1,16], index: 7, kind: input, shape index: {}]
  %s8 = inlined_call_operand.vmem [shape: f32[1,16], index: 8, kind: input, shape index: {}]
  %s9 = inlined_call_operand.vmem [shape: bf16[144,16], index: 9, kind: input, shape index: {}]
  %s10 = inlined_call_operand.vmem [shape: f32[1,16], index: 10, kind: input, shape index: {}]
  %s11 = inlined_call_operand.vmem [shape: bf16[8,16], index: 11, kind: input, shape index: {}]
  %s12 = inlined_call_operand.vmem [shape: f32[1,16], index: 12, kind: input, shape index: {}]
  %s13 = inlined_call_operand.hbm [shape: f32[2,16,256], index: 13, kind: output, shape index: {}]
  %s14 = sld [smem:[#allocation0]]
  $region85: #{tpu_custom_call.1} parent=0
    _
  %s16 = ssub.s32 1, %s14
  %s17 = scalar_select 0, %s16, %s14
  $region1: #{tpu_custom_call.1} parent=0
    #allocation4 [shape = 'u8[32768]{0}', space=vmem, size = 0x8000, scoped, tag = 'output window, operand 0']
    #allocation5 [shape = 's32[2]{0}', space=sflag, size = 0x8, scoped, tag = 'scoped memory for tpu_custom_call.1']
    %18 = vsyncpa [#allocation5], 0
    %s19 = scalar_lea.sflag [#allocation5], 1
    %20 = vsyncpa %s19, 0
    loop: start=0, step=1, limit=4
    $region2: #{tpu_custom_call.1} parent=1 // loop_pre_header
      _
    $region3: #{tpu_custom_call.1} parent=1 // loop_header
      %s22 = sphi 0, %s26
      %p23 = scmp.ge.s32.totalorder %s22, 4
      %s32 = sphi 0, %s34
      %s35 = sphi 0, %s32
      %s36 = sphi 0, %s35
      %s52 = sphi 0, %s36
      %s56 = sphi 0, %s56
      %s58 = sphi 0, %s56
      %s59 = sphi 0, %s58
      %s73 = sphi 0, %s59
      %s77 = sphi 0, %s77
      %s79 = sphi 0, %s77
      %s80 = sphi 0, %s79
      %s94 = sphi 0, %s80
      %s98 = sphi 0, %s98
      %s100 = sphi 0, %s98
      %s101 = sphi 0, %s100
      %s115 = sphi 0, %s101
      %s119 = sphi 0, %s119
      %s121 = sphi 0, %s119
      %s122 = sphi 0, %s121
      %s136 = sphi 0, %s122
      %s140 = sphi 0, %s140
      %s142 = sphi 0, %s140
      %s143 = sphi 0, %s142
      %s157 = sphi 0, %s143
      %s161 = sphi 0, %s161
      %s163 = sphi 0, %s161
      %s164 = sphi 0, %s163
      %s178 = sphi 0, %s164
      %s182 = sphi 0, %s182
      %s184 = sphi 0, %s182
      %s185 = sphi 0, %s184
      %s199 = sphi 0, %s185
      %s203 = sphi 0, %s203
      %s205 = sphi 0, %s203
      %s206 = sphi 0, %s205
      %s220 = sphi 0, %s206
      %s224 = sphi 0, %s224
      %s226 = sphi 0, %s224
      %s227 = sphi 0, %s226
      %s241 = sphi 0, %s227
      %s245 = sphi 0, %s245
      %s247 = sphi 0, %s245
      %s248 = sphi 0, %s247
      %s262 = sphi 0, %s248
      %s266 = sphi 0, %s266
      %s268 = sphi 0, %s266
      %s269 = sphi 0, %s268
      %s283 = sphi 0, %s269
      %s287 = sphi 0, %s287
      %s289 = sphi 0, %s287
      %s290 = sphi 0, %s289
      %s304 = sphi 0, %s290
      %s310 = sphi 0, %s312
      %s313 = sphi 0, %s310
      %s314 = sphi 0, %s313
      %s330 = sphi 0, %s314
    $region4: #{tpu_custom_call.1} parent=1 // loop_header_branch
      %25 = sbr.rel (%p23) target = $region8
    $region5: #{tpu_custom_call.1} parent=1 // loop_body
      %s27 = ssub.s32 %s22, 1
      %s28 = ssub.s32 %s22, 2
      %s29 = sadd.s32 %s22, 1
      %s30 = ssub.s32 %s22, %s29
      %p31 = scmp.eq.s32.totalorder %s30, 0
      %s33 = sadd.s32 %s32, 1
      %s34 = scalar_select %p31, %s32, %s33
      %p37 = pneg %p31
      %p38 = scmp.eq.s32.totalorder %s22, 1
      %p39 = por %p37, %p38
      %p40 = scmp.ne.s32.totalorder %s32, %s35
      %p41 = scmp.eq.s32.totalorder %s22, 0
      %p42 = por %p40, %p41
      %p43 = scmp.ne.s32.totalorder %s32, %s35
      %p44 = scmp.eq.s32.totalorder %s27, 1
      %p45 = por %p43, %p44
      %p46 = scmp.ne.s32.totalorder %s35, %s36
      %p47 = scmp.eq.s32.totalorder %s27, 0
      %p48 = por %p46, %p47
      %p49 = scmp.ne.s32.totalorder %s35, %s36
      %p50 = scmp.eq.s32.totalorder %s28, 1
      %p51 = por %p49, %p50
      %p53 = scmp.ne.s32.totalorder %s36, %s52
      %p54 = scmp.eq.s32.totalorder %s28, 0
      %p55 = por %p53, %p54
      %s57 = sadd.s32 %s56, 1
      %p60 = scmp.eq.s32.totalorder %s22, 1
      %p61 = scmp.ne.s32.totalorder %s56, %s58
      %p62 = scmp.eq.s32.totalorder %s22, 0
      %p63 = por %p61, %p62
      %p64 = scmp.ne.s32.totalorder %s56, %s58
      %p65 = scmp.eq.s32.totalorder %s27, 1
      %p66 = por %p64, %p65
      %p67 = scmp.ne.s32.totalorder %s58, %s59
      %p68 = scmp.eq.s32.totalorder %s27, 0
      %p69 = por %p67, %p68
      %p70 = scmp.ne.s32.totalorder %s58, %s59
      %p71 = scmp.eq.s32.totalorder %s28, 1
      %p72 = por %p70, %p71
      %p74 = scmp.ne.s32.totalorder %s59, %s73
      %p75 = scmp.eq.s32.totalorder %s28, 0
      %p76 = por %p74, %p75
      %s78 = sadd.s32 %s77, 1
      %p81 = scmp.eq.s32.totalorder %s22, 1
      %p82 = scmp.ne.s32.totalorder %s77, %s79
      %p83 = scmp.eq.s32.totalorder %s22, 0
      %p84 = por %p82, %p83
      %p85 = scmp.ne.s32.totalorder %s77, %s79
      %p86 = scmp.eq.s32.totalorder %s27, 1
      %p87 = por %p85, %p86
      %p88 = scmp.ne.s32.totalorder %s79, %s80
      %p89 = scmp.eq.s32.totalorder %s27, 0
      %p90 = por %p88, %p89
      %p91 = scmp.ne.s32.totalorder %s79, %s80
      %p92 = scmp.eq.s32.totalorder %s28, 1
      %p93 = por %p91, %p92
      %p95 = scmp.ne.s32.totalorder %s80, %s94
      %p96 = scmp.eq.s32.totalorder %s28, 0
      %p97 = por %p95, %p96
      %s99 = sadd.s32 %s98, 1
      %p102 = scmp.eq.s32.totalorder %s22, 1
      %p103 = scmp.ne.s32.totalorder %s98, %s100
      %p104 = scmp.eq.s32.totalorder %s22, 0
      %p105 = por %p103, %p104
      %p106 = scmp.ne.s32.totalorder %s98, %s100
      %p107 = scmp.eq.s32.totalorder %s27, 1
      %p108 = por %p106, %p107
      %p109 = scmp.ne.s32.totalorder %s100, %s101
      %p110 = scmp.eq.s32.totalorder %s27, 0
      %p111 = por %p109, %p110
      %p112 = scmp.ne.s32.totalorder %s100, %s101
      %p113 = scmp.eq.s32.totalorder %s28, 1
      %p114 = por %p112, %p113
      %p116 = scmp.ne.s32.totalorder %s101, %s115
      %p117 = scmp.eq.s32.totalorder %s28, 0
      %p118 = por %p116, %p117
      %s120 = sadd.s32 %s119, 1
      %p123 = scmp.eq.s32.totalorder %s22, 1
      %p124 = scmp.ne.s32.totalorder %s119, %s121
      %p125 = scmp.eq.s32.totalorder %s22, 0
      %p126 = por %p124, %p125
      %p127 = scmp.ne.s32.totalorder %s119, %s121
      %p128 = scmp.eq.s32.totalorder %s27, 1
      %p129 = por %p127, %p128
      %p130 = scmp.ne.s32.totalorder %s121, %s122
      %p131 = scmp.eq.s32.totalorder %s27, 0
      %p132 = por %p130, %p131
      %p133 = scmp.ne.s32.totalorder %s121, %s122
      %p134 = scmp.eq.s32.totalorder %s28, 1
      %p135 = por %p133, %p134
      %p137 = scmp.ne.s32.totalorder %s122, %s136
      %p138 = scmp.eq.s32.totalorder %s28, 0
      %p139 = por %p137, %p138
      %s141 = sadd.s32 %s140, 1
      %p144 = scmp.eq.s32.totalorder %s22, 1
      %p145 = scmp.ne.s32.totalorder %s140, %s142
      %p146 = scmp.eq.s32.totalorder %s22, 0
      %p147 = por %p145, %p146
      %p148 = scmp.ne.s32.totalorder %s140, %s142
      %p149 = scmp.eq.s32.totalorder %s27, 1
      %p150 = por %p148, %p149
      %p151 = scmp.ne.s32.totalorder %s142, %s143
      %p152 = scmp.eq.s32.totalorder %s27, 0
      %p153 = por %p151, %p152
      %p154 = scmp.ne.s32.totalorder %s142, %s143
      %p155 = scmp.eq.s32.totalorder %s28, 1
      %p156 = por %p154, %p155
      %p158 = scmp.ne.s32.totalorder %s143, %s157
      %p159 = scmp.eq.s32.totalorder %s28, 0
      %p160 = por %p158, %p159
      %s162 = sadd.s32 %s161, 1
      %p165 = scmp.eq.s32.totalorder %s22, 1
      %p166 = scmp.ne.s32.totalorder %s161, %s163
      %p167 = scmp.eq.s32.totalorder %s22, 0
      %p168 = por %p166, %p167
      %p169 = scmp.ne.s32.totalorder %s161, %s163
      %p170 = scmp.eq.s32.totalorder %s27, 1
      %p171 = por %p169, %p170
      %p172 = scmp.ne.s32.totalorder %s163, %s164
      %p173 = scmp.eq.s32.totalorder %s27, 0
      %p174 = por %p172, %p173
      %p175 = scmp.ne.s32.totalorder %s163, %s164
      %p176 = scmp.eq.s32.totalorder %s28, 1
      %p177 = por %p175, %p176
      %p179 = scmp.ne.s32.totalorder %s164, %s178
      %p180 = scmp.eq.s32.totalorder %s28, 0
      %p181 = por %p179, %p180
      %s183 = sadd.s32 %s182, 1
      %p186 = scmp.eq.s32.totalorder %s22, 1
      %p187 = scmp.ne.s32.totalorder %s182, %s184
      %p188 = scmp.eq.s32.totalorder %s22, 0
      %p189 = por %p187, %p188
      %p190 = scmp.ne.s32.totalorder %s182, %s184
      %p191 = scmp.eq.s32.totalorder %s27, 1
      %p192 = por %p190, %p191
      %p193 = scmp.ne.s32.totalorder %s184, %s185
      %p194 = scmp.eq.s32.totalorder %s27, 0
      %p195 = por %p193, %p194
      %p196 = scmp.ne.s32.totalorder %s184, %s185
      %p197 = scmp.eq.s32.totalorder %s28, 1
      %p198 = por %p196, %p197
      %p200 = scmp.ne.s32.totalorder %s185, %s199
      %p201 = scmp.eq.s32.totalorder %s28, 0
      %p202 = por %p200, %p201
      %s204 = sadd.s32 %s203, 1
      %p207 = scmp.eq.s32.totalorder %s22, 1
      %p208 = scmp.ne.s32.totalorder %s203, %s205
      %p209 = scmp.eq.s32.totalorder %s22, 0
      %p210 = por %p208, %p209
      %p211 = scmp.ne.s32.totalorder %s203, %s205
      %p212 = scmp.eq.s32.totalorder %s27, 1
      %p213 = por %p211, %p212
      %p214 = scmp.ne.s32.totalorder %s205, %s206
      %p215 = scmp.eq.s32.totalorder %s27, 0
      %p216 = por %p214, %p215
      %p217 = scmp.ne.s32.totalorder %s205, %s206
      %p218 = scmp.eq.s32.totalorder %s28, 1
      %p219 = por %p217, %p218
      %p221 = scmp.ne.s32.totalorder %s206, %s220
      %p222 = scmp.eq.s32.totalorder %s28, 0
      %p223 = por %p221, %p222
      %s225 = sadd.s32 %s224, 1
      %p228 = scmp.eq.s32.totalorder %s22, 1
      %p229 = scmp.ne.s32.totalorder %s224, %s226
      %p230 = scmp.eq.s32.totalorder %s22, 0
      %p231 = por %p229, %p230
      %p232 = scmp.ne.s32.totalorder %s224, %s226
      %p233 = scmp.eq.s32.totalorder %s27, 1
      %p234 = por %p232, %p233
      %p235 = scmp.ne.s32.totalorder %s226, %s227
      %p236 = scmp.eq.s32.totalorder %s27, 0
      %p237 = por %p235, %p236
      %p238 = scmp.ne.s32.totalorder %s226, %s227
      %p239 = scmp.eq.s32.totalorder %s28, 1
      %p240 = por %p238, %p239
      %p242 = scmp.ne.s32.totalorder %s227, %s241
      %p243 = scmp.eq.s32.totalorder %s28, 0
      %p244 = por %p242, %p243
      %s246 = sadd.s32 %s245, 1
      %p249 = scmp.eq.s32.totalorder %s22, 1
      %p250 = scmp.ne.s32.totalorder %s245, %s247
      %p251 = scmp.eq.s32.totalorder %s22, 0
      %p252 = por %p250, %p251
      %p253 = scmp.ne.s32.totalorder %s245, %s247
      %p254 = scmp.eq.s32.totalorder %s27, 1
      %p255 = por %p253, %p254
      %p256 = scmp.ne.s32.totalorder %s247, %s248
      %p257 = scmp.eq.s32.totalorder %s27, 0
      %p258 = por %p256, %p257
      %p259 = scmp.ne.s32.totalorder %s247, %s248
      %p260 = scmp.eq.s32.totalorder %s28, 1
      %p261 = por %p259, %p260
      %p263 = scmp.ne.s32.totalorder %s248, %s262
      %p264 = scmp.eq.s32.totalorder %s28, 0
      %p265 = por %p263, %p264
      %s267 = sadd.s32 %s266, 1
      %p270 = scmp.eq.s32.totalorder %s22, 1
      %p271 = scmp.ne.s32.totalorder %s266, %s268
      %p272 = scmp.eq.s32.totalorder %s22, 0
      %p273 = por %p271, %p272
      %p274 = scmp.ne.s32.totalorder %s266, %s268
      %p275 = scmp.eq.s32.totalorder %s27, 1
      %p276 = por %p274, %p275
      %p277 = scmp.ne.s32.totalorder %s268, %s269
      %p278 = scmp.eq.s32.totalorder %s27, 0
      %p279 = por %p277, %p278
      %p280 = scmp.ne.s32.totalorder %s268, %s269
      %p281 = scmp.eq.s32.totalorder %s28, 1
      %p282 = por %p280, %p281
      %p284 = scmp.ne.s32.totalorder %s269, %s283
      %p285 = scmp.eq.s32.totalorder %s28, 0
      %p286 = por %p284, %p285
      %s288 = sadd.s32 %s287, 1
      %p291 = scmp.eq.s32.totalorder %s22, 1
      %p292 = scmp.ne.s32.totalorder %s287, %s289
      %p293 = scmp.eq.s32.totalorder %s22, 0
      %p294 = por %p292, %p293
      %p295 = scmp.ne.s32.totalorder %s287, %s289
      %p296 = scmp.eq.s32.totalorder %s27, 1
      %p297 = por %p295, %p296
      %p298 = scmp.ne.s32.totalorder %s289, %s290
      %p299 = scmp.eq.s32.totalorder %s27, 0
      %p300 = por %p298, %p299
      %p301 = scmp.ne.s32.totalorder %s289, %s290
      %p302 = scmp.eq.s32.totalorder %s28, 1
      %p303 = por %p301, %p302
      %p305 = scmp.ne.s32.totalorder %s290, %s304
      %p306 = scmp.eq.s32.totalorder %s28, 0
      %p307 = por %p305, %p306
      %s308 = ssub.s32 %s22, %s29
      %p309 = scmp.eq.s32.totalorder %s308, 0
      %s311 = sadd.s32 %s310, 1
      %s312 = scalar_select %p309, %s310, %s311
      %p315 = pneg %p309
      %p316 = scmp.eq.s32.totalorder %s22, 1
      %p317 = por %p315, %p316
      %p318 = scmp.ne.s32.totalorder %s310, %s313
      %p319 = scmp.eq.s32.totalorder %s22, 0
      %p320 = por %p318, %p319
      %p321 = scmp.ne.s32.totalorder %s310, %s313
      %p322 = scmp.eq.s32.totalorder %s27, 1
      %p323 = por %p321, %p322
      %p324 = scmp.ne.s32.totalorder %s313, %s314
      %p325 = scmp.eq.s32.totalorder %s27, 0
      %p326 = por %p324, %p325
      %p327 = scmp.ne.s32.totalorder %s313, %s314
      %p328 = scmp.eq.s32.totalorder %s28, 1
      %p329 = por %p327, %p328
      %p331 = scmp.ne.s32.totalorder %s314, %s330
      %p332 = scmp.eq.s32.totalorder %s28, 0
      %p333 = por %p331, %p332
      %p334 = scmp.le.s32.totalorder 1, %s22
      %p335 = scmp.lt.s32.totalorder %s22, 3
      %p336 = pnand %p334, %p335
      %p337 = pneg %p336
      // Predicated region
      $region9: #{tpu_custom_call.1} parent=5 // pred_check
        _
      $region10: #{tpu_custom_call.1} parent=5 // pred_check_branch
        %339 = sbr.rel (%p336) target = $region12
      $region11: #{tpu_custom_call.1} parent=5 // pred_region
        %s340 = ssub.s32 %s22, 1
        // Predicated region
        $region13: #{tpu_custom_call.1} parent=11 // pred_check
          %p341 = pneg %p69
        $region14: #{tpu_custom_call.1} parent=11 // pred_check_branch
          %343 = sbr.rel (%p341) target = $region16
        $region15: #{tpu_custom_call.1} parent=11 // pred_region
          _
        $region16: #{tpu_custom_call.1} parent=11 // pred_fallthru
          _
        // Predicated region
        $region17: #{tpu_custom_call.1} parent=11 // pred_check
          %p344 = pneg %p90
        $region18: #{tpu_custom_call.1} parent=11 // pred_check_branch
          %346 = sbr.rel (%p344) target = $region20
        $region19: #{tpu_custom_call.1} parent=11 // pred_region
          _
        $region20: #{tpu_custom_call.1} parent=11 // pred_fallthru
          _
        // Predicated region
        $region21: #{tpu_custom_call.1} parent=11 // pred_check
          %p347 = pneg %p111
        $region22: #{tpu_custom_call.1} parent=11 // pred_check_branch
          %349 = sbr.rel (%p347) target = $region24
        $region23: #{tpu_custom_call.1} parent=11 // pred_region
          _
        $region24: #{tpu_custom_call.1} parent=11 // pred_fallthru
          _
        // Predicated region
        $region25: #{tpu_custom_call.1} parent=11 // pred_check
          %p350 = pneg %p132
        $region26: #{tpu_custom_call.1} parent=11 // pred_check_branch
          %352 = sbr.rel (%p350) target = $region28
        $region27: #{tpu_custom_call.1} parent=11 // pred_region
          _
        $region28: #{tpu_custom_call.1} parent=11 // pred_fallthru
          _
        // Predicated region
        $region29: #{tpu_custom_call.1} parent=11 // pred_check
          %p353 = pneg %p153
        $region30: #{tpu_custom_call.1} parent=11 // pred_check_branch
          %355 = sbr.rel (%p353) target = $region32
        $region31: #{tpu_custom_call.1} parent=11 // pred_region
          _
        $region32: #{tpu_custom_call.1} parent=11 // pred_fallthru
          _
        // Predicated region
        $region33: #{tpu_custom_call.1} parent=11 // pred_check
          %p356 = pneg %p174
        $region34: #{tpu_custom_call.1} parent=11 // pred_check_branch
          %358 = sbr.rel (%p356) target = $region36
        $region35: #{tpu_custom_call.1} parent=11 // pred_region
          _
        $region36: #{tpu_custom_call.1} parent=11 // pred_fallthru
          _
        // Predicated region
        $region37: #{tpu_custom_call.1} parent=11 // pred_check
          %p359 = pneg %p195
        $region38: #{tpu_custom_call.1} parent=11 // pred_check_branch
          %361 = sbr.rel (%p359) target = $region40
        $region39: #{tpu_custom_call.1} parent=11 // pred_region
          _
        $region40: #{tpu_custom_call.1} parent=11 // pred_fallthru
          _
        // Predicated region
        $region41: #{tpu_custom_call.1} parent=11 // pred_check
          %p362 = pneg %p216
        $region42: #{tpu_custom_call.1} parent=11 // pred_check_branch
          %364 = sbr.rel (%p362) target = $region44
        $region43: #{tpu_custom_call.1} parent=11 // pred_region
          _
        $region44: #{tpu_custom_call.1} parent=11 // pred_fallthru
          _
        // Predicated region
        $region45: #{tpu_custom_call.1} parent=11 // pred_check
          %p365 = pneg %p237
        $region46: #{tpu_custom_call.1} parent=11 // pred_check_branch
          %367 = sbr.rel (%p365) target = $region48
        $region47: #{tpu_custom_call.1} parent=11 // pred_region
          _
        $region48: #{tpu_custom_call.1} parent=11 // pred_fallthru
          _
        // Predicated region
        $region49: #{tpu_custom_call.1} parent=11 // pred_check
          %p368 = pneg %p258
        $region50: #{tpu_custom_call.1} parent=11 // pred_check_branch
          %370 = sbr.rel (%p368) target = $region52
        $region51: #{tpu_custom_call.1} parent=11 // pred_region
          _
        $region52: #{tpu_custom_call.1} parent=11 // pred_fallthru
          _
        // Predicated region
        $region53: #{tpu_custom_call.1} parent=11 // pred_check
          %p371 = pneg %p279
        $region54: #{tpu_custom_call.1} parent=11 // pred_check_branch
          %373 = sbr.rel (%p371) target = $region56
        $region55: #{tpu_custom_call.1} parent=11 // pred_region
          _
        $region56: #{tpu_custom_call.1} parent=11 // pred_fallthru
          _
        // Predicated region
        $region57: #{tpu_custom_call.1} parent=11 // pred_check
          %p374 = pneg %p300
        $region58: #{tpu_custom_call.1} parent=11 // pred_check_branch
          %376 = sbr.rel (%p374) target = $region60
        $region59: #{tpu_custom_call.1} parent=11 // pred_region
          _
        $region60: #{tpu_custom_call.1} parent=11 // pred_fallthru
          _
      $region12: #{tpu_custom_call.1} parent=5 // pred_fallthru
        _
      %p377 = scmp.lt.s32.totalorder %s22, 2
      // Predicated region
      $region61: #{tpu_custom_call.1} parent=5 // pred_check
        %p378 = pneg %p377
      $region62: #{tpu_custom_call.1} parent=5 // pred_check_branch
        %380 = sbr.rel (%p378) target = $region64
      $region63: #{tpu_custom_call.1} parent=5 // pred_region
        // Predicated region
        $region65: #{tpu_custom_call.1} parent=63 // pred_check
          %p381 = pneg %p42
        $region66: #{tpu_custom_call.1} parent=63 // pred_check_branch
          %383 = sbr.rel (%p381) target = $region68
        $region67: #{tpu_custom_call.1} parent=63 // pred_region
          %p384 = scmp.lt.s32.totalorder %s22, 1
          %s385 = scalar_select %p384, %s22, 1
          %s386 = smul.addr %s385, 32
          %s387 = smul.addr %s386, 8
          %s388 = scalar_lea.vmem %s0, %s387
        $region68: #{tpu_custom_call.1} parent=63 // pred_fallthru
          _
      $region64: #{tpu_custom_call.1} parent=5 // pred_fallthru
        _
      %p389 = scmp.le.s32.totalorder 1, %s22
      %p390 = scmp.lt.s32.totalorder %s22, 3
      %p391 = pnand %p389, %p390
      %p392 = pneg %p391
      // Predicated region
      $region69: #{tpu_custom_call.1} parent=5 // pred_check
        _
      $region70: #{tpu_custom_call.1} parent=5 // pred_check_branch
        %394 = sbr.rel (%p391) target = $region72
      $region71: #{tpu_custom_call.1} parent=5 // pred_region
        %s395 = ssub.s32 %s22, 1
        %p396 = scmp.lt.s32.totalorder %s27, 1
        %s397 = scalar_select %p396, %s27, 1
        %s398 = smul.addr %s397, 32
        %s399 = smul.addr %s398, 8
        %s400 = scalar_lea.vmem %s0, %s399
        %p401 = pneg %p48
        %p402 = pneg %p45
        %p403 = pneg %p69
        %p404 = pneg %p66
        %p405 = pneg %p90
        %p406 = pneg %p87
        %p407 = pneg %p111
        %p408 = pneg %p108
        %p409 = pneg %p132
        %p410 = pneg %p129
        %p411 = pneg %p153
        %p412 = pneg %p150
        %p413 = pneg %p174
        %p414 = pneg %p171
        %p415 = pneg %p195
        %p416 = pneg %p192
        %p417 = pneg %p216
        %p418 = pneg %p213
        %p419 = pneg %p237
        %p420 = pneg %p234
        %p421 = pneg %p258
        %p422 = pneg %p255
        %p423 = pneg %p279
        %p424 = pneg %p276
        %p425 = pneg %p300
        %p426 = pneg %p297
        %p427 = pneg %p326
        %p428 = pneg %p323
        %s429 = sand.u32 %s313, 1
        %s430 = scalar_lea.sflag [#allocation5], %s429
        %s431 = sand.u32 %s313, 1
        %s432 = smul.addr %s431, 32
        %s433 = scalar_lea.vmem [#allocation4], %s432
        %p434 = scmp.lt.s32.totalorder %s27, 1
        %s435 = scalar_select %p434, %s27, 1
        %s436 = smul.addr %s435, 32
        %s437 = smul.addr %s436, 8
        %s438 = scalar_lea.vmem %s0, %s437
        %vm440 = vcmask 60416
        %441 = vst.msk [vmem:[#allocation2] sm:$0xf] %vm440, 0
        %442 = vst.msk [vmem:[#allocation2 + $0x4] sm:$0xf] %vm440, 0
        %vm443 = vcmask 57344
        %444 = vst.msk [vmem:[#allocation2 + $0x8] sm:$0x1] %vm443, 0
        %s445 = scalar_lea.vmem [#allocation2], 204
        %446 = vst.msk [vmem:[%s445] sm:$0xf] %vm440, 0
        %447 = vst.msk [vmem:[%s445 + $0x4] sm:$0xf] %vm440, 0
        %448 = vst.msk [vmem:[%s445 + $0x8] sm:$0x1] %vm443, 0
        %vm449 = vcmask 57344
        %vm450 = vsmask.f32 256
        %vm451 = vmand %vm449, %vm450
        %v452 = vld [vmem:[#allocation2] sm:$0x1]
        %v453 = vsel %vm451, 0, %v452
        %454 = vst [vmem:[#allocation2] sm:$0x1] %v453
        %v455 = vld [vmem:[#allocation2 + $0xc] sm:$0x1]
        %v456 = vsel %vm451, 0, %v455
        %457 = vst [vmem:[#allocation2 + $0xc] sm:$0x1] %v456
        %v458 = vld [vmem:[#allocation2 + $0x18] sm:$0x1]
        %v459 = vsel %vm451, 0, %v458
        %460 = vst [vmem:[#allocation2 + $0x18] sm:$0x1] %v459
        %v461 = vld [vmem:[#allocation2 + $0x24] sm:$0x1]
        %v462 = vsel %vm451, 0, %v461
        %463 = vst [vmem:[#allocation2 + $0x24] sm:$0x1] %v462
        %v464 = vld [vmem:[#allocation2 + $0x30] sm:$0x1]
        %v465 = vsel %vm451, 0, %v464
        %466 = vst [vmem:[#allocation2 + $0x30] sm:$0x1] %v465
        %v467 = vld [vmem:[#allocation2 + $0x3c] sm:$0x1]
        %v468 = vsel %vm451, 0, %v467
        %469 = vst [vmem:[#allocation2 + $0x3c] sm:$0x1] %v468
        %v470 = vld [vmem:[#allocation2 + $0x48] sm:$0x1]
        %v471 = vsel %vm451, 0, %v470
        %472 = vst [vmem:[#allocation2 + $0x48] sm:$0x1] %v471
        %v473 = vld [vmem:[#allocation2 + $0x54] sm:$0x1]
        %v474 = vsel %vm451, 0, %v473
        %475 = vst [vmem:[#allocation2 + $0x54] sm:$0x1] %v474
        %v476 = vld [vmem:[#allocation2 + $0x60] sm:$0x1]
        %v477 = vsel %vm451, 0, %v476
        %478 = vst [vmem:[#allocation2 + $0x60] sm:$0x1] %v477
        %v479 = vld [vmem:[#allocation2 + $0x6c] sm:$0x1]
        %v480 = vsel %vm451, 0, %v479
        %481 = vst [vmem:[#allocation2 + $0x6c] sm:$0x1] %v480
        %v482 = vld [vmem:[#allocation2 + $0x78] sm:$0x1]
        %v483 = vsel %vm451, 0, %v482
        %484 = vst [vmem:[#allocation2 + $0x78] sm:$0x1] %v483
        %v485 = vld [vmem:[#allocation2 + $0x84] sm:$0x1]
        %v486 = vsel %vm451, 0, %v485
        %487 = vst [vmem:[#allocation2 + $0x84] sm:$0x1] %v486
        %v488 = vld [vmem:[#allocation2 + $0x90] sm:$0x1]
        %v489 = vsel %vm451, 0, %v488
        %490 = vst [vmem:[#allocation2 + $0x90] sm:$0x1] %v489
        %v491 = vld [vmem:[#allocation2 + $0x9c] sm:$0x1]
        %v492 = vsel %vm451, 0, %v491
        %493 = vst [vmem:[#allocation2 + $0x9c] sm:$0x1] %v492
        %v494 = vld [vmem:[#allocation2 + $0xa8] sm:$0x1]
        %v495 = vsel %vm451, 0, %v494
        %496 = vst [vmem:[#allocation2 + $0xa8] sm:$0x1] %v495
        %v497 = vld [vmem:[#allocation2 + $0xb4] sm:$0x1]
        %v498 = vsel %vm451, 0, %v497
        %499 = vst [vmem:[#allocation2 + $0xb4] sm:$0x1] %v498
        %v500 = vld [vmem:[#allocation2 + $0xc0] sm:$0x1]
        %v501 = vsel %vm451, 0, %v500
        %502 = vst [vmem:[#allocation2 + $0xc0] sm:$0x1] %v501
        %v503 = vld [vmem:[#allocation2 + $0xcc] sm:$0x1]
        %v504 = vsel %vm451, 0, %v503
        %505 = vst [vmem:[#allocation2 + $0xcc] sm:$0x1] %v504
        %vm506 = vsmask.f32 7938
        %vm507 = vmand %vm449, %vm506
        %v508 = vld [vmem:[#allocation2 + $0x8] sm:$0x1]
        %v509 = vsel %vm507, 0, %v508
        %510 = vst [vmem:[#allocation2 + $0x8] sm:$0x1] %v509
        %v511 = vld [vmem:[#allocation2 + $0x14] sm:$0x1]
        %v512 = vsel %vm507, 0, %v511
        %513 = vst [vmem:[#allocation2 + $0x14] sm:$0x1] %v512
        %v514 = vld [vmem:[#allocation2 + $0x20] sm:$0x1]
        %v515 = vsel %vm507, 0, %v514
        %516 = vst [vmem:[#allocation2 + $0x20] sm:$0x1] %v515
        %v517 = vld [vmem:[#allocation2 + $0x2c] sm:$0x1]
        %v518 = vsel %vm507, 0, %v517
        %519 = vst [vmem:[#allocation2 + $0x2c] sm:$0x1] %v518
        %v520 = vld [vmem:[#allocation2 + $0x38] sm:$0x1]
        %v521 = vsel %vm507, 0, %v520
        %522 = vst [vmem:[#allocation2 + $0x38] sm:$0x1] %v521
        %v523 = vld [vmem:[#allocation2 + $0x44] sm:$0x1]
        %v524 = vsel %vm507, 0, %v523
        %525 = vst [vmem:[#allocation2 + $0x44] sm:$0x1] %v524
        %v526 = vld [vmem:[#allocation2 + $0x50] sm:$0x1]
        %v527 = vsel %vm507, 0, %v526
        %528 = vst [vmem:[#allocation2 + $0x50] sm:$0x1] %v527
        %v529 = vld [vmem:[#allocation2 + $0x5c] sm:$0x1]
        %v530 = vsel %vm507, 0, %v529
        %531 = vst [vmem:[#allocation2 + $0x5c] sm:$0x1] %v530
        %v532 = vld [vmem:[#allocation2 + $0x68] sm:$0x1]
        %v533 = vsel %vm507, 0, %v532
        %534 = vst [vmem:[#allocation2 + $0x68] sm:$0x1] %v533
        %v535 = vld [vmem:[#allocation2 + $0x74] sm:$0x1]
        %v536 = vsel %vm507, 0, %v535
        %537 = vst [vmem:[#allocation2 + $0x74] sm:$0x1] %v536
        %v538 = vld [vmem:[#allocation2 + $0x80] sm:$0x1]
        %v539 = vsel %vm507, 0, %v538
        %540 = vst [vmem:[#allocation2 + $0x80] sm:$0x1] %v539
        %v541 = vld [vmem:[#allocation2 + $0x8c] sm:$0x1]
        %v542 = vsel %vm507, 0, %v541
        %543 = vst [vmem:[#allocation2 + $0x8c] sm:$0x1] %v542
        %v544 = vld [vmem:[#allocation2 + $0x98] sm:$0x1]
        %v545 = vsel %vm507, 0, %v544
        %546 = vst [vmem:[#allocation2 + $0x98] sm:$0x1] %v545
        %v547 = vld [vmem:[#allocation2 + $0xa4] sm:$0x1]
        %v548 = vsel %vm507, 0, %v547
        %549 = vst [vmem:[#allocation2 + $0xa4] sm:$0x1] %v548
        %v550 = vld [vmem:[#allocation2 + $0xb0] sm:$0x1]
        %v551 = vsel %vm507, 0, %v550
        %552 = vst [vmem:[#allocation2 + $0xb0] sm:$0x1] %v551
        %v553 = vld [vmem:[#allocation2 + $0xbc] sm:$0x1]
        %v554 = vsel %vm507, 0, %v553
        %555 = vst [vmem:[#allocation2 + $0xbc] sm:$0x1] %v554
        %v556 = vld [vmem:[#allocation2 + $0xc8] sm:$0x1]
        %v557 = vsel %vm507, 0, %v556
        %558 = vst [vmem:[#allocation2 + $0xc8] sm:$0x1] %v557
        %v559 = vld [vmem:[#allocation2 + $0xd4] sm:$0x1]
        %v560 = vsel %vm507, 0, %v559
        %561 = vst [vmem:[#allocation2 + $0xd4] sm:$0x1] %v560
        %vm562 = vcmask 125952
        %563 = vst.msk [vmem:[#allocation3] sm:$0xf] %vm562, 0
        %564 = vst.msk [vmem:[#allocation3 + $0x4] sm:$0xf] %vm562, 0
        %vm565 = vcmask 122880
        %566 = vst.msk [vmem:[#allocation3 + $0x8] sm:$0x1] %vm565, 0
        %s567 = scalar_lea.vmem [#allocation3], 204
        %568 = vst.msk [vmem:[%s567] sm:$0xf] %vm562, 0
        %569 = vst.msk [vmem:[%s567 + $0x4] sm:$0xf] %vm562, 0
        %570 = vst.msk [vmem:[%s567 + $0x8] sm:$0x1] %vm565, 0
        %vm571 = vcmask 122880
        %vm572 = vmand %vm571, %vm450
        %v573 = vld [vmem:[#allocation3] sm:$0x1]
        %v574 = vsel %vm572, 0, %v573
        %575 = vst [vmem:[#allocation3] sm:$0x1] %v574
        %v576 = vld [vmem:[#allocation3 + $0xc] sm:$0x1]
        %v577 = vsel %vm572, 0, %v576
        %578 = vst [vmem:[#allocation3 + $0xc] sm:$0x1] %v577
        %v579 = vld [vmem:[#allocation3 + $0x18] sm:$0x1]
        %v580 = vsel %vm572, 0, %v579
        %581 = vst [vmem:[#allocation3 + $0x18] sm:$0x1] %v580
        %v582 = vld [vmem:[#allocation3 + $0x24] sm:$0x1]
        %v583 = vsel %vm572, 0, %v582
        %584 = vst [vmem:[#allocation3 + $0x24] sm:$0x1] %v583
        %v585 = vld [vmem:[#allocation3 + $0x30] sm:$0x1]
        %v586 = vsel %vm572, 0, %v585
        %587 = vst [vmem:[#allocation3 + $0x30] sm:$0x1] %v586
        %v588 = vld [vmem:[#allocation3 + $0x3c] sm:$0x1]
        %v589 = vsel %vm572, 0, %v588
        %590 = vst [vmem:[#allocation3 + $0x3c] sm:$0x1] %v589
        %v591 = vld [vmem:[#allocation3 + $0x48] sm:$0x1]
        %v592 = vsel %vm572, 0, %v591
        %593 = vst [vmem:[#allocation3 + $0x48] sm:$0x1] %v592
        %v594 = vld [vmem:[#allocation3 + $0x54] sm:$0x1]
        %v595 = vsel %vm572, 0, %v594
        %596 = vst [vmem:[#allocation3 + $0x54] sm:$0x1] %v595
        %v597 = vld [vmem:[#allocation3 + $0x60] sm:$0x1]
        %v598 = vsel %vm572, 0, %v597
        %599 = vst [vmem:[#allocation3 + $0x60] sm:$0x1] %v598
        %v600 = vld [vmem:[#allocation3 + $0x6c] sm:$0x1]
        %v601 = vsel %vm572, 0, %v600
        %602 = vst [vmem:[#allocation3 + $0x6c] sm:$0x1] %v601
        %v603 = vld [vmem:[#allocation3 + $0x78] sm:$0x1]
        %v604 = vsel %vm572, 0, %v603
        %605 = vst [vmem:[#allocation3 + $0x78] sm:$0x1] %v604
        %v606 = vld [vmem:[#allocation3 + $0x84] sm:$0x1]
        %v607 = vsel %vm572, 0, %v606
        %608 = vst [vmem:[#allocation3 + $0x84] sm:$0x1] %v607
        %v609 = vld [vmem:[#allocation3 + $0x90] sm:$0x1]
        %v610 = vsel %vm572, 0, %v609
        %611 = vst [vmem:[#allocation3 + $0x90] sm:$0x1] %v610
        %v612 = vld [vmem:[#allocation3 + $0x9c] sm:$0x1]
        %v613 = vsel %vm572, 0, %v612
        %614 = vst [vmem:[#allocation3 + $0x9c] sm:$0x1] %v613
        %v615 = vld [vmem:[#allocation3 + $0xa8] sm:$0x1]
        %v616 = vsel %vm572, 0, %v615
        %617 = vst [vmem:[#allocation3 + $0xa8] sm:$0x1] %v616
        %v618 = vld [vmem:[#allocation3 + $0xb4] sm:$0x1]
        %v619 = vsel %vm572, 0, %v618
        %620 = vst [vmem:[#allocation3 + $0xb4] sm:$0x1] %v619
        %v621 = vld [vmem:[#allocation3 + $0xc0] sm:$0x1]
        %v622 = vsel %vm572, 0, %v621
        %623 = vst [vmem:[#allocation3 + $0xc0] sm:$0x1] %v622
        %v624 = vld [vmem:[#allocation3 + $0xcc] sm:$0x1]
        %v625 = vsel %vm572, 0, %v624
        %626 = vst [vmem:[#allocation3 + $0xcc] sm:$0x1] %v625
        %vm627 = vmand %vm571, %vm506
        %v628 = vld [vmem:[#allocation3 + $0x8] sm:$0x1]
        %v629 = vsel %vm627, 0, %v628
        %630 = vst [vmem:[#allocation3 + $0x8] sm:$0x1] %v629
        %v631 = vld [vmem:[#allocation3 + $0x14] sm:$0x1]
        %v632 = vsel %vm627, 0, %v631
        %633 = vst [vmem:[#allocation3 + $0x14] sm:$0x1] %v632
        %v634 = vld [vmem:[#allocation3 + $0x20] sm:$0x1]
        %v635 = vsel %vm627, 0, %v634
        %636 = vst [vmem:[#allocation3 + $0x20] sm:$0x1] %v635
        %v637 = vld [vmem:[#allocation3 + $0x2c] sm:$0x1]
        %v638 = vsel %vm627, 0, %v637
        %639 = vst [vmem:[#allocation3 + $0x2c] sm:$0x1] %v638
        %v640 = vld [vmem:[#allocation3 + $0x38] sm:$0x1]
        %v641 = vsel %vm627, 0, %v640
        %642 = vst [vmem:[#allocation3 + $0x38] sm:$0x1] %v641
        %v643 = vld [vmem:[#allocation3 + $0x44] sm:$0x1]
        %v644 = vsel %vm627, 0, %v643
        %645 = vst [vmem:[#allocation3 + $0x44] sm:$0x1] %v644
        %v646 = vld [vmem:[#allocation3 + $0x50] sm:$0x1]
        %v647 = vsel %vm627, 0, %v646
        %648 = vst [vmem:[#allocation3 + $0x50] sm:$0x1] %v647
        %v649 = vld [vmem:[#allocation3 + $0x5c] sm:$0x1]
        %v650 = vsel %vm627, 0, %v649
        %651 = vst [vmem:[#allocation3 + $0x5c] sm:$0x1] %v650
        %v652 = vld [vmem:[#allocation3 + $0x68] sm:$0x1]
        %v653 = vsel %vm627, 0, %v652
        %654 = vst [vmem:[#allocation3 + $0x68] sm:$0x1] %v653
        %v655 = vld [vmem:[#allocation3 + $0x74] sm:$0x1]
        %v656 = vsel %vm627, 0, %v655
        %657 = vst [vmem:[#allocation3 + $0x74] sm:$0x1] %v656
        %v658 = vld [vmem:[#allocation3 + $0x80] sm:$0x1]
        %v659 = vsel %vm627, 0, %v658
        %660 = vst [vmem:[#allocation3 + $0x80] sm:$0x1] %v659
        %v661 = vld [vmem:[#allocation3 + $0x8c] sm:$0x1]
        %v662 = vsel %vm627, 0, %v661
        %663 = vst [vmem:[#allocation3 + $0x8c] sm:$0x1] %v662
        %v664 = vld [vmem:[#allocation3 + $0x98] sm:$0x1]
        %v665 = vsel %vm627, 0, %v664
        %666 = vst [vmem:[#allocation3 + $0x98] sm:$0x1] %v665
        %v667 = vld [vmem:[#allocation3 + $0xa4] sm:$0x1]
        %v668 = vsel %vm627, 0, %v667
        %669 = vst [vmem:[#allocation3 + $0xa4] sm:$0x1] %v668
        %v670 = vld [vmem:[#allocation3 + $0xb0] sm:$0x1]
        %v671 = vsel %vm627, 0, %v670
        %672 = vst [vmem:[#allocation3 + $0xb0] sm:$0x1] %v671
        %v673 = vld [vmem:[#allocation3 + $0xbc] sm:$0x1]
        %v674 = vsel %vm627, 0, %v673
        %675 = vst [vmem:[#allocation3 + $0xbc] sm:$0x1] %v674
        %v676 = vld [vmem:[#allocation3 + $0xc8] sm:$0x1]
        %v677 = vsel %vm627, 0, %v676
        %678 = vst [vmem:[#allocation3 + $0xc8] sm:$0x1] %v677
        %v679 = vld [vmem:[#allocation3 + $0xd4] sm:$0x1]
        %v680 = vsel %vm627, 0, %v679
        %681 = vst [vmem:[#allocation3 + $0xd4] sm:$0x1] %v680
        %v682 = vld [vmem:[%s438] sm:$0xff]
        %v683 = vld [vmem:[%s438 + $0x8] sm:$0xff]
        %v684 = vld [vmem:[%s438 + $0x10] sm:$0xff]
        %v685 = vld [vmem:[%s438 + $0x18] sm:$0xff]
        %v686 = vld [vmem:[%s438 + $0x20] sm:$0xff]
        %v687 = vld [vmem:[%s438 + $0x28] sm:$0xff]
        %v688 = vld [vmem:[%s438 + $0x30] sm:$0xff]
        %v689 = vld [vmem:[%s438 + $0x38] sm:$0xff]
        %v690 = vld [vmem:[%s438 + $0x40] sm:$0xff]
        %v691 = vld [vmem:[%s438 + $0x48] sm:$0xff]
        %v692 = vld [vmem:[%s438 + $0x50] sm:$0xff]
        %v693 = vld [vmem:[%s438 + $0x58] sm:$0xff]
        %v694 = vld [vmem:[%s438 + $0x60] sm:$0xff]
        %v695 = vld [vmem:[%s438 + $0x68] sm:$0xff]
        %v696 = vld [vmem:[%s438 + $0x70] sm:$0xff]
        %v697 = vld [vmem:[%s438 + $0x78] sm:$0xff]
        %v698 = vld [vmem:[%s438 + $0x80] sm:$0xff]
        %v699 = vld [vmem:[%s438 + $0x88] sm:$0xff]
        %v700 = vld [vmem:[%s438 + $0x90] sm:$0xff]
        %v701 = vld [vmem:[%s438 + $0x98] sm:$0xff]
        %v702 = vld [vmem:[%s438 + $0xa0] sm:$0xff]
        %v703 = vld [vmem:[%s438 + $0xa8] sm:$0xff]
        %v704 = vld [vmem:[%s438 + $0xb0] sm:$0xff]
        %v705 = vld [vmem:[%s438 + $0xb8] sm:$0xff]
        %v706 = vld [vmem:[%s438 + $0xc0] sm:$0xff]
        %v707 = vld [vmem:[%s438 + $0xc8] sm:$0xff]
        %v708 = vld [vmem:[%s438 + $0xd0] sm:$0xff]
        %v709 = vld [vmem:[%s438 + $0xd8] sm:$0xff]
        %v710 = vld [vmem:[%s438 + $0xe0] sm:$0xff]
        %v711 = vld [vmem:[%s438 + $0xe8] sm:$0xff]
        %v712 = vld [vmem:[%s438 + $0xf0] sm:$0xff]
        %v713 = vld [vmem:[%s438 + $0xf8] sm:$0xff]
        %v714 = vld [vmem:[%s1] sm:$0xff]
        %v715 = vld [vmem:[%s2] sm:$0x1]
        %v716 = vld [vmem:[%s3] sm:$0x1]
        %vm717 = vcmask 64512
        %v718 = vsel %vm717, %v682, 0.0
        %v719 = vsel %vm717, %v683, 0.0
        %v720 = vadd.f32 %v718, %v719
        %v721 = vsel %vm717, %v684, 0.0
        %v722 = vadd.f32 %v720, %v721
        %v723 = vsel %vm717, %v685, 0.0
        %v724 = vadd.f32 %v722, %v723
        %v725 = vsel %vm717, %v686, 0.0
        %v726 = vadd.f32 %v724, %v725
        %v727 = vsel %vm717, %v687, 0.0
        %v728 = vadd.f32 %v726, %v727
        %v729 = vsel %vm717, %v688, 0.0
        %v730 = vadd.f32 %v728, %v729
        %v731 = vsel %vm717, %v689, 0.0
        %v732 = vadd.f32 %v730, %v731
        %v733 = vsel %vm717, %v690, 0.0
        %v734 = vadd.f32 %v732, %v733
        %v735 = vsel %vm717, %v691, 0.0
        %v736 = vadd.f32 %v734, %v735
        %v737 = vsel %vm717, %v692, 0.0
        %v738 = vadd.f32 %v736, %v737
        %v739 = vsel %vm717, %v693, 0.0
        %v740 = vadd.f32 %v738, %v739
        %v741 = vsel %vm717, %v694, 0.0
        %v742 = vadd.f32 %v740, %v741
        %v743 = vsel %vm717, %v695, 0.0
        %v744 = vadd.f32 %v742, %v743
        %v745 = vsel %vm717, %v696, 0.0
        %v746 = vadd.f32 %v744, %v745
        %v747 = vsel %vm717, %v697, 0.0
        %v748 = vadd.f32 %v746, %v747
        %v749 = vsel %vm717, %v698, 0.0
        %v750 = vadd.f32 %v748, %v749
        %v751 = vsel %vm717, %v699, 0.0
        %v752 = vadd.f32 %v750, %v751
        %v753 = vsel %vm717, %v700, 0.0
        %v754 = vadd.f32 %v752, %v753
        %v755 = vsel %vm717, %v701, 0.0
        %v756 = vadd.f32 %v754, %v755
        %v757 = vsel %vm717, %v702, 0.0
        %v758 = vadd.f32 %v756, %v757
        %v759 = vsel %vm717, %v703, 0.0
        %v760 = vadd.f32 %v758, %v759
        %v761 = vsel %vm717, %v704, 0.0
        %v762 = vadd.f32 %v760, %v761
        %v763 = vsel %vm717, %v705, 0.0
        %v764 = vadd.f32 %v762, %v763
        %v765 = vsel %vm717, %v706, 0.0
        %v766 = vadd.f32 %v764, %v765
        %v767 = vsel %vm717, %v707, 0.0
        %v768 = vadd.f32 %v766, %v767
        %v769 = vsel %vm717, %v708, 0.0
        %v770 = vadd.f32 %v768, %v769
        %v771 = vsel %vm717, %v709, 0.0
        %v772 = vadd.f32 %v770, %v771
        %v773 = vsel %vm717, %v710, 0.0
        %v774 = vadd.f32 %v772, %v773
        %v775 = vsel %vm717, %v711, 0.0
        %v776 = vadd.f32 %v774, %v775
        %v777 = vsel %vm717, %v712, 0.0
        %v778 = vadd.f32 %v776, %v777
        %v779 = vsel %vm717, %v713, 0.0
        %v780 = vadd.f32 %v778, %v779
        %v781 = vrot.slane %v780, 4
        %v782 = vadd.f32 %v780, %v781
        %v783 = vrot.slane %v782, 2
        %v784 = vadd.f32 %v782, %v783
        %v785 = vrot.slane %v784, 1
        %v786 = vadd.f32 %v784, %v785
        %v787 = vmul.f32 %v682, %v682
        %v788 = vmul.f32 %v683, %v683
        %v789 = vmul.f32 %v684, %v684
        %v790 = vmul.f32 %v685, %v685
        %v791 = vmul.f32 %v686, %v686
        %v792 = vmul.f32 %v687, %v687
        %v793 = vmul.f32 %v688, %v688
        %v794 = vmul.f32 %v689, %v689
        %v795 = vmul.f32 %v690, %v690
        %v796 = vmul.f32 %v691, %v691
        %v797 = vmul.f32 %v692, %v692
        %v798 = vmul.f32 %v693, %v693
        %v799 = vmul.f32 %v694, %v694
        %v800 = vmul.f32 %v695, %v695
        %v801 = vmul.f32 %v696, %v696
        %v802 = vmul.f32 %v697, %v697
        %v803 = vmul.f32 %v698, %v698
        %v804 = vmul.f32 %v699, %v699
        %v805 = vmul.f32 %v700, %v700
        %v806 = vmul.f32 %v701, %v701
        %v807 = vmul.f32 %v702, %v702
        %v808 = vmul.f32 %v703, %v703
        %v809 = vmul.f32 %v704, %v704
        %v810 = vmul.f32 %v705, %v705
        %v811 = vmul.f32 %v706, %v706
        %v812 = vmul.f32 %v707, %v707
        %v813 = vmul.f32 %v708, %v708
        %v814 = vmul.f32 %v709, %v709
        %v815 = vmul.f32 %v710, %v710
        %v816 = vmul.f32 %v711, %v711
        %v817 = vmul.f32 %v712, %v712
        %v818 = vmul.f32 %v713, %v713
        %v819 = vsel %vm717, %v787, 0.0
        %v820 = vsel %vm717, %v788, 0.0
        %v821 = vadd.f32 %v819, %v820
        %v822 = vsel %vm717, %v789, 0.0
        %v823 = vadd.f32 %v821, %v822
        %v824 = vsel %vm717, %v790, 0.0
        %v825 = vadd.f32 %v823, %v824
        %v826 = vsel %vm717, %v791, 0.0
        %v827 = vadd.f32 %v825, %v826
        %v828 = vsel %vm717, %v792, 0.0
        %v829 = vadd.f32 %v827, %v828
        %v830 = vsel %vm717, %v793, 0.0
        %v831 = vadd.f32 %v829, %v830
        %v832 = vsel %vm717, %v794, 0.0
        %v833 = vadd.f32 %v831, %v832
        %v834 = vsel %vm717, %v795, 0.0
        %v835 = vadd.f32 %v833, %v834
        %v836 = vsel %vm717, %v796, 0.0
        %v837 = vadd.f32 %v835, %v836
        %v838 = vsel %vm717, %v797, 0.0
        %v839 = vadd.f32 %v837, %v838
        %v840 = vsel %vm717, %v798, 0.0
        %v841 = vadd.f32 %v839, %v840
        %v842 = vsel %vm717, %v799, 0.0
        %v843 = vadd.f32 %v841, %v842
        %v844 = vsel %vm717, %v800, 0.0
        %v845 = vadd.f32 %v843, %v844
        %v846 = vsel %vm717, %v801, 0.0
        %v847 = vadd.f32 %v845, %v846
        %v848 = vsel %vm717, %v802, 0.0
        %v849 = vadd.f32 %v847, %v848
        %v850 = vsel %vm717, %v803, 0.0
        %v851 = vadd.f32 %v849, %v850
        %v852 = vsel %vm717, %v804, 0.0
        %v853 = vadd.f32 %v851, %v852
        %v854 = vsel %vm717, %v805, 0.0
        %v855 = vadd.f32 %v853, %v854
        %v856 = vsel %vm717, %v806, 0.0
        %v857 = vadd.f32 %v855, %v856
        %v858 = vsel %vm717, %v807, 0.0
        %v859 = vadd.f32 %v857, %v858
        %v860 = vsel %vm717, %v808, 0.0
        %v861 = vadd.f32 %v859, %v860
        %v862 = vsel %vm717, %v809, 0.0
        %v863 = vadd.f32 %v861, %v862
        %v864 = vsel %vm717, %v810, 0.0
        %v865 = vadd.f32 %v863, %v864
        %v866 = vsel %vm717, %v811, 0.0
        %v867 = vadd.f32 %v865, %v866
        %v868 = vsel %vm717, %v812, 0.0
        %v869 = vadd.f32 %v867, %v868
        %v870 = vsel %vm717, %v813, 0.0
        %v871 = vadd.f32 %v869, %v870
        %v872 = vsel %vm717, %v814, 0.0
        %v873 = vadd.f32 %v871, %v872
        %v874 = vsel %vm717, %v815, 0.0
        %v875 = vadd.f32 %v873, %v874
        %v876 = vsel %vm717, %v816, 0.0
        %v877 = vadd.f32 %v875, %v876
        %v878 = vsel %vm717, %v817, 0.0
        %v879 = vadd.f32 %v877, %v878
        %v880 = vsel %vm717, %v818, 0.0
        %v881 = vadd.f32 %v879, %v880
        %v882 = vrot.slane %v881, 4
        %v883 = vadd.f32 %v881, %v882
        %v884 = vrot.slane %v883, 2
        %v885 = vadd.f32 %v883, %v884
        %v886 = vrot.slane %v885, 1
        %v887 = vadd.f32 %v885, %v886
        %vm888 = vcmask 1040384
        %v889 = vsel %vm888, %v786, %v887
        %v891 = vsel %vm717, %v889, 0
        %893 = vmatpush.msra.mxu0 0.0
        %894 = vmatpush.msra.mxu0 0.0
        %895 = vmatpush.msra.mxu0 0.0
        %896 = vmatpush.msra.mxu0 0.0
        %897 = vmatpush.msra.mxu0 0.0
        %898 = vmatpush.msra.mxu0 0.0
        %899 = vmatpush.msra.mxu0 0.0
        %900 = vmatpush.msra.mxu0 0.0
        %901 = vmatpush.msra.mxu0 0.0
        %902 = vmatpush.msra.mxu0 0.0
        %903 = vmatpush.msra.mxu0 0.0
        %904 = vmatpush.msra.mxu0 0.0
        %905 = vmatpush.msra.mxu0 0.0
        %906 = vmatpush.msra.mxu0 0.0
        %907 = vmatpush.msra.mxu0 0.0
        %908 = vmatpush.msra.mxu0 %v714
        %909 = vmatmul.f32.gmra.mxu0 %v891
        %v910 = vpop.f32.mrf.mxu0
        %v911 = vadd.f32 0.0, %v910
        %912 = vdwg.mxu0
        %v913 = vmul.f32 %v911, 0.001953125
        %v914 = vmul.f32 %v913, %v913
        %v916 = vrot.slane %v914, 7
        %v918 = vsub.f32 %v913, %v916
        %v919 = vmax.f32 %v918, 0.0
        %v920 = vadd.f32 %v919, 1e-05
        %v921 = vrsqrt.pop %v920
        %v922 = vmul.f32 %v921, %v920
        %v923 = vmul.f32 %v922, %v921
        %v924 = vmul.f32 0.5, %v923
        %v925 = vsub.f32 1.5, %v924
        %v926 = vmul.f32 %v921, %v925
        %vm927 = vweird.f32 %v920
        %vm928 = vweird.f32 %v921
        %vm929 = vmor %vm927, %vm928
        %v930 = vsel %vm929, %v921, %v926
        %v931 = vperm.slane %v913, 0
        %v932 = vsub.f32 %v682, %v931
        %v933 = vsub.f32 %v683, %v931
        %v934 = vsub.f32 %v684, %v931
        %v935 = vsub.f32 %v685, %v931
        %v936 = vsub.f32 %v686, %v931
        %v937 = vsub.f32 %v687, %v931
        %v938 = vsub.f32 %v688, %v931
        %v939 = vsub.f32 %v689, %v931
        %v940 = vsub.f32 %v690, %v931
        %v941 = vsub.f32 %v691, %v931
        %v942 = vsub.f32 %v692, %v931
        %v943 = vsub.f32 %v693, %v931
        %v944 = vsub.f32 %v694, %v931
        %v945 = vsub.f32 %v695, %v931
        %v946 = vsub.f32 %v696, %v931
        %v947 = vsub.f32 %v697, %v931
        %v948 = vsub.f32 %v698, %v931
        %v949 = vsub.f32 %v699, %v931
        %v950 = vsub.f32 %v700, %v931
        %v951 = vsub.f32 %v701, %v931
        %v952 = vsub.f32 %v702, %v931
        %v953 = vsub.f32 %v703, %v931
        %v954 = vsub.f32 %v704, %v931
        %v955 = vsub.f32 %v705, %v931
        %v956 = vsub.f32 %v706, %v931
        %v957 = vsub.f32 %v707, %v931
        %v958 = vsub.f32 %v708, %v931
        %v959 = vsub.f32 %v709, %v931
        %v960 = vsub.f32 %v710, %v931
        %v961 = vsub.f32 %v711, %v931
        %v962 = vsub.f32 %v712, %v931
        %v963 = vsub.f32 %v713, %v931
        %v965 = vperm.slane %v715, 0
        %v967 = vmul.f32 %v930, %v965
        %v968 = vperm.slane %v967, 1
        %v969 = vmul.f32 %v932, %v968
        %v970 = vmul.f32 %v933, %v968
        %v971 = vmul.f32 %v934, %v968
        %v972 = vmul.f32 %v935, %v968
        %v973 = vmul.f32 %v936, %v968
        %v974 = vmul.f32 %v937, %v968
        %v975 = vmul.f32 %v938, %v968
        %v976 = vmul.f32 %v939, %v968
        %v977 = vmul.f32 %v940, %v968
        %v978 = vmul.f32 %v941, %v968
        %v979 = vmul.f32 %v942, %v968
        %v980 = vmul.f32 %v943, %v968
        %v981 = vmul.f32 %v944, %v968
        %v982 = vmul.f32 %v945, %v968
        %v983 = vmul.f32 %v946, %v968
        %v984 = vmul.f32 %v947, %v968
        %v985 = vmul.f32 %v948, %v968
        %v986 = vmul.f32 %v949, %v968
        %v987 = vmul.f32 %v950, %v968
        %v988 = vmul.f32 %v951, %v968
        %v989 = vmul.f32 %v952, %v968
        %v990 = vmul.f32 %v953, %v968
        %v991 = vmul.f32 %v954, %v968
        %v992 = vmul.f32 %v955, %v968
        %v993 = vmul.f32 %v956, %v968
        %v994 = vmul.f32 %v957, %v968
        %v995 = vmul.f32 %v958, %v968
        %v996 = vmul.f32 %v959, %v968
        %v997 = vmul.f32 %v960, %v968
        %v998 = vmul.f32 %v961, %v968
        %v999 = vmul.f32 %v962, %v968
        %v1000 = vmul.f32 %v963, %v968
        %v1002 = vperm.slane %v716, 0
        %v1004 = vadd.f32 %v969, %v1002
        %v1005 = vadd.f32 %v970, %v1002
        %v1006 = vadd.f32 %v971, %v1002
        %v1007 = vadd.f32 %v972, %v1002
        %v1008 = vadd.f32 %v973, %v1002
        %v1009 = vadd.f32 %v974, %v1002
        %v1010 = vadd.f32 %v975, %v1002
        %v1011 = vadd.f32 %v976, %v1002
        %v1012 = vadd.f32 %v977, %v1002
        %v1013 = vadd.f32 %v978, %v1002
        %v1014 = vadd.f32 %v979, %v1002
        %v1015 = vadd.f32 %v980, %v1002
        %v1016 = vadd.f32 %v981, %v1002
        %v1017 = vadd.f32 %v982, %v1002
        %v1018 = vadd.f32 %v983, %v1002
        %v1019 = vadd.f32 %v984, %v1002
        %v1020 = vadd.f32 %v985, %v1002
        %v1021 = vadd.f32 %v986, %v1002
        %v1022 = vadd.f32 %v987, %v1002
        %v1023 = vadd.f32 %v988, %v1002
        %v1024 = vadd.f32 %v989, %v1002
        %v1025 = vadd.f32 %v990, %v1002
        %v1026 = vadd.f32 %v991, %v1002
        %v1027 = vadd.f32 %v992, %v1002
        %v1028 = vadd.f32 %v993, %v1002
        %v1029 = vadd.f32 %v994, %v1002
        %v1030 = vadd.f32 %v995, %v1002
        %v1031 = vadd.f32 %v996, %v1002
        %v1032 = vadd.f32 %v997, %v1002
        %v1033 = vadd.f32 %v998, %v1002
        %v1034 = vadd.f32 %v999, %v1002
        %v1035 = vadd.f32 %v1000, %v1002
        %v1036 = vxor.u32 %v1004, 2147483648
        %v1037 = vxor.u32 %v1005, 2147483648
        %v1038 = vxor.u32 %v1006, 2147483648
        %v1039 = vxor.u32 %v1007, 2147483648
        %v1040 = vxor.u32 %v1008, 2147483648
        %v1041 = vxor.u32 %v1009, 2147483648
        %v1042 = vxor.u32 %v1010, 2147483648
        %v1043 = vxor.u32 %v1011, 2147483648
        %v1044 = vxor.u32 %v1012, 2147483648
        %v1045 = vxor.u32 %v1013, 2147483648
        %v1046 = vxor.u32 %v1014, 2147483648
        %v1047 = vxor.u32 %v1015, 2147483648
        %v1048 = vxor.u32 %v1016, 2147483648
        %v1049 = vxor.u32 %v1017, 2147483648
        %v1050 = vxor.u32 %v1018, 2147483648
        %v1051 = vxor.u32 %v1019, 2147483648
        %v1052 = vxor.u32 %v1020, 2147483648
        %v1053 = vxor.u32 %v1021, 2147483648
        %v1054 = vxor.u32 %v1022, 2147483648
        %v1055 = vxor.u32 %v1023, 2147483648
        %v1056 = vxor.u32 %v1024, 2147483648
        %v1057 = vxor.u32 %v1025, 2147483648
        %v1058 = vxor.u32 %v1026, 2147483648
        %v1059 = vxor.u32 %v1027, 2147483648
        %v1060 = vxor.u32 %v1028, 2147483648
        %v1061 = vxor.u32 %v1029, 2147483648
        %v1062 = vxor.u32 %v1030, 2147483648
        %v1063 = vxor.u32 %v1031, 2147483648
        %v1064 = vxor.u32 %v1032, 2147483648
        %v1065 = vxor.u32 %v1033, 2147483648
        %v1066 = vxor.u32 %v1034, 2147483648
        %v1067 = vxor.u32 %v1035, 2147483648
        %v1068 = vmul.f32 %v1036, 1.442695
        %v1069 = vpow.pop %v1068
        %v1070 = vmul.f32 %v1037, 1.442695
        %v1071 = vpow.pop %v1070
        %v1072 = vmul.f32 %v1038, 1.442695
        %v1073 = vpow.pop %v1072
        %v1074 = vmul.f32 %v1039, 1.442695
        %v1075 = vpow.pop %v1074
        %v1076 = vmul.f32 %v1040, 1.442695
        %v1077 = vpow.pop %v1076
        %v1078 = vmul.f32 %v1041, 1.442695
        %v1079 = vpow.pop %v1078
        %v1080 = vmul.f32 %v1042, 1.442695
        %v1081 = vpow.pop %v1080
        %v1082 = vmul.f32 %v1043, 1.442695
        %v1083 = vpow.pop %v1082
        %v1084 = vmul.f32 %v1044, 1.442695
        %v1085 = vpow.pop %v1084
        %v1086 = vmul.f32 %v1045, 1.442695
        %v1087 = vpow.pop %v1086
        %v1088 = vmul.f32 %v1046, 1.442695
        %v1089 = vpow.pop %v1088
        %v1090 = vmul.f32 %v1047, 1.442695
        %v1091 = vpow.pop %v1090
        %v1092 = vmul.f32 %v1048, 1.442695
        %v1093 = vpow.pop %v1092
        %v1094 = vmul.f32 %v1049, 1.442695
        %v1095 = vpow.pop %v1094
        %v1096 = vmul.f32 %v1050, 1.442695
        %v1097 = vpow.pop %v1096
        %v1098 = vmul.f32 %v1051, 1.442695
        %v1099 = vpow.pop %v1098
        %v1100 = vmul.f32 %v1052, 1.442695
        %v1101 = vpow.pop %v1100
        %v1102 = vmul.f32 %v1053, 1.442695
        %v1103 = vpow.pop %v1102
        %v1104 = vmul.f32 %v1054, 1.442695
        %v1105 = vpow.pop %v1104
        %v1106 = vmul.f32 %v1055, 1.442695
        %v1107 = vpow.pop %v1106
        %v1108 = vmul.f32 %v1056, 1.442695
        %v1109 = vpow.pop %v1108
        %v1110 = vmul.f32 %v1057, 1.442695
        %v1111 = vpow.pop %v1110
        %v1112 = vmul.f32 %v1058, 1.442695
        %v1113 = vpow.pop %v1112
        %v1114 = vmul.f32 %v1059, 1.442695
        %v1115 = vpow.pop %v1114
        %v1116 = vmul.f32 %v1060, 1.442695
        %v1117 = vpow.pop %v1116
        %v1118 = vmul.f32 %v1061, 1.442695
        %v1119 = vpow.pop %v1118
        %v1120 = vmul.f32 %v1062, 1.442695
        %v1121 = vpow.pop %v1120
        %v1122 = vmul.f32 %v1063, 1.442695
        %v1123 = vpow.pop %v1122
        %v1124 = vmul.f32 %v1064, 1.442695
        %v1125 = vpow.pop %v1124
        %v1126 = vmul.f32 %v1065, 1.442695
        %v1127 = vpow.pop %v1126
        %v1128 = vmul.f32 %v1066, 1.442695
        %v1129 = vpow.pop %v1128
        %v1130 = vmul.f32 %v1067, 1.442695
        %v1131 = vpow.pop %v1130
        %v1132 = vadd.f32 %v1069, 1.0
        %v1133 = vadd.f32 %v1071, 1.0
        %v1134 = vadd.f32 %v1073, 1.0
        %v1135 = vadd.f32 %v1075, 1.0
        %v1136 = vadd.f32 %v1077, 1.0
        %v1137 = vadd.f32 %v1079, 1.0
        %v1138 = vadd.f32 %v1081, 1.0
        %v1139 = vadd.f32 %v1083, 1.0
        %v1140 = vadd.f32 %v1085, 1.0
        %v1141 = vadd.f32 %v1087, 1.0
        %v1142 = vadd.f32 %v1089, 1.0
        %v1143 = vadd.f32 %v1091, 1.0
        %v1144 = vadd.f32 %v1093, 1.0
        %v1145 = vadd.f32 %v1095, 1.0
        %v1146 = vadd.f32 %v1097, 1.0
        %v1147 = vadd.f32 %v1099, 1.0
        %v1148 = vadd.f32 %v1101, 1.0
        %v1149 = vadd.f32 %v1103, 1.0
        %v1150 = vadd.f32 %v1105, 1.0
        %v1151 = vadd.f32 %v1107, 1.0
        %v1152 = vadd.f32 %v1109, 1.0
        %v1153 = vadd.f32 %v1111, 1.0
        %v1154 = vadd.f32 %v1113, 1.0
        %v1155 = vadd.f32 %v1115, 1.0
        %v1156 = vadd.f32 %v1117, 1.0
        %v1157 = vadd.f32 %v1119, 1.0
        %v1158 = vadd.f32 %v1121, 1.0
        %v1159 = vadd.f32 %v1123, 1.0
        %v1160 = vadd.f32 %v1125, 1.0
        %v1161 = vadd.f32 %v1127, 1.0
        %v1162 = vadd.f32 %v1129, 1.0
        %v1163 = vadd.f32 %v1131, 1.0
        %v1164 = vrcp.pop %v1132
        %v1165 = vmul.f32 %v1132, %v1164
        %v1166 = vsub.f32 1.0, %v1165
        %v1167 = vmul.f32 %v1164, %v1166
        %v1168 = vadd.f32 %v1164, %v1167
        %vm1169 = vweird.f32 %v1132
        %vm1170 = vweird.f32 %v1164
        %vm1171 = vmor %vm1169, %vm1170
        %v1172 = vsel %vm1171, %v1164, %v1168
        %v1173 = vand.u32 2147483647, %v1132
        %vm1174 = vcmp.eq.f32.partialorder %v1173, 8.507059e+37
        %v1175 = vand.u32 %v1132, 2147483648
        %v1176 = vor.u32 1.1754944e-38, %v1175
        %v1177 = vsel %vm1174, %v1176, %v1172
        %v1178 = vmul.f32 1.0, %v1177
        %v1179 = vrcp.pop %v1133
        %v1180 = vmul.f32 %v1133, %v1179
        %v1181 = vsub.f32 1.0, %v1180
        %v1182 = vmul.f32 %v1179, %v1181
        %v1183 = vadd.f32 %v1179, %v1182
        %vm1184 = vweird.f32 %v1133
        %vm1185 = vweird.f32 %v1179
        %vm1186 = vmor %vm1184, %vm1185
        %v1187 = vsel %vm1186, %v1179, %v1183
        %v1188 = vand.u32 2147483647, %v1133
        %vm1189 = vcmp.eq.f32.partialorder %v1188, 8.507059e+37
        %v1190 = vand.u32 %v1133, 2147483648
        %v1191 = vor.u32 1.1754944e-38, %v1190
        %v1192 = vsel %vm1189, %v1191, %v1187
        %v1193 = vmul.f32 1.0, %v1192
        %v1194 = vrcp.pop %v1134
        %v1195 = vmul.f32 %v1134, %v1194
        %v1196 = vsub.f32 1.0, %v1195
        %v1197 = vmul.f32 %v1194, %v1196
        %v1198 = vadd.f32 %v1194, %v1197
        %vm1199 = vweird.f32 %v1134
        %vm1200 = vweird.f32 %v1194
        %vm1201 = vmor %vm1199, %vm1200
        %v1202 = vsel %vm1201, %v1194, %v1198
        %v1203 = vand.u32 2147483647, %v1134
        %vm1204 = vcmp.eq.f32.partialorder %v1203, 8.507059e+37
        %v1205 = vand.u32 %v1134, 2147483648
        %v1206 = vor.u32 1.1754944e-38, %v1205
        %v1207 = vsel %vm1204, %v1206, %v1202
        %v1208 = vmul.f32 1.0, %v1207
        %v1209 = vrcp.pop %v1135
        %v1210 = vmul.f32 %v1135, %v1209
        %v1211 = vsub.f32 1.0, %v1210
        %v1212 = vmul.f32 %v1209, %v1211
        %v1213 = vadd.f32 %v1209, %v1212
        %vm1214 = vweird.f32 %v1135
        %vm1215 = vweird.f32 %v1209
        %vm1216 = vmor %vm1214, %vm1215
        %v1217 = vsel %vm1216, %v1209, %v1213
        %v1218 = vand.u32 2147483647, %v1135
        %vm1219 = vcmp.eq.f32.partialorder %v1218, 8.507059e+37
        %v1220 = vand.u32 %v1135, 2147483648
        %v1221 = vor.u32 1.1754944e-38, %v1220
        %v1222 = vsel %vm1219, %v1221, %v1217
        %v1223 = vmul.f32 1.0, %v1222
        %v1224 = vrcp.pop %v1136
        %v1225 = vmul.f32 %v1136, %v1224
        %v1226 = vsub.f32 1.0, %v1225
        %v1227 = vmul.f32 %v1224, %v1226
        %v1228 = vadd.f32 %v1224, %v1227
        %vm1229 = vweird.f32 %v1136
        %vm1230 = vweird.f32 %v1224
        %vm1231 = vmor %vm1229, %vm1230
        %v1232 = vsel %vm1231, %v1224, %v1228
        %v1233 = vand.u32 2147483647, %v1136
        %vm1234 = vcmp.eq.f32.partialorder %v1233, 8.507059e+37
        %v1235 = vand.u32 %v1136, 2147483648
        %v1236 = vor.u32 1.1754944e-38, %v1235
        %v1237 = vsel %vm1234, %v1236, %v1232
        %v1238 = vmul.f32 1.0, %v1237
        %v1239 = vrcp.pop %v1137
        %v1240 = vmul.f32 %v1137, %v1239
        %v1241 = vsub.f32 1.0, %v1240
        %v1242 = vmul.f32 %v1239, %v1241
        %v1243 = vadd.f32 %v1239, %v1242
        %vm1244 = vweird.f32 %v1137
        %vm1245 = vweird.f32 %v1239
        %vm1246 = vmor %vm1244, %vm1245
        %v1247 = vsel %vm1246, %v1239, %v1243
        %v1248 = vand.u32 2147483647, %v1137
        %vm1249 = vcmp.eq.f32.partialorder %v1248, 8.507059e+37
        %v1250 = vand.u32 %v1137, 2147483648
        %v1251 = vor.u32 1.1754944e-38, %v1250
        %v1252 = vsel %vm1249, %v1251, %v1247
        %v1253 = vmul.f32 1.0, %v1252
        %v1254 = vrcp.pop %v1138
        %v1255 = vmul.f32 %v1138, %v1254
        %v1256 = vsub.f32 1.0, %v1255
        %v1257 = vmul.f32 %v1254, %v1256
        %v1258 = vadd.f32 %v1254, %v1257
        %vm1259 = vweird.f32 %v1138
        %vm1260 = vweird.f32 %v1254
        %vm1261 = vmor %vm1259, %vm1260
        %v1262 = vsel %vm1261, %v1254, %v1258
        %v1263 = vand.u32 2147483647, %v1138
        %vm1264 = vcmp.eq.f32.partialorder %v1263, 8.507059e+37
        %v1265 = vand.u32 %v1138, 2147483648
        %v1266 = vor.u32 1.1754944e-38, %v1265
        %v1267 = vsel %vm1264, %v1266, %v1262
        %v1268 = vmul.f32 1.0, %v1267
        %v1269 = vrcp.pop %v1139
        %v1270 = vmul.f32 %v1139, %v1269
        %v1271 = vsub.f32 1.0, %v1270
        %v1272 = vmul.f32 %v1269, %v1271
        %v1273 = vadd.f32 %v1269, %v1272
        %vm1274 = vweird.f32 %v1139
        %vm1275 = vweird.f32 %v1269
        %vm1276 = vmor %vm1274, %vm1275
        %v1277 = vsel %vm1276, %v1269, %v1273
        %v1278 = vand.u32 2147483647, %v1139
        %vm1279 = vcmp.eq.f32.partialorder %v1278, 8.507059e+37
        %v1280 = vand.u32 %v1139, 2147483648
        %v1281 = vor.u32 1.1754944e-38, %v1280
        %v1282 = vsel %vm1279, %v1281, %v1277
        %v1283 = vmul.f32 1.0, %v1282
        %v1284 = vrcp.pop %v1140
        %v1285 = vmul.f32 %v1140, %v1284
        %v1286 = vsub.f32 1.0, %v1285
        %v1287 = vmul.f32 %v1284, %v1286
        %v1288 = vadd.f32 %v1284, %v1287
        %vm1289 = vweird.f32 %v1140
        %vm1290 = vweird.f32 %v1284
        %vm1291 = vmor %vm1289, %vm1290
        %v1292 = vsel %vm1291, %v1284, %v1288
        %v1293 = vand.u32 2147483647, %v1140
        %vm1294 = vcmp.eq.f32.partialorder %v1293, 8.507059e+37
        %v1295 = vand.u32 %v1140, 2147483648
        %v1296 = vor.u32 1.1754944e-38, %v1295
        %v1297 = vsel %vm1294, %v1296, %v1292
        %v1298 = vmul.f32 1.0, %v1297
        %v1299 = vrcp.pop %v1141
        %v1300 = vmul.f32 %v1141, %v1299
        %v1301 = vsub.f32 1.0, %v1300
        %v1302 = vmul.f32 %v1299, %v1301
        %v1303 = vadd.f32 %v1299, %v1302
        %vm1304 = vweird.f32 %v1141
        %vm1305 = vweird.f32 %v1299
        %vm1306 = vmor %vm1304, %vm1305
        %v1307 = vsel %vm1306, %v1299, %v1303
        %v1308 = vand.u32 2147483647, %v1141
        %vm1309 = vcmp.eq.f32.partialorder %v1308, 8.507059e+37
        %v1310 = vand.u32 %v1141, 2147483648
        %v1311 = vor.u32 1.1754944e-38, %v1310
        %v1312 = vsel %vm1309, %v1311, %v1307
        %v1313 = vmul.f32 1.0, %v1312
        %v1314 = vrcp.pop %v1142
        %v1315 = vmul.f32 %v1142, %v1314
        %v1316 = vsub.f32 1.0, %v1315
        %v1317 = vmul.f32 %v1314, %v1316
        %v1318 = vadd.f32 %v1314, %v1317
        %vm1319 = vweird.f32 %v1142
        %vm1320 = vweird.f32 %v1314
        %vm1321 = vmor %vm1319, %vm1320
        %v1322 = vsel %vm1321, %v1314, %v1318
        %v1323 = vand.u32 2147483647, %v1142
        %vm1324 = vcmp.eq.f32.partialorder %v1323, 8.507059e+37
        %v1325 = vand.u32 %v1142, 2147483648
        %v1326 = vor.u32 1.1754944e-38, %v1325
        %v1327 = vsel %vm1324, %v1326, %v1322
        %v1328 = vmul.f32 1.0, %v1327
        %v1329 = vrcp.pop %v1143
        %v1330 = vmul.f32 %v1143, %v1329
        %v1331 = vsub.f32 1.0, %v1330
        %v1332 = vmul.f32 %v1329, %v1331
        %v1333 = vadd.f32 %v1329, %v1332
        %vm1334 = vweird.f32 %v1143
        %vm1335 = vweird.f32 %v1329
        %vm1336 = vmor %vm1334, %vm1335
        %v1337 = vsel %vm1336, %v1329, %v1333
        %v1338 = vand.u32 2147483647, %v1143
        %vm1339 = vcmp.eq.f32.partialorder %v1338, 8.507059e+37
        %v1340 = vand.u32 %v1143, 2147483648
        %v1341 = vor.u32 1.1754944e-38, %v1340
        %v1342 = vsel %vm1339, %v1341, %v1337
        %v1343 = vmul.f32 1.0, %v1342
        %v1344 = vrcp.pop %v1144
        %v1345 = vmul.f32 %v1144, %v1344
        %v1346 = vsub.f32 1.0, %v1345
        %v1347 = vmul.f32 %v1344, %v1346
        %v1348 = vadd.f32 %v1344, %v1347
        %vm1349 = vweird.f32 %v1144
        %vm1350 = vweird.f32 %v1344
        %vm1351 = vmor %vm1349, %vm1350
        %v1352 = vsel %vm1351, %v1344, %v1348
        %v1353 = vand.u32 2147483647, %v1144
        %vm1354 = vcmp.eq.f32.partialorder %v1353, 8.507059e+37
        %v1355 = vand.u32 %v1144, 2147483648
        %v1356 = vor.u32 1.1754944e-38, %v1355
        %v1357 = vsel %vm1354, %v1356, %v1352
        %v1358 = vmul.f32 1.0, %v1357
        %v1359 = vrcp.pop %v1145
        %v1360 = vmul.f32 %v1145, %v1359
        %v1361 = vsub.f32 1.0, %v1360
        %v1362 = vmul.f32 %v1359, %v1361
        %v1363 = vadd.f32 %v1359, %v1362
        %vm1364 = vweird.f32 %v1145
        %vm1365 = vweird.f32 %v1359
        %vm1366 = vmor %vm1364, %vm1365
        %v1367 = vsel %vm1366, %v1359, %v1363
        %v1368 = vand.u32 2147483647, %v1145
        %vm1369 = vcmp.eq.f32.partialorder %v1368, 8.507059e+37
        %v1370 = vand.u32 %v1145, 2147483648
        %v1371 = vor.u32 1.1754944e-38, %v1370
        %v1372 = vsel %vm1369, %v1371, %v1367
        %v1373 = vmul.f32 1.0, %v1372
        %v1374 = vrcp.pop %v1146
        %v1375 = vmul.f32 %v1146, %v1374
        %v1376 = vsub.f32 1.0, %v1375
        %v1377 = vmul.f32 %v1374, %v1376
        %v1378 = vadd.f32 %v1374, %v1377
        %vm1379 = vweird.f32 %v1146
        %vm1380 = vweird.f32 %v1374
        %vm1381 = vmor %vm1379, %vm1380
        %v1382 = vsel %vm1381, %v1374, %v1378
        %v1383 = vand.u32 2147483647, %v1146
        %vm1384 = vcmp.eq.f32.partialorder %v1383, 8.507059e+37
        %v1385 = vand.u32 %v1146, 2147483648
        %v1386 = vor.u32 1.1754944e-38, %v1385
        %v1387 = vsel %vm1384, %v1386, %v1382
        %v1388 = vmul.f32 1.0, %v1387
        %v1389 = vrcp.pop %v1147
        %v1390 = vmul.f32 %v1147, %v1389
        %v1391 = vsub.f32 1.0, %v1390
        %v1392 = vmul.f32 %v1389, %v1391
        %v1393 = vadd.f32 %v1389, %v1392
        %vm1394 = vweird.f32 %v1147
        %vm1395 = vweird.f32 %v1389
        %vm1396 = vmor %vm1394, %vm1395
        %v1397 = vsel %vm1396, %v1389, %v1393
        %v1398 = vand.u32 2147483647, %v1147
        %vm1399 = vcmp.eq.f32.partialorder %v1398, 8.507059e+37
        %v1400 = vand.u32 %v1147, 2147483648
        %v1401 = vor.u32 1.1754944e-38, %v1400
        %v1402 = vsel %vm1399, %v1401, %v1397
        %v1403 = vmul.f32 1.0, %v1402
        %v1404 = vrcp.pop %v1148
        %v1405 = vmul.f32 %v1148, %v1404
        %v1406 = vsub.f32 1.0, %v1405
        %v1407 = vmul.f32 %v1404, %v1406
        %v1408 = vadd.f32 %v1404, %v1407
        %vm1409 = vweird.f32 %v1148
        %vm1410 = vweird.f32 %v1404
        %vm1411 = vmor %vm1409, %vm1410
        %v1412 = vsel %vm1411, %v1404, %v1408
        %v1413 = vand.u32 2147483647, %v1148
        %vm1414 = vcmp.eq.f32.partialorder %v1413, 8.507059e+37
        %v1415 = vand.u32 %v1148, 2147483648
        %v1416 = vor.u32 1.1754944e-38, %v1415
        %v1417 = vsel %vm1414, %v1416, %v1412
        %v1418 = vmul.f32 1.0, %v1417
        %v1419 = vrcp.pop %v1149
        %v1420 = vmul.f32 %v1149, %v1419
        %v1421 = vsub.f32 1.0, %v1420
        %v1422 = vmul.f32 %v1419, %v1421
        %v1423 = vadd.f32 %v1419, %v1422
        %vm1424 = vweird.f32 %v1149
        %vm1425 = vweird.f32 %v1419
        %vm1426 = vmor %vm1424, %vm1425
        %v1427 = vsel %vm1426, %v1419, %v1423
        %v1428 = vand.u32 2147483647, %v1149
        %vm1429 = vcmp.eq.f32.partialorder %v1428, 8.507059e+37
        %v1430 = vand.u32 %v1149, 2147483648
        %v1431 = vor.u32 1.1754944e-38, %v1430
        %v1432 = vsel %vm1429, %v1431, %v1427
        %v1433 = vmul.f32 1.0, %v1432
        %v1434 = vrcp.pop %v1150
        %v1435 = vmul.f32 %v1150, %v1434
        %v1436 = vsub.f32 1.0, %v1435
        %v1437 = vmul.f32 %v1434, %v1436
        %v1438 = vadd.f32 %v1434, %v1437
        %vm1439 = vweird.f32 %v1150
        %vm1440 = vweird.f32 %v1434
        %vm1441 = vmor %vm1439, %vm1440
        %v1442 = vsel %vm1441, %v1434, %v1438
        %v1443 = vand.u32 2147483647, %v1150
        %vm1444 = vcmp.eq.f32.partialorder %v1443, 8.507059e+37
        %v1445 = vand.u32 %v1150, 2147483648
        %v1446 = vor.u32 1.1754944e-38, %v1445
        %v1447 = vsel %vm1444, %v1446, %v1442
        %v1448 = vmul.f32 1.0, %v1447
        %v1449 = vrcp.pop %v1151
        %v1450 = vmul.f32 %v1151, %v1449
        %v1451 = vsub.f32 1.0, %v1450
        %v1452 = vmul.f32 %v1449, %v1451
        %v1453 = vadd.f32 %v1449, %v1452
        %vm1454 = vweird.f32 %v1151
        %vm1455 = vweird.f32 %v1449
        %vm1456 = vmor %vm1454, %vm1455
        %v1457 = vsel %vm1456, %v1449, %v1453
        %v1458 = vand.u32 2147483647, %v1151
        %vm1459 = vcmp.eq.f32.partialorder %v1458, 8.507059e+37
        %v1460 = vand.u32 %v1151, 2147483648
        %v1461 = vor.u32 1.1754944e-38, %v1460
        %v1462 = vsel %vm1459, %v1461, %v1457
        %v1463 = vmul.f32 1.0, %v1462
        %v1464 = vrcp.pop %v1152
        %v1465 = vmul.f32 %v1152, %v1464
        %v1466 = vsub.f32 1.0, %v1465
        %v1467 = vmul.f32 %v1464, %v1466
        %v1468 = vadd.f32 %v1464, %v1467
        %vm1469 = vweird.f32 %v1152
        %vm1470 = vweird.f32 %v1464
        %vm1471 = vmor %vm1469, %vm1470
        %v1472 = vsel %vm1471, %v1464, %v1468
        %v1473 = vand.u32 2147483647, %v1152
        %vm1474 = vcmp.eq.f32.partialorder %v1473, 8.507059e+37
        %v1475 = vand.u32 %v1152, 2147483648
        %v1476 = vor.u32 1.1754944e-38, %v1475
        %v1477 = vsel %vm1474, %v1476, %v1472
        %v1478 = vmul.f32 1.0, %v1477
        %v1479 = vrcp.pop %v1153
        %v1480 = vmul.f32 %v1153, %v1479
        %v1481 = vsub.f32 1.0, %v1480
        %v1482 = vmul.f32 %v1479, %v1481
        %v1483 = vadd.f32 %v1479, %v1482
        %vm1484 = vweird.f32 %v1153
        %vm1485 = vweird.f32 %v1479
        %vm1486 = vmor %vm1484, %vm1485
        %v1487 = vsel %vm1486, %v1479, %v1483
        %v1488 = vand.u32 2147483647, %v1153
        %vm1489 = vcmp.eq.f32.partialorder %v1488, 8.507059e+37
        %v1490 = vand.u32 %v1153, 2147483648
        %v1491 = vor.u32 1.1754944e-38, %v1490
        %v1492 = vsel %vm1489, %v1491, %v1487
        %v1493 = vmul.f32 1.0, %v1492
        %v1494 = vrcp.pop %v1154
        %v1495 = vmul.f32 %v1154, %v1494
        %v1496 = vsub.f32 1.0, %v1495
        %v1497 = vmul.f32 %v1494, %v1496
        %v1498 = vadd.f32 %v1494, %v1497
        %vm1499 = vweird.f32 %v1154
        %vm1500 = vweird.f32 %v1494
        %vm1501 = vmor %vm1499, %vm1500
        %v1502 = vsel %vm1501, %v1494, %v1498
        %v1503 = vand.u32 2147483647, %v1154
        %vm1504 = vcmp.eq.f32.partialorder %v1503, 8.507059e+37
        %v1505 = vand.u32 %v1154, 2147483648
        %v1506 = vor.u32 1.1754944e-38, %v1505
        %v1507 = vsel %vm1504, %v1506, %v1502
        %v1508 = vmul.f32 1.0, %v1507
        %v1509 = vrcp.pop %v1155
        %v1510 = vmul.f32 %v1155, %v1509
        %v1511 = vsub.f32 1.0, %v1510
        %v1512 = vmul.f32 %v1509, %v1511
        %v1513 = vadd.f32 %v1509, %v1512
        %vm1514 = vweird.f32 %v1155
        %vm1515 = vweird.f32 %v1509
        %vm1516 = vmor %vm1514, %vm1515
        %v1517 = vsel %vm1516, %v1509, %v1513
        %v1518 = vand.u32 2147483647, %v1155
        %vm1519 = vcmp.eq.f32.partialorder %v1518, 8.507059e+37
        %v1520 = vand.u32 %v1155, 2147483648
        %v1521 = vor.u32 1.1754944e-38, %v1520
        %v1522 = vsel %vm1519, %v1521, %v1517
        %v1523 = vmul.f32 1.0, %v1522
        %v1524 = vrcp.pop %v1156
        %v1525 = vmul.f32 %v1156, %v1524
        %v1526 = vsub.f32 1.0, %v1525
        %v1527 = vmul.f32 %v1524, %v1526
        %v1528 = vadd.f32 %v1524, %v1527
        %vm1529 = vweird.f32 %v1156
        %vm1530 = vweird.f32 %v1524
        %vm1531 = vmor %vm1529, %vm1530
        %v1532 = vsel %vm1531, %v1524, %v1528
        %v1533 = vand.u32 2147483647, %v1156
        %vm1534 = vcmp.eq.f32.partialorder %v1533, 8.507059e+37
        %v1535 = vand.u32 %v1156, 2147483648
        %v1536 = vor.u32 1.1754944e-38, %v1535
        %v1537 = vsel %vm1534, %v1536, %v1532
        %v1538 = vmul.f32 1.0, %v1537
        %v1539 = vrcp.pop %v1157
        %v1540 = vmul.f32 %v1157, %v1539
        %v1541 = vsub.f32 1.0, %v1540
        %v1542 = vmul.f32 %v1539, %v1541
        %v1543 = vadd.f32 %v1539, %v1542
        %vm1544 = vweird.f32 %v1157
        %vm1545 = vweird.f32 %v1539
        %vm1546 = vmor %vm1544, %vm1545
        %v1547 = vsel %vm1546, %v1539, %v1543
        %v1548 = vand.u32 2147483647, %v1157
        %vm1549 = vcmp.eq.f32.partialorder %v1548, 8.507059e+37
        %v1550 = vand.u32 %v1157, 2147483648
        %v1551 = vor.u32 1.1754944e-38, %v1550
        %v1552 = vsel %vm1549, %v1551, %v1547
        %v1553 = vmul.f32 1.0, %v1552
        %v1554 = vrcp.pop %v1158
        %v1555 = vmul.f32 %v1158, %v1554
        %v1556 = vsub.f32 1.0, %v1555
        %v1557 = vmul.f32 %v1554, %v1556
        %v1558 = vadd.f32 %v1554, %v1557
        %vm1559 = vweird.f32 %v1158
        %vm1560 = vweird.f32 %v1554
        %vm1561 = vmor %vm1559, %vm1560
        %v1562 = vsel %vm1561, %v1554, %v1558
        %v1563 = vand.u32 2147483647, %v1158
        %vm1564 = vcmp.eq.f32.partialorder %v1563, 8.507059e+37
        %v1565 = vand.u32 %v1158, 2147483648
        %v1566 = vor.u32 1.1754944e-38, %v1565
        %v1567 = vsel %vm1564, %v1566, %v1562
        %v1568 = vmul.f32 1.0, %v1567
        %v1569 = vrcp.pop %v1159
        %v1570 = vmul.f32 %v1159, %v1569
        %v1571 = vsub.f32 1.0, %v1570
        %v1572 = vmul.f32 %v1569, %v1571
        %v1573 = vadd.f32 %v1569, %v1572
        %vm1574 = vweird.f32 %v1159
        %vm1575 = vweird.f32 %v1569
        %vm1576 = vmor %vm1574, %vm1575
        %v1577 = vsel %vm1576, %v1569, %v1573
        %v1578 = vand.u32 2147483647, %v1159
        %vm1579 = vcmp.eq.f32.partialorder %v1578, 8.507059e+37
        %v1580 = vand.u32 %v1159, 2147483648
        %v1581 = vor.u32 1.1754944e-38, %v1580
        %v1582 = vsel %vm1579, %v1581, %v1577
        %v1583 = vmul.f32 1.0, %v1582
        %v1584 = vrcp.pop %v1160
        %v1585 = vmul.f32 %v1160, %v1584
        %v1586 = vsub.f32 1.0, %v1585
        %v1587 = vmul.f32 %v1584, %v1586
        %v1588 = vadd.f32 %v1584, %v1587
        %vm1589 = vweird.f32 %v1160
        %vm1590 = vweird.f32 %v1584
        %vm1591 = vmor %vm1589, %vm1590
        %v1592 = vsel %vm1591, %v1584, %v1588
        %v1593 = vand.u32 2147483647, %v1160
        %vm1594 = vcmp.eq.f32.partialorder %v1593, 8.507059e+37
        %v1595 = vand.u32 %v1160, 2147483648
        %v1596 = vor.u32 1.1754944e-38, %v1595
        %v1597 = vsel %vm1594, %v1596, %v1592
        %v1598 = vmul.f32 1.0, %v1597
        %v1599 = vrcp.pop %v1161
        %v1600 = vmul.f32 %v1161, %v1599
        %v1601 = vsub.f32 1.0, %v1600
        %v1602 = vmul.f32 %v1599, %v1601
        %v1603 = vadd.f32 %v1599, %v1602
        %vm1604 = vweird.f32 %v1161
        %vm1605 = vweird.f32 %v1599
        %vm1606 = vmor %vm1604, %vm1605
        %v1607 = vsel %vm1606, %v1599, %v1603
        %v1608 = vand.u32 2147483647, %v1161
        %vm1609 = vcmp.eq.f32.partialorder %v1608, 8.507059e+37
        %v1610 = vand.u32 %v1161, 2147483648
        %v1611 = vor.u32 1.1754944e-38, %v1610
        %v1612 = vsel %vm1609, %v1611, %v1607
        %v1613 = vmul.f32 1.0, %v1612
        %v1614 = vrcp.pop %v1162
        %v1615 = vmul.f32 %v1162, %v1614
        %v1616 = vsub.f32 1.0, %v1615
        %v1617 = vmul.f32 %v1614, %v1616
        %v1618 = vadd.f32 %v1614, %v1617
        %vm1619 = vweird.f32 %v1162
        %vm1620 = vweird.f32 %v1614
        %vm1621 = vmor %vm1619, %vm1620
        %v1622 = vsel %vm1621, %v1614, %v1618
        %v1623 = vand.u32 2147483647, %v1162
        %vm1624 = vcmp.eq.f32.partialorder %v1623, 8.507059e+37
        %v1625 = vand.u32 %v1162, 2147483648
        %v1626 = vor.u32 1.1754944e-38, %v1625
        %v1627 = vsel %vm1624, %v1626, %v1622
        %v1628 = vmul.f32 1.0, %v1627
        %v1629 = vrcp.pop %v1163
        %v1630 = vmul.f32 %v1163, %v1629
        %v1631 = vsub.f32 1.0, %v1630
        %v1632 = vmul.f32 %v1629, %v1631
        %v1633 = vadd.f32 %v1629, %v1632
        %vm1634 = vweird.f32 %v1163
        %vm1635 = vweird.f32 %v1629
        %vm1636 = vmor %vm1634, %vm1635
        %v1637 = vsel %vm1636, %v1629, %v1633
        %v1638 = vand.u32 2147483647, %v1163
        %vm1639 = vcmp.eq.f32.partialorder %v1638, 8.507059e+37
        %v1640 = vand.u32 %v1163, 2147483648
        %v1641 = vor.u32 1.1754944e-38, %v1640
        %v1642 = vsel %vm1639, %v1641, %v1637
        %v1643 = vmul.f32 1.0, %v1642
        %v1644 = vmul.f32 %v1004, %v1178
        %v1645 = vmul.f32 %v1005, %v1193
        %v1646 = vmul.f32 %v1006, %v1208
        %v1647 = vmul.f32 %v1007, %v1223
        %v1648 = vmul.f32 %v1008, %v1238
        %v1649 = vmul.f32 %v1009, %v1253
        %v1650 = vmul.f32 %v1010, %v1268
        %v1651 = vmul.f32 %v1011, %v1283
        %v1652 = vmul.f32 %v1012, %v1298
        %v1653 = vmul.f32 %v1013, %v1313
        %v1654 = vmul.f32 %v1014, %v1328
        %v1655 = vmul.f32 %v1015, %v1343
        %v1656 = vmul.f32 %v1016, %v1358
        %v1657 = vmul.f32 %v1017, %v1373
        %v1658 = vmul.f32 %v1018, %v1388
        %v1659 = vmul.f32 %v1019, %v1403
        %v1660 = vmul.f32 %v1020, %v1418
        %v1661 = vmul.f32 %v1021, %v1433
        %v1662 = vmul.f32 %v1022, %v1448
        %v1663 = vmul.f32 %v1023, %v1463
        %v1664 = vmul.f32 %v1024, %v1478
        %v1665 = vmul.f32 %v1025, %v1493
        %v1666 = vmul.f32 %v1026, %v1508
        %v1667 = vmul.f32 %v1027, %v1523
        %v1668 = vmul.f32 %v1028, %v1538
        %v1669 = vmul.f32 %v1029, %v1553
        %v1670 = vmul.f32 %v1030, %v1568
        %v1671 = vmul.f32 %v1031, %v1583
        %v1672 = vmul.f32 %v1032, %v1598
        %v1673 = vmul.f32 %v1033, %v1613
        %v1674 = vmul.f32 %v1034, %v1628
        %v1675 = vmul.f32 %v1035, %v1643
        %v1676 = vpack.c.bf16 %v1644, %v1644
        %v1677 = vpack.c.bf16 %v1645, %v1645
        %v1678 = vpack.c.bf16 %v1646, %v1646
        %v1679 = vpack.c.bf16 %v1647, %v1647
        %v1680 = vpack.c.bf16 %v1648, %v1648
        %v1681 = vpack.c.bf16 %v1649, %v1649
        %v1682 = vpack.c.bf16 %v1650, %v1650
        %v1683 = vpack.c.bf16 %v1651, %v1651
        %v1684 = vpack.c.bf16 %v1652, %v1652
        %v1685 = vpack.c.bf16 %v1653, %v1653
        %v1686 = vpack.c.bf16 %v1654, %v1654
        %v1687 = vpack.c.bf16 %v1655, %v1655
        %v1688 = vpack.c.bf16 %v1656, %v1656
        %v1689 = vpack.c.bf16 %v1657, %v1657
        %v1690 = vpack.c.bf16 %v1658, %v1658
        %v1691 = vpack.c.bf16 %v1659, %v1659
        %v1692 = vpack.c.bf16 %v1660, %v1660
        %v1693 = vpack.c.bf16 %v1661, %v1661
        %v1694 = vpack.c.bf16 %v1662, %v1662
        %v1695 = vpack.c.bf16 %v1663, %v1663
        %v1696 = vpack.c.bf16 %v1664, %v1664
        %v1697 = vpack.c.bf16 %v1665, %v1665
        %v1698 = vpack.c.bf16 %v1666, %v1666
        %v1699 = vpack.c.bf16 %v1667, %v1667
        %v1700 = vpack.c.bf16 %v1668, %v1668
        %v1701 = vpack.c.bf16 %v1669, %v1669
        %v1702 = vpack.c.bf16 %v1670, %v1670
        %v1703 = vpack.c.bf16 %v1671, %v1671
        %v1704 = vpack.c.bf16 %v1672, %v1672
        %v1705 = vpack.c.bf16 %v1673, %v1673
        %v1706 = vpack.c.bf16 %v1674, %v1674
        %v1707 = vpack.c.bf16 %v1675, %v1675
        %vm1708 = vsmask.f32 4368
        %vm1709 = vmor %vm450, %vm1708
        %v1711 = vshrl.u32 %v1676, 16
        %v1713 = vrot.slane %v1711, 7
        %v1714 = vshll.u32 %v1676, 16
        %v1716 = vor.u32 %v1713, %v1714
        %v1717 = vrot.slane %v1713, 4
        %v1719 = vshrl.u32 %v1677, 16
        %v1721 = vrot.slane %v1719, 7
        %v1722 = vshll.u32 %v1677, 16
        %v1724 = vor.u32 %v1721, %v1722
        %v1725 = vsel %vm1709, %v1717, %v1724
        %v1726 = vrot.slane %v1721, 4
        %v1728 = vshrl.u32 %v1678, 16
        %v1730 = vrot.slane %v1728, 7
        %v1731 = vshll.u32 %v1678, 16
        %v1733 = vor.u32 %v1730, %v1731
        %v1734 = vrot.slane %v1730, 4
        %v1736 = vshrl.u32 %v1679, 16
        %v1738 = vrot.slane %v1736, 7
        %v1739 = vshll.u32 %v1679, 16
        %v1741 = vor.u32 %v1738, %v1739
        %v1742 = vsel %vm1709, %v1734, %v1741
        %v1743 = vrot.slane %v1738, 4
        %v1745 = vshrl.u32 %v1680, 16
        %v1747 = vrot.slane %v1745, 7
        %v1748 = vshll.u32 %v1680, 16
        %v1750 = vor.u32 %v1747, %v1748
        %v1751 = vrot.slane %v1747, 4
        %v1753 = vshrl.u32 %v1681, 16
        %v1755 = vrot.slane %v1753, 7
        %v1756 = vshll.u32 %v1681, 16
        %v1758 = vor.u32 %v1755, %v1756
        %v1759 = vsel %vm1709, %v1751, %v1758
        %v1760 = vrot.slane %v1755, 4
        %v1762 = vshrl.u32 %v1682, 16
        %v1764 = vrot.slane %v1762, 7
        %v1765 = vshll.u32 %v1682, 16
        %v1767 = vor.u32 %v1764, %v1765
        %v1768 = vrot.slane %v1764, 4
        %v1770 = vshrl.u32 %v1683, 16
        %v1772 = vrot.slane %v1770, 7
        %v1773 = vshll.u32 %v1683, 16
        %v1775 = vor.u32 %v1772, %v1773
        %v1776 = vsel %vm1709, %v1768, %v1775
        %v1777 = vrot.slane %v1772, 4
        %v1779 = vshrl.u32 %v1684, 16
        %v1781 = vrot.slane %v1779, 7
        %v1782 = vshll.u32 %v1684, 16
        %v1784 = vor.u32 %v1781, %v1782
        %v1785 = vrot.slane %v1781, 4
        %v1787 = vshrl.u32 %v1685, 16
        %v1789 = vrot.slane %v1787, 7
        %v1790 = vshll.u32 %v1685, 16
        %v1792 = vor.u32 %v1789, %v1790
        %v1793 = vsel %vm1709, %v1785, %v1792
        %v1794 = vrot.slane %v1789, 4
        %v1796 = vshrl.u32 %v1686, 16
        %v1798 = vrot.slane %v1796, 7
        %v1799 = vshll.u32 %v1686, 16
        %v1801 = vor.u32 %v1798, %v1799
        %v1802 = vrot.slane %v1798, 4
        %v1804 = vshrl.u32 %v1687, 16
        %v1806 = vrot.slane %v1804, 7
        %v1807 = vshll.u32 %v1687, 16
        %v1809 = vor.u32 %v1806, %v1807
        %v1810 = vsel %vm1709, %v1802, %v1809
        %v1811 = vrot.slane %v1806, 4
        %v1813 = vshrl.u32 %v1688, 16
        %v1815 = vrot.slane %v1813, 7
        %v1816 = vshll.u32 %v1688, 16
        %v1818 = vor.u32 %v1815, %v1816
        %v1819 = vrot.slane %v1815, 4
        %v1821 = vshrl.u32 %v1689, 16
        %v1823 = vrot.slane %v1821, 7
        %v1824 = vshll.u32 %v1689, 16
        %v1826 = vor.u32 %v1823, %v1824
        %v1827 = vsel %vm1709, %v1819, %v1826
        %v1828 = vrot.slane %v1823, 4
        %v1830 = vshrl.u32 %v1690, 16
        %v1832 = vrot.slane %v1830, 7
        %v1833 = vshll.u32 %v1690, 16
        %v1835 = vor.u32 %v1832, %v1833
        %v1836 = vrot.slane %v1832, 4
        %v1838 = vshrl.u32 %v1691, 16
        %v1840 = vrot.slane %v1838, 7
        %v1841 = vshll.u32 %v1691, 16
        %v1843 = vor.u32 %v1840, %v1841
        %v1844 = vsel %vm1709, %v1836, %v1843
        %v1845 = vrot.slane %v1840, 4
        %v1847 = vshrl.u32 %v1692, 16
        %v1849 = vrot.slane %v1847, 7
        %v1850 = vshll.u32 %v1692, 16
        %v1852 = vor.u32 %v1849, %v1850
        %v1853 = vrot.slane %v1849, 4
        %v1855 = vshrl.u32 %v1693, 16
        %v1857 = vrot.slane %v1855, 7
        %v1858 = vshll.u32 %v1693, 16
        %v1860 = vor.u32 %v1857, %v1858
        %v1861 = vsel %vm1709, %v1853, %v1860
        %v1862 = vrot.slane %v1857, 4
        %v1864 = vshrl.u32 %v1694, 16
        %v1866 = vrot.slane %v1864, 7
        %v1867 = vshll.u32 %v1694, 16
        %v1869 = vor.u32 %v1866, %v1867
        %v1870 = vrot.slane %v1866, 4
        %v1872 = vshrl.u32 %v1695, 16
        %v1874 = vrot.slane %v1872, 7
        %v1875 = vshll.u32 %v1695, 16
        %v1877 = vor.u32 %v1874, %v1875
        %v1878 = vsel %vm1709, %v1870, %v1877
        %v1879 = vrot.slane %v1874, 4
        %v1881 = vshrl.u32 %v1696, 16
        %v1883 = vrot.slane %v1881, 7
        %v1884 = vshll.u32 %v1696, 16
        %v1886 = vor.u32 %v1883, %v1884
        %v1887 = vrot.slane %v1883, 4
        %v1889 = vshrl.u32 %v1697, 16
        %v1891 = vrot.slane %v1889, 7
        %v1892 = vshll.u32 %v1697, 16
        %v1894 = vor.u32 %v1891, %v1892
        %v1895 = vsel %vm1709, %v1887, %v1894
        %v1896 = vrot.slane %v1891, 4
        %v1898 = vshrl.u32 %v1698, 16
        %v1900 = vrot.slane %v1898, 7
        %v1901 = vshll.u32 %v1698, 16
        %v1903 = vor.u32 %v1900, %v1901
        %v1904 = vrot.slane %v1900, 4
        %v1906 = vshrl.u32 %v1699, 16
        %v1908 = vrot.slane %v1906, 7
        %v1909 = vshll.u32 %v1699, 16
        %v1911 = vor.u32 %v1908, %v1909
        %v1912 = vsel %vm1709, %v1904, %v1911
        %v1913 = vrot.slane %v1908, 4
        %v1915 = vshrl.u32 %v1700, 16
        %v1917 = vrot.slane %v1915, 7
        %v1918 = vshll.u32 %v1700, 16
        %v1920 = vor.u32 %v1917, %v1918
        %v1921 = vrot.slane %v1917, 4
        %v1923 = vshrl.u32 %v1701, 16
        %v1925 = vrot.slane %v1923, 7
        %v1926 = vshll.u32 %v1701, 16
        %v1928 = vor.u32 %v1925, %v1926
        %v1929 = vsel %vm1709, %v1921, %v1928
        %v1930 = vrot.slane %v1925, 4
        %v1932 = vshrl.u32 %v1702, 16
        %v1934 = vrot.slane %v1932, 7
        %v1935 = vshll.u32 %v1702, 16
        %v1937 = vor.u32 %v1934, %v1935
        %v1938 = vrot.slane %v1934, 4
        %v1940 = vshrl.u32 %v1703, 16
        %v1942 = vrot.slane %v1940, 7
        %v1943 = vshll.u32 %v1703, 16
        %v1945 = vor.u32 %v1942, %v1943
        %v1946 = vsel %vm1709, %v1938, %v1945
        %v1947 = vrot.slane %v1942, 4
        %v1949 = vshrl.u32 %v1704, 16
        %v1951 = vrot.slane %v1949, 7
        %v1952 = vshll.u32 %v1704, 16
        %v1954 = vor.u32 %v1951, %v1952
        %v1955 = vrot.slane %v1951, 4
        %v1957 = vshrl.u32 %v1705, 16
        %v1959 = vrot.slane %v1957, 7
        %v1960 = vshll.u32 %v1705, 16
        %v1962 = vor.u32 %v1959, %v1960
        %v1963 = vsel %vm1709, %v1955, %v1962
        %v1964 = vrot.slane %v1959, 4
        %v1966 = vshrl.u32 %v1706, 16
        %v1968 = vrot.slane %v1966, 7
        %v1969 = vshll.u32 %v1706, 16
        %v1971 = vor.u32 %v1968, %v1969
        %v1972 = vrot.slane %v1968, 4
        %v1974 = vshrl.u32 %v1707, 16
        %v1976 = vrot.slane %v1974, 7
        %v1977 = vshll.u32 %v1707, 16
        %v1979 = vor.u32 %v1976, %v1977
        %v1980 = vsel %vm1709, %v1972, %v1979
        %v1981 = vrot.slane %v1976, 4
        %s2030 = scalar_lea.vmem [#allocation2], 12
        %vm2031 = vcmask 60416
        %vm2032 = vmand %vm2031, %vm506
        %v2033 = vld [vmem:[%s2030] sm:$0xf]
        %v2034 = vsel %vm2032, %v1716, %v2033
        %2035 = vst [vmem:[%s2030] sm:$0xf] %v2034
        %2036 = vst.msk [vmem:[%s2030 + $0x4] sm:$0xf] %vm440, %v1725
        %v2037 = vld [vmem:[%s2030 + $0x8] sm:$0x1]
        %v2038 = vsel %vm451, %v1726, %v2037
        %2039 = vst [vmem:[%s2030 + $0x8] sm:$0x1] %v2038
        %v2040 = vld [vmem:[%s2030 + $0xc] sm:$0xf]
        %v2041 = vsel %vm2032, %v1733, %v2040
        %2042 = vst [vmem:[%s2030 + $0xc] sm:$0xf] %v2041
        %2043 = vst.msk [vmem:[%s2030 + $0x10] sm:$0xf] %vm440, %v1742
        %v2044 = vld [vmem:[%s2030 + $0x14] sm:$0x1]
        %v2045 = vsel %vm451, %v1743, %v2044
        %2046 = vst [vmem:[%s2030 + $0x14] sm:$0x1] %v2045
        %v2047 = vld [vmem:[%s2030 + $0x18] sm:$0xf]
        %v2048 = vsel %vm2032, %v1750, %v2047
        %2049 = vst [vmem:[%s2030 + $0x18] sm:$0xf] %v2048
        %2050 = vst.msk [vmem:[%s2030 + $0x1c] sm:$0xf] %vm440, %v1759
        %v2051 = vld [vmem:[%s2030 + $0x20] sm:$0x1]
        %v2052 = vsel %vm451, %v1760, %v2051
        %2053 = vst [vmem:[%s2030 + $0x20] sm:$0x1] %v2052
        %v2054 = vld [vmem:[%s2030 + $0x24] sm:$0xf]
        %v2055 = vsel %vm2032, %v1767, %v2054
        %2056 = vst [vmem:[%s2030 + $0x24] sm:$0xf] %v2055
        %2057 = vst.msk [vmem:[%s2030 + $0x28] sm:$0xf] %vm440, %v1776
        %v2058 = vld [vmem:[%s2030 + $0x2c] sm:$0x1]
        %v2059 = vsel %vm451, %v1777, %v2058
        %2060 = vst [vmem:[%s2030 + $0x2c] sm:$0x1] %v2059
        %v2061 = vld [vmem:[%s2030 + $0x30] sm:$0xf]
        %v2062 = vsel %vm2032, %v1784, %v2061
        %2063 = vst [vmem:[%s2030 + $0x30] sm:$0xf] %v2062
        %2064 = vst.msk [vmem:[%s2030 + $0x34] sm:$0xf] %vm440, %v1793
        %v2065 = vld [vmem:[%s2030 + $0x38] sm:$0x1]
        %v2066 = vsel %vm451, %v1794, %v2065
        %2067 = vst [vmem:[%s2030 + $0x38] sm:$0x1] %v2066
        %v2068 = vld [vmem:[%s2030 + $0x3c] sm:$0xf]
        %v2069 = vsel %vm2032, %v1801, %v2068
        %2070 = vst [vmem:[%s2030 + $0x3c] sm:$0xf] %v2069
        %2071 = vst.msk [vmem:[%s2030 + $0x40] sm:$0xf] %vm440, %v1810
        %v2072 = vld [vmem:[%s2030 + $0x44] sm:$0x1]
        %v2073 = vsel %vm451, %v1811, %v2072
        %2074 = vst [vmem:[%s2030 + $0x44] sm:$0x1] %v2073
        %v2075 = vld [vmem:[%s2030 + $0x48] sm:$0xf]
        %v2076 = vsel %vm2032, %v1818, %v2075
        %2077 = vst [vmem:[%s2030 + $0x48] sm:$0xf] %v2076
        %2078 = vst.msk [vmem:[%s2030 + $0x4c] sm:$0xf] %vm440, %v1827
        %v2079 = vld [vmem:[%s2030 + $0x50] sm:$0x1]
        %v2080 = vsel %vm451, %v1828, %v2079
        %2081 = vst [vmem:[%s2030 + $0x50] sm:$0x1] %v2080
        %v2082 = vld [vmem:[%s2030 + $0x54] sm:$0xf]
        %v2083 = vsel %vm2032, %v1835, %v2082
        %2084 = vst [vmem:[%s2030 + $0x54] sm:$0xf] %v2083
        %2085 = vst.msk [vmem:[%s2030 + $0x58] sm:$0xf] %vm440, %v1844
        %v2086 = vld [vmem:[%s2030 + $0x5c] sm:$0x1]
        %v2087 = vsel %vm451, %v1845, %v2086
        %2088 = vst [vmem:[%s2030 + $0x5c] sm:$0x1] %v2087
        %v2089 = vld [vmem:[%s2030 + $0x60] sm:$0xf]
        %v2090 = vsel %vm2032, %v1852, %v2089
        %2091 = vst [vmem:[%s2030 + $0x60] sm:$0xf] %v2090
        %2092 = vst.msk [vmem:[%s2030 + $0x64] sm:$0xf] %vm440, %v1861
        %v2093 = vld [vmem:[%s2030 + $0x68] sm:$0x1]
        %v2094 = vsel %vm451, %v1862, %v2093
        %2095 = vst [vmem:[%s2030 + $0x68] sm:$0x1] %v2094
        %v2096 = vld [vmem:[%s2030 + $0x6c] sm:$0xf]
        %v2097 = vsel %vm2032, %v1869, %v2096
        %2098 = vst [vmem:[%s2030 + $0x6c] sm:$0xf] %v2097
        %2099 = vst.msk [vmem:[%s2030 + $0x70] sm:$0xf] %vm440, %v1878
        %v2100 = vld [vmem:[%s2030 + $0x74] sm:$0x1]
        %v2101 = vsel %vm451, %v1879, %v2100
        %2102 = vst [vmem:[%s2030 + $0x74] sm:$0x1] %v2101
        %v2103 = vld [vmem:[%s2030 + $0x78] sm:$0xf]
        %v2104 = vsel %vm2032, %v1886, %v2103
        %2105 = vst [vmem:[%s2030 + $0x78] sm:$0xf] %v2104
        %2106 = vst.msk [vmem:[%s2030 + $0x7c] sm:$0xf] %vm440, %v1895
        %v2107 = vld [vmem:[%s2030 + $0x80] sm:$0x1]
        %v2108 = vsel %vm451, %v1896, %v2107
        %2109 = vst [vmem:[%s2030 + $0x80] sm:$0x1] %v2108
        %v2110 = vld [vmem:[%s2030 + $0x84] sm:$0xf]
        %v2111 = vsel %vm2032, %v1903, %v2110
        %2112 = vst [vmem:[%s2030 + $0x84] sm:$0xf] %v2111
        %2113 = vst.msk [vmem:[%s2030 + $0x88] sm:$0xf] %vm440, %v1912
        %v2114 = vld [vmem:[%s2030 + $0x8c] sm:$0x1]
        %v2115 = vsel %vm451, %v1913, %v2114
        %2116 = vst [vmem:[%s2030 + $0x8c] sm:$0x1] %v2115
        %v2117 = vld [vmem:[%s2030 + $0x90] sm:$0xf]
        %v2118 = vsel %vm2032, %v1920, %v2117
        %2119 = vst [vmem:[%s2030 + $0x90] sm:$0xf] %v2118
        %2120 = vst.msk [vmem:[%s2030 + $0x94] sm:$0xf] %vm440, %v1929
        %v2121 = vld [vmem:[%s2030 + $0x98] sm:$0x1]
        %v2122 = vsel %vm451, %v1930, %v2121
        %2123 = vst [vmem:[%s2030 + $0x98] sm:$0x1] %v2122
        %v2124 = vld [vmem:[%s2030 + $0x9c] sm:$0xf]
        %v2125 = vsel %vm2032, %v1937, %v2124
        %2126 = vst [vmem:[%s2030 + $0x9c] sm:$0xf] %v2125
        %2127 = vst.msk [vmem:[%s2030 + $0xa0] sm:$0xf] %vm440, %v1946
        %v2128 = vld [vmem:[%s2030 + $0xa4] sm:$0x1]
        %v2129 = vsel %vm451, %v1947, %v2128
        %2130 = vst [vmem:[%s2030 + $0xa4] sm:$0x1] %v2129
        %v2131 = vld [vmem:[%s2030 + $0xa8] sm:$0xf]
        %v2132 = vsel %vm2032, %v1954, %v2131
        %2133 = vst [vmem:[%s2030 + $0xa8] sm:$0xf] %v2132
        %2134 = vst.msk [vmem:[%s2030 + $0xac] sm:$0xf] %vm440, %v1963
        %v2135 = vld [vmem:[%s2030 + $0xb0] sm:$0x1]
        %v2136 = vsel %vm451, %v1964, %v2135
        %2137 = vst [vmem:[%s2030 + $0xb0] sm:$0x1] %v2136
        %v2138 = vld [vmem:[%s2030 + $0xb4] sm:$0xf]
        %v2139 = vsel %vm2032, %v1971, %v2138
        %2140 = vst [vmem:[%s2030 + $0xb4] sm:$0xf] %v2139
        %2141 = vst.msk [vmem:[%s2030 + $0xb8] sm:$0xf] %vm440, %v1980
        %v2142 = vld [vmem:[%s2030 + $0xbc] sm:$0x1]
        %v2143 = vsel %vm451, %v1981, %v2142
        %2144 = vst [vmem:[%s2030 + $0xbc] sm:$0x1] %v2143
        %v2145 = vld [vmem:[#allocation2] sm:$0xf]
        %v2146 = vld [vmem:[#allocation2 + $0x4] sm:$0xf]
        %v2147 = vld [vmem:[#allocation2 + $0xc] sm:$0xf]
        %v2148 = vld [vmem:[#allocation2 + $0x10] sm:$0xf]
        %v2149 = vld [vmem:[#allocation2 + $0x18] sm:$0xf]
        %v2150 = vld [vmem:[#allocation2 + $0x1c] sm:$0xf]
        %v2151 = vld [vmem:[#allocation2 + $0x24] sm:$0xf]
        %v2152 = vld [vmem:[#allocation2 + $0x28] sm:$0xf]
        %v2153 = vld [vmem:[#allocation2 + $0x30] sm:$0xf]
        %v2154 = vld [vmem:[#allocation2 + $0x34] sm:$0xf]
        %v2155 = vld [vmem:[#allocation2 + $0x3c] sm:$0xf]
        %v2156 = vld [vmem:[#allocation2 + $0x40] sm:$0xf]
        %v2157 = vld [vmem:[#allocation2 + $0x48] sm:$0xf]
        %v2158 = vld [vmem:[#allocation2 + $0x4c] sm:$0xf]
        %v2159 = vld [vmem:[#allocation2 + $0x54] sm:$0xf]
        %v2160 = vld [vmem:[#allocation2 + $0x58] sm:$0xf]
        %v2161 = vld [vmem:[#allocation2 + $0x60] sm:$0xf]
        %v2162 = vld [vmem:[#allocation2 + $0x64] sm:$0xf]
        %v2163 = vld [vmem:[#allocation2 + $0x6c] sm:$0xf]
        %v2164 = vld [vmem:[#allocation2 + $0x70] sm:$0xf]
        %v2165 = vld [vmem:[#allocation2 + $0x78] sm:$0xf]
        %v2166 = vld [vmem:[#allocation2 + $0x7c] sm:$0xf]
        %v2167 = vld [vmem:[#allocation2 + $0x84] sm:$0xf]
        %v2168 = vld [vmem:[#allocation2 + $0x88] sm:$0xf]
        %v2169 = vld [vmem:[#allocation2 + $0x90] sm:$0xf]
        %v2170 = vld [vmem:[#allocation2 + $0x94] sm:$0xf]
        %v2171 = vld [vmem:[#allocation2 + $0x9c] sm:$0xf]
        %v2172 = vld [vmem:[#allocation2 + $0xa0] sm:$0xf]
        %v2173 = vld [vmem:[#allocation2 + $0xa8] sm:$0xf]
        %v2174 = vld [vmem:[#allocation2 + $0xac] sm:$0xf]
        %v2175 = vld [vmem:[#allocation2 + $0xb4] sm:$0xf]
        %v2176 = vld [vmem:[#allocation2 + $0xb8] sm:$0xf]
        %v2177 = vld [vmem:[%s4] sm:$0xf]
        %v2178 = vld [vmem:[#allocation2 + $0x8] sm:$0x1]
        %v2179 = vld [vmem:[#allocation2 + $0x14] sm:$0x1]
        %v2180 = vld [vmem:[#allocation2 + $0x20] sm:$0x1]
        %v2181 = vld [vmem:[#allocation2 + $0x2c] sm:$0x1]
        %v2182 = vld [vmem:[#allocation2 + $0x38] sm:$0x1]
        %v2183 = vld [vmem:[#allocation2 + $0x44] sm:$0x1]
        %v2184 = vld [vmem:[#allocation2 + $0x50] sm:$0x1]
        %v2185 = vld [vmem:[#allocation2 + $0x5c] sm:$0x1]
        %v2186 = vld [vmem:[#allocation2 + $0x68] sm:$0x1]
        %v2187 = vld [vmem:[#allocation2 + $0x74] sm:$0x1]
        %v2188 = vld [vmem:[#allocation2 + $0x80] sm:$0x1]
        %v2189 = vld [vmem:[#allocation2 + $0x8c] sm:$0x1]
        %v2190 = vld [vmem:[#allocation2 + $0x98] sm:$0x1]
        %v2191 = vld [vmem:[#allocation2 + $0xa4] sm:$0x1]
        %v2192 = vld [vmem:[#allocation2 + $0xb0] sm:$0x1]
        %v2193 = vld [vmem:[#allocation2 + $0xbc] sm:$0x1]
        %vm2194 = vsmask.f32 3328
        %vm2195 = vsmask.f32 7440
        %vm2196 = vmor %vm2194, %vm2195
        %v2198 = vshrl.u32 %v2145, 16
        %v2200 = vrot.slane %v2198, 4
        %v2201 = vshll.u32 %v2145, 16
        %v2203 = vrot.slane %v2201, 5
        %v2204 = vor.u32 %v2200, %v2203
        %v2205 = vrot.slane %v2204, 4
        %v2207 = vshll.u32 %v2146, 16
        %v2209 = vrot.slane %v2207, 5
        %v2210 = vsel %vm2196, %v2205, %v2209
        %v2211 = vshrl.u32 %v2146, 16
        %v2213 = vrot.slane %v2211, 4
        %v2214 = vor.u32 %v2213, %v2209
        %v2215 = vrot.slane %v2214, 4
        %v2217 = vshll.u32 %v2178, 16
        %v2219 = vrot.slane %v2217, 5
        %v2220 = vsel %vm2196, %v2215, %v2219
        %v2222 = vshrl.u32 %v2147, 16
        %v2224 = vrot.slane %v2222, 4
        %v2225 = vshll.u32 %v2147, 16
        %v2227 = vrot.slane %v2225, 5
        %v2228 = vor.u32 %v2224, %v2227
        %v2229 = vrot.slane %v2228, 4
        %v2231 = vshll.u32 %v2148, 16
        %v2233 = vrot.slane %v2231, 5
        %v2234 = vsel %vm2196, %v2229, %v2233
        %v2235 = vshrl.u32 %v2148, 16
        %v2237 = vrot.slane %v2235, 4
        %v2238 = vor.u32 %v2237, %v2233
        %v2239 = vrot.slane %v2238, 4
        %v2241 = vshll.u32 %v2179, 16
        %v2243 = vrot.slane %v2241, 5
        %v2244 = vsel %vm2196, %v2239, %v2243
        %v2246 = vshrl.u32 %v2149, 16
        %v2248 = vrot.slane %v2246, 4
        %v2249 = vshll.u32 %v2149, 16
        %v2251 = vrot.slane %v2249, 5
        %v2252 = vor.u32 %v2248, %v2251
        %v2253 = vrot.slane %v2252, 4
        %v2255 = vshll.u32 %v2150, 16
        %v2257 = vrot.slane %v2255, 5
        %v2258 = vsel %vm2196, %v2253, %v2257
        %v2259 = vshrl.u32 %v2150, 16
        %v2261 = vrot.slane %v2259, 4
        %v2262 = vor.u32 %v2261, %v2257
        %v2263 = vrot.slane %v2262, 4
        %v2265 = vshll.u32 %v2180, 16
        %v2267 = vrot.slane %v2265, 5
        %v2268 = vsel %vm2196, %v2263, %v2267
        %v2270 = vshrl.u32 %v2151, 16
        %v2272 = vrot.slane %v2270, 4
        %v2273 = vshll.u32 %v2151, 16
        %v2275 = vrot.slane %v2273, 5
        %v2276 = vor.u32 %v2272, %v2275
        %v2277 = vrot.slane %v2276, 4
        %v2279 = vshll.u32 %v2152, 16
        %v2281 = vrot.slane %v2279, 5
        %v2282 = vsel %vm2196, %v2277, %v2281
        %v2283 = vshrl.u32 %v2152, 16
        %v2285 = vrot.slane %v2283, 4
        %v2286 = vor.u32 %v2285, %v2281
        %v2287 = vrot.slane %v2286, 4
        %v2289 = vshll.u32 %v2181, 16
        %v2291 = vrot.slane %v2289, 5
        %v2292 = vsel %vm2196, %v2287, %v2291
        %v2294 = vshrl.u32 %v2153, 16
        %v2296 = vrot.slane %v2294, 4
        %v2297 = vshll.u32 %v2153, 16
        %v2299 = vrot.slane %v2297, 5
        %v2300 = vor.u32 %v2296, %v2299
        %v2301 = vrot.slane %v2300, 4
        %v2303 = vshll.u32 %v2154, 16
        %v2305 = vrot.slane %v2303, 5
        %v2306 = vsel %vm2196, %v2301, %v2305
        %v2307 = vshrl.u32 %v2154, 16
        %v2309 = vrot.slane %v2307, 4
        %v2310 = vor.u32 %v2309, %v2305
        %v2311 = vrot.slane %v2310, 4
        %v2313 = vshll.u32 %v2182, 16
        %v2315 = vrot.slane %v2313, 5
        %v2316 = vsel %vm2196, %v2311, %v2315
        %v2318 = vshrl.u32 %v2155, 16
        %v2320 = vrot.slane %v2318, 4
        %v2321 = vshll.u32 %v2155, 16
        %v2323 = vrot.slane %v2321, 5
        %v2324 = vor.u32 %v2320, %v2323
        %v2325 = vrot.slane %v2324, 4
        %v2327 = vshll.u32 %v2156, 16
        %v2329 = vrot.slane %v2327, 5
        %v2330 = vsel %vm2196, %v2325, %v2329
        %v2331 = vshrl.u32 %v2156, 16
        %v2333 = vrot.slane %v2331, 4
        %v2334 = vor.u32 %v2333, %v2329
        %v2335 = vrot.slane %v2334, 4
        %v2337 = vshll.u32 %v2183, 16
        %v2339 = vrot.slane %v2337, 5
        %v2340 = vsel %vm2196, %v2335, %v2339
        %v2342 = vshrl.u32 %v2157, 16
        %v2344 = vrot.slane %v2342, 4
        %v2345 = vshll.u32 %v2157, 16
        %v2347 = vrot.slane %v2345, 5
        %v2348 = vor.u32 %v2344, %v2347
        %v2349 = vrot.slane %v2348, 4
        %v2351 = vshll.u32 %v2158, 16
        %v2353 = vrot.slane %v2351, 5
        %v2354 = vsel %vm2196, %v2349, %v2353
        %v2355 = vshrl.u32 %v2158, 16
        %v2357 = vrot.slane %v2355, 4
        %v2358 = vor.u32 %v2357, %v2353
        %v2359 = vrot.slane %v2358, 4
        %v2361 = vshll.u32 %v2184, 16
        %v2363 = vrot.slane %v2361, 5
        %v2364 = vsel %vm2196, %v2359, %v2363
        %v2366 = vshrl.u32 %v2159, 16
        %v2368 = vrot.slane %v2366, 4
        %v2369 = vshll.u32 %v2159, 16
        %v2371 = vrot.slane %v2369, 5
        %v2372 = vor.u32 %v2368, %v2371
        %v2373 = vrot.slane %v2372, 4
        %v2375 = vshll.u32 %v2160, 16
        %v2377 = vrot.slane %v2375, 5
        %v2378 = vsel %vm2196, %v2373, %v2377
        %v2379 = vshrl.u32 %v2160, 16
        %v2381 = vrot.slane %v2379, 4
        %v2382 = vor.u32 %v2381, %v2377
        %v2383 = vrot.slane %v2382, 4
        %v2385 = vshll.u32 %v2185, 16
        %v2387 = vrot.slane %v2385, 5
        %v2388 = vsel %vm2196, %v2383, %v2387
        %v2390 = vshrl.u32 %v2161, 16
        %v2392 = vrot.slane %v2390, 4
        %v2393 = vshll.u32 %v2161, 16
        %v2395 = vrot.slane %v2393, 5
        %v2396 = vor.u32 %v2392, %v2395
        %v2397 = vrot.slane %v2396, 4
        %v2399 = vshll.u32 %v2162, 16
        %v2401 = vrot.slane %v2399, 5
        %v2402 = vsel %vm2196, %v2397, %v2401
        %v2403 = vshrl.u32 %v2162, 16
        %v2405 = vrot.slane %v2403, 4
        %v2406 = vor.u32 %v2405, %v2401
        %v2407 = vrot.slane %v2406, 4
        %v2409 = vshll.u32 %v2186, 16
        %v2411 = vrot.slane %v2409, 5
        %v2412 = vsel %vm2196, %v2407, %v2411
        %v2414 = vshrl.u32 %v2163, 16
        %v2416 = vrot.slane %v2414, 4
        %v2417 = vshll.u32 %v2163, 16
        %v2419 = vrot.slane %v2417, 5
        %v2420 = vor.u32 %v2416, %v2419
        %v2421 = vrot.slane %v2420, 4
        %v2423 = vshll.u32 %v2164, 16
        %v2425 = vrot.slane %v2423, 5
        %v2426 = vsel %vm2196, %v2421, %v2425
        %v2427 = vshrl.u32 %v2164, 16
        %v2429 = vrot.slane %v2427, 4
        %v2430 = vor.u32 %v2429, %v2425
        %v2431 = vrot.slane %v2430, 4
        %v2433 = vshll.u32 %v2187, 16
        %v2435 = vrot.slane %v2433, 5
        %v2436 = vsel %vm2196, %v2431, %v2435
        %v2438 = vshrl.u32 %v2165, 16
        %v2440 = vrot.slane %v2438, 4
        %v2441 = vshll.u32 %v2165, 16
        %v2443 = vrot.slane %v2441, 5
        %v2444 = vor.u32 %v2440, %v2443
        %v2445 = vrot.slane %v2444, 4
        %v2447 = vshll.u32 %v2166, 16
        %v2449 = vrot.slane %v2447, 5
        %v2450 = vsel %vm2196, %v2445, %v2449
        %v2451 = vshrl.u32 %v2166, 16
        %v2453 = vrot.slane %v2451, 4
        %v2454 = vor.u32 %v2453, %v2449
        %v2455 = vrot.slane %v2454, 4
        %v2457 = vshll.u32 %v2188, 16
        %v2459 = vrot.slane %v2457, 5
        %v2460 = vsel %vm2196, %v2455, %v2459
        %v2462 = vshrl.u32 %v2167, 16
        %v2464 = vrot.slane %v2462, 4
        %v2465 = vshll.u32 %v2167, 16
        %v2467 = vrot.slane %v2465, 5
        %v2468 = vor.u32 %v2464, %v2467
        %v2469 = vrot.slane %v2468, 4
        %v2471 = vshll.u32 %v2168, 16
        %v2473 = vrot.slane %v2471, 5
        %v2474 = vsel %vm2196, %v2469, %v2473
        %v2475 = vshrl.u32 %v2168, 16
        %v2477 = vrot.slane %v2475, 4
        %v2478 = vor.u32 %v2477, %v2473
        %v2479 = vrot.slane %v2478, 4
        %v2481 = vshll.u32 %v2189, 16
        %v2483 = vrot.slane %v2481, 5
        %v2484 = vsel %vm2196, %v2479, %v2483
        %v2486 = vshrl.u32 %v2169, 16
        %v2488 = vrot.slane %v2486, 4
        %v2489 = vshll.u32 %v2169, 16
        %v2491 = vrot.slane %v2489, 5
        %v2492 = vor.u32 %v2488, %v2491
        %v2493 = vrot.slane %v2492, 4
        %v2495 = vshll.u32 %v2170, 16
        %v2497 = vrot.slane %v2495, 5
        %v2498 = vsel %vm2196, %v2493, %v2497
        %v2499 = vshrl.u32 %v2170, 16
        %v2501 = vrot.slane %v2499, 4
        %v2502 = vor.u32 %v2501, %v2497
        %v2503 = vrot.slane %v2502, 4
        %v2505 = vshll.u32 %v2190, 16
        %v2507 = vrot.slane %v2505, 5
        %v2508 = vsel %vm2196, %v2503, %v2507
        %v2510 = vshrl.u32 %v2171, 16
        %v2512 = vrot.slane %v2510, 4
        %v2513 = vshll.u32 %v2171, 16
        %v2515 = vrot.slane %v2513, 5
        %v2516 = vor.u32 %v2512, %v2515
        %v2517 = vrot.slane %v2516, 4
        %v2519 = vshll.u32 %v2172, 16
        %v2521 = vrot.slane %v2519, 5
        %v2522 = vsel %vm2196, %v2517, %v2521
        %v2523 = vshrl.u32 %v2172, 16
        %v2525 = vrot.slane %v2523, 4
        %v2526 = vor.u32 %v2525, %v2521
        %v2527 = vrot.slane %v2526, 4
        %v2529 = vshll.u32 %v2191, 16
        %v2531 = vrot.slane %v2529, 5
        %v2532 = vsel %vm2196, %v2527, %v2531
        %v2534 = vshrl.u32 %v2173, 16
        %v2536 = vrot.slane %v2534, 4
        %v2537 = vshll.u32 %v2173, 16
        %v2539 = vrot.slane %v2537, 5
        %v2540 = vor.u32 %v2536, %v2539
        %v2541 = vrot.slane %v2540, 4
        %v2543 = vshll.u32 %v2174, 16
        %v2545 = vrot.slane %v2543, 5
        %v2546 = vsel %vm2196, %v2541, %v2545
        %v2547 = vshrl.u32 %v2174, 16
        %v2549 = vrot.slane %v2547, 4
        %v2550 = vor.u32 %v2549, %v2545
        %v2551 = vrot.slane %v2550, 4
        %v2553 = vshll.u32 %v2192, 16
        %v2555 = vrot.slane %v2553, 5
        %v2556 = vsel %vm2196, %v2551, %v2555
        %v2558 = vshrl.u32 %v2175, 16
        %v2560 = vrot.slane %v2558, 4
        %v2561 = vshll.u32 %v2175, 16
        %v2563 = vrot.slane %v2561, 5
        %v2564 = vor.u32 %v2560, %v2563
        %v2565 = vrot.slane %v2564, 4
        %v2567 = vshll.u32 %v2176, 16
        %v2569 = vrot.slane %v2567, 5
        %v2570 = vsel %vm2196, %v2565, %v2569
        %v2571 = vshrl.u32 %v2176, 16
        %v2573 = vrot.slane %v2571, 4
        %v2574 = vor.u32 %v2573, %v2569
        %v2575 = vrot.slane %v2574, 4
        %v2577 = vshll.u32 %v2193, 16
        %v2579 = vrot.slane %v2577, 5
        %v2580 = vsel %vm2196, %v2575, %v2579
        %v2581 = vld [vmem:[%s4 + $0x4] sm:$0xf]
        %v2582 = vunpack.c.l.b16 %v2210
        %v2583 = vunpack.c.l.b16 %v2220
        %v2584 = vunpack.c.l.b16 %v2234
        %v2585 = vunpack.c.l.b16 %v2244
        %v2586 = vunpack.c.l.b16 %v2258
        %v2587 = vunpack.c.l.b16 %v2268
        %v2588 = vunpack.c.l.b16 %v2282
        %v2589 = vunpack.c.l.b16 %v2292
        %v2590 = vunpack.c.l.b16 %v2306
        %v2591 = vunpack.c.l.b16 %v2316
        %v2592 = vunpack.c.l.b16 %v2330
        %v2593 = vunpack.c.l.b16 %v2340
        %v2594 = vunpack.c.l.b16 %v2354
        %v2595 = vunpack.c.l.b16 %v2364
        %v2596 = vunpack.c.l.b16 %v2378
        %v2597 = vunpack.c.l.b16 %v2388
        %v2598 = vunpack.c.l.b16 %v2402
        %v2599 = vunpack.c.l.b16 %v2412
        %v2600 = vunpack.c.l.b16 %v2426
        %v2601 = vunpack.c.l.b16 %v2436
        %v2602 = vunpack.c.l.b16 %v2450
        %v2603 = vunpack.c.l.b16 %v2460
        %v2604 = vunpack.c.l.b16 %v2474
        %v2605 = vunpack.c.l.b16 %v2484
        %v2606 = vunpack.c.l.b16 %v2498
        %v2607 = vunpack.c.l.b16 %v2508
        %v2608 = vunpack.c.l.b16 %v2522
        %v2609 = vunpack.c.l.b16 %v2532
        %v2610 = vunpack.c.l.b16 %v2546
        %v2611 = vunpack.c.l.b16 %v2556
        %v2612 = vunpack.c.l.b16 %v2570
        %v2613 = vunpack.c.l.b16 %v2580
        %v2614 = vpack.c.b16 %v2583, %v2582
        %v2615 = vpack.c.b16 %v2585, %v2584
        %v2616 = vpack.c.b16 %v2587, %v2586
        %v2617 = vpack.c.b16 %v2589, %v2588
        %v2618 = vpack.c.b16 %v2591, %v2590
        %v2619 = vpack.c.b16 %v2593, %v2592
        %v2620 = vpack.c.b16 %v2595, %v2594
        %v2621 = vpack.c.b16 %v2597, %v2596
        %v2622 = vpack.c.b16 %v2599, %v2598
        %v2623 = vpack.c.b16 %v2601, %v2600
        %v2624 = vpack.c.b16 %v2603, %v2602
        %v2625 = vpack.c.b16 %v2605, %v2604
        %v2626 = vpack.c.b16 %v2607, %v2606
        %v2627 = vpack.c.b16 %v2609, %v2608
        %v2628 = vpack.c.b16 %v2611, %v2610
        %v2629 = vpack.c.b16 %v2613, %v2612
        %v2631 = vsel %vm717, %v2614, 0
        %v2634 = vsel %vm717, %v2615, 0
        %v2637 = vsel %vm717, %v2616, 0
        %v2640 = vsel %vm717, %v2617, 0
        %v2643 = vsel %vm717, %v2618, 0
        %v2646 = vsel %vm717, %v2619, 0
        %v2649 = vsel %vm717, %v2620, 0
        %v2652 = vsel %vm717, %v2621, 0
        %v2655 = vsel %vm717, %v2622, 0
        %v2658 = vsel %vm717, %v2623, 0
        %v2661 = vsel %vm717, %v2624, 0
        %v2664 = vsel %vm717, %v2625, 0
        %v2667 = vsel %vm717, %v2626, 0
        %v2670 = vsel %vm717, %v2627, 0
        %v2673 = vsel %vm717, %v2628, 0
        %v2676 = vsel %vm717, %v2629, 0
        %vm2678 = vcmask 1043456
        %v2680 = vsel %vm2678, %v2581, 0
        %2682 = vmatpush.bf16.msra.mxu0 0
        %2683 = vmatpush.bf16.msra.mxu0 0
        %2684 = vmatpush.bf16.msra.mxu0 0
        %2685 = vmatpush.bf16.msra.mxu0 0
        %2686 = vmatpush.bf16.msra.mxu0 0
        %2687 = vmatpush.bf16.msra.mxu0 0
        %2688 = vmatpush.bf16.msra.mxu0 0
        %2689 = vmatpush.bf16.msra.mxu0 %v2680
        %2690 = vmatmul.bf16.gmra.mxu0 %v2631
        %v2691 = vpop.f32.mrf.mxu0
        %v2692 = vadd.f32 0.0, %v2691
        %v2693 = vpop.f32.mrf.mxu0
        %v2694 = vadd.f32 0.0, %v2693
        %2695 = vmatmul.bf16.gmra.mxu0 %v2634
        %v2696 = vpop.f32.mrf.mxu0
        %v2697 = vadd.f32 0.0, %v2696
        %v2698 = vpop.f32.mrf.mxu0
        %v2699 = vadd.f32 0.0, %v2698
        %2700 = vmatmul.bf16.gmra.mxu0 %v2637
        %v2701 = vpop.f32.mrf.mxu0
        %v2702 = vadd.f32 0.0, %v2701
        %v2703 = vpop.f32.mrf.mxu0
        %v2704 = vadd.f32 0.0, %v2703
        %2705 = vmatmul.bf16.gmra.mxu0 %v2640
        %v2706 = vpop.f32.mrf.mxu0
        %v2707 = vadd.f32 0.0, %v2706
        %v2708 = vpop.f32.mrf.mxu0
        %v2709 = vadd.f32 0.0, %v2708
        %2710 = vmatmul.bf16.gmra.mxu0 %v2643
        %v2711 = vpop.f32.mrf.mxu0
        %v2712 = vadd.f32 0.0, %v2711
        %v2713 = vpop.f32.mrf.mxu0
        %v2714 = vadd.f32 0.0, %v2713
        %2715 = vmatmul.bf16.gmra.mxu0 %v2646
        %v2716 = vpop.f32.mrf.mxu0
        %v2717 = vadd.f32 0.0, %v2716
        %v2718 = vpop.f32.mrf.mxu0
        %v2719 = vadd.f32 0.0, %v2718
        %2720 = vmatmul.bf16.gmra.mxu0 %v2649
        %v2721 = vpop.f32.mrf.mxu0
        %v2722 = vadd.f32 0.0, %v2721
        %v2723 = vpop.f32.mrf.mxu0
        %v2724 = vadd.f32 0.0, %v2723
        %2725 = vmatmul.bf16.gmra.mxu0 %v2652
        %v2726 = vpop.f32.mrf.mxu0
        %v2727 = vadd.f32 0.0, %v2726
        %v2728 = vpop.f32.mrf.mxu0
        %v2729 = vadd.f32 0.0, %v2728
        %2730 = vmatmul.bf16.gmra.mxu0 %v2655
        %v2731 = vpop.f32.mrf.mxu0
        %v2732 = vadd.f32 0.0, %v2731
        %v2733 = vpop.f32.mrf.mxu0
        %v2734 = vadd.f32 0.0, %v2733
        %2735 = vmatmul.bf16.gmra.mxu0 %v2658
        %v2736 = vpop.f32.mrf.mxu0
        %v2737 = vadd.f32 0.0, %v2736
        %v2738 = vpop.f32.mrf.mxu0
        %v2739 = vadd.f32 0.0, %v2738
        %2740 = vmatmul.bf16.gmra.mxu0 %v2661
        %v2741 = vpop.f32.mrf.mxu0
        %v2742 = vadd.f32 0.0, %v2741
        %v2743 = vpop.f32.mrf.mxu0
        %v2744 = vadd.f32 0.0, %v2743
        %2745 = vmatmul.bf16.gmra.mxu0 %v2664
        %v2746 = vpop.f32.mrf.mxu0
        %v2747 = vadd.f32 0.0, %v2746
        %v2748 = vpop.f32.mrf.mxu0
        %v2749 = vadd.f32 0.0, %v2748
        %2750 = vmatmul.bf16.gmra.mxu0 %v2667
        %v2751 = vpop.f32.mrf.mxu0
        %v2752 = vadd.f32 0.0, %v2751
        %v2753 = vpop.f32.mrf.mxu0
        %v2754 = vadd.f32 0.0, %v2753
        %2755 = vmatmul.bf16.gmra.mxu0 %v2670
        %v2756 = vpop.f32.mrf.mxu0
        %v2757 = vadd.f32 0.0, %v2756
        %v2758 = vpop.f32.mrf.mxu0
        %v2759 = vadd.f32 0.0, %v2758
        %2760 = vmatmul.bf16.gmra.mxu0 %v2673
        %v2761 = vpop.f32.mrf.mxu0
        %v2762 = vadd.f32 0.0, %v2761
        %v2763 = vpop.f32.mrf.mxu0
        %v2764 = vadd.f32 0.0, %v2763
        %2765 = vmatmul.bf16.gmra.mxu0 %v2676
        %v2766 = vpop.f32.mrf.mxu0
        %v2767 = vadd.f32 0.0, %v2766
        %v2768 = vpop.f32.mrf.mxu0
        %v2769 = vadd.f32 0.0, %v2768
        %2770 = vdwg.mxu0
        %v2803 = vunpack.c.l.b16 %v2145
        %v2804 = vunpack.c.l.b16 %v2146
        %v2805 = vunpack.c.l.b16 %v2147
        %v2806 = vunpack.c.l.b16 %v2148
        %v2807 = vunpack.c.l.b16 %v2149
        %v2808 = vunpack.c.l.b16 %v2150
        %v2809 = vunpack.c.l.b16 %v2151
        %v2810 = vunpack.c.l.b16 %v2152
        %v2811 = vunpack.c.l.b16 %v2153
        %v2812 = vunpack.c.l.b16 %v2154
        %v2813 = vunpack.c.l.b16 %v2155
        %v2814 = vunpack.c.l.b16 %v2156
        %v2815 = vunpack.c.l.b16 %v2157
        %v2816 = vunpack.c.l.b16 %v2158
        %v2817 = vunpack.c.l.b16 %v2159
        %v2818 = vunpack.c.l.b16 %v2160
        %v2819 = vunpack.c.l.b16 %v2161
        %v2820 = vunpack.c.l.b16 %v2162
        %v2821 = vunpack.c.l.b16 %v2163
        %v2822 = vunpack.c.l.b16 %v2164
        %v2823 = vunpack.c.l.b16 %v2165
        %v2824 = vunpack.c.l.b16 %v2166
        %v2825 = vunpack.c.l.b16 %v2167
        %v2826 = vunpack.c.l.b16 %v2168
        %v2827 = vunpack.c.l.b16 %v2169
        %v2828 = vunpack.c.l.b16 %v2170
        %v2829 = vunpack.c.l.b16 %v2171
        %v2830 = vunpack.c.l.b16 %v2172
        %v2831 = vunpack.c.l.b16 %v2173
        %v2832 = vunpack.c.l.b16 %v2174
        %v2833 = vunpack.c.l.b16 %v2175
        %v2834 = vunpack.c.l.b16 %v2176
        %v2835 = vpack.c.b16 %v2804, %v2803
        %v2836 = vpack.c.b16 %v2806, %v2805
        %v2837 = vpack.c.b16 %v2808, %v2807
        %v2838 = vpack.c.b16 %v2810, %v2809
        %v2839 = vpack.c.b16 %v2812, %v2811
        %v2840 = vpack.c.b16 %v2814, %v2813
        %v2841 = vpack.c.b16 %v2816, %v2815
        %v2842 = vpack.c.b16 %v2818, %v2817
        %v2843 = vpack.c.b16 %v2820, %v2819
        %v2844 = vpack.c.b16 %v2822, %v2821
        %v2845 = vpack.c.b16 %v2824, %v2823
        %v2846 = vpack.c.b16 %v2826, %v2825
        %v2847 = vpack.c.b16 %v2828, %v2827
        %v2848 = vpack.c.b16 %v2830, %v2829
        %v2849 = vpack.c.b16 %v2832, %v2831
        %v2850 = vpack.c.b16 %v2834, %v2833
        %v2852 = vsel %vm717, %v2835, 0
        %v2855 = vsel %vm717, %v2836, 0
        %v2858 = vsel %vm717, %v2837, 0
        %v2861 = vsel %vm717, %v2838, 0
        %v2864 = vsel %vm717, %v2839, 0
        %v2867 = vsel %vm717, %v2840, 0
        %v2870 = vsel %vm717, %v2841, 0
        %v2873 = vsel %vm717, %v2842, 0
        %v2876 = vsel %vm717, %v2843, 0
        %v2879 = vsel %vm717, %v2844, 0
        %v2882 = vsel %vm717, %v2845, 0
        %v2885 = vsel %vm717, %v2846, 0
        %v2888 = vsel %vm717, %v2847, 0
        %v2891 = vsel %vm717, %v2848, 0
        %v2894 = vsel %vm717, %v2849, 0
        %v2897 = vsel %vm717, %v2850, 0
        %v2900 = vsel %vm2678, %v2177, 0
        %2902 = vmatpush.bf16.msra.mxu0 0
        %2903 = vmatpush.bf16.msra.mxu0 0
        %2904 = vmatpush.bf16.msra.mxu0 0
        %2905 = vmatpush.bf16.msra.mxu0 0
        %2906 = vmatpush.bf16.msra.mxu0 0
        %2907 = vmatpush.bf16.msra.mxu0 0
        %2908 = vmatpush.bf16.msra.mxu0 0
        %2909 = vmatpush.bf16.msra.mxu0 %v2900
        %2910 = vmatmul.bf16.gmra.mxu0 %v2852
        %v2911 = vpop.f32.mrf.mxu0
        %v2912 = vadd.f32 %v2692, %v2911
        %v2913 = vpop.f32.mrf.mxu0
        %v2914 = vadd.f32 %v2694, %v2913
        %2915 = vmatmul.bf16.gmra.mxu0 %v2855
        %v2916 = vpop.f32.mrf.mxu0
        %v2917 = vadd.f32 %v2697, %v2916
        %v2918 = vpop.f32.mrf.mxu0
        %v2919 = vadd.f32 %v2699, %v2918
        %2920 = vmatmul.bf16.gmra.mxu0 %v2858
        %v2921 = vpop.f32.mrf.mxu0
        %v2922 = vadd.f32 %v2702, %v2921
        %v2923 = vpop.f32.mrf.mxu0
        %v2924 = vadd.f32 %v2704, %v2923
        %2925 = vmatmul.bf16.gmra.mxu0 %v2861
        %v2926 = vpop.f32.mrf.mxu0
        %v2927 = vadd.f32 %v2707, %v2926
        %v2928 = vpop.f32.mrf.mxu0
        %v2929 = vadd.f32 %v2709, %v2928
        %2930 = vmatmul.bf16.gmra.mxu0 %v2864
        %v2931 = vpop.f32.mrf.mxu0
        %v2932 = vadd.f32 %v2712, %v2931
        %v2933 = vpop.f32.mrf.mxu0
        %v2934 = vadd.f32 %v2714, %v2933
        %2935 = vmatmul.bf16.gmra.mxu0 %v2867
        %v2936 = vpop.f32.mrf.mxu0
        %v2937 = vadd.f32 %v2717, %v2936
        %v2938 = vpop.f32.mrf.mxu0
        %v2939 = vadd.f32 %v2719, %v2938
        %2940 = vmatmul.bf16.gmra.mxu0 %v2870
        %v2941 = vpop.f32.mrf.mxu0
        %v2942 = vadd.f32 %v2722, %v2941
        %v2943 = vpop.f32.mrf.mxu0
        %v2944 = vadd.f32 %v2724, %v2943
        %2945 = vmatmul.bf16.gmra.mxu0 %v2873
        %v2946 = vpop.f32.mrf.mxu0
        %v2947 = vadd.f32 %v2727, %v2946
        %v2948 = vpop.f32.mrf.mxu0
        %v2949 = vadd.f32 %v2729, %v2948
        %2950 = vmatmul.bf16.gmra.mxu0 %v2876
        %v2951 = vpop.f32.mrf.mxu0
        %v2952 = vadd.f32 %v2732, %v2951
        %v2953 = vpop.f32.mrf.mxu0
        %v2954 = vadd.f32 %v2734, %v2953
        %2955 = vmatmul.bf16.gmra.mxu0 %v2879
        %v2956 = vpop.f32.mrf.mxu0
        %v2957 = vadd.f32 %v2737, %v2956
        %v2958 = vpop.f32.mrf.mxu0
        %v2959 = vadd.f32 %v2739, %v2958
        %2960 = vmatmul.bf16.gmra.mxu0 %v2882
        %v2961 = vpop.f32.mrf.mxu0
        %v2962 = vadd.f32 %v2742, %v2961
        %v2963 = vpop.f32.mrf.mxu0
        %v2964 = vadd.f32 %v2744, %v2963
        %2965 = vmatmul.bf16.gmra.mxu0 %v2885
        %v2966 = vpop.f32.mrf.mxu0
        %v2967 = vadd.f32 %v2747, %v2966
        %v2968 = vpop.f32.mrf.mxu0
        %v2969 = vadd.f32 %v2749, %v2968
        %2970 = vmatmul.bf16.gmra.mxu0 %v2888
        %v2971 = vpop.f32.mrf.mxu0
        %v2972 = vadd.f32 %v2752, %v2971
        %v2973 = vpop.f32.mrf.mxu0
        %v2974 = vadd.f32 %v2754, %v2973
        %2975 = vmatmul.bf16.gmra.mxu0 %v2891
        %v2976 = vpop.f32.mrf.mxu0
        %v2977 = vadd.f32 %v2757, %v2976
        %v2978 = vpop.f32.mrf.mxu0
        %v2979 = vadd.f32 %v2759, %v2978
        %2980 = vmatmul.bf16.gmra.mxu0 %v2894
        %v2981 = vpop.f32.mrf.mxu0
        %v2982 = vadd.f32 %v2762, %v2981
        %v2983 = vpop.f32.mrf.mxu0
        %v2984 = vadd.f32 %v2764, %v2983
        %2985 = vmatmul.bf16.gmra.mxu0 %v2897
        %v2986 = vpop.f32.mrf.mxu0
        %v2987 = vadd.f32 %v2767, %v2986
        %v2988 = vpop.f32.mrf.mxu0
        %v2989 = vadd.f32 %v2769, %v2988
        %2990 = vdwg.mxu0
        %v2991 = vld [vmem:[#allocation2] sm:$0xe]
        %v2992 = vld [vmem:[#allocation2 + $0xc] sm:$0xe]
        %v2993 = vld [vmem:[#allocation2 + $0x18] sm:$0xe]
        %v2994 = vld [vmem:[#allocation2 + $0x24] sm:$0xe]
        %v2995 = vld [vmem:[#allocation2 + $0x30] sm:$0xe]
        %v2996 = vld [vmem:[#allocation2 + $0x3c] sm:$0xe]
        %v2997 = vld [vmem:[#allocation2 + $0x48] sm:$0xe]
        %v2998 = vld [vmem:[#allocation2 + $0x54] sm:$0xe]
        %v2999 = vld [vmem:[#allocation2 + $0x60] sm:$0xe]
        %v3000 = vld [vmem:[#allocation2 + $0x6c] sm:$0xe]
        %v3001 = vld [vmem:[#allocation2 + $0x78] sm:$0xe]
        %v3002 = vld [vmem:[#allocation2 + $0x84] sm:$0xe]
        %v3003 = vld [vmem:[#allocation2 + $0x90] sm:$0xe]
        %v3004 = vld [vmem:[#allocation2 + $0x9c] sm:$0xe]
        %v3005 = vld [vmem:[#allocation2 + $0xa8] sm:$0xe]
        %v3006 = vld [vmem:[#allocation2 + $0xb4] sm:$0xe]
        %vm3039 = vcmask 1042432
        %vm3040 = vcmask 1046532
        %vm3041 = vmor %vm3039, %vm3040
        %v3042 = vrot.slane %v2991, 5
        %v3043 = vrot.slane %v3042, 4
        %v3044 = vrot.slane %v2146, 5
        %v3045 = vsel %vm3041, %v3043, %v3044
        %v3046 = vrot.slane %v3044, 4
        %v3047 = vrot.slane %v2178, 5
        %v3048 = vsel %vm3041, %v3046, %v3047
        %v3049 = vrot.slane %v2992, 5
        %v3050 = vrot.slane %v3049, 4
        %v3051 = vrot.slane %v2148, 5
        %v3052 = vsel %vm3041, %v3050, %v3051
        %v3053 = vrot.slane %v3051, 4
        %v3054 = vrot.slane %v2179, 5
        %v3055 = vsel %vm3041, %v3053, %v3054
        %v3056 = vrot.slane %v2993, 5
        %v3057 = vrot.slane %v3056, 4
        %v3058 = vrot.slane %v2150, 5
        %v3059 = vsel %vm3041, %v3057, %v3058
        %v3060 = vrot.slane %v3058, 4
        %v3061 = vrot.slane %v2180, 5
        %v3062 = vsel %vm3041, %v3060, %v3061
        %v3063 = vrot.slane %v2994, 5
        %v3064 = vrot.slane %v3063, 4
        %v3065 = vrot.slane %v2152, 5
        %v3066 = vsel %vm3041, %v3064, %v3065
        %v3067 = vrot.slane %v3065, 4
        %v3068 = vrot.slane %v2181, 5
        %v3069 = vsel %vm3041, %v3067, %v3068
        %v3070 = vrot.slane %v2995, 5
        %v3071 = vrot.slane %v3070, 4
        %v3072 = vrot.slane %v2154, 5
        %v3073 = vsel %vm3041, %v3071, %v3072
        %v3074 = vrot.slane %v3072, 4
        %v3075 = vrot.slane %v2182, 5
        %v3076 = vsel %vm3041, %v3074, %v3075
        %v3077 = vrot.slane %v2996, 5
        %v3078 = vrot.slane %v3077, 4
        %v3079 = vrot.slane %v2156, 5
        %v3080 = vsel %vm3041, %v3078, %v3079
        %v3081 = vrot.slane %v3079, 4
        %v3082 = vrot.slane %v2183, 5
        %v3083 = vsel %vm3041, %v3081, %v3082
        %v3084 = vrot.slane %v2997, 5
        %v3085 = vrot.slane %v3084, 4
        %v3086 = vrot.slane %v2158, 5
        %v3087 = vsel %vm3041, %v3085, %v3086
        %v3088 = vrot.slane %v3086, 4
        %v3089 = vrot.slane %v2184, 5
        %v3090 = vsel %vm3041, %v3088, %v3089
        %v3091 = vrot.slane %v2998, 5
        %v3092 = vrot.slane %v3091, 4
        %v3093 = vrot.slane %v2160, 5
        %v3094 = vsel %vm3041, %v3092, %v3093
        %v3095 = vrot.slane %v3093, 4
        %v3096 = vrot.slane %v2185, 5
        %v3097 = vsel %vm3041, %v3095, %v3096
        %v3098 = vrot.slane %v2999, 5
        %v3099 = vrot.slane %v3098, 4
        %v3100 = vrot.slane %v2162, 5
        %v3101 = vsel %vm3041, %v3099, %v3100
        %v3102 = vrot.slane %v3100, 4
        %v3103 = vrot.slane %v2186, 5
        %v3104 = vsel %vm3041, %v3102, %v3103
        %v3105 = vrot.slane %v3000, 5
        %v3106 = vrot.slane %v3105, 4
        %v3107 = vrot.slane %v2164, 5
        %v3108 = vsel %vm3041, %v3106, %v3107
        %v3109 = vrot.slane %v3107, 4
        %v3110 = vrot.slane %v2187, 5
        %v3111 = vsel %vm3041, %v3109, %v3110
        %v3112 = vrot.slane %v3001, 5
        %v3113 = vrot.slane %v3112, 4
        %v3114 = vrot.slane %v2166, 5
        %v3115 = vsel %vm3041, %v3113, %v3114
        %v3116 = vrot.slane %v3114, 4
        %v3117 = vrot.slane %v2188, 5
        %v3118 = vsel %vm3041, %v3116, %v3117
        %v3119 = vrot.slane %v3002, 5
        %v3120 = vrot.slane %v3119, 4
        %v3121 = vrot.slane %v2168, 5
        %v3122 = vsel %vm3041, %v3120, %v3121
        %v3123 = vrot.slane %v3121, 4
        %v3124 = vrot.slane %v2189, 5
        %v3125 = vsel %vm3041, %v3123, %v3124
        %v3126 = vrot.slane %v3003, 5
        %v3127 = vrot.slane %v3126, 4
        %v3128 = vrot.slane %v2170, 5
        %v3129 = vsel %vm3041, %v3127, %v3128
        %v3130 = vrot.slane %v3128, 4
        %v3131 = vrot.slane %v2190, 5
        %v3132 = vsel %vm3041, %v3130, %v3131
        %v3133 = vrot.slane %v3004, 5
        %v3134 = vrot.slane %v3133, 4
        %v3135 = vrot.slane %v2172, 5
        %v3136 = vsel %vm3041, %v3134, %v3135
        %v3137 = vrot.slane %v3135, 4
        %v3138 = vrot.slane %v2191, 5
        %v3139 = vsel %vm3041, %v3137, %v3138
        %v3140 = vrot.slane %v3005, 5
        %v3141 = vrot.slane %v3140, 4
        %v3142 = vrot.slane %v2174, 5
        %v3143 = vsel %vm3041, %v3141, %v3142
        %v3144 = vrot.slane %v3142, 4
        %v3145 = vrot.slane %v2192, 5
        %v3146 = vsel %vm3041, %v3144, %v3145
        %v3147 = vrot.slane %v3006, 5
        %v3148 = vrot.slane %v3147, 4
        %v3149 = vrot.slane %v2176, 5
        %v3150 = vsel %vm3041, %v3148, %v3149
        %v3151 = vrot.slane %v3149, 4
        %v3152 = vrot.slane %v2193, 5
        %v3153 = vsel %vm3041, %v3151, %v3152
        %v3154 = vld [vmem:[%s4 + $0x8] sm:$0xf]
        %v3155 = vunpack.c.l.b16 %v3045
        %v3156 = vunpack.c.l.b16 %v3048
        %v3157 = vunpack.c.l.b16 %v3052
        %v3158 = vunpack.c.l.b16 %v3055
        %v3159 = vunpack.c.l.b16 %v3059
        %v3160 = vunpack.c.l.b16 %v3062
        %v3161 = vunpack.c.l.b16 %v3066
        %v3162 = vunpack.c.l.b16 %v3069
        %v3163 = vunpack.c.l.b16 %v3073
        %v3164 = vunpack.c.l.b16 %v3076
        %v3165 = vunpack.c.l.b16 %v3080
        %v3166 = vunpack.c.l.b16 %v3083
        %v3167 = vunpack.c.l.b16 %v3087
        %v3168 = vunpack.c.l.b16 %v3090
        %v3169 = vunpack.c.l.b16 %v3094
        %v3170 = vunpack.c.l.b16 %v3097
        %v3171 = vunpack.c.l.b16 %v3101
        %v3172 = vunpack.c.l.b16 %v3104
        %v3173 = vunpack.c.l.b16 %v3108
        %v3174 = vunpack.c.l.b16 %v3111
        %v3175 = vunpack.c.l.b16 %v3115
        %v3176 = vunpack.c.l.b16 %v3118
        %v3177 = vunpack.c.l.b16 %v3122
        %v3178 = vunpack.c.l.b16 %v3125
        %v3179 = vunpack.c.l.b16 %v3129
        %v3180 = vunpack.c.l.b16 %v3132
        %v3181 = vunpack.c.l.b16 %v3136
        %v3182 = vunpack.c.l.b16 %v3139
        %v3183 = vunpack.c.l.b16 %v3143
        %v3184 = vunpack.c.l.b16 %v3146
        %v3185 = vunpack.c.l.b16 %v3150
        %v3186 = vunpack.c.l.b16 %v3153
        %v3187 = vpack.c.b16 %v3156, %v3155
        %v3188 = vpack.c.b16 %v3158, %v3157
        %v3189 = vpack.c.b16 %v3160, %v3159
        %v3190 = vpack.c.b16 %v3162, %v3161
        %v3191 = vpack.c.b16 %v3164, %v3163
        %v3192 = vpack.c.b16 %v3166, %v3165
        %v3193 = vpack.c.b16 %v3168, %v3167
        %v3194 = vpack.c.b16 %v3170, %v3169
        %v3195 = vpack.c.b16 %v3172, %v3171
        %v3196 = vpack.c.b16 %v3174, %v3173
        %v3197 = vpack.c.b16 %v3176, %v3175
        %v3198 = vpack.c.b16 %v3178, %v3177
        %v3199 = vpack.c.b16 %v3180, %v3179
        %v3200 = vpack.c.b16 %v3182, %v3181
        %v3201 = vpack.c.b16 %v3184, %v3183
        %v3202 = vpack.c.b16 %v3186, %v3185
        %v3204 = vsel %vm717, %v3187, 0
        %v3207 = vsel %vm717, %v3188, 0
        %v3210 = vsel %vm717, %v3189, 0
        %v3213 = vsel %vm717, %v3190, 0
        %v3216 = vsel %vm717, %v3191, 0
        %v3219 = vsel %vm717, %v3192, 0
        %v3222 = vsel %vm717, %v3193, 0
        %v3225 = vsel %vm717, %v3194, 0
        %v3228 = vsel %vm717, %v3195, 0
        %v3231 = vsel %vm717, %v3196, 0
        %v3234 = vsel %vm717, %v3197, 0
        %v3237 = vsel %vm717, %v3198, 0
        %v3240 = vsel %vm717, %v3199, 0
        %v3243 = vsel %vm717, %v3200, 0
        %v3246 = vsel %vm717, %v3201, 0
        %v3249 = vsel %vm717, %v3202, 0
        %v3252 = vsel %vm2678, %v3154, 0
        %3254 = vmatpush.bf16.msra.mxu0 0
        %3255 = vmatpush.bf16.msra.mxu0 0
        %3256 = vmatpush.bf16.msra.mxu0 0
        %3257 = vmatpush.bf16.msra.mxu0 0
        %3258 = vmatpush.bf16.msra.mxu0 0
        %3259 = vmatpush.bf16.msra.mxu0 0
        %3260 = vmatpush.bf16.msra.mxu0 0
        %3261 = vmatpush.bf16.msra.mxu0 %v3252
        %3262 = vmatmul.bf16.gmra.mxu0 %v3204
        %v3263 = vpop.f32.mrf.mxu0
        %v3264 = vadd.f32 0.0, %v3263
        %v3265 = vpop.f32.mrf.mxu0
        %v3266 = vadd.f32 0.0, %v3265
        %3267 = vmatmul.bf16.gmra.mxu0 %v3207
        %v3268 = vpop.f32.mrf.mxu0
        %v3269 = vadd.f32 0.0, %v3268
        %v3270 = vpop.f32.mrf.mxu0
        %v3271 = vadd.f32 0.0, %v3270
        %3272 = vmatmul.bf16.gmra.mxu0 %v3210
        %v3273 = vpop.f32.mrf.mxu0
        %v3274 = vadd.f32 0.0, %v3273
        %v3275 = vpop.f32.mrf.mxu0
        %v3276 = vadd.f32 0.0, %v3275
        %3277 = vmatmul.bf16.gmra.mxu0 %v3213
        %v3278 = vpop.f32.mrf.mxu0
        %v3279 = vadd.f32 0.0, %v3278
        %v3280 = vpop.f32.mrf.mxu0
        %v3281 = vadd.f32 0.0, %v3280
        %3282 = vmatmul.bf16.gmra.mxu0 %v3216
        %v3283 = vpop.f32.mrf.mxu0
        %v3284 = vadd.f32 0.0, %v3283
        %v3285 = vpop.f32.mrf.mxu0
        %v3286 = vadd.f32 0.0, %v3285
        %3287 = vmatmul.bf16.gmra.mxu0 %v3219
        %v3288 = vpop.f32.mrf.mxu0
        %v3289 = vadd.f32 0.0, %v3288
        %v3290 = vpop.f32.mrf.mxu0
        %v3291 = vadd.f32 0.0, %v3290
        %3292 = vmatmul.bf16.gmra.mxu0 %v3222
        %v3293 = vpop.f32.mrf.mxu0
        %v3294 = vadd.f32 0.0, %v3293
        %v3295 = vpop.f32.mrf.mxu0
        %v3296 = vadd.f32 0.0, %v3295
        %3297 = vmatmul.bf16.gmra.mxu0 %v3225
        %v3298 = vpop.f32.mrf.mxu0
        %v3299 = vadd.f32 0.0, %v3298
        %v3300 = vpop.f32.mrf.mxu0
        %v3301 = vadd.f32 0.0, %v3300
        %3302 = vmatmul.bf16.gmra.mxu0 %v3228
        %v3303 = vpop.f32.mrf.mxu0
        %v3304 = vadd.f32 0.0, %v3303
        %v3305 = vpop.f32.mrf.mxu0
        %v3306 = vadd.f32 0.0, %v3305
        %3307 = vmatmul.bf16.gmra.mxu0 %v3231
        %v3308 = vpop.f32.mrf.mxu0
        %v3309 = vadd.f32 0.0, %v3308
        %v3310 = vpop.f32.mrf.mxu0
        %v3311 = vadd.f32 0.0, %v3310
        %3312 = vmatmul.bf16.gmra.mxu0 %v3234
        %v3313 = vpop.f32.mrf.mxu0
        %v3314 = vadd.f32 0.0, %v3313
        %v3315 = vpop.f32.mrf.mxu0
        %v3316 = vadd.f32 0.0, %v3315
        %3317 = vmatmul.bf16.gmra.mxu0 %v3237
        %v3318 = vpop.f32.mrf.mxu0
        %v3319 = vadd.f32 0.0, %v3318
        %v3320 = vpop.f32.mrf.mxu0
        %v3321 = vadd.f32 0.0, %v3320
        %3322 = vmatmul.bf16.gmra.mxu0 %v3240
        %v3323 = vpop.f32.mrf.mxu0
        %v3324 = vadd.f32 0.0, %v3323
        %v3325 = vpop.f32.mrf.mxu0
        %v3326 = vadd.f32 0.0, %v3325
        %3327 = vmatmul.bf16.gmra.mxu0 %v3243
        %v3328 = vpop.f32.mrf.mxu0
        %v3329 = vadd.f32 0.0, %v3328
        %v3330 = vpop.f32.mrf.mxu0
        %v3331 = vadd.f32 0.0, %v3330
        %3332 = vmatmul.bf16.gmra.mxu0 %v3246
        %v3333 = vpop.f32.mrf.mxu0
        %v3334 = vadd.f32 0.0, %v3333
        %v3335 = vpop.f32.mrf.mxu0
        %v3336 = vadd.f32 0.0, %v3335
        %3337 = vmatmul.bf16.gmra.mxu0 %v3249
        %v3338 = vpop.f32.mrf.mxu0
        %v3339 = vadd.f32 0.0, %v3338
        %v3340 = vpop.f32.mrf.mxu0
        %v3341 = vadd.f32 0.0, %v3340
        %3342 = vdwg.mxu0
        %v3343 = vadd.f32 %v2912, %v3264
        %v3344 = vadd.f32 %v2914, %v3266
        %v3345 = vadd.f32 %v2917, %v3269
        %v3346 = vadd.f32 %v2919, %v3271
        %v3347 = vadd.f32 %v2922, %v3274
        %v3348 = vadd.f32 %v2924, %v3276
        %v3349 = vadd.f32 %v2927, %v3279
        %v3350 = vadd.f32 %v2929, %v3281
        %v3351 = vadd.f32 %v2932, %v3284
        %v3352 = vadd.f32 %v2934, %v3286
        %v3353 = vadd.f32 %v2937, %v3289
        %v3354 = vadd.f32 %v2939, %v3291
        %v3355 = vadd.f32 %v2942, %v3294
        %v3356 = vadd.f32 %v2944, %v3296
        %v3357 = vadd.f32 %v2947, %v3299
        %v3358 = vadd.f32 %v2949, %v3301
        %v3359 = vadd.f32 %v2952, %v3304
        %v3360 = vadd.f32 %v2954, %v3306
        %v3361 = vadd.f32 %v2957, %v3309
        %v3362 = vadd.f32 %v2959, %v3311
        %v3363 = vadd.f32 %v2962, %v3314
        %v3364 = vadd.f32 %v2964, %v3316
        %v3365 = vadd.f32 %v2967, %v3319
        %v3366 = vadd.f32 %v2969, %v3321
        %v3367 = vadd.f32 %v2972, %v3324
        %v3368 = vadd.f32 %v2974, %v3326
        %v3369 = vadd.f32 %v2977, %v3329
        %v3370 = vadd.f32 %v2979, %v3331
        %v3371 = vadd.f32 %v2982, %v3334
        %v3372 = vadd.f32 %v2984, %v3336
        %v3373 = vadd.f32 %v2987, %v3339
        %v3374 = vadd.f32 %v2989, %v3341
        %v3375 = vld [vmem:[%s2030] sm:$0xf]
        %v3376 = vld [vmem:[%s2030 + $0x4] sm:$0xf]
        %v3377 = vld [vmem:[%s2030 + $0xc] sm:$0xf]
        %v3378 = vld [vmem:[%s2030 + $0x10] sm:$0xf]
        %v3379 = vld [vmem:[%s2030 + $0x18] sm:$0xf]
        %v3380 = vld [vmem:[%s2030 + $0x1c] sm:$0xf]
        %v3381 = vld [vmem:[%s2030 + $0x24] sm:$0xf]
        %v3382 = vld [vmem:[%s2030 + $0x28] sm:$0xf]
        %v3383 = vld [vmem:[%s2030 + $0x30] sm:$0xf]
        %v3384 = vld [vmem:[%s2030 + $0x34] sm:$0xf]
        %v3385 = vld [vmem:[%s2030 + $0x3c] sm:$0xf]
        %v3386 = vld [vmem:[%s2030 + $0x40] sm:$0xf]
        %v3387 = vld [vmem:[%s2030 + $0x48] sm:$0xf]
        %v3388 = vld [vmem:[%s2030 + $0x4c] sm:$0xf]
        %v3389 = vld [vmem:[%s2030 + $0x54] sm:$0xf]
        %v3390 = vld [vmem:[%s2030 + $0x58] sm:$0xf]
        %v3391 = vld [vmem:[%s2030 + $0x60] sm:$0xf]
        %v3392 = vld [vmem:[%s2030 + $0x64] sm:$0xf]
        %v3393 = vld [vmem:[%s2030 + $0x6c] sm:$0xf]
        %v3394 = vld [vmem:[%s2030 + $0x70] sm:$0xf]
        %v3395 = vld [vmem:[%s2030 + $0x78] sm:$0xf]
        %v3396 = vld [vmem:[%s2030 + $0x7c] sm:$0xf]
        %v3397 = vld [vmem:[%s2030 + $0x84] sm:$0xf]
        %v3398 = vld [vmem:[%s2030 + $0x88] sm:$0xf]
        %v3399 = vld [vmem:[%s2030 + $0x90] sm:$0xf]
        %v3400 = vld [vmem:[%s2030 + $0x94] sm:$0xf]
        %v3401 = vld [vmem:[%s2030 + $0x9c] sm:$0xf]
        %v3402 = vld [vmem:[%s2030 + $0xa0] sm:$0xf]
        %v3403 = vld [vmem:[%s2030 + $0xa8] sm:$0xf]
        %v3404 = vld [vmem:[%s2030 + $0xac] sm:$0xf]
        %v3405 = vld [vmem:[%s2030 + $0xb4] sm:$0xf]
        %v3406 = vld [vmem:[%s2030 + $0xb8] sm:$0xf]
        %v3407 = vld [vmem:[%s4 + $0xc] sm:$0xf]
        %v3440 = vunpack.c.l.b16 %v3375
        %v3441 = vunpack.c.l.b16 %v3376
        %v3442 = vunpack.c.l.b16 %v3377
        %v3443 = vunpack.c.l.b16 %v3378
        %v3444 = vunpack.c.l.b16 %v3379
        %v3445 = vunpack.c.l.b16 %v3380
        %v3446 = vunpack.c.l.b16 %v3381
        %v3447 = vunpack.c.l.b16 %v3382
        %v3448 = vunpack.c.l.b16 %v3383
        %v3449 = vunpack.c.l.b16 %v3384
        %v3450 = vunpack.c.l.b16 %v3385
        %v3451 = vunpack.c.l.b16 %v3386
        %v3452 = vunpack.c.l.b16 %v3387
        %v3453 = vunpack.c.l.b16 %v3388
        %v3454 = vunpack.c.l.b16 %v3389
        %v3455 = vunpack.c.l.b16 %v3390
        %v3456 = vunpack.c.l.b16 %v3391
        %v3457 = vunpack.c.l.b16 %v3392
        %v3458 = vunpack.c.l.b16 %v3393
        %v3459 = vunpack.c.l.b16 %v3394
        %v3460 = vunpack.c.l.b16 %v3395
        %v3461 = vunpack.c.l.b16 %v3396
        %v3462 = vunpack.c.l.b16 %v3397
        %v3463 = vunpack.c.l.b16 %v3398
        %v3464 = vunpack.c.l.b16 %v3399
        %v3465 = vunpack.c.l.b16 %v3400
        %v3466 = vunpack.c.l.b16 %v3401
        %v3467 = vunpack.c.l.b16 %v3402
        %v3468 = vunpack.c.l.b16 %v3403
        %v3469 = vunpack.c.l.b16 %v3404
        %v3470 = vunpack.c.l.b16 %v3405
        %v3471 = vunpack.c.l.b16 %v3406
        %v3472 = vpack.c.b16 %v3441, %v3440
        %v3473 = vpack.c.b16 %v3443, %v3442
        %v3474 = vpack.c.b16 %v3445, %v3444
        %v3475 = vpack.c.b16 %v3447, %v3446
        %v3476 = vpack.c.b16 %v3449, %v3448
        %v3477 = vpack.c.b16 %v3451, %v3450
        %v3478 = vpack.c.b16 %v3453, %v3452
        %v3479 = vpack.c.b16 %v3455, %v3454
        %v3480 = vpack.c.b16 %v3457, %v3456
        %v3481 = vpack.c.b16 %v3459, %v3458
        %v3482 = vpack.c.b16 %v3461, %v3460
        %v3483 = vpack.c.b16 %v3463, %v3462
        %v3484 = vpack.c.b16 %v3465, %v3464
        %v3485 = vpack.c.b16 %v3467, %v3466
        %v3486 = vpack.c.b16 %v3469, %v3468
        %v3487 = vpack.c.b16 %v3471, %v3470
        %v3489 = vsel %vm717, %v3472, 0
        %v3492 = vsel %vm717, %v3473, 0
        %v3495 = vsel %vm717, %v3474, 0
        %v3498 = vsel %vm717, %v3475, 0
        %v3501 = vsel %vm717, %v3476, 0
        %v3504 = vsel %vm717, %v3477, 0
        %v3507 = vsel %vm717, %v3478, 0
        %v3510 = vsel %vm717, %v3479, 0
        %v3513 = vsel %vm717, %v3480, 0
        %v3516 = vsel %vm717, %v3481, 0
        %v3519 = vsel %vm717, %v3482, 0
        %v3522 = vsel %vm717, %v3483, 0
        %v3525 = vsel %vm717, %v3484, 0
        %v3528 = vsel %vm717, %v3485, 0
        %v3531 = vsel %vm717, %v3486, 0
        %v3534 = vsel %vm717, %v3487, 0
        %v3537 = vsel %vm2678, %v3407, 0
        %3539 = vmatpush.bf16.msra.mxu0 0
        %3540 = vmatpush.bf16.msra.mxu0 0
        %3541 = vmatpush.bf16.msra.mxu0 0
        %3542 = vmatpush.bf16.msra.mxu0 0
        %3543 = vmatpush.bf16.msra.mxu0 0
        %3544 = vmatpush.bf16.msra.mxu0 0
        %3545 = vmatpush.bf16.msra.mxu0 0
        %3546 = vmatpush.bf16.msra.mxu0 %v3537
        %3547 = vmatmul.bf16.gmra.mxu0 %v3489
        %v3548 = vpop.f32.mrf.mxu0
        %v3549 = vadd.f32 0.0, %v3548
        %v3550 = vpop.f32.mrf.mxu0
        %v3551 = vadd.f32 0.0, %v3550
        %3552 = vmatmul.bf16.gmra.mxu0 %v3492
        %v3553 = vpop.f32.mrf.mxu0
        %v3554 = vadd.f32 0.0, %v3553
        %v3555 = vpop.f32.mrf.mxu0
        %v3556 = vadd.f32 0.0, %v3555
        %3557 = vmatmul.bf16.gmra.mxu0 %v3495
        %v3558 = vpop.f32.mrf.mxu0
        %v3559 = vadd.f32 0.0, %v3558
        %v3560 = vpop.f32.mrf.mxu0
        %v3561 = vadd.f32 0.0, %v3560
        %3562 = vmatmul.bf16.gmra.mxu0 %v3498
        %v3563 = vpop.f32.mrf.mxu0
        %v3564 = vadd.f32 0.0, %v3563
        %v3565 = vpop.f32.mrf.mxu0
        %v3566 = vadd.f32 0.0, %v3565
        %3567 = vmatmul.bf16.gmra.mxu0 %v3501
        %v3568 = vpop.f32.mrf.mxu0
        %v3569 = vadd.f32 0.0, %v3568
        %v3570 = vpop.f32.mrf.mxu0
        %v3571 = vadd.f32 0.0, %v3570
        %3572 = vmatmul.bf16.gmra.mxu0 %v3504
        %v3573 = vpop.f32.mrf.mxu0
        %v3574 = vadd.f32 0.0, %v3573
        %v3575 = vpop.f32.mrf.mxu0
        %v3576 = vadd.f32 0.0, %v3575
        %3577 = vmatmul.bf16.gmra.mxu0 %v3507
        %v3578 = vpop.f32.mrf.mxu0
        %v3579 = vadd.f32 0.0, %v3578
        %v3580 = vpop.f32.mrf.mxu0
        %v3581 = vadd.f32 0.0, %v3580
        %3582 = vmatmul.bf16.gmra.mxu0 %v3510
        %v3583 = vpop.f32.mrf.mxu0
        %v3584 = vadd.f32 0.0, %v3583
        %v3585 = vpop.f32.mrf.mxu0
        %v3586 = vadd.f32 0.0, %v3585
        %3587 = vmatmul.bf16.gmra.mxu0 %v3513
        %v3588 = vpop.f32.mrf.mxu0
        %v3589 = vadd.f32 0.0, %v3588
        %v3590 = vpop.f32.mrf.mxu0
        %v3591 = vadd.f32 0.0, %v3590
        %3592 = vmatmul.bf16.gmra.mxu0 %v3516
        %v3593 = vpop.f32.mrf.mxu0
        %v3594 = vadd.f32 0.0, %v3593
        %v3595 = vpop.f32.mrf.mxu0
        %v3596 = vadd.f32 0.0, %v3595
        %3597 = vmatmul.bf16.gmra.mxu0 %v3519
        %v3598 = vpop.f32.mrf.mxu0
        %v3599 = vadd.f32 0.0, %v3598
        %v3600 = vpop.f32.mrf.mxu0
        %v3601 = vadd.f32 0.0, %v3600
        %3602 = vmatmul.bf16.gmra.mxu0 %v3522
        %v3603 = vpop.f32.mrf.mxu0
        %v3604 = vadd.f32 0.0, %v3603
        %v3605 = vpop.f32.mrf.mxu0
        %v3606 = vadd.f32 0.0, %v3605
        %3607 = vmatmul.bf16.gmra.mxu0 %v3525
        %v3608 = vpop.f32.mrf.mxu0
        %v3609 = vadd.f32 0.0, %v3608
        %v3610 = vpop.f32.mrf.mxu0
        %v3611 = vadd.f32 0.0, %v3610
        %3612 = vmatmul.bf16.gmra.mxu0 %v3528
        %v3613 = vpop.f32.mrf.mxu0
        %v3614 = vadd.f32 0.0, %v3613
        %v3615 = vpop.f32.mrf.mxu0
        %v3616 = vadd.f32 0.0, %v3615
        %3617 = vmatmul.bf16.gmra.mxu0 %v3531
        %v3618 = vpop.f32.mrf.mxu0
        %v3619 = vadd.f32 0.0, %v3618
        %v3620 = vpop.f32.mrf.mxu0
        %v3621 = vadd.f32 0.0, %v3620
        %3622 = vmatmul.bf16.gmra.mxu0 %v3534
        %v3623 = vpop.f32.mrf.mxu0
        %v3624 = vadd.f32 0.0, %v3623
        %v3625 = vpop.f32.mrf.mxu0
        %v3626 = vadd.f32 0.0, %v3625
        %3627 = vdwg.mxu0
        %v3628 = vadd.f32 %v3343, %v3549
        %v3629 = vadd.f32 %v3344, %v3551
        %v3630 = vadd.f32 %v3345, %v3554
        %v3631 = vadd.f32 %v3346, %v3556
        %v3632 = vadd.f32 %v3347, %v3559
        %v3633 = vadd.f32 %v3348, %v3561
        %v3634 = vadd.f32 %v3349, %v3564
        %v3635 = vadd.f32 %v3350, %v3566
        %v3636 = vadd.f32 %v3351, %v3569
        %v3637 = vadd.f32 %v3352, %v3571
        %v3638 = vadd.f32 %v3353, %v3574
        %v3639 = vadd.f32 %v3354, %v3576
        %v3640 = vadd.f32 %v3355, %v3579
        %v3641 = vadd.f32 %v3356, %v3581
        %v3642 = vadd.f32 %v3357, %v3584
        %v3643 = vadd.f32 %v3358, %v3586
        %v3644 = vadd.f32 %v3359, %v3589
        %v3645 = vadd.f32 %v3360, %v3591
        %v3646 = vadd.f32 %v3361, %v3594
        %v3647 = vadd.f32 %v3362, %v3596
        %v3648 = vadd.f32 %v3363, %v3599
        %v3649 = vadd.f32 %v3364, %v3601
        %v3650 = vadd.f32 %v3365, %v3604
        %v3651 = vadd.f32 %v3366, %v3606
        %v3652 = vadd.f32 %v3367, %v3609
        %v3653 = vadd.f32 %v3368, %v3611
        %v3654 = vadd.f32 %v3369, %v3614
        %v3655 = vadd.f32 %v3370, %v3616
        %v3656 = vadd.f32 %v3371, %v3619
        %v3657 = vadd.f32 %v3372, %v3621
        %v3658 = vadd.f32 %v3373, %v3624
        %v3659 = vadd.f32 %v3374, %v3626
        %v3660 = vld [vmem:[%s2030] sm:$0xf]
        %v3661 = vld [vmem:[%s2030 + $0x4] sm:$0xf]
        %v3662 = vld [vmem:[%s2030 + $0x8] sm:$0x1]
        %v3663 = vld [vmem:[%s2030 + $0xc] sm:$0xf]
        %v3664 = vld [vmem:[%s2030 + $0x10] sm:$0xf]
        %v3665 = vld [vmem:[%s2030 + $0x14] sm:$0x1]
        %v3666 = vld [vmem:[%s2030 + $0x18] sm:$0xf]
        %v3667 = vld [vmem:[%s2030 + $0x1c] sm:$0xf]
        %v3668 = vld [vmem:[%s2030 + $0x20] sm:$0x1]
        %v3669 = vld [vmem:[%s2030 + $0x24] sm:$0xf]
        %v3670 = vld [vmem:[%s2030 + $0x28] sm:$0xf]
        %v3671 = vld [vmem:[%s2030 + $0x2c] sm:$0x1]
        %v3672 = vld [vmem:[%s2030 + $0x30] sm:$0xf]
        %v3673 = vld [vmem:[%s2030 + $0x34] sm:$0xf]
        %v3674 = vld [vmem:[%s2030 + $0x38] sm:$0x1]
        %v3675 = vld [vmem:[%s2030 + $0x3c] sm:$0xf]
        %v3676 = vld [vmem:[%s2030 + $0x40] sm:$0xf]
        %v3677 = vld [vmem:[%s2030 + $0x44] sm:$0x1]
        %v3678 = vld [vmem:[%s2030 + $0x48] sm:$0xf]
        %v3679 = vld [vmem:[%s2030 + $0x4c] sm:$0xf]
        %v3680 = vld [vmem:[%s2030 + $0x50] sm:$0x1]
        %v3681 = vld [vmem:[%s2030 + $0x54] sm:$0xf]
        %v3682 = vld [vmem:[%s2030 + $0x58] sm:$0xf]
        %v3683 = vld [vmem:[%s2030 + $0x5c] sm:$0x1]
        %v3684 = vld [vmem:[%s2030 + $0x60] sm:$0xf]
        %v3685 = vld [vmem:[%s2030 + $0x64] sm:$0xf]
        %v3686 = vld [vmem:[%s2030 + $0x68] sm:$0x1]
        %v3687 = vld [vmem:[%s2030 + $0x6c] sm:$0xf]
        %v3688 = vld [vmem:[%s2030 + $0x70] sm:$0xf]
        %v3689 = vld [vmem:[%s2030 + $0x74] sm:$0x1]
        %v3690 = vld [vmem:[%s2030 + $0x78] sm:$0xf]
        %v3691 = vld [vmem:[%s2030 + $0x7c] sm:$0xf]
        %v3692 = vld [vmem:[%s2030 + $0x80] sm:$0x1]
        %v3693 = vld [vmem:[%s2030 + $0x84] sm:$0xf]
        %v3694 = vld [vmem:[%s2030 + $0x88] sm:$0xf]
        %v3695 = vld [vmem:[%s2030 + $0x8c] sm:$0x1]
        %v3696 = vld [vmem:[%s2030 + $0x90] sm:$0xf]
        %v3697 = vld [vmem:[%s2030 + $0x94] sm:$0xf]
        %v3698 = vld [vmem:[%s2030 + $0x98] sm:$0x1]
        %v3699 = vld [vmem:[%s2030 + $0x9c] sm:$0xf]
        %v3700 = vld [vmem:[%s2030 + $0xa0] sm:$0xf]
        %v3701 = vld [vmem:[%s2030 + $0xa4] sm:$0x1]
        %v3702 = vld [vmem:[%s2030 + $0xa8] sm:$0xf]
        %v3703 = vld [vmem:[%s2030 + $0xac] sm:$0xf]
        %v3704 = vld [vmem:[%s2030 + $0xb0] sm:$0x1]
        %v3705 = vld [vmem:[%s2030 + $0xb4] sm:$0xf]
        %v3706 = vld [vmem:[%s2030 + $0xb8] sm:$0xf]
        %v3707 = vld [vmem:[%s2030 + $0xbc] sm:$0x1]
        %v3709 = vshrl.u32 %v3660, 16
        %v3711 = vrot.slane %v3709, 4
        %v3712 = vshll.u32 %v3660, 16
        %v3714 = vrot.slane %v3712, 5
        %v3715 = vor.u32 %v3711, %v3714
        %v3716 = vrot.slane %v3715, 4
        %v3718 = vshll.u32 %v3661, 16
        %v3720 = vrot.slane %v3718, 5
        %v3721 = vsel %vm2196, %v3716, %v3720
        %v3722 = vshrl.u32 %v3661, 16
        %v3724 = vrot.slane %v3722, 4
        %v3725 = vor.u32 %v3724, %v3720
        %v3726 = vrot.slane %v3725, 4
        %v3728 = vshll.u32 %v3662, 16
        %v3730 = vrot.slane %v3728, 5
        %v3731 = vsel %vm2196, %v3726, %v3730
        %v3733 = vshrl.u32 %v3663, 16
        %v3735 = vrot.slane %v3733, 4
        %v3736 = vshll.u32 %v3663, 16
        %v3738 = vrot.slane %v3736, 5
        %v3739 = vor.u32 %v3735, %v3738
        %v3740 = vrot.slane %v3739, 4
        %v3742 = vshll.u32 %v3664, 16
        %v3744 = vrot.slane %v3742, 5
        %v3745 = vsel %vm2196, %v3740, %v3744
        %v3746 = vshrl.u32 %v3664, 16
        %v3748 = vrot.slane %v3746, 4
        %v3749 = vor.u32 %v3748, %v3744
        %v3750 = vrot.slane %v3749, 4
        %v3752 = vshll.u32 %v3665, 16
        %v3754 = vrot.slane %v3752, 5
        %v3755 = vsel %vm2196, %v3750, %v3754
        %v3757 = vshrl.u32 %v3666, 16
        %v3759 = vrot.slane %v3757, 4
        %v3760 = vshll.u32 %v3666, 16
        %v3762 = vrot.slane %v3760, 5
        %v3763 = vor.u32 %v3759, %v3762
        %v3764 = vrot.slane %v3763, 4
        %v3766 = vshll.u32 %v3667, 16
        %v3768 = vrot.slane %v3766, 5
        %v3769 = vsel %vm2196, %v3764, %v3768
        %v3770 = vshrl.u32 %v3667, 16
        %v3772 = vrot.slane %v3770, 4
        %v3773 = vor.u32 %v3772, %v3768
        %v3774 = vrot.slane %v3773, 4
        %v3776 = vshll.u32 %v3668, 16
        %v3778 = vrot.slane %v3776, 5
        %v3779 = vsel %vm2196, %v3774, %v3778
        %v3781 = vshrl.u32 %v3669, 16
        %v3783 = vrot.slane %v3781, 4
        %v3784 = vshll.u32 %v3669, 16
        %v3786 = vrot.slane %v3784, 5
        %v3787 = vor.u32 %v3783, %v3786
        %v3788 = vrot.slane %v3787, 4
        %v3790 = vshll.u32 %v3670, 16
        %v3792 = vrot.slane %v3790, 5
        %v3793 = vsel %vm2196, %v3788, %v3792
        %v3794 = vshrl.u32 %v3670, 16
        %v3796 = vrot.slane %v3794, 4
        %v3797 = vor.u32 %v3796, %v3792
        %v3798 = vrot.slane %v3797, 4
        %v3800 = vshll.u32 %v3671, 16
        %v3802 = vrot.slane %v3800, 5
        %v3803 = vsel %vm2196, %v3798, %v3802
        %v3805 = vshrl.u32 %v3672, 16
        %v3807 = vrot.slane %v3805, 4
        %v3808 = vshll.u32 %v3672, 16
        %v3810 = vrot.slane %v3808, 5
        %v3811 = vor.u32 %v3807, %v3810
        %v3812 = vrot.slane %v3811, 4
        %v3814 = vshll.u32 %v3673, 16
        %v3816 = vrot.slane %v3814, 5
        %v3817 = vsel %vm2196, %v3812, %v3816
        %v3818 = vshrl.u32 %v3673, 16
        %v3820 = vrot.slane %v3818, 4
        %v3821 = vor.u32 %v3820, %v3816
        %v3822 = vrot.slane %v3821, 4
        %v3824 = vshll.u32 %v3674, 16
        %v3826 = vrot.slane %v3824, 5
        %v3827 = vsel %vm2196, %v3822, %v3826
        %v3829 = vshrl.u32 %v3675, 16
        %v3831 = vrot.slane %v3829, 4
        %v3832 = vshll.u32 %v3675, 16
        %v3834 = vrot.slane %v3832, 5
        %v3835 = vor.u32 %v3831, %v3834
        %v3836 = vrot.slane %v3835, 4
        %v3838 = vshll.u32 %v3676, 16
        %v3840 = vrot.slane %v3838, 5
        %v3841 = vsel %vm2196, %v3836, %v3840
        %v3842 = vshrl.u32 %v3676, 16
        %v3844 = vrot.slane %v3842, 4
        %v3845 = vor.u32 %v3844, %v3840
        %v3846 = vrot.slane %v3845, 4
        %v3848 = vshll.u32 %v3677, 16
        %v3850 = vrot.slane %v3848, 5
        %v3851 = vsel %vm2196, %v3846, %v3850
        %v3853 = vshrl.u32 %v3678, 16
        %v3855 = vrot.slane %v3853, 4
        %v3856 = vshll.u32 %v3678, 16
        %v3858 = vrot.slane %v3856, 5
        %v3859 = vor.u32 %v3855, %v3858
        %v3860 = vrot.slane %v3859, 4
        %v3862 = vshll.u32 %v3679, 16
        %v3864 = vrot.slane %v3862, 5
        %v3865 = vsel %vm2196, %v3860, %v3864
        %v3866 = vshrl.u32 %v3679, 16
        %v3868 = vrot.slane %v3866, 4
        %v3869 = vor.u32 %v3868, %v3864
        %v3870 = vrot.slane %v3869, 4
        %v3872 = vshll.u32 %v3680, 16
        %v3874 = vrot.slane %v3872, 5
        %v3875 = vsel %vm2196, %v3870, %v3874
        %v3877 = vshrl.u32 %v3681, 16
        %v3879 = vrot.slane %v3877, 4
        %v3880 = vshll.u32 %v3681, 16
        %v3882 = vrot.slane %v3880, 5
        %v3883 = vor.u32 %v3879, %v3882
        %v3884 = vrot.slane %v3883, 4
        %v3886 = vshll.u32 %v3682, 16
        %v3888 = vrot.slane %v3886, 5
        %v3889 = vsel %vm2196, %v3884, %v3888
        %v3890 = vshrl.u32 %v3682, 16
        %v3892 = vrot.slane %v3890, 4
        %v3893 = vor.u32 %v3892, %v3888
        %v3894 = vrot.slane %v3893, 4
        %v3896 = vshll.u32 %v3683, 16
        %v3898 = vrot.slane %v3896, 5
        %v3899 = vsel %vm2196, %v3894, %v3898
        %v3901 = vshrl.u32 %v3684, 16
        %v3903 = vrot.slane %v3901, 4
        %v3904 = vshll.u32 %v3684, 16
        %v3906 = vrot.slane %v3904, 5
        %v3907 = vor.u32 %v3903, %v3906
        %v3908 = vrot.slane %v3907, 4
        %v3910 = vshll.u32 %v3685, 16
        %v3912 = vrot.slane %v3910, 5
        %v3913 = vsel %vm2196, %v3908, %v3912
        %v3914 = vshrl.u32 %v3685, 16
        %v3916 = vrot.slane %v3914, 4
        %v3917 = vor.u32 %v3916, %v3912
        %v3918 = vrot.slane %v3917, 4
        %v3920 = vshll.u32 %v3686, 16
        %v3922 = vrot.slane %v3920, 5
        %v3923 = vsel %vm2196, %v3918, %v3922
        %v3925 = vshrl.u32 %v3687, 16
        %v3927 = vrot.slane %v3925, 4
        %v3928 = vshll.u32 %v3687, 16
        %v3930 = vrot.slane %v3928, 5
        %v3931 = vor.u32 %v3927, %v3930
        %v3932 = vrot.slane %v3931, 4
        %v3934 = vshll.u32 %v3688, 16
        %v3936 = vrot.slane %v3934, 5
        %v3937 = vsel %vm2196, %v3932, %v3936
        %v3938 = vshrl.u32 %v3688, 16
        %v3940 = vrot.slane %v3938, 4
        %v3941 = vor.u32 %v3940, %v3936
        %v3942 = vrot.slane %v3941, 4
        %v3944 = vshll.u32 %v3689, 16
        %v3946 = vrot.slane %v3944, 5
        %v3947 = vsel %vm2196, %v3942, %v3946
        %v3949 = vshrl.u32 %v3690, 16
        %v3951 = vrot.slane %v3949, 4
        %v3952 = vshll.u32 %v3690, 16
        %v3954 = vrot.slane %v3952, 5
        %v3955 = vor.u32 %v3951, %v3954
        %v3956 = vrot.slane %v3955, 4
        %v3958 = vshll.u32 %v3691, 16
        %v3960 = vrot.slane %v3958, 5
        %v3961 = vsel %vm2196, %v3956, %v3960
        %v3962 = vshrl.u32 %v3691, 16
        %v3964 = vrot.slane %v3962, 4
        %v3965 = vor.u32 %v3964, %v3960
        %v3966 = vrot.slane %v3965, 4
        %v3968 = vshll.u32 %v3692, 16
        %v3970 = vrot.slane %v3968, 5
        %v3971 = vsel %vm2196, %v3966, %v3970
        %v3973 = vshrl.u32 %v3693, 16
        %v3975 = vrot.slane %v3973, 4
        %v3976 = vshll.u32 %v3693, 16
        %v3978 = vrot.slane %v3976, 5
        %v3979 = vor.u32 %v3975, %v3978
        %v3980 = vrot.slane %v3979, 4
        %v3982 = vshll.u32 %v3694, 16
        %v3984 = vrot.slane %v3982, 5
        %v3985 = vsel %vm2196, %v3980, %v3984
        %v3986 = vshrl.u32 %v3694, 16
        %v3988 = vrot.slane %v3986, 4
        %v3989 = vor.u32 %v3988, %v3984
        %v3990 = vrot.slane %v3989, 4
        %v3992 = vshll.u32 %v3695, 16
        %v3994 = vrot.slane %v3992, 5
        %v3995 = vsel %vm2196, %v3990, %v3994
        %v3997 = vshrl.u32 %v3696, 16
        %v3999 = vrot.slane %v3997, 4
        %v4000 = vshll.u32 %v3696, 16
        %v4002 = vrot.slane %v4000, 5
        %v4003 = vor.u32 %v3999, %v4002
        %v4004 = vrot.slane %v4003, 4
        %v4006 = vshll.u32 %v3697, 16
        %v4008 = vrot.slane %v4006, 5
        %v4009 = vsel %vm2196, %v4004, %v4008
        %v4010 = vshrl.u32 %v3697, 16
        %v4012 = vrot.slane %v4010, 4
        %v4013 = vor.u32 %v4012, %v4008
        %v4014 = vrot.slane %v4013, 4
        %v4016 = vshll.u32 %v3698, 16
        %v4018 = vrot.slane %v4016, 5
        %v4019 = vsel %vm2196, %v4014, %v4018
        %v4021 = vshrl.u32 %v3699, 16
        %v4023 = vrot.slane %v4021, 4
        %v4024 = vshll.u32 %v3699, 16
        %v4026 = vrot.slane %v4024, 5
        %v4027 = vor.u32 %v4023, %v4026
        %v4028 = vrot.slane %v4027, 4
        %v4030 = vshll.u32 %v3700, 16
        %v4032 = vrot.slane %v4030, 5
        %v4033 = vsel %vm2196, %v4028, %v4032
        %v4034 = vshrl.u32 %v3700, 16
        %v4036 = vrot.slane %v4034, 4
        %v4037 = vor.u32 %v4036, %v4032
        %v4038 = vrot.slane %v4037, 4
        %v4040 = vshll.u32 %v3701, 16
        %v4042 = vrot.slane %v4040, 5
        %v4043 = vsel %vm2196, %v4038, %v4042
        %v4045 = vshrl.u32 %v3702, 16
        %v4047 = vrot.slane %v4045, 4
        %v4048 = vshll.u32 %v3702, 16
        %v4050 = vrot.slane %v4048, 5
        %v4051 = vor.u32 %v4047, %v4050
        %v4052 = vrot.slane %v4051, 4
        %v4054 = vshll.u32 %v3703, 16
        %v4056 = vrot.slane %v4054, 5
        %v4057 = vsel %vm2196, %v4052, %v4056
        %v4058 = vshrl.u32 %v3703, 16
        %v4060 = vrot.slane %v4058, 4
        %v4061 = vor.u32 %v4060, %v4056
        %v4062 = vrot.slane %v4061, 4
        %v4064 = vshll.u32 %v3704, 16
        %v4066 = vrot.slane %v4064, 5
        %v4067 = vsel %vm2196, %v4062, %v4066
        %v4069 = vshrl.u32 %v3705, 16
        %v4071 = vrot.slane %v4069, 4
        %v4072 = vshll.u32 %v3705, 16
        %v4074 = vrot.slane %v4072, 5
        %v4075 = vor.u32 %v4071, %v4074
        %v4076 = vrot.slane %v4075, 4
        %v4078 = vshll.u32 %v3706, 16
        %v4080 = vrot.slane %v4078, 5
        %v4081 = vsel %vm2196, %v4076, %v4080
        %v4082 = vshrl.u32 %v3706, 16
        %v4084 = vrot.slane %v4082, 4
        %v4085 = vor.u32 %v4084, %v4080
        %v4086 = vrot.slane %v4085, 4
        %v4088 = vshll.u32 %v3707, 16
        %v4090 = vrot.slane %v4088, 5
        %v4091 = vsel %vm2196, %v4086, %v4090
        %v4092 = vld [vmem:[%s4 + $0x10] sm:$0xf]
        %v4093 = vunpack.c.l.b16 %v3721
        %v4094 = vunpack.c.l.b16 %v3731
        %v4095 = vunpack.c.l.b16 %v3745
        %v4096 = vunpack.c.l.b16 %v3755
        %v4097 = vunpack.c.l.b16 %v3769
        %v4098 = vunpack.c.l.b16 %v3779
        %v4099 = vunpack.c.l.b16 %v3793
        %v4100 = vunpack.c.l.b16 %v3803
        %v4101 = vunpack.c.l.b16 %v3817
        %v4102 = vunpack.c.l.b16 %v3827
        %v4103 = vunpack.c.l.b16 %v3841
        %v4104 = vunpack.c.l.b16 %v3851
        %v4105 = vunpack.c.l.b16 %v3865
        %v4106 = vunpack.c.l.b16 %v3875
        %v4107 = vunpack.c.l.b16 %v3889
        %v4108 = vunpack.c.l.b16 %v3899
        %v4109 = vunpack.c.l.b16 %v3913
        %v4110 = vunpack.c.l.b16 %v3923
        %v4111 = vunpack.c.l.b16 %v3937
        %v4112 = vunpack.c.l.b16 %v3947
        %v4113 = vunpack.c.l.b16 %v3961
        %v4114 = vunpack.c.l.b16 %v3971
        %v4115 = vunpack.c.l.b16 %v3985
        %v4116 = vunpack.c.l.b16 %v3995
        %v4117 = vunpack.c.l.b16 %v4009
        %v4118 = vunpack.c.l.b16 %v4019
        %v4119 = vunpack.c.l.b16 %v4033
        %v4120 = vunpack.c.l.b16 %v4043
        %v4121 = vunpack.c.l.b16 %v4057
        %v4122 = vunpack.c.l.b16 %v4067
        %v4123 = vunpack.c.l.b16 %v4081
        %v4124 = vunpack.c.l.b16 %v4091
        %v4125 = vpack.c.b16 %v4094, %v4093
        %v4126 = vpack.c.b16 %v4096, %v4095
        %v4127 = vpack.c.b16 %v4098, %v4097
        %v4128 = vpack.c.b16 %v4100, %v4099
        %v4129 = vpack.c.b16 %v4102, %v4101
        %v4130 = vpack.c.b16 %v4104, %v4103
        %v4131 = vpack.c.b16 %v4106, %v4105
        %v4132 = vpack.c.b16 %v4108, %v4107
        %v4133 = vpack.c.b16 %v4110, %v4109
        %v4134 = vpack.c.b16 %v4112, %v4111
        %v4135 = vpack.c.b16 %v4114, %v4113
        %v4136 = vpack.c.b16 %v4116, %v4115
        %v4137 = vpack.c.b16 %v4118, %v4117
        %v4138 = vpack.c.b16 %v4120, %v4119
        %v4139 = vpack.c.b16 %v4122, %v4121
        %v4140 = vpack.c.b16 %v4124, %v4123
        %v4142 = vsel %vm717, %v4125, 0
        %v4145 = vsel %vm717, %v4126, 0
        %v4148 = vsel %vm717, %v4127, 0
        %v4151 = vsel %vm717, %v4128, 0
        %v4154 = vsel %vm717, %v4129, 0
        %v4157 = vsel %vm717, %v4130, 0
        %v4160 = vsel %vm717, %v4131, 0
        %v4163 = vsel %vm717, %v4132, 0
        %v4166 = vsel %vm717, %v4133, 0
        %v4169 = vsel %vm717, %v4134, 0
        %v4172 = vsel %vm717, %v4135, 0
        %v4175 = vsel %vm717, %v4136, 0
        %v4178 = vsel %vm717, %v4137, 0
        %v4181 = vsel %vm717, %v4138, 0
        %v4184 = vsel %vm717, %v4139, 0
        %v4187 = vsel %vm717, %v4140, 0
        %v4190 = vsel %vm2678, %v4092, 0
        %4192 = vmatpush.bf16.msra.mxu0 0
        %4193 = vmatpush.bf16.msra.mxu0 0
        %4194 = vmatpush.bf16.msra.mxu0 0
        %4195 = vmatpush.bf16.msra.mxu0 0
        %4196 = vmatpush.bf16.msra.mxu0 0
        %4197 = vmatpush.bf16.msra.mxu0 0
        %4198 = vmatpush.bf16.msra.mxu0 0
        %4199 = vmatpush.bf16.msra.mxu0 %v4190
        %4200 = vmatmul.bf16.gmra.mxu0 %v4142
        %v4201 = vpop.f32.mrf.mxu0
        %v4202 = vadd.f32 0.0, %v4201
        %v4203 = vpop.f32.mrf.mxu0
        %v4204 = vadd.f32 0.0, %v4203
        %4205 = vmatmul.bf16.gmra.mxu0 %v4145
        %v4206 = vpop.f32.mrf.mxu0
        %v4207 = vadd.f32 0.0, %v4206
        %v4208 = vpop.f32.mrf.mxu0
        %v4209 = vadd.f32 0.0, %v4208
        %4210 = vmatmul.bf16.gmra.mxu0 %v4148
        %v4211 = vpop.f32.mrf.mxu0
        %v4212 = vadd.f32 0.0, %v4211
        %v4213 = vpop.f32.mrf.mxu0
        %v4214 = vadd.f32 0.0, %v4213
        %4215 = vmatmul.bf16.gmra.mxu0 %v4151
        %v4216 = vpop.f32.mrf.mxu0
        %v4217 = vadd.f32 0.0, %v4216
        %v4218 = vpop.f32.mrf.mxu0
        %v4219 = vadd.f32 0.0, %v4218
        %4220 = vmatmul.bf16.gmra.mxu0 %v4154
        %v4221 = vpop.f32.mrf.mxu0
        %v4222 = vadd.f32 0.0, %v4221
        %v4223 = vpop.f32.mrf.mxu0
        %v4224 = vadd.f32 0.0, %v4223
        %4225 = vmatmul.bf16.gmra.mxu0 %v4157
        %v4226 = vpop.f32.mrf.mxu0
        %v4227 = vadd.f32 0.0, %v4226
        %v4228 = vpop.f32.mrf.mxu0
        %v4229 = vadd.f32 0.0, %v4228
        %4230 = vmatmul.bf16.gmra.mxu0 %v4160
        %v4231 = vpop.f32.mrf.mxu0
        %v4232 = vadd.f32 0.0, %v4231
        %v4233 = vpop.f32.mrf.mxu0
        %v4234 = vadd.f32 0.0, %v4233
        %4235 = vmatmul.bf16.gmra.mxu0 %v4163
        %v4236 = vpop.f32.mrf.mxu0
        %v4237 = vadd.f32 0.0, %v4236
        %v4238 = vpop.f32.mrf.mxu0
        %v4239 = vadd.f32 0.0, %v4238
        %4240 = vmatmul.bf16.gmra.mxu0 %v4166
        %v4241 = vpop.f32.mrf.mxu0
        %v4242 = vadd.f32 0.0, %v4241
        %v4243 = vpop.f32.mrf.mxu0
        %v4244 = vadd.f32 0.0, %v4243
        %4245 = vmatmul.bf16.gmra.mxu0 %v4169
        %v4246 = vpop.f32.mrf.mxu0
        %v4247 = vadd.f32 0.0, %v4246
        %v4248 = vpop.f32.mrf.mxu0
        %v4249 = vadd.f32 0.0, %v4248
        %4250 = vmatmul.bf16.gmra.mxu0 %v4172
        %v4251 = vpop.f32.mrf.mxu0
        %v4252 = vadd.f32 0.0, %v4251
        %v4253 = vpop.f32.mrf.mxu0
        %v4254 = vadd.f32 0.0, %v4253
        %4255 = vmatmul.bf16.gmra.mxu0 %v4175
        %v4256 = vpop.f32.mrf.mxu0
        %v4257 = vadd.f32 0.0, %v4256
        %v4258 = vpop.f32.mrf.mxu0
        %v4259 = vadd.f32 0.0, %v4258
        %4260 = vmatmul.bf16.gmra.mxu0 %v4178
        %v4261 = vpop.f32.mrf.mxu0
        %v4262 = vadd.f32 0.0, %v4261
        %v4263 = vpop.f32.mrf.mxu0
        %v4264 = vadd.f32 0.0, %v4263
        %4265 = vmatmul.bf16.gmra.mxu0 %v4181
        %v4266 = vpop.f32.mrf.mxu0
        %v4267 = vadd.f32 0.0, %v4266
        %v4268 = vpop.f32.mrf.mxu0
        %v4269 = vadd.f32 0.0, %v4268
        %4270 = vmatmul.bf16.gmra.mxu0 %v4184
        %v4271 = vpop.f32.mrf.mxu0
        %v4272 = vadd.f32 0.0, %v4271
        %v4273 = vpop.f32.mrf.mxu0
        %v4274 = vadd.f32 0.0, %v4273
        %4275 = vmatmul.bf16.gmra.mxu0 %v4187
        %v4276 = vpop.f32.mrf.mxu0
        %v4277 = vadd.f32 0.0, %v4276
        %v4278 = vpop.f32.mrf.mxu0
        %v4279 = vadd.f32 0.0, %v4278
        %4280 = vdwg.mxu0
        %v4281 = vadd.f32 %v3628, %v4202
        %v4282 = vadd.f32 %v3629, %v4204
        %v4283 = vadd.f32 %v3630, %v4207
        %v4284 = vadd.f32 %v3631, %v4209
        %v4285 = vadd.f32 %v3632, %v4212
        %v4286 = vadd.f32 %v3633, %v4214
        %v4287 = vadd.f32 %v3634, %v4217
        %v4288 = vadd.f32 %v3635, %v4219
        %v4289 = vadd.f32 %v3636, %v4222
        %v4290 = vadd.f32 %v3637, %v4224
        %v4291 = vadd.f32 %v3638, %v4227
        %v4292 = vadd.f32 %v3639, %v4229
        %v4293 = vadd.f32 %v3640, %v4232
        %v4294 = vadd.f32 %v3641, %v4234
        %v4295 = vadd.f32 %v3642, %v4237
        %v4296 = vadd.f32 %v3643, %v4239
        %v4297 = vadd.f32 %v3644, %v4242
        %v4298 = vadd.f32 %v3645, %v4244
        %v4299 = vadd.f32 %v3646, %v4247
        %v4300 = vadd.f32 %v3647, %v4249
        %v4301 = vadd.f32 %v3648, %v4252
        %v4302 = vadd.f32 %v3649, %v4254
        %v4303 = vadd.f32 %v3650, %v4257
        %v4304 = vadd.f32 %v3651, %v4259
        %v4305 = vadd.f32 %v3652, %v4262
        %v4306 = vadd.f32 %v3653, %v4264
        %v4307 = vadd.f32 %v3654, %v4267
        %v4308 = vadd.f32 %v3655, %v4269
        %v4309 = vadd.f32 %v3656, %v4272
        %v4310 = vadd.f32 %v3657, %v4274
        %v4311 = vadd.f32 %v3658, %v4277
        %v4312 = vadd.f32 %v3659, %v4279
        %v4313 = vld [vmem:[%s2030] sm:$0xe]
        %v4314 = vld [vmem:[%s2030 + $0xc] sm:$0xe]
        %v4315 = vld [vmem:[%s2030 + $0x18] sm:$0xe]
        %v4316 = vld [vmem:[%s2030 + $0x24] sm:$0xe]
        %v4317 = vld [vmem:[%s2030 + $0x30] sm:$0xe]
        %v4318 = vld [vmem:[%s2030 + $0x3c] sm:$0xe]
        %v4319 = vld [vmem:[%s2030 + $0x48] sm:$0xe]
        %v4320 = vld [vmem:[%s2030 + $0x54] sm:$0xe]
        %v4321 = vld [vmem:[%s2030 + $0x60] sm:$0xe]
        %v4322 = vld [vmem:[%s2030 + $0x6c] sm:$0xe]
        %v4323 = vld [vmem:[%s2030 + $0x78] sm:$0xe]
        %v4324 = vld [vmem:[%s2030 + $0x84] sm:$0xe]
        %v4325 = vld [vmem:[%s2030 + $0x90] sm:$0xe]
        %v4326 = vld [vmem:[%s2030 + $0x9c] sm:$0xe]
        %v4327 = vld [vmem:[%s2030 + $0xa8] sm:$0xe]
        %v4328 = vld [vmem:[%s2030 + $0xb4] sm:$0xe]
        %v4377 = vrot.slane %v4313, 5
        %v4378 = vrot.slane %v4377, 4
        %v4379 = vrot.slane %v3661, 5
        %v4380 = vsel %vm3041, %v4378, %v4379
        %v4381 = vrot.slane %v4379, 4
        %v4382 = vrot.slane %v3662, 5
        %v4383 = vsel %vm3041, %v4381, %v4382
        %v4384 = vrot.slane %v4314, 5
        %v4385 = vrot.slane %v4384, 4
        %v4386 = vrot.slane %v3664, 5
        %v4387 = vsel %vm3041, %v4385, %v4386
        %v4388 = vrot.slane %v4386, 4
        %v4389 = vrot.slane %v3665, 5
        %v4390 = vsel %vm3041, %v4388, %v4389
        %v4391 = vrot.slane %v4315, 5
        %v4392 = vrot.slane %v4391, 4
        %v4393 = vrot.slane %v3667, 5
        %v4394 = vsel %vm3041, %v4392, %v4393
        %v4395 = vrot.slane %v4393, 4
        %v4396 = vrot.slane %v3668, 5
        %v4397 = vsel %vm3041, %v4395, %v4396
        %v4398 = vrot.slane %v4316, 5
        %v4399 = vrot.slane %v4398, 4
        %v4400 = vrot.slane %v3670, 5
        %v4401 = vsel %vm3041, %v4399, %v4400
        %v4402 = vrot.slane %v4400, 4
        %v4403 = vrot.slane %v3671, 5
        %v4404 = vsel %vm3041, %v4402, %v4403
        %v4405 = vrot.slane %v4317, 5
        %v4406 = vrot.slane %v4405, 4
        %v4407 = vrot.slane %v3673, 5
        %v4408 = vsel %vm3041, %v4406, %v4407
        %v4409 = vrot.slane %v4407, 4
        %v4410 = vrot.slane %v3674, 5
        %v4411 = vsel %vm3041, %v4409, %v4410
        %v4412 = vrot.slane %v4318, 5
        %v4413 = vrot.slane %v4412, 4
        %v4414 = vrot.slane %v3676, 5
        %v4415 = vsel %vm3041, %v4413, %v4414
        %v4416 = vrot.slane %v4414, 4
        %v4417 = vrot.slane %v3677, 5
        %v4418 = vsel %vm3041, %v4416, %v4417
        %v4419 = vrot.slane %v4319, 5
        %v4420 = vrot.slane %v4419, 4
        %v4421 = vrot.slane %v3679, 5
        %v4422 = vsel %vm3041, %v4420, %v4421
        %v4423 = vrot.slane %v4421, 4
        %v4424 = vrot.slane %v3680, 5
        %v4425 = vsel %vm3041, %v4423, %v4424
        %v4426 = vrot.slane %v4320, 5
        %v4427 = vrot.slane %v4426, 4
        %v4428 = vrot.slane %v3682, 5
        %v4429 = vsel %vm3041, %v4427, %v4428
        %v4430 = vrot.slane %v4428, 4
        %v4431 = vrot.slane %v3683, 5
        %v4432 = vsel %vm3041, %v4430, %v4431
        %v4433 = vrot.slane %v4321, 5
        %v4434 = vrot.slane %v4433, 4
        %v4435 = vrot.slane %v3685, 5
        %v4436 = vsel %vm3041, %v4434, %v4435
        %v4437 = vrot.slane %v4435, 4
        %v4438 = vrot.slane %v3686, 5
        %v4439 = vsel %vm3041, %v4437, %v4438
        %v4440 = vrot.slane %v4322, 5
        %v4441 = vrot.slane %v4440, 4
        %v4442 = vrot.slane %v3688, 5
        %v4443 = vsel %vm3041, %v4441, %v4442
        %v4444 = vrot.slane %v4442, 4
        %v4445 = vrot.slane %v3689, 5
        %v4446 = vsel %vm3041, %v4444, %v4445
        %v4447 = vrot.slane %v4323, 5
        %v4448 = vrot.slane %v4447, 4
        %v4449 = vrot.slane %v3691, 5
        %v4450 = vsel %vm3041, %v4448, %v4449
        %v4451 = vrot.slane %v4449, 4
        %v4452 = vrot.slane %v3692, 5
        %v4453 = vsel %vm3041, %v4451, %v4452
        %v4454 = vrot.slane %v4324, 5
        %v4455 = vrot.slane %v4454, 4
        %v4456 = vrot.slane %v3694, 5
        %v4457 = vsel %vm3041, %v4455, %v4456
        %v4458 = vrot.slane %v4456, 4
        %v4459 = vrot.slane %v3695, 5
        %v4460 = vsel %vm3041, %v4458, %v4459
        %v4461 = vrot.slane %v4325, 5
        %v4462 = vrot.slane %v4461, 4
        %v4463 = vrot.slane %v3697, 5
        %v4464 = vsel %vm3041, %v4462, %v4463
        %v4465 = vrot.slane %v4463, 4
        %v4466 = vrot.slane %v3698, 5
        %v4467 = vsel %vm3041, %v4465, %v4466
        %v4468 = vrot.slane %v4326, 5
        %v4469 = vrot.slane %v4468, 4
        %v4470 = vrot.slane %v3700, 5
        %v4471 = vsel %vm3041, %v4469, %v4470
        %v4472 = vrot.slane %v4470, 4
        %v4473 = vrot.slane %v3701, 5
        %v4474 = vsel %vm3041, %v4472, %v4473
        %v4475 = vrot.slane %v4327, 5
        %v4476 = vrot.slane %v4475, 4
        %v4477 = vrot.slane %v3703, 5
        %v4478 = vsel %vm3041, %v4476, %v4477
        %v4479 = vrot.slane %v4477, 4
        %v4480 = vrot.slane %v3704, 5
        %v4481 = vsel %vm3041, %v4479, %v4480
        %v4482 = vrot.slane %v4328, 5
        %v4483 = vrot.slane %v4482, 4
        %v4484 = vrot.slane %v3706, 5
        %v4485 = vsel %vm3041, %v4483, %v4484
        %v4486 = vrot.slane %v4484, 4
        %v4487 = vrot.slane %v3707, 5
        %v4488 = vsel %vm3041, %v4486, %v4487
        %v4489 = vld [vmem:[%s4 + $0x14] sm:$0xf]
        %v4490 = vunpack.c.l.b16 %v4380
        %v4491 = vunpack.c.l.b16 %v4383
        %v4492 = vunpack.c.l.b16 %v4387
        %v4493 = vunpack.c.l.b16 %v4390
        %v4494 = vunpack.c.l.b16 %v4394
        %v4495 = vunpack.c.l.b16 %v4397
        %v4496 = vunpack.c.l.b16 %v4401
        %v4497 = vunpack.c.l.b16 %v4404
        %v4498 = vunpack.c.l.b16 %v4408
        %v4499 = vunpack.c.l.b16 %v4411
        %v4500 = vunpack.c.l.b16 %v4415
        %v4501 = vunpack.c.l.b16 %v4418
        %v4502 = vunpack.c.l.b16 %v4422
        %v4503 = vunpack.c.l.b16 %v4425
        %v4504 = vunpack.c.l.b16 %v4429
        %v4505 = vunpack.c.l.b16 %v4432
        %v4506 = vunpack.c.l.b16 %v4436
        %v4507 = vunpack.c.l.b16 %v4439
        %v4508 = vunpack.c.l.b16 %v4443
        %v4509 = vunpack.c.l.b16 %v4446
        %v4510 = vunpack.c.l.b16 %v4450
        %v4511 = vunpack.c.l.b16 %v4453
        %v4512 = vunpack.c.l.b16 %v4457
        %v4513 = vunpack.c.l.b16 %v4460
        %v4514 = vunpack.c.l.b16 %v4464
        %v4515 = vunpack.c.l.b16 %v4467
        %v4516 = vunpack.c.l.b16 %v4471
        %v4517 = vunpack.c.l.b16 %v4474
        %v4518 = vunpack.c.l.b16 %v4478
        %v4519 = vunpack.c.l.b16 %v4481
        %v4520 = vunpack.c.l.b16 %v4485
        %v4521 = vunpack.c.l.b16 %v4488
        %v4522 = vpack.c.b16 %v4491, %v4490
        %v4523 = vpack.c.b16 %v4493, %v4492
        %v4524 = vpack.c.b16 %v4495, %v4494
        %v4525 = vpack.c.b16 %v4497, %v4496
        %v4526 = vpack.c.b16 %v4499, %v4498
        %v4527 = vpack.c.b16 %v4501, %v4500
        %v4528 = vpack.c.b16 %v4503, %v4502
        %v4529 = vpack.c.b16 %v4505, %v4504
        %v4530 = vpack.c.b16 %v4507, %v4506
        %v4531 = vpack.c.b16 %v4509, %v4508
        %v4532 = vpack.c.b16 %v4511, %v4510
        %v4533 = vpack.c.b16 %v4513, %v4512
        %v4534 = vpack.c.b16 %v4515, %v4514
        %v4535 = vpack.c.b16 %v4517, %v4516
        %v4536 = vpack.c.b16 %v4519, %v4518
        %v4537 = vpack.c.b16 %v4521, %v4520
        %v4539 = vsel %vm717, %v4522, 0
        %v4542 = vsel %vm717, %v4523, 0
        %v4545 = vsel %vm717, %v4524, 0
        %v4548 = vsel %vm717, %v4525, 0
        %v4551 = vsel %vm717, %v4526, 0
        %v4554 = vsel %vm717, %v4527, 0
        %v4557 = vsel %vm717, %v4528, 0
        %v4560 = vsel %vm717, %v4529, 0
        %v4563 = vsel %vm717, %v4530, 0
        %v4566 = vsel %vm717, %v4531, 0
        %v4569 = vsel %vm717, %v4532, 0
        %v4572 = vsel %vm717, %v4533, 0
        %v4575 = vsel %vm717, %v4534, 0
        %v4578 = vsel %vm717, %v4535, 0
        %v4581 = vsel %vm717, %v4536, 0
        %v4584 = vsel %vm717, %v4537, 0
        %v4587 = vsel %vm2678, %v4489, 0
        %4589 = vmatpush.bf16.msra.mxu0 0
        %4590 = vmatpush.bf16.msra.mxu0 0
        %4591 = vmatpush.bf16.msra.mxu0 0
        %4592 = vmatpush.bf16.msra.mxu0 0
        %4593 = vmatpush.bf16.msra.mxu0 0
        %4594 = vmatpush.bf16.msra.mxu0 0
        %4595 = vmatpush.bf16.msra.mxu0 0
        %4596 = vmatpush.bf16.msra.mxu0 %v4587
        %4597 = vmatmul.bf16.gmra.mxu0 %v4539
        %v4598 = vpop.f32.mrf.mxu0
        %v4599 = vadd.f32 0.0, %v4598
        %v4600 = vpop.f32.mrf.mxu0
        %v4601 = vadd.f32 0.0, %v4600
        %4602 = vmatmul.bf16.gmra.mxu0 %v4542
        %v4603 = vpop.f32.mrf.mxu0
        %v4604 = vadd.f32 0.0, %v4603
        %v4605 = vpop.f32.mrf.mxu0
        %v4606 = vadd.f32 0.0, %v4605
        %4607 = vmatmul.bf16.gmra.mxu0 %v4545
        %v4608 = vpop.f32.mrf.mxu0
        %v4609 = vadd.f32 0.0, %v4608
        %v4610 = vpop.f32.mrf.mxu0
        %v4611 = vadd.f32 0.0, %v4610
        %4612 = vmatmul.bf16.gmra.mxu0 %v4548
        %v4613 = vpop.f32.mrf.mxu0
        %v4614 = vadd.f32 0.0, %v4613
        %v4615 = vpop.f32.mrf.mxu0
        %v4616 = vadd.f32 0.0, %v4615
        %4617 = vmatmul.bf16.gmra.mxu0 %v4551
        %v4618 = vpop.f32.mrf.mxu0
        %v4619 = vadd.f32 0.0, %v4618
        %v4620 = vpop.f32.mrf.mxu0
        %v4621 = vadd.f32 0.0, %v4620
        %4622 = vmatmul.bf16.gmra.mxu0 %v4554
        %v4623 = vpop.f32.mrf.mxu0
        %v4624 = vadd.f32 0.0, %v4623
        %v4625 = vpop.f32.mrf.mxu0
        %v4626 = vadd.f32 0.0, %v4625
        %4627 = vmatmul.bf16.gmra.mxu0 %v4557
        %v4628 = vpop.f32.mrf.mxu0
        %v4629 = vadd.f32 0.0, %v4628
        %v4630 = vpop.f32.mrf.mxu0
        %v4631 = vadd.f32 0.0, %v4630
        %4632 = vmatmul.bf16.gmra.mxu0 %v4560
        %v4633 = vpop.f32.mrf.mxu0
        %v4634 = vadd.f32 0.0, %v4633
        %v4635 = vpop.f32.mrf.mxu0
        %v4636 = vadd.f32 0.0, %v4635
        %4637 = vmatmul.bf16.gmra.mxu0 %v4563
        %v4638 = vpop.f32.mrf.mxu0
        %v4639 = vadd.f32 0.0, %v4638
        %v4640 = vpop.f32.mrf.mxu0
        %v4641 = vadd.f32 0.0, %v4640
        %4642 = vmatmul.bf16.gmra.mxu0 %v4566
        %v4643 = vpop.f32.mrf.mxu0
        %v4644 = vadd.f32 0.0, %v4643
        %v4645 = vpop.f32.mrf.mxu0
        %v4646 = vadd.f32 0.0, %v4645
        %4647 = vmatmul.bf16.gmra.mxu0 %v4569
        %v4648 = vpop.f32.mrf.mxu0
        %v4649 = vadd.f32 0.0, %v4648
        %v4650 = vpop.f32.mrf.mxu0
        %v4651 = vadd.f32 0.0, %v4650
        %4652 = vmatmul.bf16.gmra.mxu0 %v4572
        %v4653 = vpop.f32.mrf.mxu0
        %v4654 = vadd.f32 0.0, %v4653
        %v4655 = vpop.f32.mrf.mxu0
        %v4656 = vadd.f32 0.0, %v4655
        %4657 = vmatmul.bf16.gmra.mxu0 %v4575
        %v4658 = vpop.f32.mrf.mxu0
        %v4659 = vadd.f32 0.0, %v4658
        %v4660 = vpop.f32.mrf.mxu0
        %v4661 = vadd.f32 0.0, %v4660
        %4662 = vmatmul.bf16.gmra.mxu0 %v4578
        %v4663 = vpop.f32.mrf.mxu0
        %v4664 = vadd.f32 0.0, %v4663
        %v4665 = vpop.f32.mrf.mxu0
        %v4666 = vadd.f32 0.0, %v4665
        %4667 = vmatmul.bf16.gmra.mxu0 %v4581
        %v4668 = vpop.f32.mrf.mxu0
        %v4669 = vadd.f32 0.0, %v4668
        %v4670 = vpop.f32.mrf.mxu0
        %v4671 = vadd.f32 0.0, %v4670
        %4672 = vmatmul.bf16.gmra.mxu0 %v4584
        %v4673 = vpop.f32.mrf.mxu0
        %v4674 = vadd.f32 0.0, %v4673
        %v4675 = vpop.f32.mrf.mxu0
        %v4676 = vadd.f32 0.0, %v4675
        %4677 = vdwg.mxu0
        %v4678 = vadd.f32 %v4281, %v4599
        %v4679 = vadd.f32 %v4282, %v4601
        %v4680 = vadd.f32 %v4283, %v4604
        %v4681 = vadd.f32 %v4284, %v4606
        %v4682 = vadd.f32 %v4285, %v4609
        %v4683 = vadd.f32 %v4286, %v4611
        %v4684 = vadd.f32 %v4287, %v4614
        %v4685 = vadd.f32 %v4288, %v4616
        %v4686 = vadd.f32 %v4289, %v4619
        %v4687 = vadd.f32 %v4290, %v4621
        %v4688 = vadd.f32 %v4291, %v4624
        %v4689 = vadd.f32 %v4292, %v4626
        %v4690 = vadd.f32 %v4293, %v4629
        %v4691 = vadd.f32 %v4294, %v4631
        %v4692 = vadd.f32 %v4295, %v4634
        %v4693 = vadd.f32 %v4296, %v4636
        %v4694 = vadd.f32 %v4297, %v4639
        %v4695 = vadd.f32 %v4298, %v4641
        %v4696 = vadd.f32 %v4299, %v4644
        %v4697 = vadd.f32 %v4300, %v4646
        %v4698 = vadd.f32 %v4301, %v4649
        %v4699 = vadd.f32 %v4302, %v4651
        %v4700 = vadd.f32 %v4303, %v4654
        %v4701 = vadd.f32 %v4304, %v4656
        %v4702 = vadd.f32 %v4305, %v4659
        %v4703 = vadd.f32 %v4306, %v4661
        %v4704 = vadd.f32 %v4307, %v4664
        %v4705 = vadd.f32 %v4308, %v4666
        %v4706 = vadd.f32 %v4309, %v4669
        %v4707 = vadd.f32 %v4310, %v4671
        %v4708 = vadd.f32 %v4311, %v4674
        %v4709 = vadd.f32 %v4312, %v4676
        %s4710 = scalar_lea.vmem [#allocation2], 24
        %v4711 = vld [vmem:[%s4710] sm:$0xf]
        %v4712 = vld [vmem:[%s4710 + $0x4] sm:$0xf]
        %v4713 = vld [vmem:[%s4710 + $0xc] sm:$0xf]
        %v4714 = vld [vmem:[%s4710 + $0x10] sm:$0xf]
        %v4715 = vld [vmem:[%s4710 + $0x18] sm:$0xf]
        %v4716 = vld [vmem:[%s4710 + $0x1c] sm:$0xf]
        %v4717 = vld [vmem:[%s4710 + $0x24] sm:$0xf]
        %v4718 = vld [vmem:[%s4710 + $0x28] sm:$0xf]
        %v4719 = vld [vmem:[%s4710 + $0x30] sm:$0xf]
        %v4720 = vld [vmem:[%s4710 + $0x34] sm:$0xf]
        %v4721 = vld [vmem:[%s4710 + $0x3c] sm:$0xf]
        %v4722 = vld [vmem:[%s4710 + $0x40] sm:$0xf]
        %v4723 = vld [vmem:[%s4710 + $0x48] sm:$0xf]
        %v4724 = vld [vmem:[%s4710 + $0x4c] sm:$0xf]
        %v4725 = vld [vmem:[%s4710 + $0x54] sm:$0xf]
        %v4726 = vld [vmem:[%s4710 + $0x58] sm:$0xf]
        %v4727 = vld [vmem:[%s4710 + $0x60] sm:$0xf]
        %v4728 = vld [vmem:[%s4710 + $0x64] sm:$0xf]
        %v4729 = vld [vmem:[%s4710 + $0x6c] sm:$0xf]
        %v4730 = vld [vmem:[%s4710 + $0x70] sm:$0xf]
        %v4731 = vld [vmem:[%s4710 + $0x78] sm:$0xf]
        %v4732 = vld [vmem:[%s4710 + $0x7c] sm:$0xf]
        %v4733 = vld [vmem:[%s4710 + $0x84] sm:$0xf]
        %v4734 = vld [vmem:[%s4710 + $0x88] sm:$0xf]
        %v4735 = vld [vmem:[%s4710 + $0x90] sm:$0xf]
        %v4736 = vld [vmem:[%s4710 + $0x94] sm:$0xf]
        %v4737 = vld [vmem:[%s4710 + $0x9c] sm:$0xf]
        %v4738 = vld [vmem:[%s4710 + $0xa0] sm:$0xf]
        %v4739 = vld [vmem:[%s4710 + $0xa8] sm:$0xf]
        %v4740 = vld [vmem:[%s4710 + $0xac] sm:$0xf]
        %v4741 = vld [vmem:[%s4710 + $0xb4] sm:$0xf]
        %v4742 = vld [vmem:[%s4710 + $0xb8] sm:$0xf]
        %v4743 = vld [vmem:[%s4 + $0x18] sm:$0xf]
        %v4776 = vunpack.c.l.b16 %v4711
        %v4777 = vunpack.c.l.b16 %v4712
        %v4778 = vunpack.c.l.b16 %v4713
        %v4779 = vunpack.c.l.b16 %v4714
        %v4780 = vunpack.c.l.b16 %v4715
        %v4781 = vunpack.c.l.b16 %v4716
        %v4782 = vunpack.c.l.b16 %v4717
        %v4783 = vunpack.c.l.b16 %v4718
        %v4784 = vunpack.c.l.b16 %v4719
        %v4785 = vunpack.c.l.b16 %v4720
        %v4786 = vunpack.c.l.b16 %v4721
        %v4787 = vunpack.c.l.b16 %v4722
        %v4788 = vunpack.c.l.b16 %v4723
        %v4789 = vunpack.c.l.b16 %v4724
        %v4790 = vunpack.c.l.b16 %v4725
        %v4791 = vunpack.c.l.b16 %v4726
        %v4792 = vunpack.c.l.b16 %v4727
        %v4793 = vunpack.c.l.b16 %v4728
        %v4794 = vunpack.c.l.b16 %v4729
        %v4795 = vunpack.c.l.b16 %v4730
        %v4796 = vunpack.c.l.b16 %v4731
        %v4797 = vunpack.c.l.b16 %v4732
        %v4798 = vunpack.c.l.b16 %v4733
        %v4799 = vunpack.c.l.b16 %v4734
        %v4800 = vunpack.c.l.b16 %v4735
        %v4801 = vunpack.c.l.b16 %v4736
        %v4802 = vunpack.c.l.b16 %v4737
        %v4803 = vunpack.c.l.b16 %v4738
        %v4804 = vunpack.c.l.b16 %v4739
        %v4805 = vunpack.c.l.b16 %v4740
        %v4806 = vunpack.c.l.b16 %v4741
        %v4807 = vunpack.c.l.b16 %v4742
        %v4808 = vpack.c.b16 %v4777, %v4776
        %v4809 = vpack.c.b16 %v4779, %v4778
        %v4810 = vpack.c.b16 %v4781, %v4780
        %v4811 = vpack.c.b16 %v4783, %v4782
        %v4812 = vpack.c.b16 %v4785, %v4784
        %v4813 = vpack.c.b16 %v4787, %v4786
        %v4814 = vpack.c.b16 %v4789, %v4788
        %v4815 = vpack.c.b16 %v4791, %v4790
        %v4816 = vpack.c.b16 %v4793, %v4792
        %v4817 = vpack.c.b16 %v4795, %v4794
        %v4818 = vpack.c.b16 %v4797, %v4796
        %v4819 = vpack.c.b16 %v4799, %v4798
        %v4820 = vpack.c.b16 %v4801, %v4800
        %v4821 = vpack.c.b16 %v4803, %v4802
        %v4822 = vpack.c.b16 %v4805, %v4804
        %v4823 = vpack.c.b16 %v4807, %v4806
        %v4825 = vsel %vm717, %v4808, 0
        %v4828 = vsel %vm717, %v4809, 0
        %v4831 = vsel %vm717, %v4810, 0
        %v4834 = vsel %vm717, %v4811, 0
        %v4837 = vsel %vm717, %v4812, 0
        %v4840 = vsel %vm717, %v4813, 0
        %v4843 = vsel %vm717, %v4814, 0
        %v4846 = vsel %vm717, %v4815, 0
        %v4849 = vsel %vm717, %v4816, 0
        %v4852 = vsel %vm717, %v4817, 0
        %v4855 = vsel %vm717, %v4818, 0
        %v4858 = vsel %vm717, %v4819, 0
        %v4861 = vsel %vm717, %v4820, 0
        %v4864 = vsel %vm717, %v4821, 0
        %v4867 = vsel %vm717, %v4822, 0
        %v4870 = vsel %vm717, %v4823, 0
        %v4873 = vsel %vm2678, %v4743, 0
        %4875 = vmatpush.bf16.msra.mxu0 0
        %4876 = vmatpush.bf16.msra.mxu0 0
        %4877 = vmatpush.bf16.msra.mxu0 0
        %4878 = vmatpush.bf16.msra.mxu0 0
        %4879 = vmatpush.bf16.msra.mxu0 0
        %4880 = vmatpush.bf16.msra.mxu0 0
        %4881 = vmatpush.bf16.msra.mxu0 0
        %4882 = vmatpush.bf16.msra.mxu0 %v4873
        %4883 = vmatmul.bf16.gmra.mxu0 %v4825
        %v4884 = vpop.f32.mrf.mxu0
        %v4885 = vadd.f32 0.0, %v4884
        %v4886 = vpop.f32.mrf.mxu0
        %v4887 = vadd.f32 0.0, %v4886
        %4888 = vmatmul.bf16.gmra.mxu0 %v4828
        %v4889 = vpop.f32.mrf.mxu0
        %v4890 = vadd.f32 0.0, %v4889
        %v4891 = vpop.f32.mrf.mxu0
        %v4892 = vadd.f32 0.0, %v4891
        %4893 = vmatmul.bf16.gmra.mxu0 %v4831
        %v4894 = vpop.f32.mrf.mxu0
        %v4895 = vadd.f32 0.0, %v4894
        %v4896 = vpop.f32.mrf.mxu0
        %v4897 = vadd.f32 0.0, %v4896
        %4898 = vmatmul.bf16.gmra.mxu0 %v4834
        %v4899 = vpop.f32.mrf.mxu0
        %v4900 = vadd.f32 0.0, %v4899
        %v4901 = vpop.f32.mrf.mxu0
        %v4902 = vadd.f32 0.0, %v4901
        %4903 = vmatmul.bf16.gmra.mxu0 %v4837
        %v4904 = vpop.f32.mrf.mxu0
        %v4905 = vadd.f32 0.0, %v4904
        %v4906 = vpop.f32.mrf.mxu0
        %v4907 = vadd.f32 0.0, %v4906
        %4908 = vmatmul.bf16.gmra.mxu0 %v4840
        %v4909 = vpop.f32.mrf.mxu0
        %v4910 = vadd.f32 0.0, %v4909
        %v4911 = vpop.f32.mrf.mxu0
        %v4912 = vadd.f32 0.0, %v4911
        %4913 = vmatmul.bf16.gmra.mxu0 %v4843
        %v4914 = vpop.f32.mrf.mxu0
        %v4915 = vadd.f32 0.0, %v4914
        %v4916 = vpop.f32.mrf.mxu0
        %v4917 = vadd.f32 0.0, %v4916
        %4918 = vmatmul.bf16.gmra.mxu0 %v4846
        %v4919 = vpop.f32.mrf.mxu0
        %v4920 = vadd.f32 0.0, %v4919
        %v4921 = vpop.f32.mrf.mxu0
        %v4922 = vadd.f32 0.0, %v4921
        %4923 = vmatmul.bf16.gmra.mxu0 %v4849
        %v4924 = vpop.f32.mrf.mxu0
        %v4925 = vadd.f32 0.0, %v4924
        %v4926 = vpop.f32.mrf.mxu0
        %v4927 = vadd.f32 0.0, %v4926
        %4928 = vmatmul.bf16.gmra.mxu0 %v4852
        %v4929 = vpop.f32.mrf.mxu0
        %v4930 = vadd.f32 0.0, %v4929
        %v4931 = vpop.f32.mrf.mxu0
        %v4932 = vadd.f32 0.0, %v4931
        %4933 = vmatmul.bf16.gmra.mxu0 %v4855
        %v4934 = vpop.f32.mrf.mxu0
        %v4935 = vadd.f32 0.0, %v4934
        %v4936 = vpop.f32.mrf.mxu0
        %v4937 = vadd.f32 0.0, %v4936
        %4938 = vmatmul.bf16.gmra.mxu0 %v4858
        %v4939 = vpop.f32.mrf.mxu0
        %v4940 = vadd.f32 0.0, %v4939
        %v4941 = vpop.f32.mrf.mxu0
        %v4942 = vadd.f32 0.0, %v4941
        %4943 = vmatmul.bf16.gmra.mxu0 %v4861
        %v4944 = vpop.f32.mrf.mxu0
        %v4945 = vadd.f32 0.0, %v4944
        %v4946 = vpop.f32.mrf.mxu0
        %v4947 = vadd.f32 0.0, %v4946
        %4948 = vmatmul.bf16.gmra.mxu0 %v4864
        %v4949 = vpop.f32.mrf.mxu0
        %v4950 = vadd.f32 0.0, %v4949
        %v4951 = vpop.f32.mrf.mxu0
        %v4952 = vadd.f32 0.0, %v4951
        %4953 = vmatmul.bf16.gmra.mxu0 %v4867
        %v4954 = vpop.f32.mrf.mxu0
        %v4955 = vadd.f32 0.0, %v4954
        %v4956 = vpop.f32.mrf.mxu0
        %v4957 = vadd.f32 0.0, %v4956
        %4958 = vmatmul.bf16.gmra.mxu0 %v4870
        %v4959 = vpop.f32.mrf.mxu0
        %v4960 = vadd.f32 0.0, %v4959
        %v4961 = vpop.f32.mrf.mxu0
        %v4962 = vadd.f32 0.0, %v4961
        %4963 = vdwg.mxu0
        %v4964 = vadd.f32 %v4678, %v4885
        %v4965 = vadd.f32 %v4679, %v4887
        %v4966 = vadd.f32 %v4680, %v4890
        %v4967 = vadd.f32 %v4681, %v4892
        %v4968 = vadd.f32 %v4682, %v4895
        %v4969 = vadd.f32 %v4683, %v4897
        %v4970 = vadd.f32 %v4684, %v4900
        %v4971 = vadd.f32 %v4685, %v4902
        %v4972 = vadd.f32 %v4686, %v4905
        %v4973 = vadd.f32 %v4687, %v4907
        %v4974 = vadd.f32 %v4688, %v4910
        %v4975 = vadd.f32 %v4689, %v4912
        %v4976 = vadd.f32 %v4690, %v4915
        %v4977 = vadd.f32 %v4691, %v4917
        %v4978 = vadd.f32 %v4692, %v4920
        %v4979 = vadd.f32 %v4693, %v4922
        %v4980 = vadd.f32 %v4694, %v4925
        %v4981 = vadd.f32 %v4695, %v4927
        %v4982 = vadd.f32 %v4696, %v4930
        %v4983 = vadd.f32 %v4697, %v4932
        %v4984 = vadd.f32 %v4698, %v4935
        %v4985 = vadd.f32 %v4699, %v4937
        %v4986 = vadd.f32 %v4700, %v4940
        %v4987 = vadd.f32 %v4701, %v4942
        %v4988 = vadd.f32 %v4702, %v4945
        %v4989 = vadd.f32 %v4703, %v4947
        %v4990 = vadd.f32 %v4704, %v4950
        %v4991 = vadd.f32 %v4705, %v4952
        %v4992 = vadd.f32 %v4706, %v4955
        %v4993 = vadd.f32 %v4707, %v4957
        %v4994 = vadd.f32 %v4708, %v4960
        %v4995 = vadd.f32 %v4709, %v4962
        %v4996 = vld [vmem:[%s4710] sm:$0xf]
        %v4997 = vld [vmem:[%s4710 + $0x4] sm:$0xf]
        %v4998 = vld [vmem:[%s4710 + $0x8] sm:$0x1]
        %v4999 = vld [vmem:[%s4710 + $0xc] sm:$0xf]
        %v5000 = vld [vmem:[%s4710 + $0x10] sm:$0xf]
        %v5001 = vld [vmem:[%s4710 + $0x14] sm:$0x1]
        %v5002 = vld [vmem:[%s4710 + $0x18] sm:$0xf]
        %v5003 = vld [vmem:[%s4710 + $0x1c] sm:$0xf]
        %v5004 = vld [vmem:[%s4710 + $0x20] sm:$0x1]
        %v5005 = vld [vmem:[%s4710 + $0x24] sm:$0xf]
        %v5006 = vld [vmem:[%s4710 + $0x28] sm:$0xf]
        %v5007 = vld [vmem:[%s4710 + $0x2c] sm:$0x1]
        %v5008 = vld [vmem:[%s4710 + $0x30] sm:$0xf]
        %v5009 = vld [vmem:[%s4710 + $0x34] sm:$0xf]
        %v5010 = vld [vmem:[%s4710 + $0x38] sm:$0x1]
        %v5011 = vld [vmem:[%s4710 + $0x3c] sm:$0xf]
        %v5012 = vld [vmem:[%s4710 + $0x40] sm:$0xf]
        %v5013 = vld [vmem:[%s4710 + $0x44] sm:$0x1]
        %v5014 = vld [vmem:[%s4710 + $0x48] sm:$0xf]
        %v5015 = vld [vmem:[%s4710 + $0x4c] sm:$0xf]
        %v5016 = vld [vmem:[%s4710 + $0x50] sm:$0x1]
        %v5017 = vld [vmem:[%s4710 + $0x54] sm:$0xf]
        %v5018 = vld [vmem:[%s4710 + $0x58] sm:$0xf]
        %v5019 = vld [vmem:[%s4710 + $0x5c] sm:$0x1]
        %v5020 = vld [vmem:[%s4710 + $0x60] sm:$0xf]
        %v5021 = vld [vmem:[%s4710 + $0x64] sm:$0xf]
        %v5022 = vld [vmem:[%s4710 + $0x68] sm:$0x1]
        %v5023 = vld [vmem:[%s4710 + $0x6c] sm:$0xf]
        %v5024 = vld [vmem:[%s4710 + $0x70] sm:$0xf]
        %v5025 = vld [vmem:[%s4710 + $0x74] sm:$0x1]
        %v5026 = vld [vmem:[%s4710 + $0x78] sm:$0xf]
        %v5027 = vld [vmem:[%s4710 + $0x7c] sm:$0xf]
        %v5028 = vld [vmem:[%s4710 + $0x80] sm:$0x1]
        %v5029 = vld [vmem:[%s4710 + $0x84] sm:$0xf]
        %v5030 = vld [vmem:[%s4710 + $0x88] sm:$0xf]
        %v5031 = vld [vmem:[%s4710 + $0x8c] sm:$0x1]
        %v5032 = vld [vmem:[%s4710 + $0x90] sm:$0xf]
        %v5033 = vld [vmem:[%s4710 + $0x94] sm:$0xf]
        %v5034 = vld [vmem:[%s4710 + $0x98] sm:$0x1]
        %v5035 = vld [vmem:[%s4710 + $0x9c] sm:$0xf]
        %v5036 = vld [vmem:[%s4710 + $0xa0] sm:$0xf]
        %v5037 = vld [vmem:[%s4710 + $0xa4] sm:$0x1]
        %v5038 = vld [vmem:[%s4710 + $0xa8] sm:$0xf]
        %v5039 = vld [vmem:[%s4710 + $0xac] sm:$0xf]
        %v5040 = vld [vmem:[%s4710 + $0xb0] sm:$0x1]
        %v5041 = vld [vmem:[%s4710 + $0xb4] sm:$0xf]
        %v5042 = vld [vmem:[%s4710 + $0xb8] sm:$0xf]
        %v5043 = vld [vmem:[%s4710 + $0xbc] sm:$0x1]
        %v5045 = vshrl.u32 %v4996, 16
        %v5047 = vrot.slane %v5045, 4
        %v5048 = vshll.u32 %v4996, 16
        %v5050 = vrot.slane %v5048, 5
        %v5051 = vor.u32 %v5047, %v5050
        %v5052 = vrot.slane %v5051, 4
        %v5054 = vshll.u32 %v4997, 16
        %v5056 = vrot.slane %v5054, 5
        %v5057 = vsel %vm2196, %v5052, %v5056
        %v5058 = vshrl.u32 %v4997, 16
        %v5060 = vrot.slane %v5058, 4
        %v5061 = vor.u32 %v5060, %v5056
        %v5062 = vrot.slane %v5061, 4
        %v5064 = vshll.u32 %v4998, 16
        %v5066 = vrot.slane %v5064, 5
        %v5067 = vsel %vm2196, %v5062, %v5066
        %v5069 = vshrl.u32 %v4999, 16
        %v5071 = vrot.slane %v5069, 4
        %v5072 = vshll.u32 %v4999, 16
        %v5074 = vrot.slane %v5072, 5
        %v5075 = vor.u32 %v5071, %v5074
        %v5076 = vrot.slane %v5075, 4
        %v5078 = vshll.u32 %v5000, 16
        %v5080 = vrot.slane %v5078, 5
        %v5081 = vsel %vm2196, %v5076, %v5080
        %v5082 = vshrl.u32 %v5000, 16
        %v5084 = vrot.slane %v5082, 4
        %v5085 = vor.u32 %v5084, %v5080
        %v5086 = vrot.slane %v5085, 4
        %v5088 = vshll.u32 %v5001, 16
        %v5090 = vrot.slane %v5088, 5
        %v5091 = vsel %vm2196, %v5086, %v5090
        %v5093 = vshrl.u32 %v5002, 16
        %v5095 = vrot.slane %v5093, 4
        %v5096 = vshll.u32 %v5002, 16
        %v5098 = vrot.slane %v5096, 5
        %v5099 = vor.u32 %v5095, %v5098
        %v5100 = vrot.slane %v5099, 4
        %v5102 = vshll.u32 %v5003, 16
        %v5104 = vrot.slane %v5102, 5
        %v5105 = vsel %vm2196, %v5100, %v5104
        %v5106 = vshrl.u32 %v5003, 16
        %v5108 = vrot.slane %v5106, 4
        %v5109 = vor.u32 %v5108, %v5104
        %v5110 = vrot.slane %v5109, 4
        %v5112 = vshll.u32 %v5004, 16
        %v5114 = vrot.slane %v5112, 5
        %v5115 = vsel %vm2196, %v5110, %v5114
        %v5117 = vshrl.u32 %v5005, 16
        %v5119 = vrot.slane %v5117, 4
        %v5120 = vshll.u32 %v5005, 16
        %v5122 = vrot.slane %v5120, 5
        %v5123 = vor.u32 %v5119, %v5122
        %v5124 = vrot.slane %v5123, 4
        %v5126 = vshll.u32 %v5006, 16
        %v5128 = vrot.slane %v5126, 5
        %v5129 = vsel %vm2196, %v5124, %v5128
        %v5130 = vshrl.u32 %v5006, 16
        %v5132 = vrot.slane %v5130, 4
        %v5133 = vor.u32 %v5132, %v5128
        %v5134 = vrot.slane %v5133, 4
        %v5136 = vshll.u32 %v5007, 16
        %v5138 = vrot.slane %v5136, 5
        %v5139 = vsel %vm2196, %v5134, %v5138
        %v5141 = vshrl.u32 %v5008, 16
        %v5143 = vrot.slane %v5141, 4
        %v5144 = vshll.u32 %v5008, 16
        %v5146 = vrot.slane %v5144, 5
        %v5147 = vor.u32 %v5143, %v5146
        %v5148 = vrot.slane %v5147, 4
        %v5150 = vshll.u32 %v5009, 16
        %v5152 = vrot.slane %v5150, 5
        %v5153 = vsel %vm2196, %v5148, %v5152
        %v5154 = vshrl.u32 %v5009, 16
        %v5156 = vrot.slane %v5154, 4
        %v5157 = vor.u32 %v5156, %v5152
        %v5158 = vrot.slane %v5157, 4
        %v5160 = vshll.u32 %v5010, 16
        %v5162 = vrot.slane %v5160, 5
        %v5163 = vsel %vm2196, %v5158, %v5162
        %v5165 = vshrl.u32 %v5011, 16
        %v5167 = vrot.slane %v5165, 4
        %v5168 = vshll.u32 %v5011, 16
        %v5170 = vrot.slane %v5168, 5
        %v5171 = vor.u32 %v5167, %v5170
        %v5172 = vrot.slane %v5171, 4
        %v5174 = vshll.u32 %v5012, 16
        %v5176 = vrot.slane %v5174, 5
        %v5177 = vsel %vm2196, %v5172, %v5176
        %v5178 = vshrl.u32 %v5012, 16
        %v5180 = vrot.slane %v5178, 4
        %v5181 = vor.u32 %v5180, %v5176
        %v5182 = vrot.slane %v5181, 4
        %v5184 = vshll.u32 %v5013, 16
        %v5186 = vrot.slane %v5184, 5
        %v5187 = vsel %vm2196, %v5182, %v5186
        %v5189 = vshrl.u32 %v5014, 16
        %v5191 = vrot.slane %v5189, 4
        %v5192 = vshll.u32 %v5014, 16
        %v5194 = vrot.slane %v5192, 5
        %v5195 = vor.u32 %v5191, %v5194
        %v5196 = vrot.slane %v5195, 4
        %v5198 = vshll.u32 %v5015, 16
        %v5200 = vrot.slane %v5198, 5
        %v5201 = vsel %vm2196, %v5196, %v5200
        %v5202 = vshrl.u32 %v5015, 16
        %v5204 = vrot.slane %v5202, 4
        %v5205 = vor.u32 %v5204, %v5200
        %v5206 = vrot.slane %v5205, 4
        %v5208 = vshll.u32 %v5016, 16
        %v5210 = vrot.slane %v5208, 5
        %v5211 = vsel %vm2196, %v5206, %v5210
        %v5213 = vshrl.u32 %v5017, 16
        %v5215 = vrot.slane %v5213, 4
        %v5216 = vshll.u32 %v5017, 16
        %v5218 = vrot.slane %v5216, 5
        %v5219 = vor.u32 %v5215, %v5218
        %v5220 = vrot.slane %v5219, 4
        %v5222 = vshll.u32 %v5018, 16
        %v5224 = vrot.slane %v5222, 5
        %v5225 = vsel %vm2196, %v5220, %v5224
        %v5226 = vshrl.u32 %v5018, 16
        %v5228 = vrot.slane %v5226, 4
        %v5229 = vor.u32 %v5228, %v5224
        %v5230 = vrot.slane %v5229, 4
        %v5232 = vshll.u32 %v5019, 16
        %v5234 = vrot.slane %v5232, 5
        %v5235 = vsel %vm2196, %v5230, %v5234
        %v5237 = vshrl.u32 %v5020, 16
        %v5239 = vrot.slane %v5237, 4
        %v5240 = vshll.u32 %v5020, 16
        %v5242 = vrot.slane %v5240, 5
        %v5243 = vor.u32 %v5239, %v5242
        %v5244 = vrot.slane %v5243, 4
        %v5246 = vshll.u32 %v5021, 16
        %v5248 = vrot.slane %v5246, 5
        %v5249 = vsel %vm2196, %v5244, %v5248
        %v5250 = vshrl.u32 %v5021, 16
        %v5252 = vrot.slane %v5250, 4
        %v5253 = vor.u32 %v5252, %v5248
        %v5254 = vrot.slane %v5253, 4
        %v5256 = vshll.u32 %v5022, 16
        %v5258 = vrot.slane %v5256, 5
        %v5259 = vsel %vm2196, %v5254, %v5258
        %v5261 = vshrl.u32 %v5023, 16
        %v5263 = vrot.slane %v5261, 4
        %v5264 = vshll.u32 %v5023, 16
        %v5266 = vrot.slane %v5264, 5
        %v5267 = vor.u32 %v5263, %v5266
        %v5268 = vrot.slane %v5267, 4
        %v5270 = vshll.u32 %v5024, 16
        %v5272 = vrot.slane %v5270, 5
        %v5273 = vsel %vm2196, %v5268, %v5272
        %v5274 = vshrl.u32 %v5024, 16
        %v5276 = vrot.slane %v5274, 4
        %v5277 = vor.u32 %v5276, %v5272
        %v5278 = vrot.slane %v5277, 4
        %v5280 = vshll.u32 %v5025, 16
        %v5282 = vrot.slane %v5280, 5
        %v5283 = vsel %vm2196, %v5278, %v5282
        %v5285 = vshrl.u32 %v5026, 16
        %v5287 = vrot.slane %v5285, 4
        %v5288 = vshll.u32 %v5026, 16
        %v5290 = vrot.slane %v5288, 5
        %v5291 = vor.u32 %v5287, %v5290
        %v5292 = vrot.slane %v5291, 4
        %v5294 = vshll.u32 %v5027, 16
        %v5296 = vrot.slane %v5294, 5
        %v5297 = vsel %vm2196, %v5292, %v5296
        %v5298 = vshrl.u32 %v5027, 16
        %v5300 = vrot.slane %v5298, 4
        %v5301 = vor.u32 %v5300, %v5296
        %v5302 = vrot.slane %v5301, 4
        %v5304 = vshll.u32 %v5028, 16
        %v5306 = vrot.slane %v5304, 5
        %v5307 = vsel %vm2196, %v5302, %v5306
        %v5309 = vshrl.u32 %v5029, 16
        %v5311 = vrot.slane %v5309, 4
        %v5312 = vshll.u32 %v5029, 16
        %v5314 = vrot.slane %v5312, 5
        %v5315 = vor.u32 %v5311, %v5314
        %v5316 = vrot.slane %v5315, 4
        %v5318 = vshll.u32 %v5030, 16
        %v5320 = vrot.slane %v5318, 5
        %v5321 = vsel %vm2196, %v5316, %v5320
        %v5322 = vshrl.u32 %v5030, 16
        %v5324 = vrot.slane %v5322, 4
        %v5325 = vor.u32 %v5324, %v5320
        %v5326 = vrot.slane %v5325, 4
        %v5328 = vshll.u32 %v5031, 16
        %v5330 = vrot.slane %v5328, 5
        %v5331 = vsel %vm2196, %v5326, %v5330
        %v5333 = vshrl.u32 %v5032, 16
        %v5335 = vrot.slane %v5333, 4
        %v5336 = vshll.u32 %v5032, 16
        %v5338 = vrot.slane %v5336, 5
        %v5339 = vor.u32 %v5335, %v5338
        %v5340 = vrot.slane %v5339, 4
        %v5342 = vshll.u32 %v5033, 16
        %v5344 = vrot.slane %v5342, 5
        %v5345 = vsel %vm2196, %v5340, %v5344
        %v5346 = vshrl.u32 %v5033, 16
        %v5348 = vrot.slane %v5346, 4
        %v5349 = vor.u32 %v5348, %v5344
        %v5350 = vrot.slane %v5349, 4
        %v5352 = vshll.u32 %v5034, 16
        %v5354 = vrot.slane %v5352, 5
        %v5355 = vsel %vm2196, %v5350, %v5354
        %v5357 = vshrl.u32 %v5035, 16
        %v5359 = vrot.slane %v5357, 4
        %v5360 = vshll.u32 %v5035, 16
        %v5362 = vrot.slane %v5360, 5
        %v5363 = vor.u32 %v5359, %v5362
        %v5364 = vrot.slane %v5363, 4
        %v5366 = vshll.u32 %v5036, 16
        %v5368 = vrot.slane %v5366, 5
        %v5369 = vsel %vm2196, %v5364, %v5368
        %v5370 = vshrl.u32 %v5036, 16
        %v5372 = vrot.slane %v5370, 4
        %v5373 = vor.u32 %v5372, %v5368
        %v5374 = vrot.slane %v5373, 4
        %v5376 = vshll.u32 %v5037, 16
        %v5378 = vrot.slane %v5376, 5
        %v5379 = vsel %vm2196, %v5374, %v5378
        %v5381 = vshrl.u32 %v5038, 16
        %v5383 = vrot.slane %v5381, 4
        %v5384 = vshll.u32 %v5038, 16
        %v5386 = vrot.slane %v5384, 5
        %v5387 = vor.u32 %v5383, %v5386
        %v5388 = vrot.slane %v5387, 4
        %v5390 = vshll.u32 %v5039, 16
        %v5392 = vrot.slane %v5390, 5
        %v5393 = vsel %vm2196, %v5388, %v5392
        %v5394 = vshrl.u32 %v5039, 16
        %v5396 = vrot.slane %v5394, 4
        %v5397 = vor.u32 %v5396, %v5392
        %v5398 = vrot.slane %v5397, 4
        %v5400 = vshll.u32 %v5040, 16
        %v5402 = vrot.slane %v5400, 5
        %v5403 = vsel %vm2196, %v5398, %v5402
        %v5405 = vshrl.u32 %v5041, 16
        %v5407 = vrot.slane %v5405, 4
        %v5408 = vshll.u32 %v5041, 16
        %v5410 = vrot.slane %v5408, 5
        %v5411 = vor.u32 %v5407, %v5410
        %v5412 = vrot.slane %v5411, 4
        %v5414 = vshll.u32 %v5042, 16
        %v5416 = vrot.slane %v5414, 5
        %v5417 = vsel %vm2196, %v5412, %v5416
        %v5418 = vshrl.u32 %v5042, 16
        %v5420 = vrot.slane %v5418, 4
        %v5421 = vor.u32 %v5420, %v5416
        %v5422 = vrot.slane %v5421, 4
        %v5424 = vshll.u32 %v5043, 16
        %v5426 = vrot.slane %v5424, 5
        %v5427 = vsel %vm2196, %v5422, %v5426
        %v5428 = vld [vmem:[%s4 + $0x1c] sm:$0xf]
        %v5429 = vunpack.c.l.b16 %v5057
        %v5430 = vunpack.c.l.b16 %v5067
        %v5431 = vunpack.c.l.b16 %v5081
        %v5432 = vunpack.c.l.b16 %v5091
        %v5433 = vunpack.c.l.b16 %v5105
        %v5434 = vunpack.c.l.b16 %v5115
        %v5435 = vunpack.c.l.b16 %v5129
        %v5436 = vunpack.c.l.b16 %v5139
        %v5437 = vunpack.c.l.b16 %v5153
        %v5438 = vunpack.c.l.b16 %v5163
        %v5439 = vunpack.c.l.b16 %v5177
        %v5440 = vunpack.c.l.b16 %v5187
        %v5441 = vunpack.c.l.b16 %v5201
        %v5442 = vunpack.c.l.b16 %v5211
        %v5443 = vunpack.c.l.b16 %v5225
        %v5444 = vunpack.c.l.b16 %v5235
        %v5445 = vunpack.c.l.b16 %v5249
        %v5446 = vunpack.c.l.b16 %v5259
        %v5447 = vunpack.c.l.b16 %v5273
        %v5448 = vunpack.c.l.b16 %v5283
        %v5449 = vunpack.c.l.b16 %v5297
        %v5450 = vunpack.c.l.b16 %v5307
        %v5451 = vunpack.c.l.b16 %v5321
        %v5452 = vunpack.c.l.b16 %v5331
        %v5453 = vunpack.c.l.b16 %v5345
        %v5454 = vunpack.c.l.b16 %v5355
        %v5455 = vunpack.c.l.b16 %v5369
        %v5456 = vunpack.c.l.b16 %v5379
        %v5457 = vunpack.c.l.b16 %v5393
        %v5458 = vunpack.c.l.b16 %v5403
        %v5459 = vunpack.c.l.b16 %v5417
        %v5460 = vunpack.c.l.b16 %v5427
        %v5461 = vpack.c.b16 %v5430, %v5429
        %v5462 = vpack.c.b16 %v5432, %v5431
        %v5463 = vpack.c.b16 %v5434, %v5433
        %v5464 = vpack.c.b16 %v5436, %v5435
        %v5465 = vpack.c.b16 %v5438, %v5437
        %v5466 = vpack.c.b16 %v5440, %v5439
        %v5467 = vpack.c.b16 %v5442, %v5441
        %v5468 = vpack.c.b16 %v5444, %v5443
        %v5469 = vpack.c.b16 %v5446, %v5445
        %v5470 = vpack.c.b16 %v5448, %v5447
        %v5471 = vpack.c.b16 %v5450, %v5449
        %v5472 = vpack.c.b16 %v5452, %v5451
        %v5473 = vpack.c.b16 %v5454, %v5453
        %v5474 = vpack.c.b16 %v5456, %v5455
        %v5475 = vpack.c.b16 %v5458, %v5457
        %v5476 = vpack.c.b16 %v5460, %v5459
        %v5478 = vsel %vm717, %v5461, 0
        %v5481 = vsel %vm717, %v5462, 0
        %v5484 = vsel %vm717, %v5463, 0
        %v5487 = vsel %vm717, %v5464, 0
        %v5490 = vsel %vm717, %v5465, 0
        %v5493 = vsel %vm717, %v5466, 0
        %v5496 = vsel %vm717, %v5467, 0
        %v5499 = vsel %vm717, %v5468, 0
        %v5502 = vsel %vm717, %v5469, 0
        %v5505 = vsel %vm717, %v5470, 0
        %v5508 = vsel %vm717, %v5471, 0
        %v5511 = vsel %vm717, %v5472, 0
        %v5514 = vsel %vm717, %v5473, 0
        %v5517 = vsel %vm717, %v5474, 0
        %v5520 = vsel %vm717, %v5475, 0
        %v5523 = vsel %vm717, %v5476, 0
        %v5526 = vsel %vm2678, %v5428, 0
        %5528 = vmatpush.bf16.msra.mxu0 0
        %5529 = vmatpush.bf16.msra.mxu0 0
        %5530 = vmatpush.bf16.msra.mxu0 0
        %5531 = vmatpush.bf16.msra.mxu0 0
        %5532 = vmatpush.bf16.msra.mxu0 0
        %5533 = vmatpush.bf16.msra.mxu0 0
        %5534 = vmatpush.bf16.msra.mxu0 0
        %5535 = vmatpush.bf16.msra.mxu0 %v5526
        %5536 = vmatmul.bf16.gmra.mxu0 %v5478
        %v5537 = vpop.f32.mrf.mxu0
        %v5538 = vadd.f32 0.0, %v5537
        %v5539 = vpop.f32.mrf.mxu0
        %v5540 = vadd.f32 0.0, %v5539
        %5541 = vmatmul.bf16.gmra.mxu0 %v5481
        %v5542 = vpop.f32.mrf.mxu0
        %v5543 = vadd.f32 0.0, %v5542
        %v5544 = vpop.f32.mrf.mxu0
        %v5545 = vadd.f32 0.0, %v5544
        %5546 = vmatmul.bf16.gmra.mxu0 %v5484
        %v5547 = vpop.f32.mrf.mxu0
        %v5548 = vadd.f32 0.0, %v5547
        %v5549 = vpop.f32.mrf.mxu0
        %v5550 = vadd.f32 0.0, %v5549
        %5551 = vmatmul.bf16.gmra.mxu0 %v5487
        %v5552 = vpop.f32.mrf.mxu0
        %v5553 = vadd.f32 0.0, %v5552
        %v5554 = vpop.f32.mrf.mxu0
        %v5555 = vadd.f32 0.0, %v5554
        %5556 = vmatmul.bf16.gmra.mxu0 %v5490
        %v5557 = vpop.f32.mrf.mxu0
        %v5558 = vadd.f32 0.0, %v5557
        %v5559 = vpop.f32.mrf.mxu0
        %v5560 = vadd.f32 0.0, %v5559
        %5561 = vmatmul.bf16.gmra.mxu0 %v5493
        %v5562 = vpop.f32.mrf.mxu0
        %v5563 = vadd.f32 0.0, %v5562
        %v5564 = vpop.f32.mrf.mxu0
        %v5565 = vadd.f32 0.0, %v5564
        %5566 = vmatmul.bf16.gmra.mxu0 %v5496
        %v5567 = vpop.f32.mrf.mxu0
        %v5568 = vadd.f32 0.0, %v5567
        %v5569 = vpop.f32.mrf.mxu0
        %v5570 = vadd.f32 0.0, %v5569
        %5571 = vmatmul.bf16.gmra.mxu0 %v5499
        %v5572 = vpop.f32.mrf.mxu0
        %v5573 = vadd.f32 0.0, %v5572
        %v5574 = vpop.f32.mrf.mxu0
        %v5575 = vadd.f32 0.0, %v5574
        %5576 = vmatmul.bf16.gmra.mxu0 %v5502
        %v5577 = vpop.f32.mrf.mxu0
        %v5578 = vadd.f32 0.0, %v5577
        %v5579 = vpop.f32.mrf.mxu0
        %v5580 = vadd.f32 0.0, %v5579
        %5581 = vmatmul.bf16.gmra.mxu0 %v5505
        %v5582 = vpop.f32.mrf.mxu0
        %v5583 = vadd.f32 0.0, %v5582
        %v5584 = vpop.f32.mrf.mxu0
        %v5585 = vadd.f32 0.0, %v5584
        %5586 = vmatmul.bf16.gmra.mxu0 %v5508
        %v5587 = vpop.f32.mrf.mxu0
        %v5588 = vadd.f32 0.0, %v5587
        %v5589 = vpop.f32.mrf.mxu0
        %v5590 = vadd.f32 0.0, %v5589
        %5591 = vmatmul.bf16.gmra.mxu0 %v5511
        %v5592 = vpop.f32.mrf.mxu0
        %v5593 = vadd.f32 0.0, %v5592
        %v5594 = vpop.f32.mrf.mxu0
        %v5595 = vadd.f32 0.0, %v5594
        %5596 = vmatmul.bf16.gmra.mxu0 %v5514
        %v5597 = vpop.f32.mrf.mxu0
        %v5598 = vadd.f32 0.0, %v5597
        %v5599 = vpop.f32.mrf.mxu0
        %v5600 = vadd.f32 0.0, %v5599
        %5601 = vmatmul.bf16.gmra.mxu0 %v5517
        %v5602 = vpop.f32.mrf.mxu0
        %v5603 = vadd.f32 0.0, %v5602
        %v5604 = vpop.f32.mrf.mxu0
        %v5605 = vadd.f32 0.0, %v5604
        %5606 = vmatmul.bf16.gmra.mxu0 %v5520
        %v5607 = vpop.f32.mrf.mxu0
        %v5608 = vadd.f32 0.0, %v5607
        %v5609 = vpop.f32.mrf.mxu0
        %v5610 = vadd.f32 0.0, %v5609
        %5611 = vmatmul.bf16.gmra.mxu0 %v5523
        %v5612 = vpop.f32.mrf.mxu0
        %v5613 = vadd.f32 0.0, %v5612
        %v5614 = vpop.f32.mrf.mxu0
        %v5615 = vadd.f32 0.0, %v5614
        %5616 = vdwg.mxu0
        %v5617 = vadd.f32 %v4964, %v5538
        %v5618 = vadd.f32 %v4965, %v5540
        %v5619 = vadd.f32 %v4966, %v5543
        %v5620 = vadd.f32 %v4967, %v5545
        %v5621 = vadd.f32 %v4968, %v5548
        %v5622 = vadd.f32 %v4969, %v5550
        %v5623 = vadd.f32 %v4970, %v5553
        %v5624 = vadd.f32 %v4971, %v5555
        %v5625 = vadd.f32 %v4972, %v5558
        %v5626 = vadd.f32 %v4973, %v5560
        %v5627 = vadd.f32 %v4974, %v5563
        %v5628 = vadd.f32 %v4975, %v5565
        %v5629 = vadd.f32 %v4976, %v5568
        %v5630 = vadd.f32 %v4977, %v5570
        %v5631 = vadd.f32 %v4978, %v5573
        %v5632 = vadd.f32 %v4979, %v5575
        %v5633 = vadd.f32 %v4980, %v5578
        %v5634 = vadd.f32 %v4981, %v5580
        %v5635 = vadd.f32 %v4982, %v5583
        %v5636 = vadd.f32 %v4983, %v5585
        %v5637 = vadd.f32 %v4984, %v5588
        %v5638 = vadd.f32 %v4985, %v5590
        %v5639 = vadd.f32 %v4986, %v5593
        %v5640 = vadd.f32 %v4987, %v5595
        %v5641 = vadd.f32 %v4988, %v5598
        %v5642 = vadd.f32 %v4989, %v5600
        %v5643 = vadd.f32 %v4990, %v5603
        %v5644 = vadd.f32 %v4991, %v5605
        %v5645 = vadd.f32 %v4992, %v5608
        %v5646 = vadd.f32 %v4993, %v5610
        %v5647 = vadd.f32 %v4994, %v5613
        %v5648 = vadd.f32 %v4995, %v5615
        %v5649 = vld [vmem:[%s4710] sm:$0xe]
        %v5650 = vld [vmem:[%s4710 + $0xc] sm:$0xe]
        %v5651 = vld [vmem:[%s4710 + $0x18] sm:$0xe]
        %v5652 = vld [vmem:[%s4710 + $0x24] sm:$0xe]
        %v5653 = vld [vmem:[%s4710 + $0x30] sm:$0xe]
        %v5654 = vld [vmem:[%s4710 + $0x3c] sm:$0xe]
        %v5655 = vld [vmem:[%s4710 + $0x48] sm:$0xe]
        %v5656 = vld [vmem:[%s4710 + $0x54] sm:$0xe]
        %v5657 = vld [vmem:[%s4710 + $0x60] sm:$0xe]
        %v5658 = vld [vmem:[%s4710 + $0x6c] sm:$0xe]
        %v5659 = vld [vmem:[%s4710 + $0x78] sm:$0xe]
        %v5660 = vld [vmem:[%s4710 + $0x84] sm:$0xe]
        %v5661 = vld [vmem:[%s4710 + $0x90] sm:$0xe]
        %v5662 = vld [vmem:[%s4710 + $0x9c] sm:$0xe]
        %v5663 = vld [vmem:[%s4710 + $0xa8] sm:$0xe]
        %v5664 = vld [vmem:[%s4710 + $0xb4] sm:$0xe]
        %v5713 = vrot.slane %v5649, 5
        %v5714 = vrot.slane %v5713, 4
        %v5715 = vrot.slane %v4997, 5
        %v5716 = vsel %vm3041, %v5714, %v5715
        %v5717 = vrot.slane %v5715, 4
        %v5718 = vrot.slane %v4998, 5
        %v5719 = vsel %vm3041, %v5717, %v5718
        %v5720 = vrot.slane %v5650, 5
        %v5721 = vrot.slane %v5720, 4
        %v5722 = vrot.slane %v5000, 5
        %v5723 = vsel %vm3041, %v5721, %v5722
        %v5724 = vrot.slane %v5722, 4
        %v5725 = vrot.slane %v5001, 5
        %v5726 = vsel %vm3041, %v5724, %v5725
        %v5727 = vrot.slane %v5651, 5
        %v5728 = vrot.slane %v5727, 4
        %v5729 = vrot.slane %v5003, 5
        %v5730 = vsel %vm3041, %v5728, %v5729
        %v5731 = vrot.slane %v5729, 4
        %v5732 = vrot.slane %v5004, 5
        %v5733 = vsel %vm3041, %v5731, %v5732
        %v5734 = vrot.slane %v5652, 5
        %v5735 = vrot.slane %v5734, 4
        %v5736 = vrot.slane %v5006, 5
        %v5737 = vsel %vm3041, %v5735, %v5736
        %v5738 = vrot.slane %v5736, 4
        %v5739 = vrot.slane %v5007, 5
        %v5740 = vsel %vm3041, %v5738, %v5739
        %v5741 = vrot.slane %v5653, 5
        %v5742 = vrot.slane %v5741, 4
        %v5743 = vrot.slane %v5009, 5
        %v5744 = vsel %vm3041, %v5742, %v5743
        %v5745 = vrot.slane %v5743, 4
        %v5746 = vrot.slane %v5010, 5
        %v5747 = vsel %vm3041, %v5745, %v5746
        %v5748 = vrot.slane %v5654, 5
        %v5749 = vrot.slane %v5748, 4
        %v5750 = vrot.slane %v5012, 5
        %v5751 = vsel %vm3041, %v5749, %v5750
        %v5752 = vrot.slane %v5750, 4
        %v5753 = vrot.slane %v5013, 5
        %v5754 = vsel %vm3041, %v5752, %v5753
        %v5755 = vrot.slane %v5655, 5
        %v5756 = vrot.slane %v5755, 4
        %v5757 = vrot.slane %v5015, 5
        %v5758 = vsel %vm3041, %v5756, %v5757
        %v5759 = vrot.slane %v5757, 4
        %v5760 = vrot.slane %v5016, 5
        %v5761 = vsel %vm3041, %v5759, %v5760
        %v5762 = vrot.slane %v5656, 5
        %v5763 = vrot.slane %v5762, 4
        %v5764 = vrot.slane %v5018, 5
        %v5765 = vsel %vm3041, %v5763, %v5764
        %v5766 = vrot.slane %v5764, 4
        %v5767 = vrot.slane %v5019, 5
        %v5768 = vsel %vm3041, %v5766, %v5767
        %v5769 = vrot.slane %v5657, 5
        %v5770 = vrot.slane %v5769, 4
        %v5771 = vrot.slane %v5021, 5
        %v5772 = vsel %vm3041, %v5770, %v5771
        %v5773 = vrot.slane %v5771, 4
        %v5774 = vrot.slane %v5022, 5
        %v5775 = vsel %vm3041, %v5773, %v5774
        %v5776 = vrot.slane %v5658, 5
        %v5777 = vrot.slane %v5776, 4
        %v5778 = vrot.slane %v5024, 5
        %v5779 = vsel %vm3041, %v5777, %v5778
        %v5780 = vrot.slane %v5778, 4
        %v5781 = vrot.slane %v5025, 5
        %v5782 = vsel %vm3041, %v5780, %v5781
        %v5783 = vrot.slane %v5659, 5
        %v5784 = vrot.slane %v5783, 4
        %v5785 = vrot.slane %v5027, 5
        %v5786 = vsel %vm3041, %v5784, %v5785
        %v5787 = vrot.slane %v5785, 4
        %v5788 = vrot.slane %v5028, 5
        %v5789 = vsel %vm3041, %v5787, %v5788
        %v5790 = vrot.slane %v5660, 5
        %v5791 = vrot.slane %v5790, 4
        %v5792 = vrot.slane %v5030, 5
        %v5793 = vsel %vm3041, %v5791, %v5792
        %v5794 = vrot.slane %v5792, 4
        %v5795 = vrot.slane %v5031, 5
        %v5796 = vsel %vm3041, %v5794, %v5795
        %v5797 = vrot.slane %v5661, 5
        %v5798 = vrot.slane %v5797, 4
        %v5799 = vrot.slane %v5033, 5
        %v5800 = vsel %vm3041, %v5798, %v5799
        %v5801 = vrot.slane %v5799, 4
        %v5802 = vrot.slane %v5034, 5
        %v5803 = vsel %vm3041, %v5801, %v5802
        %v5804 = vrot.slane %v5662, 5
        %v5805 = vrot.slane %v5804, 4
        %v5806 = vrot.slane %v5036, 5
        %v5807 = vsel %vm3041, %v5805, %v5806
        %v5808 = vrot.slane %v5806, 4
        %v5809 = vrot.slane %v5037, 5
        %v5810 = vsel %vm3041, %v5808, %v5809
        %v5811 = vrot.slane %v5663, 5
        %v5812 = vrot.slane %v5811, 4
        %v5813 = vrot.slane %v5039, 5
        %v5814 = vsel %vm3041, %v5812, %v5813
        %v5815 = vrot.slane %v5813, 4
        %v5816 = vrot.slane %v5040, 5
        %v5817 = vsel %vm3041, %v5815, %v5816
        %v5818 = vrot.slane %v5664, 5
        %v5819 = vrot.slane %v5818, 4
        %v5820 = vrot.slane %v5042, 5
        %v5821 = vsel %vm3041, %v5819, %v5820
        %v5822 = vrot.slane %v5820, 4
        %v5823 = vrot.slane %v5043, 5
        %v5824 = vsel %vm3041, %v5822, %v5823
        %v5825 = vld [vmem:[%s4 + $0x20] sm:$0xf]
        %v5826 = vunpack.c.l.b16 %v5716
        %v5827 = vunpack.c.l.b16 %v5719
        %v5828 = vunpack.c.l.b16 %v5723
        %v5829 = vunpack.c.l.b16 %v5726
        %v5830 = vunpack.c.l.b16 %v5730
        %v5831 = vunpack.c.l.b16 %v5733
        %v5832 = vunpack.c.l.b16 %v5737
        %v5833 = vunpack.c.l.b16 %v5740
        %v5834 = vunpack.c.l.b16 %v5744
        %v5835 = vunpack.c.l.b16 %v5747
        %v5836 = vunpack.c.l.b16 %v5751
        %v5837 = vunpack.c.l.b16 %v5754
        %v5838 = vunpack.c.l.b16 %v5758
        %v5839 = vunpack.c.l.b16 %v5761
        %v5840 = vunpack.c.l.b16 %v5765
        %v5841 = vunpack.c.l.b16 %v5768
        %v5842 = vunpack.c.l.b16 %v5772
        %v5843 = vunpack.c.l.b16 %v5775
        %v5844 = vunpack.c.l.b16 %v5779
        %v5845 = vunpack.c.l.b16 %v5782
        %v5846 = vunpack.c.l.b16 %v5786
        %v5847 = vunpack.c.l.b16 %v5789
        %v5848 = vunpack.c.l.b16 %v5793
        %v5849 = vunpack.c.l.b16 %v5796
        %v5850 = vunpack.c.l.b16 %v5800
        %v5851 = vunpack.c.l.b16 %v5803
        %v5852 = vunpack.c.l.b16 %v5807
        %v5853 = vunpack.c.l.b16 %v5810
        %v5854 = vunpack.c.l.b16 %v5814
        %v5855 = vunpack.c.l.b16 %v5817
        %v5856 = vunpack.c.l.b16 %v5821
        %v5857 = vunpack.c.l.b16 %v5824
        %v5858 = vpack.c.b16 %v5827, %v5826
        %v5859 = vpack.c.b16 %v5829, %v5828
        %v5860 = vpack.c.b16 %v5831, %v5830
        %v5861 = vpack.c.b16 %v5833, %v5832
        %v5862 = vpack.c.b16 %v5835, %v5834
        %v5863 = vpack.c.b16 %v5837, %v5836
        %v5864 = vpack.c.b16 %v5839, %v5838
        %v5865 = vpack.c.b16 %v5841, %v5840
        %v5866 = vpack.c.b16 %v5843, %v5842
        %v5867 = vpack.c.b16 %v5845, %v5844
        %v5868 = vpack.c.b16 %v5847, %v5846
        %v5869 = vpack.c.b16 %v5849, %v5848
        %v5870 = vpack.c.b16 %v5851, %v5850
        %v5871 = vpack.c.b16 %v5853, %v5852
        %v5872 = vpack.c.b16 %v5855, %v5854
        %v5873 = vpack.c.b16 %v5857, %v5856
        %v5875 = vsel %vm717, %v5858, 0
        %v5878 = vsel %vm717, %v5859, 0
        %v5881 = vsel %vm717, %v5860, 0
        %v5884 = vsel %vm717, %v5861, 0
        %v5887 = vsel %vm717, %v5862, 0
        %v5890 = vsel %vm717, %v5863, 0
        %v5893 = vsel %vm717, %v5864, 0
        %v5896 = vsel %vm717, %v5865, 0
        %v5899 = vsel %vm717, %v5866, 0
        %v5902 = vsel %vm717, %v5867, 0
        %v5905 = vsel %vm717, %v5868, 0
        %v5908 = vsel %vm717, %v5869, 0
        %v5911 = vsel %vm717, %v5870, 0
        %v5914 = vsel %vm717, %v5871, 0
        %v5917 = vsel %vm717, %v5872, 0
        %v5920 = vsel %vm717, %v5873, 0
        %v5923 = vsel %vm2678, %v5825, 0
        %5925 = vmatpush.bf16.msra.mxu0 0
        %5926 = vmatpush.bf16.msra.mxu0 0
        %5927 = vmatpush.bf16.msra.mxu0 0
        %5928 = vmatpush.bf16.msra.mxu0 0
        %5929 = vmatpush.bf16.msra.mxu0 0
        %5930 = vmatpush.bf16.msra.mxu0 0
        %5931 = vmatpush.bf16.msra.mxu0 0
        %5932 = vmatpush.bf16.msra.mxu0 %v5923
        %5933 = vmatmul.bf16.gmra.mxu0 %v5875
        %v5934 = vpop.f32.mrf.mxu0
        %v5935 = vadd.f32 0.0, %v5934
        %v5936 = vpop.f32.mrf.mxu0
        %v5937 = vadd.f32 0.0, %v5936
        %5938 = vmatmul.bf16.gmra.mxu0 %v5878
        %v5939 = vpop.f32.mrf.mxu0
        %v5940 = vadd.f32 0.0, %v5939
        %v5941 = vpop.f32.mrf.mxu0
        %v5942 = vadd.f32 0.0, %v5941
        %5943 = vmatmul.bf16.gmra.mxu0 %v5881
        %v5944 = vpop.f32.mrf.mxu0
        %v5945 = vadd.f32 0.0, %v5944
        %v5946 = vpop.f32.mrf.mxu0
        %v5947 = vadd.f32 0.0, %v5946
        %5948 = vmatmul.bf16.gmra.mxu0 %v5884
        %v5949 = vpop.f32.mrf.mxu0
        %v5950 = vadd.f32 0.0, %v5949
        %v5951 = vpop.f32.mrf.mxu0
        %v5952 = vadd.f32 0.0, %v5951
        %5953 = vmatmul.bf16.gmra.mxu0 %v5887
        %v5954 = vpop.f32.mrf.mxu0
        %v5955 = vadd.f32 0.0, %v5954
        %v5956 = vpop.f32.mrf.mxu0
        %v5957 = vadd.f32 0.0, %v5956
        %5958 = vmatmul.bf16.gmra.mxu0 %v5890
        %v5959 = vpop.f32.mrf.mxu0
        %v5960 = vadd.f32 0.0, %v5959
        %v5961 = vpop.f32.mrf.mxu0
        %v5962 = vadd.f32 0.0, %v5961
        %5963 = vmatmul.bf16.gmra.mxu0 %v5893
        %v5964 = vpop.f32.mrf.mxu0
        %v5965 = vadd.f32 0.0, %v5964
        %v5966 = vpop.f32.mrf.mxu0
        %v5967 = vadd.f32 0.0, %v5966
        %5968 = vmatmul.bf16.gmra.mxu0 %v5896
        %v5969 = vpop.f32.mrf.mxu0
        %v5970 = vadd.f32 0.0, %v5969
        %v5971 = vpop.f32.mrf.mxu0
        %v5972 = vadd.f32 0.0, %v5971
        %5973 = vmatmul.bf16.gmra.mxu0 %v5899
        %v5974 = vpop.f32.mrf.mxu0
        %v5975 = vadd.f32 0.0, %v5974
        %v5976 = vpop.f32.mrf.mxu0
        %v5977 = vadd.f32 0.0, %v5976
        %5978 = vmatmul.bf16.gmra.mxu0 %v5902
        %v5979 = vpop.f32.mrf.mxu0
        %v5980 = vadd.f32 0.0, %v5979
        %v5981 = vpop.f32.mrf.mxu0
        %v5982 = vadd.f32 0.0, %v5981
        %5983 = vmatmul.bf16.gmra.mxu0 %v5905
        %v5984 = vpop.f32.mrf.mxu0
        %v5985 = vadd.f32 0.0, %v5984
        %v5986 = vpop.f32.mrf.mxu0
        %v5987 = vadd.f32 0.0, %v5986
        %5988 = vmatmul.bf16.gmra.mxu0 %v5908
        %v5989 = vpop.f32.mrf.mxu0
        %v5990 = vadd.f32 0.0, %v5989
        %v5991 = vpop.f32.mrf.mxu0
        %v5992 = vadd.f32 0.0, %v5991
        %5993 = vmatmul.bf16.gmra.mxu0 %v5911
        %v5994 = vpop.f32.mrf.mxu0
        %v5995 = vadd.f32 0.0, %v5994
        %v5996 = vpop.f32.mrf.mxu0
        %v5997 = vadd.f32 0.0, %v5996
        %5998 = vmatmul.bf16.gmra.mxu0 %v5914
        %v5999 = vpop.f32.mrf.mxu0
        %v6000 = vadd.f32 0.0, %v5999
        %v6001 = vpop.f32.mrf.mxu0
        %v6002 = vadd.f32 0.0, %v6001
        %6003 = vmatmul.bf16.gmra.mxu0 %v5917
        %v6004 = vpop.f32.mrf.mxu0
        %v6005 = vadd.f32 0.0, %v6004
        %v6006 = vpop.f32.mrf.mxu0
        %v6007 = vadd.f32 0.0, %v6006
        %6008 = vmatmul.bf16.gmra.mxu0 %v5920
        %v6009 = vpop.f32.mrf.mxu0
        %v6010 = vadd.f32 0.0, %v6009
        %v6011 = vpop.f32.mrf.mxu0
        %v6012 = vadd.f32 0.0, %v6011
        %6013 = vdwg.mxu0
        %v6014 = vadd.f32 %v5617, %v5935
        %v6015 = vadd.f32 %v5618, %v5937
        %v6016 = vadd.f32 %v5619, %v5940
        %v6017 = vadd.f32 %v5620, %v5942
        %v6018 = vadd.f32 %v5621, %v5945
        %v6019 = vadd.f32 %v5622, %v5947
        %v6020 = vadd.f32 %v5623, %v5950
        %v6021 = vadd.f32 %v5624, %v5952
        %v6022 = vadd.f32 %v5625, %v5955
        %v6023 = vadd.f32 %v5626, %v5957
        %v6024 = vadd.f32 %v5627, %v5960
        %v6025 = vadd.f32 %v5628, %v5962
        %v6026 = vadd.f32 %v5629, %v5965
        %v6027 = vadd.f32 %v5630, %v5967
        %v6028 = vadd.f32 %v5631, %v5970
        %v6029 = vadd.f32 %v5632, %v5972
        %v6030 = vadd.f32 %v5633, %v5975
        %v6031 = vadd.f32 %v5634, %v5977
        %v6032 = vadd.f32 %v5635, %v5980
        %v6033 = vadd.f32 %v5636, %v5982
        %v6034 = vadd.f32 %v5637, %v5985
        %v6035 = vadd.f32 %v5638, %v5987
        %v6036 = vadd.f32 %v5639, %v5990
        %v6037 = vadd.f32 %v5640, %v5992
        %v6038 = vadd.f32 %v5641, %v5995
        %v6039 = vadd.f32 %v5642, %v5997
        %v6040 = vadd.f32 %v5643, %v6000
        %v6041 = vadd.f32 %v5644, %v6002
        %v6042 = vadd.f32 %v5645, %v6005
        %v6043 = vadd.f32 %v5646, %v6007
        %v6044 = vadd.f32 %v5647, %v6010
        %v6045 = vadd.f32 %v5648, %v6012
        %v6046 = vld [vmem:[%s5] sm:$0x1]
        %v6048 = vperm.slane %v6046, 0
        %v6050 = vadd.f32 %v6014, %v6048
        %v6051 = vadd.f32 %v6015, %v6048
        %v6052 = vadd.f32 %v6016, %v6048
        %v6053 = vadd.f32 %v6017, %v6048
        %v6054 = vadd.f32 %v6018, %v6048
        %v6055 = vadd.f32 %v6019, %v6048
        %v6056 = vadd.f32 %v6020, %v6048
        %v6057 = vadd.f32 %v6021, %v6048
        %v6058 = vadd.f32 %v6022, %v6048
        %v6059 = vadd.f32 %v6023, %v6048
        %v6060 = vadd.f32 %v6024, %v6048
        %v6061 = vadd.f32 %v6025, %v6048
        %v6062 = vadd.f32 %v6026, %v6048
        %v6063 = vadd.f32 %v6027, %v6048
        %v6064 = vadd.f32 %v6028, %v6048
        %v6065 = vadd.f32 %v6029, %v6048
        %v6066 = vadd.f32 %v6030, %v6048
        %v6067 = vadd.f32 %v6031, %v6048
        %v6068 = vadd.f32 %v6032, %v6048
        %v6069 = vadd.f32 %v6033, %v6048
        %v6070 = vadd.f32 %v6034, %v6048
        %v6071 = vadd.f32 %v6035, %v6048
        %v6072 = vadd.f32 %v6036, %v6048
        %v6073 = vadd.f32 %v6037, %v6048
        %v6074 = vadd.f32 %v6038, %v6048
        %v6075 = vadd.f32 %v6039, %v6048
        %v6076 = vadd.f32 %v6040, %v6048
        %v6077 = vadd.f32 %v6041, %v6048
        %v6078 = vadd.f32 %v6042, %v6048
        %v6079 = vadd.f32 %v6043, %v6048
        %v6080 = vadd.f32 %v6044, %v6048
        %v6081 = vadd.f32 %v6045, %v6048
        %v6082 = vld [vmem:[%s6] sm:$0xff]
        %v6083 = vld [vmem:[%s6 + $0x8] sm:$0xff]
        %v6084 = vld [vmem:[%s7] sm:$0x1]
        %v6085 = vld [vmem:[%s8] sm:$0x1]
        %vm6086 = vcmask 130048
        %v6087 = vsel %vm6086, %v6050, 0.0
        %v6088 = vsel %vm6086, %v6051, 0.0
        %v6089 = vadd.f32 %v6087, %v6088
        %v6090 = vsel %vm6086, %v6052, 0.0
        %v6091 = vadd.f32 %v6089, %v6090
        %v6092 = vsel %vm6086, %v6053, 0.0
        %v6093 = vadd.f32 %v6091, %v6092
        %v6094 = vsel %vm6086, %v6054, 0.0
        %v6095 = vadd.f32 %v6093, %v6094
        %v6096 = vsel %vm6086, %v6055, 0.0
        %v6097 = vadd.f32 %v6095, %v6096
        %v6098 = vsel %vm6086, %v6056, 0.0
        %v6099 = vadd.f32 %v6097, %v6098
        %v6100 = vsel %vm6086, %v6057, 0.0
        %v6101 = vadd.f32 %v6099, %v6100
        %v6102 = vsel %vm6086, %v6058, 0.0
        %v6103 = vadd.f32 %v6101, %v6102
        %v6104 = vsel %vm6086, %v6059, 0.0
        %v6105 = vadd.f32 %v6103, %v6104
        %v6106 = vsel %vm6086, %v6060, 0.0
        %v6107 = vadd.f32 %v6105, %v6106
        %v6108 = vsel %vm6086, %v6061, 0.0
        %v6109 = vadd.f32 %v6107, %v6108
        %v6110 = vsel %vm6086, %v6062, 0.0
        %v6111 = vadd.f32 %v6109, %v6110
        %v6112 = vsel %vm6086, %v6063, 0.0
        %v6113 = vadd.f32 %v6111, %v6112
        %v6114 = vsel %vm6086, %v6064, 0.0
        %v6115 = vadd.f32 %v6113, %v6114
        %v6116 = vsel %vm6086, %v6065, 0.0
        %v6117 = vadd.f32 %v6115, %v6116
        %v6118 = vsel %vm6086, %v6066, 0.0
        %v6119 = vadd.f32 %v6117, %v6118
        %v6120 = vsel %vm6086, %v6067, 0.0
        %v6121 = vadd.f32 %v6119, %v6120
        %v6122 = vsel %vm6086, %v6068, 0.0
        %v6123 = vadd.f32 %v6121, %v6122
        %v6124 = vsel %vm6086, %v6069, 0.0
        %v6125 = vadd.f32 %v6123, %v6124
        %v6126 = vsel %vm6086, %v6070, 0.0
        %v6127 = vadd.f32 %v6125, %v6126
        %v6128 = vsel %vm6086, %v6071, 0.0
        %v6129 = vadd.f32 %v6127, %v6128
        %v6130 = vsel %vm6086, %v6072, 0.0
        %v6131 = vadd.f32 %v6129, %v6130
        %v6132 = vsel %vm6086, %v6073, 0.0
        %v6133 = vadd.f32 %v6131, %v6132
        %v6134 = vsel %vm6086, %v6074, 0.0
        %v6135 = vadd.f32 %v6133, %v6134
        %v6136 = vsel %vm6086, %v6075, 0.0
        %v6137 = vadd.f32 %v6135, %v6136
        %v6138 = vsel %vm6086, %v6076, 0.0
        %v6139 = vadd.f32 %v6137, %v6138
        %v6140 = vsel %vm6086, %v6077, 0.0
        %v6141 = vadd.f32 %v6139, %v6140
        %v6142 = vsel %vm6086, %v6078, 0.0
        %v6143 = vadd.f32 %v6141, %v6142
        %v6144 = vsel %vm6086, %v6079, 0.0
        %v6145 = vadd.f32 %v6143, %v6144
        %v6146 = vsel %vm6086, %v6080, 0.0
        %v6147 = vadd.f32 %v6145, %v6146
        %v6148 = vsel %vm6086, %v6081, 0.0
        %v6149 = vadd.f32 %v6147, %v6148
        %v6150 = vrot.slane %v6149, 4
        %v6151 = vadd.f32 %v6149, %v6150
        %v6152 = vrot.slane %v6151, 2
        %v6153 = vadd.f32 %v6151, %v6152
        %v6154 = vrot.slane %v6153, 1
        %v6155 = vadd.f32 %v6153, %v6154
        %v6156 = vmul.f32 %v6050, %v6050
        %v6157 = vmul.f32 %v6051, %v6051
        %v6158 = vmul.f32 %v6052, %v6052
        %v6159 = vmul.f32 %v6053, %v6053
        %v6160 = vmul.f32 %v6054, %v6054
        %v6161 = vmul.f32 %v6055, %v6055
        %v6162 = vmul.f32 %v6056, %v6056
        %v6163 = vmul.f32 %v6057, %v6057
        %v6164 = vmul.f32 %v6058, %v6058
        %v6165 = vmul.f32 %v6059, %v6059
        %v6166 = vmul.f32 %v6060, %v6060
        %v6167 = vmul.f32 %v6061, %v6061
        %v6168 = vmul.f32 %v6062, %v6062
        %v6169 = vmul.f32 %v6063, %v6063
        %v6170 = vmul.f32 %v6064, %v6064
        %v6171 = vmul.f32 %v6065, %v6065
        %v6172 = vmul.f32 %v6066, %v6066
        %v6173 = vmul.f32 %v6067, %v6067
        %v6174 = vmul.f32 %v6068, %v6068
        %v6175 = vmul.f32 %v6069, %v6069
        %v6176 = vmul.f32 %v6070, %v6070
        %v6177 = vmul.f32 %v6071, %v6071
        %v6178 = vmul.f32 %v6072, %v6072
        %v6179 = vmul.f32 %v6073, %v6073
        %v6180 = vmul.f32 %v6074, %v6074
        %v6181 = vmul.f32 %v6075, %v6075
        %v6182 = vmul.f32 %v6076, %v6076
        %v6183 = vmul.f32 %v6077, %v6077
        %v6184 = vmul.f32 %v6078, %v6078
        %v6185 = vmul.f32 %v6079, %v6079
        %v6186 = vmul.f32 %v6080, %v6080
        %v6187 = vmul.f32 %v6081, %v6081
        %v6188 = vsel %vm6086, %v6156, 0.0
        %v6189 = vsel %vm6086, %v6157, 0.0
        %v6190 = vadd.f32 %v6188, %v6189
        %v6191 = vsel %vm6086, %v6158, 0.0
        %v6192 = vadd.f32 %v6190, %v6191
        %v6193 = vsel %vm6086, %v6159, 0.0
        %v6194 = vadd.f32 %v6192, %v6193
        %v6195 = vsel %vm6086, %v6160, 0.0
        %v6196 = vadd.f32 %v6194, %v6195
        %v6197 = vsel %vm6086, %v6161, 0.0
        %v6198 = vadd.f32 %v6196, %v6197
        %v6199 = vsel %vm6086, %v6162, 0.0
        %v6200 = vadd.f32 %v6198, %v6199
        %v6201 = vsel %vm6086, %v6163, 0.0
        %v6202 = vadd.f32 %v6200, %v6201
        %v6203 = vsel %vm6086, %v6164, 0.0
        %v6204 = vadd.f32 %v6202, %v6203
        %v6205 = vsel %vm6086, %v6165, 0.0
        %v6206 = vadd.f32 %v6204, %v6205
        %v6207 = vsel %vm6086, %v6166, 0.0
        %v6208 = vadd.f32 %v6206, %v6207
        %v6209 = vsel %vm6086, %v6167, 0.0
        %v6210 = vadd.f32 %v6208, %v6209
        %v6211 = vsel %vm6086, %v6168, 0.0
        %v6212 = vadd.f32 %v6210, %v6211
        %v6213 = vsel %vm6086, %v6169, 0.0
        %v6214 = vadd.f32 %v6212, %v6213
        %v6215 = vsel %vm6086, %v6170, 0.0
        %v6216 = vadd.f32 %v6214, %v6215
        %v6217 = vsel %vm6086, %v6171, 0.0
        %v6218 = vadd.f32 %v6216, %v6217
        %v6219 = vsel %vm6086, %v6172, 0.0
        %v6220 = vadd.f32 %v6218, %v6219
        %v6221 = vsel %vm6086, %v6173, 0.0
        %v6222 = vadd.f32 %v6220, %v6221
        %v6223 = vsel %vm6086, %v6174, 0.0
        %v6224 = vadd.f32 %v6222, %v6223
        %v6225 = vsel %vm6086, %v6175, 0.0
        %v6226 = vadd.f32 %v6224, %v6225
        %v6227 = vsel %vm6086, %v6176, 0.0
        %v6228 = vadd.f32 %v6226, %v6227
        %v6229 = vsel %vm6086, %v6177, 0.0
        %v6230 = vadd.f32 %v6228, %v6229
        %v6231 = vsel %vm6086, %v6178, 0.0
        %v6232 = vadd.f32 %v6230, %v6231
        %v6233 = vsel %vm6086, %v6179, 0.0
        %v6234 = vadd.f32 %v6232, %v6233
        %v6235 = vsel %vm6086, %v6180, 0.0
        %v6236 = vadd.f32 %v6234, %v6235
        %v6237 = vsel %vm6086, %v6181, 0.0
        %v6238 = vadd.f32 %v6236, %v6237
        %v6239 = vsel %vm6086, %v6182, 0.0
        %v6240 = vadd.f32 %v6238, %v6239
        %v6241 = vsel %vm6086, %v6183, 0.0
        %v6242 = vadd.f32 %v6240, %v6241
        %v6243 = vsel %vm6086, %v6184, 0.0
        %v6244 = vadd.f32 %v6242, %v6243
        %v6245 = vsel %vm6086, %v6185, 0.0
        %v6246 = vadd.f32 %v6244, %v6245
        %v6247 = vsel %vm6086, %v6186, 0.0
        %v6248 = vadd.f32 %v6246, %v6247
        %v6249 = vsel %vm6086, %v6187, 0.0
        %v6250 = vadd.f32 %v6248, %v6249
        %v6251 = vrot.slane %v6250, 4
        %v6252 = vadd.f32 %v6250, %v6251
        %v6253 = vrot.slane %v6252, 2
        %v6254 = vadd.f32 %v6252, %v6253
        %v6255 = vrot.slane %v6254, 1
        %v6256 = vadd.f32 %v6254, %v6255
        %v6257 = vsel %vm888, %v6155, %v6256
        %v6259 = vsel %vm6086, %v6257, 0
        %6261 = vmatpush.msra.mxu0 0.0
        %6262 = vmatpush.msra.mxu0 0.0
        %6263 = vmatpush.msra.mxu0 0.0
        %6264 = vmatpush.msra.mxu0 0.0
        %6265 = vmatpush.msra.mxu0 0.0
        %6266 = vmatpush.msra.mxu0 0.0
        %6267 = vmatpush.msra.mxu0 0.0
        %6268 = vmatpush.msra.mxu0 0.0
        %6269 = vmatpush.msra.mxu0 0.0
        %6270 = vmatpush.msra.mxu0 0.0
        %6271 = vmatpush.msra.mxu0 0.0
        %6272 = vmatpush.msra.mxu0 0.0
        %6273 = vmatpush.msra.mxu0 0.0
        %6274 = vmatpush.msra.mxu0 0.0
        %6275 = vmatpush.msra.mxu0 %v6083
        %6276 = vmatpush.msra.mxu0 %v6082
        %6277 = vmatmul.f32.gmra.mxu0 %v6259
        %v6278 = vpop.f32.mrf.mxu0
        %v6279 = vadd.f32 0.0, %v6278
        %6280 = vdwg.mxu0
        %v6281 = vmul.f32 %v6279, 0.0009765625
        %v6282 = vmul.f32 %v6281, %v6281
        %v6284 = vrot.slane %v6282, 7
        %v6286 = vsub.f32 %v6281, %v6284
        %v6287 = vmax.f32 %v6286, 0.0
        %v6288 = vadd.f32 %v6287, 1e-05
        %v6289 = vrsqrt.pop %v6288
        %v6290 = vmul.f32 %v6289, %v6288
        %v6291 = vmul.f32 %v6290, %v6289
        %v6292 = vmul.f32 0.5, %v6291
        %v6293 = vsub.f32 1.5, %v6292
        %v6294 = vmul.f32 %v6289, %v6293
        %vm6295 = vweird.f32 %v6288
        %vm6296 = vweird.f32 %v6289
        %vm6297 = vmor %vm6295, %vm6296
        %v6298 = vsel %vm6297, %v6289, %v6294
        %v6299 = vperm.slane %v6281, 0
        %v6300 = vsub.f32 %v6050, %v6299
        %v6301 = vsub.f32 %v6051, %v6299
        %v6302 = vsub.f32 %v6052, %v6299
        %v6303 = vsub.f32 %v6053, %v6299
        %v6304 = vsub.f32 %v6054, %v6299
        %v6305 = vsub.f32 %v6055, %v6299
        %v6306 = vsub.f32 %v6056, %v6299
        %v6307 = vsub.f32 %v6057, %v6299
        %v6308 = vsub.f32 %v6058, %v6299
        %v6309 = vsub.f32 %v6059, %v6299
        %v6310 = vsub.f32 %v6060, %v6299
        %v6311 = vsub.f32 %v6061, %v6299
        %v6312 = vsub.f32 %v6062, %v6299
        %v6313 = vsub.f32 %v6063, %v6299
        %v6314 = vsub.f32 %v6064, %v6299
        %v6315 = vsub.f32 %v6065, %v6299
        %v6316 = vsub.f32 %v6066, %v6299
        %v6317 = vsub.f32 %v6067, %v6299
        %v6318 = vsub.f32 %v6068, %v6299
        %v6319 = vsub.f32 %v6069, %v6299
        %v6320 = vsub.f32 %v6070, %v6299
        %v6321 = vsub.f32 %v6071, %v6299
        %v6322 = vsub.f32 %v6072, %v6299
        %v6323 = vsub.f32 %v6073, %v6299
        %v6324 = vsub.f32 %v6074, %v6299
        %v6325 = vsub.f32 %v6075, %v6299
        %v6326 = vsub.f32 %v6076, %v6299
        %v6327 = vsub.f32 %v6077, %v6299
        %v6328 = vsub.f32 %v6078, %v6299
        %v6329 = vsub.f32 %v6079, %v6299
        %v6330 = vsub.f32 %v6080, %v6299
        %v6331 = vsub.f32 %v6081, %v6299
        %v6333 = vperm.slane %v6084, 0
        %v6335 = vmul.f32 %v6298, %v6333
        %v6336 = vperm.slane %v6335, 1
        %v6337 = vmul.f32 %v6300, %v6336
        %v6338 = vmul.f32 %v6301, %v6336
        %v6339 = vmul.f32 %v6302, %v6336
        %v6340 = vmul.f32 %v6303, %v6336
        %v6341 = vmul.f32 %v6304, %v6336
        %v6342 = vmul.f32 %v6305, %v6336
        %v6343 = vmul.f32 %v6306, %v6336
        %v6344 = vmul.f32 %v6307, %v6336
        %v6345 = vmul.f32 %v6308, %v6336
        %v6346 = vmul.f32 %v6309, %v6336
        %v6347 = vmul.f32 %v6310, %v6336
        %v6348 = vmul.f32 %v6311, %v6336
        %v6349 = vmul.f32 %v6312, %v6336
        %v6350 = vmul.f32 %v6313, %v6336
        %v6351 = vmul.f32 %v6314, %v6336
        %v6352 = vmul.f32 %v6315, %v6336
        %v6353 = vmul.f32 %v6316, %v6336
        %v6354 = vmul.f32 %v6317, %v6336
        %v6355 = vmul.f32 %v6318, %v6336
        %v6356 = vmul.f32 %v6319, %v6336
        %v6357 = vmul.f32 %v6320, %v6336
        %v6358 = vmul.f32 %v6321, %v6336
        %v6359 = vmul.f32 %v6322, %v6336
        %v6360 = vmul.f32 %v6323, %v6336
        %v6361 = vmul.f32 %v6324, %v6336
        %v6362 = vmul.f32 %v6325, %v6336
        %v6363 = vmul.f32 %v6326, %v6336
        %v6364 = vmul.f32 %v6327, %v6336
        %v6365 = vmul.f32 %v6328, %v6336
        %v6366 = vmul.f32 %v6329, %v6336
        %v6367 = vmul.f32 %v6330, %v6336
        %v6368 = vmul.f32 %v6331, %v6336
        %v6370 = vperm.slane %v6085, 0
        %v6372 = vadd.f32 %v6337, %v6370
        %v6373 = vadd.f32 %v6338, %v6370
        %v6374 = vadd.f32 %v6339, %v6370
        %v6375 = vadd.f32 %v6340, %v6370
        %v6376 = vadd.f32 %v6341, %v6370
        %v6377 = vadd.f32 %v6342, %v6370
        %v6378 = vadd.f32 %v6343, %v6370
        %v6379 = vadd.f32 %v6344, %v6370
        %v6380 = vadd.f32 %v6345, %v6370
        %v6381 = vadd.f32 %v6346, %v6370
        %v6382 = vadd.f32 %v6347, %v6370
        %v6383 = vadd.f32 %v6348, %v6370
        %v6384 = vadd.f32 %v6349, %v6370
        %v6385 = vadd.f32 %v6350, %v6370
        %v6386 = vadd.f32 %v6351, %v6370
        %v6387 = vadd.f32 %v6352, %v6370
        %v6388 = vadd.f32 %v6353, %v6370
        %v6389 = vadd.f32 %v6354, %v6370
        %v6390 = vadd.f32 %v6355, %v6370
        %v6391 = vadd.f32 %v6356, %v6370
        %v6392 = vadd.f32 %v6357, %v6370
        %v6393 = vadd.f32 %v6358, %v6370
        %v6394 = vadd.f32 %v6359, %v6370
        %v6395 = vadd.f32 %v6360, %v6370
        %v6396 = vadd.f32 %v6361, %v6370
        %v6397 = vadd.f32 %v6362, %v6370
        %v6398 = vadd.f32 %v6363, %v6370
        %v6399 = vadd.f32 %v6364, %v6370
        %v6400 = vadd.f32 %v6365, %v6370
        %v6401 = vadd.f32 %v6366, %v6370
        %v6402 = vadd.f32 %v6367, %v6370
        %v6403 = vadd.f32 %v6368, %v6370
        %v6404 = vxor.u32 %v6372, 2147483648
        %v6405 = vxor.u32 %v6373, 2147483648
        %v6406 = vxor.u32 %v6374, 2147483648
        %v6407 = vxor.u32 %v6375, 2147483648
        %v6408 = vxor.u32 %v6376, 2147483648
        %v6409 = vxor.u32 %v6377, 2147483648
        %v6410 = vxor.u32 %v6378, 2147483648
        %v6411 = vxor.u32 %v6379, 2147483648
        %v6412 = vxor.u32 %v6380, 2147483648
        %v6413 = vxor.u32 %v6381, 2147483648
        %v6414 = vxor.u32 %v6382, 2147483648
        %v6415 = vxor.u32 %v6383, 2147483648
        %v6416 = vxor.u32 %v6384, 2147483648
        %v6417 = vxor.u32 %v6385, 2147483648
        %v6418 = vxor.u32 %v6386, 2147483648
        %v6419 = vxor.u32 %v6387, 2147483648
        %v6420 = vxor.u32 %v6388, 2147483648
        %v6421 = vxor.u32 %v6389, 2147483648
        %v6422 = vxor.u32 %v6390, 2147483648
        %v6423 = vxor.u32 %v6391, 2147483648
        %v6424 = vxor.u32 %v6392, 2147483648
        %v6425 = vxor.u32 %v6393, 2147483648
        %v6426 = vxor.u32 %v6394, 2147483648
        %v6427 = vxor.u32 %v6395, 2147483648
        %v6428 = vxor.u32 %v6396, 2147483648
        %v6429 = vxor.u32 %v6397, 2147483648
        %v6430 = vxor.u32 %v6398, 2147483648
        %v6431 = vxor.u32 %v6399, 2147483648
        %v6432 = vxor.u32 %v6400, 2147483648
        %v6433 = vxor.u32 %v6401, 2147483648
        %v6434 = vxor.u32 %v6402, 2147483648
        %v6435 = vxor.u32 %v6403, 2147483648
        %v6436 = vmul.f32 %v6404, 1.442695
        %v6437 = vpow.pop %v6436
        %v6438 = vmul.f32 %v6405, 1.442695
        %v6439 = vpow.pop %v6438
        %v6440 = vmul.f32 %v6406, 1.442695
        %v6441 = vpow.pop %v6440
        %v6442 = vmul.f32 %v6407, 1.442695
        %v6443 = vpow.pop %v6442
        %v6444 = vmul.f32 %v6408, 1.442695
        %v6445 = vpow.pop %v6444
        %v6446 = vmul.f32 %v6409, 1.442695
        %v6447 = vpow.pop %v6446
        %v6448 = vmul.f32 %v6410, 1.442695
        %v6449 = vpow.pop %v6448
        %v6450 = vmul.f32 %v6411, 1.442695
        %v6451 = vpow.pop %v6450
        %v6452 = vmul.f32 %v6412, 1.442695
        %v6453 = vpow.pop %v6452
        %v6454 = vmul.f32 %v6413, 1.442695
        %v6455 = vpow.pop %v6454
        %v6456 = vmul.f32 %v6414, 1.442695
        %v6457 = vpow.pop %v6456
        %v6458 = vmul.f32 %v6415, 1.442695
        %v6459 = vpow.pop %v6458
        %v6460 = vmul.f32 %v6416, 1.442695
        %v6461 = vpow.pop %v6460
        %v6462 = vmul.f32 %v6417, 1.442695
        %v6463 = vpow.pop %v6462
        %v6464 = vmul.f32 %v6418, 1.442695
        %v6465 = vpow.pop %v6464
        %v6466 = vmul.f32 %v6419, 1.442695
        %v6467 = vpow.pop %v6466
        %v6468 = vmul.f32 %v6420, 1.442695
        %v6469 = vpow.pop %v6468
        %v6470 = vmul.f32 %v6421, 1.442695
        %v6471 = vpow.pop %v6470
        %v6472 = vmul.f32 %v6422, 1.442695
        %v6473 = vpow.pop %v6472
        %v6474 = vmul.f32 %v6423, 1.442695
        %v6475 = vpow.pop %v6474
        %v6476 = vmul.f32 %v6424, 1.442695
        %v6477 = vpow.pop %v6476
        %v6478 = vmul.f32 %v6425, 1.442695
        %v6479 = vpow.pop %v6478
        %v6480 = vmul.f32 %v6426, 1.442695
        %v6481 = vpow.pop %v6480
        %v6482 = vmul.f32 %v6427, 1.442695
        %v6483 = vpow.pop %v6482
        %v6484 = vmul.f32 %v6428, 1.442695
        %v6485 = vpow.pop %v6484
        %v6486 = vmul.f32 %v6429, 1.442695
        %v6487 = vpow.pop %v6486
        %v6488 = vmul.f32 %v6430, 1.442695
        %v6489 = vpow.pop %v6488
        %v6490 = vmul.f32 %v6431, 1.442695
        %v6491 = vpow.pop %v6490
        %v6492 = vmul.f32 %v6432, 1.442695
        %v6493 = vpow.pop %v6492
        %v6494 = vmul.f32 %v6433, 1.442695
        %v6495 = vpow.pop %v6494
        %v6496 = vmul.f32 %v6434, 1.442695
        %v6497 = vpow.pop %v6496
        %v6498 = vmul.f32 %v6435, 1.442695
        %v6499 = vpow.pop %v6498
        %v6500 = vadd.f32 %v6437, 1.0
        %v6501 = vadd.f32 %v6439, 1.0
        %v6502 = vadd.f32 %v6441, 1.0
        %v6503 = vadd.f32 %v6443, 1.0
        %v6504 = vadd.f32 %v6445, 1.0
        %v6505 = vadd.f32 %v6447, 1.0
        %v6506 = vadd.f32 %v6449, 1.0
        %v6507 = vadd.f32 %v6451, 1.0
        %v6508 = vadd.f32 %v6453, 1.0
        %v6509 = vadd.f32 %v6455, 1.0
        %v6510 = vadd.f32 %v6457, 1.0
        %v6511 = vadd.f32 %v6459, 1.0
        %v6512 = vadd.f32 %v6461, 1.0
        %v6513 = vadd.f32 %v6463, 1.0
        %v6514 = vadd.f32 %v6465, 1.0
        %v6515 = vadd.f32 %v6467, 1.0
        %v6516 = vadd.f32 %v6469, 1.0
        %v6517 = vadd.f32 %v6471, 1.0
        %v6518 = vadd.f32 %v6473, 1.0
        %v6519 = vadd.f32 %v6475, 1.0
        %v6520 = vadd.f32 %v6477, 1.0
        %v6521 = vadd.f32 %v6479, 1.0
        %v6522 = vadd.f32 %v6481, 1.0
        %v6523 = vadd.f32 %v6483, 1.0
        %v6524 = vadd.f32 %v6485, 1.0
        %v6525 = vadd.f32 %v6487, 1.0
        %v6526 = vadd.f32 %v6489, 1.0
        %v6527 = vadd.f32 %v6491, 1.0
        %v6528 = vadd.f32 %v6493, 1.0
        %v6529 = vadd.f32 %v6495, 1.0
        %v6530 = vadd.f32 %v6497, 1.0
        %v6531 = vadd.f32 %v6499, 1.0
        %v6532 = vrcp.pop %v6500
        %v6533 = vmul.f32 %v6500, %v6532
        %v6534 = vsub.f32 1.0, %v6533
        %v6535 = vmul.f32 %v6532, %v6534
        %v6536 = vadd.f32 %v6532, %v6535
        %vm6537 = vweird.f32 %v6500
        %vm6538 = vweird.f32 %v6532
        %vm6539 = vmor %vm6537, %vm6538
        %v6540 = vsel %vm6539, %v6532, %v6536
        %v6541 = vand.u32 2147483647, %v6500
        %vm6542 = vcmp.eq.f32.partialorder %v6541, 8.507059e+37
        %v6543 = vand.u32 %v6500, 2147483648
        %v6544 = vor.u32 1.1754944e-38, %v6543
        %v6545 = vsel %vm6542, %v6544, %v6540
        %v6546 = vmul.f32 1.0, %v6545
        %v6547 = vrcp.pop %v6501
        %v6548 = vmul.f32 %v6501, %v6547
        %v6549 = vsub.f32 1.0, %v6548
        %v6550 = vmul.f32 %v6547, %v6549
        %v6551 = vadd.f32 %v6547, %v6550
        %vm6552 = vweird.f32 %v6501
        %vm6553 = vweird.f32 %v6547
        %vm6554 = vmor %vm6552, %vm6553
        %v6555 = vsel %vm6554, %v6547, %v6551
        %v6556 = vand.u32 2147483647, %v6501
        %vm6557 = vcmp.eq.f32.partialorder %v6556, 8.507059e+37
        %v6558 = vand.u32 %v6501, 2147483648
        %v6559 = vor.u32 1.1754944e-38, %v6558
        %v6560 = vsel %vm6557, %v6559, %v6555
        %v6561 = vmul.f32 1.0, %v6560
        %v6562 = vrcp.pop %v6502
        %v6563 = vmul.f32 %v6502, %v6562
        %v6564 = vsub.f32 1.0, %v6563
        %v6565 = vmul.f32 %v6562, %v6564
        %v6566 = vadd.f32 %v6562, %v6565
        %vm6567 = vweird.f32 %v6502
        %vm6568 = vweird.f32 %v6562
        %vm6569 = vmor %vm6567, %vm6568
        %v6570 = vsel %vm6569, %v6562, %v6566
        %v6571 = vand.u32 2147483647, %v6502
        %vm6572 = vcmp.eq.f32.partialorder %v6571, 8.507059e+37
        %v6573 = vand.u32 %v6502, 2147483648
        %v6574 = vor.u32 1.1754944e-38, %v6573
        %v6575 = vsel %vm6572, %v6574, %v6570
        %v6576 = vmul.f32 1.0, %v6575
        %v6577 = vrcp.pop %v6503
        %v6578 = vmul.f32 %v6503, %v6577
        %v6579 = vsub.f32 1.0, %v6578
        %v6580 = vmul.f32 %v6577, %v6579
        %v6581 = vadd.f32 %v6577, %v6580
        %vm6582 = vweird.f32 %v6503
        %vm6583 = vweird.f32 %v6577
        %vm6584 = vmor %vm6582, %vm6583
        %v6585 = vsel %vm6584, %v6577, %v6581
        %v6586 = vand.u32 2147483647, %v6503
        %vm6587 = vcmp.eq.f32.partialorder %v6586, 8.507059e+37
        %v6588 = vand.u32 %v6503, 2147483648
        %v6589 = vor.u32 1.1754944e-38, %v6588
        %v6590 = vsel %vm6587, %v6589, %v6585
        %v6591 = vmul.f32 1.0, %v6590
        %v6592 = vrcp.pop %v6504
        %v6593 = vmul.f32 %v6504, %v6592
        %v6594 = vsub.f32 1.0, %v6593
        %v6595 = vmul.f32 %v6592, %v6594
        %v6596 = vadd.f32 %v6592, %v6595
        %vm6597 = vweird.f32 %v6504
        %vm6598 = vweird.f32 %v6592
        %vm6599 = vmor %vm6597, %vm6598
        %v6600 = vsel %vm6599, %v6592, %v6596
        %v6601 = vand.u32 2147483647, %v6504
        %vm6602 = vcmp.eq.f32.partialorder %v6601, 8.507059e+37
        %v6603 = vand.u32 %v6504, 2147483648
        %v6604 = vor.u32 1.1754944e-38, %v6603
        %v6605 = vsel %vm6602, %v6604, %v6600
        %v6606 = vmul.f32 1.0, %v6605
        %v6607 = vrcp.pop %v6505
        %v6608 = vmul.f32 %v6505, %v6607
        %v6609 = vsub.f32 1.0, %v6608
        %v6610 = vmul.f32 %v6607, %v6609
        %v6611 = vadd.f32 %v6607, %v6610
        %vm6612 = vweird.f32 %v6505
        %vm6613 = vweird.f32 %v6607
        %vm6614 = vmor %vm6612, %vm6613
        %v6615 = vsel %vm6614, %v6607, %v6611
        %v6616 = vand.u32 2147483647, %v6505
        %vm6617 = vcmp.eq.f32.partialorder %v6616, 8.507059e+37
        %v6618 = vand.u32 %v6505, 2147483648
        %v6619 = vor.u32 1.1754944e-38, %v6618
        %v6620 = vsel %vm6617, %v6619, %v6615
        %v6621 = vmul.f32 1.0, %v6620
        %v6622 = vrcp.pop %v6506
        %v6623 = vmul.f32 %v6506, %v6622
        %v6624 = vsub.f32 1.0, %v6623
        %v6625 = vmul.f32 %v6622, %v6624
        %v6626 = vadd.f32 %v6622, %v6625
        %vm6627 = vweird.f32 %v6506
        %vm6628 = vweird.f32 %v6622
        %vm6629 = vmor %vm6627, %vm6628
        %v6630 = vsel %vm6629, %v6622, %v6626
        %v6631 = vand.u32 2147483647, %v6506
        %vm6632 = vcmp.eq.f32.partialorder %v6631, 8.507059e+37
        %v6633 = vand.u32 %v6506, 2147483648
        %v6634 = vor.u32 1.1754944e-38, %v6633
        %v6635 = vsel %vm6632, %v6634, %v6630
        %v6636 = vmul.f32 1.0, %v6635
        %v6637 = vrcp.pop %v6507
        %v6638 = vmul.f32 %v6507, %v6637
        %v6639 = vsub.f32 1.0, %v6638
        %v6640 = vmul.f32 %v6637, %v6639
        %v6641 = vadd.f32 %v6637, %v6640
        %vm6642 = vweird.f32 %v6507
        %vm6643 = vweird.f32 %v6637
        %vm6644 = vmor %vm6642, %vm6643
        %v6645 = vsel %vm6644, %v6637, %v6641
        %v6646 = vand.u32 2147483647, %v6507
        %vm6647 = vcmp.eq.f32.partialorder %v6646, 8.507059e+37
        %v6648 = vand.u32 %v6507, 2147483648
        %v6649 = vor.u32 1.1754944e-38, %v6648
        %v6650 = vsel %vm6647, %v6649, %v6645
        %v6651 = vmul.f32 1.0, %v6650
        %v6652 = vrcp.pop %v6508
        %v6653 = vmul.f32 %v6508, %v6652
        %v6654 = vsub.f32 1.0, %v6653
        %v6655 = vmul.f32 %v6652, %v6654
        %v6656 = vadd.f32 %v6652, %v6655
        %vm6657 = vweird.f32 %v6508
        %vm6658 = vweird.f32 %v6652
        %vm6659 = vmor %vm6657, %vm6658
        %v6660 = vsel %vm6659, %v6652, %v6656
        %v6661 = vand.u32 2147483647, %v6508
        %vm6662 = vcmp.eq.f32.partialorder %v6661, 8.507059e+37
        %v6663 = vand.u32 %v6508, 2147483648
        %v6664 = vor.u32 1.1754944e-38, %v6663
        %v6665 = vsel %vm6662, %v6664, %v6660
        %v6666 = vmul.f32 1.0, %v6665
        %v6667 = vrcp.pop %v6509
        %v6668 = vmul.f32 %v6509, %v6667
        %v6669 = vsub.f32 1.0, %v6668
        %v6670 = vmul.f32 %v6667, %v6669
        %v6671 = vadd.f32 %v6667, %v6670
        %vm6672 = vweird.f32 %v6509
        %vm6673 = vweird.f32 %v6667
        %vm6674 = vmor %vm6672, %vm6673
        %v6675 = vsel %vm6674, %v6667, %v6671
        %v6676 = vand.u32 2147483647, %v6509
        %vm6677 = vcmp.eq.f32.partialorder %v6676, 8.507059e+37
        %v6678 = vand.u32 %v6509, 2147483648
        %v6679 = vor.u32 1.1754944e-38, %v6678
        %v6680 = vsel %vm6677, %v6679, %v6675
        %v6681 = vmul.f32 1.0, %v6680
        %v6682 = vrcp.pop %v6510
        %v6683 = vmul.f32 %v6510, %v6682
        %v6684 = vsub.f32 1.0, %v6683
        %v6685 = vmul.f32 %v6682, %v6684
        %v6686 = vadd.f32 %v6682, %v6685
        %vm6687 = vweird.f32 %v6510
        %vm6688 = vweird.f32 %v6682
        %vm6689 = vmor %vm6687, %vm6688
        %v6690 = vsel %vm6689, %v6682, %v6686
        %v6691 = vand.u32 2147483647, %v6510
        %vm6692 = vcmp.eq.f32.partialorder %v6691, 8.507059e+37
        %v6693 = vand.u32 %v6510, 2147483648
        %v6694 = vor.u32 1.1754944e-38, %v6693
        %v6695 = vsel %vm6692, %v6694, %v6690
        %v6696 = vmul.f32 1.0, %v6695
        %v6697 = vrcp.pop %v6511
        %v6698 = vmul.f32 %v6511, %v6697
        %v6699 = vsub.f32 1.0, %v6698
        %v6700 = vmul.f32 %v6697, %v6699
        %v6701 = vadd.f32 %v6697, %v6700
        %vm6702 = vweird.f32 %v6511
        %vm6703 = vweird.f32 %v6697
        %vm6704 = vmor %vm6702, %vm6703
        %v6705 = vsel %vm6704, %v6697, %v6701
        %v6706 = vand.u32 2147483647, %v6511
        %vm6707 = vcmp.eq.f32.partialorder %v6706, 8.507059e+37
        %v6708 = vand.u32 %v6511, 2147483648
        %v6709 = vor.u32 1.1754944e-38, %v6708
        %v6710 = vsel %vm6707, %v6709, %v6705
        %v6711 = vmul.f32 1.0, %v6710
        %v6712 = vrcp.pop %v6512
        %v6713 = vmul.f32 %v6512, %v6712
        %v6714 = vsub.f32 1.0, %v6713
        %v6715 = vmul.f32 %v6712, %v6714
        %v6716 = vadd.f32 %v6712, %v6715
        %vm6717 = vweird.f32 %v6512
        %vm6718 = vweird.f32 %v6712
        %vm6719 = vmor %vm6717, %vm6718
        %v6720 = vsel %vm6719, %v6712, %v6716
        %v6721 = vand.u32 2147483647, %v6512
        %vm6722 = vcmp.eq.f32.partialorder %v6721, 8.507059e+37
        %v6723 = vand.u32 %v6512, 2147483648
        %v6724 = vor.u32 1.1754944e-38, %v6723
        %v6725 = vsel %vm6722, %v6724, %v6720
        %v6726 = vmul.f32 1.0, %v6725
        %v6727 = vrcp.pop %v6513
        %v6728 = vmul.f32 %v6513, %v6727
        %v6729 = vsub.f32 1.0, %v6728
        %v6730 = vmul.f32 %v6727, %v6729
        %v6731 = vadd.f32 %v6727, %v6730
        %vm6732 = vweird.f32 %v6513
        %vm6733 = vweird.f32 %v6727
        %vm6734 = vmor %vm6732, %vm6733
        %v6735 = vsel %vm6734, %v6727, %v6731
        %v6736 = vand.u32 2147483647, %v6513
        %vm6737 = vcmp.eq.f32.partialorder %v6736, 8.507059e+37
        %v6738 = vand.u32 %v6513, 2147483648
        %v6739 = vor.u32 1.1754944e-38, %v6738
        %v6740 = vsel %vm6737, %v6739, %v6735
        %v6741 = vmul.f32 1.0, %v6740
        %v6742 = vrcp.pop %v6514
        %v6743 = vmul.f32 %v6514, %v6742
        %v6744 = vsub.f32 1.0, %v6743
        %v6745 = vmul.f32 %v6742, %v6744
        %v6746 = vadd.f32 %v6742, %v6745
        %vm6747 = vweird.f32 %v6514
        %vm6748 = vweird.f32 %v6742
        %vm6749 = vmor %vm6747, %vm6748
        %v6750 = vsel %vm6749, %v6742, %v6746
        %v6751 = vand.u32 2147483647, %v6514
        %vm6752 = vcmp.eq.f32.partialorder %v6751, 8.507059e+37
        %v6753 = vand.u32 %v6514, 2147483648
        %v6754 = vor.u32 1.1754944e-38, %v6753
        %v6755 = vsel %vm6752, %v6754, %v6750
        %v6756 = vmul.f32 1.0, %v6755
        %v6757 = vrcp.pop %v6515
        %v6758 = vmul.f32 %v6515, %v6757
        %v6759 = vsub.f32 1.0, %v6758
        %v6760 = vmul.f32 %v6757, %v6759
        %v6761 = vadd.f32 %v6757, %v6760
        %vm6762 = vweird.f32 %v6515
        %vm6763 = vweird.f32 %v6757
        %vm6764 = vmor %vm6762, %vm6763
        %v6765 = vsel %vm6764, %v6757, %v6761
        %v6766 = vand.u32 2147483647, %v6515
        %vm6767 = vcmp.eq.f32.partialorder %v6766, 8.507059e+37
        %v6768 = vand.u32 %v6515, 2147483648
        %v6769 = vor.u32 1.1754944e-38, %v6768
        %v6770 = vsel %vm6767, %v6769, %v6765
        %v6771 = vmul.f32 1.0, %v6770
        %v6772 = vrcp.pop %v6516
        %v6773 = vmul.f32 %v6516, %v6772
        %v6774 = vsub.f32 1.0, %v6773
        %v6775 = vmul.f32 %v6772, %v6774
        %v6776 = vadd.f32 %v6772, %v6775
        %vm6777 = vweird.f32 %v6516
        %vm6778 = vweird.f32 %v6772
        %vm6779 = vmor %vm6777, %vm6778
        %v6780 = vsel %vm6779, %v6772, %v6776
        %v6781 = vand.u32 2147483647, %v6516
        %vm6782 = vcmp.eq.f32.partialorder %v6781, 8.507059e+37
        %v6783 = vand.u32 %v6516, 2147483648
        %v6784 = vor.u32 1.1754944e-38, %v6783
        %v6785 = vsel %vm6782, %v6784, %v6780
        %v6786 = vmul.f32 1.0, %v6785
        %v6787 = vrcp.pop %v6517
        %v6788 = vmul.f32 %v6517, %v6787
        %v6789 = vsub.f32 1.0, %v6788
        %v6790 = vmul.f32 %v6787, %v6789
        %v6791 = vadd.f32 %v6787, %v6790
        %vm6792 = vweird.f32 %v6517
        %vm6793 = vweird.f32 %v6787
        %vm6794 = vmor %vm6792, %vm6793
        %v6795 = vsel %vm6794, %v6787, %v6791
        %v6796 = vand.u32 2147483647, %v6517
        %vm6797 = vcmp.eq.f32.partialorder %v6796, 8.507059e+37
        %v6798 = vand.u32 %v6517, 2147483648
        %v6799 = vor.u32 1.1754944e-38, %v6798
        %v6800 = vsel %vm6797, %v6799, %v6795
        %v6801 = vmul.f32 1.0, %v6800
        %v6802 = vrcp.pop %v6518
        %v6803 = vmul.f32 %v6518, %v6802
        %v6804 = vsub.f32 1.0, %v6803
        %v6805 = vmul.f32 %v6802, %v6804
        %v6806 = vadd.f32 %v6802, %v6805
        %vm6807 = vweird.f32 %v6518
        %vm6808 = vweird.f32 %v6802
        %vm6809 = vmor %vm6807, %vm6808
        %v6810 = vsel %vm6809, %v6802, %v6806
        %v6811 = vand.u32 2147483647, %v6518
        %vm6812 = vcmp.eq.f32.partialorder %v6811, 8.507059e+37
        %v6813 = vand.u32 %v6518, 2147483648
        %v6814 = vor.u32 1.1754944e-38, %v6813
        %v6815 = vsel %vm6812, %v6814, %v6810
        %v6816 = vmul.f32 1.0, %v6815
        %v6817 = vrcp.pop %v6519
        %v6818 = vmul.f32 %v6519, %v6817
        %v6819 = vsub.f32 1.0, %v6818
        %v6820 = vmul.f32 %v6817, %v6819
        %v6821 = vadd.f32 %v6817, %v6820
        %vm6822 = vweird.f32 %v6519
        %vm6823 = vweird.f32 %v6817
        %vm6824 = vmor %vm6822, %vm6823
        %v6825 = vsel %vm6824, %v6817, %v6821
        %v6826 = vand.u32 2147483647, %v6519
        %vm6827 = vcmp.eq.f32.partialorder %v6826, 8.507059e+37
        %v6828 = vand.u32 %v6519, 2147483648
        %v6829 = vor.u32 1.1754944e-38, %v6828
        %v6830 = vsel %vm6827, %v6829, %v6825
        %v6831 = vmul.f32 1.0, %v6830
        %v6832 = vrcp.pop %v6520
        %v6833 = vmul.f32 %v6520, %v6832
        %v6834 = vsub.f32 1.0, %v6833
        %v6835 = vmul.f32 %v6832, %v6834
        %v6836 = vadd.f32 %v6832, %v6835
        %vm6837 = vweird.f32 %v6520
        %vm6838 = vweird.f32 %v6832
        %vm6839 = vmor %vm6837, %vm6838
        %v6840 = vsel %vm6839, %v6832, %v6836
        %v6841 = vand.u32 2147483647, %v6520
        %vm6842 = vcmp.eq.f32.partialorder %v6841, 8.507059e+37
        %v6843 = vand.u32 %v6520, 2147483648
        %v6844 = vor.u32 1.1754944e-38, %v6843
        %v6845 = vsel %vm6842, %v6844, %v6840
        %v6846 = vmul.f32 1.0, %v6845
        %v6847 = vrcp.pop %v6521
        %v6848 = vmul.f32 %v6521, %v6847
        %v6849 = vsub.f32 1.0, %v6848
        %v6850 = vmul.f32 %v6847, %v6849
        %v6851 = vadd.f32 %v6847, %v6850
        %vm6852 = vweird.f32 %v6521
        %vm6853 = vweird.f32 %v6847
        %vm6854 = vmor %vm6852, %vm6853
        %v6855 = vsel %vm6854, %v6847, %v6851
        %v6856 = vand.u32 2147483647, %v6521
        %vm6857 = vcmp.eq.f32.partialorder %v6856, 8.507059e+37
        %v6858 = vand.u32 %v6521, 2147483648
        %v6859 = vor.u32 1.1754944e-38, %v6858
        %v6860 = vsel %vm6857, %v6859, %v6855
        %v6861 = vmul.f32 1.0, %v6860
        %v6862 = vrcp.pop %v6522
        %v6863 = vmul.f32 %v6522, %v6862
        %v6864 = vsub.f32 1.0, %v6863
        %v6865 = vmul.f32 %v6862, %v6864
        %v6866 = vadd.f32 %v6862, %v6865
        %vm6867 = vweird.f32 %v6522
        %vm6868 = vweird.f32 %v6862
        %vm6869 = vmor %vm6867, %vm6868
        %v6870 = vsel %vm6869, %v6862, %v6866
        %v6871 = vand.u32 2147483647, %v6522
        %vm6872 = vcmp.eq.f32.partialorder %v6871, 8.507059e+37
        %v6873 = vand.u32 %v6522, 2147483648
        %v6874 = vor.u32 1.1754944e-38, %v6873
        %v6875 = vsel %vm6872, %v6874, %v6870
        %v6876 = vmul.f32 1.0, %v6875
        %v6877 = vrcp.pop %v6523
        %v6878 = vmul.f32 %v6523, %v6877
        %v6879 = vsub.f32 1.0, %v6878
        %v6880 = vmul.f32 %v6877, %v6879
        %v6881 = vadd.f32 %v6877, %v6880
        %vm6882 = vweird.f32 %v6523
        %vm6883 = vweird.f32 %v6877
        %vm6884 = vmor %vm6882, %vm6883
        %v6885 = vsel %vm6884, %v6877, %v6881
        %v6886 = vand.u32 2147483647, %v6523
        %vm6887 = vcmp.eq.f32.partialorder %v6886, 8.507059e+37
        %v6888 = vand.u32 %v6523, 2147483648
        %v6889 = vor.u32 1.1754944e-38, %v6888
        %v6890 = vsel %vm6887, %v6889, %v6885
        %v6891 = vmul.f32 1.0, %v6890
        %v6892 = vrcp.pop %v6524
        %v6893 = vmul.f32 %v6524, %v6892
        %v6894 = vsub.f32 1.0, %v6893
        %v6895 = vmul.f32 %v6892, %v6894
        %v6896 = vadd.f32 %v6892, %v6895
        %vm6897 = vweird.f32 %v6524
        %vm6898 = vweird.f32 %v6892
        %vm6899 = vmor %vm6897, %vm6898
        %v6900 = vsel %vm6899, %v6892, %v6896
        %v6901 = vand.u32 2147483647, %v6524
        %vm6902 = vcmp.eq.f32.partialorder %v6901, 8.507059e+37
        %v6903 = vand.u32 %v6524, 2147483648
        %v6904 = vor.u32 1.1754944e-38, %v6903
        %v6905 = vsel %vm6902, %v6904, %v6900
        %v6906 = vmul.f32 1.0, %v6905
        %v6907 = vrcp.pop %v6525
        %v6908 = vmul.f32 %v6525, %v6907
        %v6909 = vsub.f32 1.0, %v6908
        %v6910 = vmul.f32 %v6907, %v6909
        %v6911 = vadd.f32 %v6907, %v6910
        %vm6912 = vweird.f32 %v6525
        %vm6913 = vweird.f32 %v6907
        %vm6914 = vmor %vm6912, %vm6913
        %v6915 = vsel %vm6914, %v6907, %v6911
        %v6916 = vand.u32 2147483647, %v6525
        %vm6917 = vcmp.eq.f32.partialorder %v6916, 8.507059e+37
        %v6918 = vand.u32 %v6525, 2147483648
        %v6919 = vor.u32 1.1754944e-38, %v6918
        %v6920 = vsel %vm6917, %v6919, %v6915
        %v6921 = vmul.f32 1.0, %v6920
        %v6922 = vrcp.pop %v6526
        %v6923 = vmul.f32 %v6526, %v6922
        %v6924 = vsub.f32 1.0, %v6923
        %v6925 = vmul.f32 %v6922, %v6924
        %v6926 = vadd.f32 %v6922, %v6925
        %vm6927 = vweird.f32 %v6526
        %vm6928 = vweird.f32 %v6922
        %vm6929 = vmor %vm6927, %vm6928
        %v6930 = vsel %vm6929, %v6922, %v6926
        %v6931 = vand.u32 2147483647, %v6526
        %vm6932 = vcmp.eq.f32.partialorder %v6931, 8.507059e+37
        %v6933 = vand.u32 %v6526, 2147483648
        %v6934 = vor.u32 1.1754944e-38, %v6933
        %v6935 = vsel %vm6932, %v6934, %v6930
        %v6936 = vmul.f32 1.0, %v6935
        %v6937 = vrcp.pop %v6527
        %v6938 = vmul.f32 %v6527, %v6937
        %v6939 = vsub.f32 1.0, %v6938
        %v6940 = vmul.f32 %v6937, %v6939
        %v6941 = vadd.f32 %v6937, %v6940
        %vm6942 = vweird.f32 %v6527
        %vm6943 = vweird.f32 %v6937
        %vm6944 = vmor %vm6942, %vm6943
        %v6945 = vsel %vm6944, %v6937, %v6941
        %v6946 = vand.u32 2147483647, %v6527
        %vm6947 = vcmp.eq.f32.partialorder %v6946, 8.507059e+37
        %v6948 = vand.u32 %v6527, 2147483648
        %v6949 = vor.u32 1.1754944e-38, %v6948
        %v6950 = vsel %vm6947, %v6949, %v6945
        %v6951 = vmul.f32 1.0, %v6950
        %v6952 = vrcp.pop %v6528
        %v6953 = vmul.f32 %v6528, %v6952
        %v6954 = vsub.f32 1.0, %v6953
        %v6955 = vmul.f32 %v6952, %v6954
        %v6956 = vadd.f32 %v6952, %v6955
        %vm6957 = vweird.f32 %v6528
        %vm6958 = vweird.f32 %v6952
        %vm6959 = vmor %vm6957, %vm6958
        %v6960 = vsel %vm6959, %v6952, %v6956
        %v6961 = vand.u32 2147483647, %v6528
        %vm6962 = vcmp.eq.f32.partialorder %v6961, 8.507059e+37
        %v6963 = vand.u32 %v6528, 2147483648
        %v6964 = vor.u32 1.1754944e-38, %v6963
        %v6965 = vsel %vm6962, %v6964, %v6960
        %v6966 = vmul.f32 1.0, %v6965
        %v6967 = vrcp.pop %v6529
        %v6968 = vmul.f32 %v6529, %v6967
        %v6969 = vsub.f32 1.0, %v6968
        %v6970 = vmul.f32 %v6967, %v6969
        %v6971 = vadd.f32 %v6967, %v6970
        %vm6972 = vweird.f32 %v6529
        %vm6973 = vweird.f32 %v6967
        %vm6974 = vmor %vm6972, %vm6973
        %v6975 = vsel %vm6974, %v6967, %v6971
        %v6976 = vand.u32 2147483647, %v6529
        %vm6977 = vcmp.eq.f32.partialorder %v6976, 8.507059e+37
        %v6978 = vand.u32 %v6529, 2147483648
        %v6979 = vor.u32 1.1754944e-38, %v6978
        %v6980 = vsel %vm6977, %v6979, %v6975
        %v6981 = vmul.f32 1.0, %v6980
        %v6982 = vrcp.pop %v6530
        %v6983 = vmul.f32 %v6530, %v6982
        %v6984 = vsub.f32 1.0, %v6983
        %v6985 = vmul.f32 %v6982, %v6984
        %v6986 = vadd.f32 %v6982, %v6985
        %vm6987 = vweird.f32 %v6530
        %vm6988 = vweird.f32 %v6982
        %vm6989 = vmor %vm6987, %vm6988
        %v6990 = vsel %vm6989, %v6982, %v6986
        %v6991 = vand.u32 2147483647, %v6530
        %vm6992 = vcmp.eq.f32.partialorder %v6991, 8.507059e+37
        %v6993 = vand.u32 %v6530, 2147483648
        %v6994 = vor.u32 1.1754944e-38, %v6993
        %v6995 = vsel %vm6992, %v6994, %v6990
        %v6996 = vmul.f32 1.0, %v6995
        %v6997 = vrcp.pop %v6531
        %v6998 = vmul.f32 %v6531, %v6997
        %v6999 = vsub.f32 1.0, %v6998
        %v7000 = vmul.f32 %v6997, %v6999
        %v7001 = vadd.f32 %v6997, %v7000
        %vm7002 = vweird.f32 %v6531
        %vm7003 = vweird.f32 %v6997
        %vm7004 = vmor %vm7002, %vm7003
        %v7005 = vsel %vm7004, %v6997, %v7001
        %v7006 = vand.u32 2147483647, %v6531
        %vm7007 = vcmp.eq.f32.partialorder %v7006, 8.507059e+37
        %v7008 = vand.u32 %v6531, 2147483648
        %v7009 = vor.u32 1.1754944e-38, %v7008
        %v7010 = vsel %vm7007, %v7009, %v7005
        %v7011 = vmul.f32 1.0, %v7010
        %v7012 = vmul.f32 %v6372, %v6546
        %v7013 = vmul.f32 %v6373, %v6561
        %v7014 = vmul.f32 %v6374, %v6576
        %v7015 = vmul.f32 %v6375, %v6591
        %v7016 = vmul.f32 %v6376, %v6606
        %v7017 = vmul.f32 %v6377, %v6621
        %v7018 = vmul.f32 %v6378, %v6636
        %v7019 = vmul.f32 %v6379, %v6651
        %v7020 = vmul.f32 %v6380, %v6666
        %v7021 = vmul.f32 %v6381, %v6681
        %v7022 = vmul.f32 %v6382, %v6696
        %v7023 = vmul.f32 %v6383, %v6711
        %v7024 = vmul.f32 %v6384, %v6726
        %v7025 = vmul.f32 %v6385, %v6741
        %v7026 = vmul.f32 %v6386, %v6756
        %v7027 = vmul.f32 %v6387, %v6771
        %v7028 = vmul.f32 %v6388, %v6786
        %v7029 = vmul.f32 %v6389, %v6801
        %v7030 = vmul.f32 %v6390, %v6816
        %v7031 = vmul.f32 %v6391, %v6831
        %v7032 = vmul.f32 %v6392, %v6846
        %v7033 = vmul.f32 %v6393, %v6861
        %v7034 = vmul.f32 %v6394, %v6876
        %v7035 = vmul.f32 %v6395, %v6891
        %v7036 = vmul.f32 %v6396, %v6906
        %v7037 = vmul.f32 %v6397, %v6921
        %v7038 = vmul.f32 %v6398, %v6936
        %v7039 = vmul.f32 %v6399, %v6951
        %v7040 = vmul.f32 %v6400, %v6966
        %v7041 = vmul.f32 %v6401, %v6981
        %v7042 = vmul.f32 %v6402, %v6996
        %v7043 = vmul.f32 %v6403, %v7011
        %v7044 = vpack.c.bf16 %v7012, %v7012
        %v7045 = vpack.c.bf16 %v7013, %v7013
        %v7046 = vpack.c.bf16 %v7014, %v7014
        %v7047 = vpack.c.bf16 %v7015, %v7015
        %v7048 = vpack.c.bf16 %v7016, %v7016
        %v7049 = vpack.c.bf16 %v7017, %v7017
        %v7050 = vpack.c.bf16 %v7018, %v7018
        %v7051 = vpack.c.bf16 %v7019, %v7019
        %v7052 = vpack.c.bf16 %v7020, %v7020
        %v7053 = vpack.c.bf16 %v7021, %v7021
        %v7054 = vpack.c.bf16 %v7022, %v7022
        %v7055 = vpack.c.bf16 %v7023, %v7023
        %v7056 = vpack.c.bf16 %v7024, %v7024
        %v7057 = vpack.c.bf16 %v7025, %v7025
        %v7058 = vpack.c.bf16 %v7026, %v7026
        %v7059 = vpack.c.bf16 %v7027, %v7027
        %v7060 = vpack.c.bf16 %v7028, %v7028
        %v7061 = vpack.c.bf16 %v7029, %v7029
        %v7062 = vpack.c.bf16 %v7030, %v7030
        %v7063 = vpack.c.bf16 %v7031, %v7031
        %v7064 = vpack.c.bf16 %v7032, %v7032
        %v7065 = vpack.c.bf16 %v7033, %v7033
        %v7066 = vpack.c.bf16 %v7034, %v7034
        %v7067 = vpack.c.bf16 %v7035, %v7035
        %v7068 = vpack.c.bf16 %v7036, %v7036
        %v7069 = vpack.c.bf16 %v7037, %v7037
        %v7070 = vpack.c.bf16 %v7038, %v7038
        %v7071 = vpack.c.bf16 %v7039, %v7039
        %v7072 = vpack.c.bf16 %v7040, %v7040
        %v7073 = vpack.c.bf16 %v7041, %v7041
        %v7074 = vpack.c.bf16 %v7042, %v7042
        %v7075 = vpack.c.bf16 %v7043, %v7043
        %v7077 = vshrl.u32 %v7044, 16
        %v7079 = vrot.slane %v7077, 7
        %v7080 = vshll.u32 %v7044, 16
        %v7082 = vor.u32 %v7079, %v7080
        %v7083 = vrot.slane %v7079, 4
        %v7085 = vshrl.u32 %v7045, 16
        %v7087 = vrot.slane %v7085, 7
        %v7088 = vshll.u32 %v7045, 16
        %v7090 = vor.u32 %v7087, %v7088
        %v7091 = vsel %vm1709, %v7083, %v7090
        %v7092 = vrot.slane %v7087, 4
        %v7094 = vshrl.u32 %v7046, 16
        %v7096 = vrot.slane %v7094, 7
        %v7097 = vshll.u32 %v7046, 16
        %v7099 = vor.u32 %v7096, %v7097
        %v7100 = vrot.slane %v7096, 4
        %v7102 = vshrl.u32 %v7047, 16
        %v7104 = vrot.slane %v7102, 7
        %v7105 = vshll.u32 %v7047, 16
        %v7107 = vor.u32 %v7104, %v7105
        %v7108 = vsel %vm1709, %v7100, %v7107
        %v7109 = vrot.slane %v7104, 4
        %v7111 = vshrl.u32 %v7048, 16
        %v7113 = vrot.slane %v7111, 7
        %v7114 = vshll.u32 %v7048, 16
        %v7116 = vor.u32 %v7113, %v7114
        %v7117 = vrot.slane %v7113, 4
        %v7119 = vshrl.u32 %v7049, 16
        %v7121 = vrot.slane %v7119, 7
        %v7122 = vshll.u32 %v7049, 16
        %v7124 = vor.u32 %v7121, %v7122
        %v7125 = vsel %vm1709, %v7117, %v7124
        %v7126 = vrot.slane %v7121, 4
        %v7128 = vshrl.u32 %v7050, 16
        %v7130 = vrot.slane %v7128, 7
        %v7131 = vshll.u32 %v7050, 16
        %v7133 = vor.u32 %v7130, %v7131
        %v7134 = vrot.slane %v7130, 4
        %v7136 = vshrl.u32 %v7051, 16
        %v7138 = vrot.slane %v7136, 7
        %v7139 = vshll.u32 %v7051, 16
        %v7141 = vor.u32 %v7138, %v7139
        %v7142 = vsel %vm1709, %v7134, %v7141
        %v7143 = vrot.slane %v7138, 4
        %v7145 = vshrl.u32 %v7052, 16
        %v7147 = vrot.slane %v7145, 7
        %v7148 = vshll.u32 %v7052, 16
        %v7150 = vor.u32 %v7147, %v7148
        %v7151 = vrot.slane %v7147, 4
        %v7153 = vshrl.u32 %v7053, 16
        %v7155 = vrot.slane %v7153, 7
        %v7156 = vshll.u32 %v7053, 16
        %v7158 = vor.u32 %v7155, %v7156
        %v7159 = vsel %vm1709, %v7151, %v7158
        %v7160 = vrot.slane %v7155, 4
        %v7162 = vshrl.u32 %v7054, 16
        %v7164 = vrot.slane %v7162, 7
        %v7165 = vshll.u32 %v7054, 16
        %v7167 = vor.u32 %v7164, %v7165
        %v7168 = vrot.slane %v7164, 4
        %v7170 = vshrl.u32 %v7055, 16
        %v7172 = vrot.slane %v7170, 7
        %v7173 = vshll.u32 %v7055, 16
        %v7175 = vor.u32 %v7172, %v7173
        %v7176 = vsel %vm1709, %v7168, %v7175
        %v7177 = vrot.slane %v7172, 4
        %v7179 = vshrl.u32 %v7056, 16
        %v7181 = vrot.slane %v7179, 7
        %v7182 = vshll.u32 %v7056, 16
        %v7184 = vor.u32 %v7181, %v7182
        %v7185 = vrot.slane %v7181, 4
        %v7187 = vshrl.u32 %v7057, 16
        %v7189 = vrot.slane %v7187, 7
        %v7190 = vshll.u32 %v7057, 16
        %v7192 = vor.u32 %v7189, %v7190
        %v7193 = vsel %vm1709, %v7185, %v7192
        %v7194 = vrot.slane %v7189, 4
        %v7196 = vshrl.u32 %v7058, 16
        %v7198 = vrot.slane %v7196, 7
        %v7199 = vshll.u32 %v7058, 16
        %v7201 = vor.u32 %v7198, %v7199
        %v7202 = vrot.slane %v7198, 4
        %v7204 = vshrl.u32 %v7059, 16
        %v7206 = vrot.slane %v7204, 7
        %v7207 = vshll.u32 %v7059, 16
        %v7209 = vor.u32 %v7206, %v7207
        %v7210 = vsel %vm1709, %v7202, %v7209
        %v7211 = vrot.slane %v7206, 4
        %v7213 = vshrl.u32 %v7060, 16
        %v7215 = vrot.slane %v7213, 7
        %v7216 = vshll.u32 %v7060, 16
        %v7218 = vor.u32 %v7215, %v7216
        %v7219 = vrot.slane %v7215, 4
        %v7221 = vshrl.u32 %v7061, 16
        %v7223 = vrot.slane %v7221, 7
        %v7224 = vshll.u32 %v7061, 16
        %v7226 = vor.u32 %v7223, %v7224
        %v7227 = vsel %vm1709, %v7219, %v7226
        %v7228 = vrot.slane %v7223, 4
        %v7230 = vshrl.u32 %v7062, 16
        %v7232 = vrot.slane %v7230, 7
        %v7233 = vshll.u32 %v7062, 16
        %v7235 = vor.u32 %v7232, %v7233
        %v7236 = vrot.slane %v7232, 4
        %v7238 = vshrl.u32 %v7063, 16
        %v7240 = vrot.slane %v7238, 7
        %v7241 = vshll.u32 %v7063, 16
        %v7243 = vor.u32 %v7240, %v7241
        %v7244 = vsel %vm1709, %v7236, %v7243
        %v7245 = vrot.slane %v7240, 4
        %v7247 = vshrl.u32 %v7064, 16
        %v7249 = vrot.slane %v7247, 7
        %v7250 = vshll.u32 %v7064, 16
        %v7252 = vor.u32 %v7249, %v7250
        %v7253 = vrot.slane %v7249, 4
        %v7255 = vshrl.u32 %v7065, 16
        %v7257 = vrot.slane %v7255, 7
        %v7258 = vshll.u32 %v7065, 16
        %v7260 = vor.u32 %v7257, %v7258
        %v7261 = vsel %vm1709, %v7253, %v7260
        %v7262 = vrot.slane %v7257, 4
        %v7264 = vshrl.u32 %v7066, 16
        %v7266 = vrot.slane %v7264, 7
        %v7267 = vshll.u32 %v7066, 16
        %v7269 = vor.u32 %v7266, %v7267
        %v7270 = vrot.slane %v7266, 4
        %v7272 = vshrl.u32 %v7067, 16
        %v7274 = vrot.slane %v7272, 7
        %v7275 = vshll.u32 %v7067, 16
        %v7277 = vor.u32 %v7274, %v7275
        %v7278 = vsel %vm1709, %v7270, %v7277
        %v7279 = vrot.slane %v7274, 4
        %v7281 = vshrl.u32 %v7068, 16
        %v7283 = vrot.slane %v7281, 7
        %v7284 = vshll.u32 %v7068, 16
        %v7286 = vor.u32 %v7283, %v7284
        %v7287 = vrot.slane %v7283, 4
        %v7289 = vshrl.u32 %v7069, 16
        %v7291 = vrot.slane %v7289, 7
        %v7292 = vshll.u32 %v7069, 16
        %v7294 = vor.u32 %v7291, %v7292
        %v7295 = vsel %vm1709, %v7287, %v7294
        %v7296 = vrot.slane %v7291, 4
        %v7298 = vshrl.u32 %v7070, 16
        %v7300 = vrot.slane %v7298, 7
        %v7301 = vshll.u32 %v7070, 16
        %v7303 = vor.u32 %v7300, %v7301
        %v7304 = vrot.slane %v7300, 4
        %v7306 = vshrl.u32 %v7071, 16
        %v7308 = vrot.slane %v7306, 7
        %v7309 = vshll.u32 %v7071, 16
        %v7311 = vor.u32 %v7308, %v7309
        %v7312 = vsel %vm1709, %v7304, %v7311
        %v7313 = vrot.slane %v7308, 4
        %v7315 = vshrl.u32 %v7072, 16
        %v7317 = vrot.slane %v7315, 7
        %v7318 = vshll.u32 %v7072, 16
        %v7320 = vor.u32 %v7317, %v7318
        %v7321 = vrot.slane %v7317, 4
        %v7323 = vshrl.u32 %v7073, 16
        %v7325 = vrot.slane %v7323, 7
        %v7326 = vshll.u32 %v7073, 16
        %v7328 = vor.u32 %v7325, %v7326
        %v7329 = vsel %vm1709, %v7321, %v7328
        %v7330 = vrot.slane %v7325, 4
        %v7332 = vshrl.u32 %v7074, 16
        %v7334 = vrot.slane %v7332, 7
        %v7335 = vshll.u32 %v7074, 16
        %v7337 = vor.u32 %v7334, %v7335
        %v7338 = vrot.slane %v7334, 4
        %v7340 = vshrl.u32 %v7075, 16
        %v7342 = vrot.slane %v7340, 7
        %v7343 = vshll.u32 %v7075, 16
        %v7345 = vor.u32 %v7342, %v7343
        %v7346 = vsel %vm1709, %v7338, %v7345
        %v7347 = vrot.slane %v7342, 4
        %s7396 = scalar_lea.vmem [#allocation3], 12
        %vm7397 = vcmask 125952
        %vm7398 = vmand %vm7397, %vm506
        %v7399 = vld [vmem:[%s7396] sm:$0xf]
        %v7400 = vsel %vm7398, %v7082, %v7399
        %7401 = vst [vmem:[%s7396] sm:$0xf] %v7400
        %7402 = vst.msk [vmem:[%s7396 + $0x4] sm:$0xf] %vm562, %v7091
        %v7403 = vld [vmem:[%s7396 + $0x8] sm:$0x1]
        %v7404 = vsel %vm572, %v7092, %v7403
        %7405 = vst [vmem:[%s7396 + $0x8] sm:$0x1] %v7404
        %v7406 = vld [vmem:[%s7396 + $0xc] sm:$0xf]
        %v7407 = vsel %vm7398, %v7099, %v7406
        %7408 = vst [vmem:[%s7396 + $0xc] sm:$0xf] %v7407
        %7409 = vst.msk [vmem:[%s7396 + $0x10] sm:$0xf] %vm562, %v7108
        %v7410 = vld [vmem:[%s7396 + $0x14] sm:$0x1]
        %v7411 = vsel %vm572, %v7109, %v7410
        %7412 = vst [vmem:[%s7396 + $0x14] sm:$0x1] %v7411
        %v7413 = vld [vmem:[%s7396 + $0x18] sm:$0xf]
        %v7414 = vsel %vm7398, %v7116, %v7413
        %7415 = vst [vmem:[%s7396 + $0x18] sm:$0xf] %v7414
        %7416 = vst.msk [vmem:[%s7396 + $0x1c] sm:$0xf] %vm562, %v7125
        %v7417 = vld [vmem:[%s7396 + $0x20] sm:$0x1]
        %v7418 = vsel %vm572, %v7126, %v7417
        %7419 = vst [vmem:[%s7396 + $0x20] sm:$0x1] %v7418
        %v7420 = vld [vmem:[%s7396 + $0x24] sm:$0xf]
        %v7421 = vsel %vm7398, %v7133, %v7420
        %7422 = vst [vmem:[%s7396 + $0x24] sm:$0xf] %v7421
        %7423 = vst.msk [vmem:[%s7396 + $0x28] sm:$0xf] %vm562, %v7142
        %v7424 = vld [vmem:[%s7396 + $0x2c] sm:$0x1]
        %v7425 = vsel %vm572, %v7143, %v7424
        %7426 = vst [vmem:[%s7396 + $0x2c] sm:$0x1] %v7425
        %v7427 = vld [vmem:[%s7396 + $0x30] sm:$0xf]
        %v7428 = vsel %vm7398, %v7150, %v7427
        %7429 = vst [vmem:[%s7396 + $0x30] sm:$0xf] %v7428
        %7430 = vst.msk [vmem:[%s7396 + $0x34] sm:$0xf] %vm562, %v7159
        %v7431 = vld [vmem:[%s7396 + $0x38] sm:$0x1]
        %v7432 = vsel %vm572, %v7160, %v7431
        %7433 = vst [vmem:[%s7396 + $0x38] sm:$0x1] %v7432
        %v7434 = vld [vmem:[%s7396 + $0x3c] sm:$0xf]
        %v7435 = vsel %vm7398, %v7167, %v7434
        %7436 = vst [vmem:[%s7396 + $0x3c] sm:$0xf] %v7435
        %7437 = vst.msk [vmem:[%s7396 + $0x40] sm:$0xf] %vm562, %v7176
        %v7438 = vld [vmem:[%s7396 + $0x44] sm:$0x1]
        %v7439 = vsel %vm572, %v7177, %v7438
        %7440 = vst [vmem:[%s7396 + $0x44] sm:$0x1] %v7439
        %v7441 = vld [vmem:[%s7396 + $0x48] sm:$0xf]
        %v7442 = vsel %vm7398, %v7184, %v7441
        %7443 = vst [vmem:[%s7396 + $0x48] sm:$0xf] %v7442
        %7444 = vst.msk [vmem:[%s7396 + $0x4c] sm:$0xf] %vm562, %v7193
        %v7445 = vld [vmem:[%s7396 + $0x50] sm:$0x1]
        %v7446 = vsel %vm572, %v7194, %v7445
        %7447 = vst [vmem:[%s7396 + $0x50] sm:$0x1] %v7446
        %v7448 = vld [vmem:[%s7396 + $0x54] sm:$0xf]
        %v7449 = vsel %vm7398, %v7201, %v7448
        %7450 = vst [vmem:[%s7396 + $0x54] sm:$0xf] %v7449
        %7451 = vst.msk [vmem:[%s7396 + $0x58] sm:$0xf] %vm562, %v7210
        %v7452 = vld [vmem:[%s7396 + $0x5c] sm:$0x1]
        %v7453 = vsel %vm572, %v7211, %v7452
        %7454 = vst [vmem:[%s7396 + $0x5c] sm:$0x1] %v7453
        %v7455 = vld [vmem:[%s7396 + $0x60] sm:$0xf]
        %v7456 = vsel %vm7398, %v7218, %v7455
        %7457 = vst [vmem:[%s7396 + $0x60] sm:$0xf] %v7456
        %7458 = vst.msk [vmem:[%s7396 + $0x64] sm:$0xf] %vm562, %v7227
        %v7459 = vld [vmem:[%s7396 + $0x68] sm:$0x1]
        %v7460 = vsel %vm572, %v7228, %v7459
        %7461 = vst [vmem:[%s7396 + $0x68] sm:$0x1] %v7460
        %v7462 = vld [vmem:[%s7396 + $0x6c] sm:$0xf]
        %v7463 = vsel %vm7398, %v7235, %v7462
        %7464 = vst [vmem:[%s7396 + $0x6c] sm:$0xf] %v7463
        %7465 = vst.msk [vmem:[%s7396 + $0x70] sm:$0xf] %vm562, %v7244
        %v7466 = vld [vmem:[%s7396 + $0x74] sm:$0x1]
        %v7467 = vsel %vm572, %v7245, %v7466
        %7468 = vst [vmem:[%s7396 + $0x74] sm:$0x1] %v7467
        %v7469 = vld [vmem:[%s7396 + $0x78] sm:$0xf]
        %v7470 = vsel %vm7398, %v7252, %v7469
        %7471 = vst [vmem:[%s7396 + $0x78] sm:$0xf] %v7470
        %7472 = vst.msk [vmem:[%s7396 + $0x7c] sm:$0xf] %vm562, %v7261
        %v7473 = vld [vmem:[%s7396 + $0x80] sm:$0x1]
        %v7474 = vsel %vm572, %v7262, %v7473
        %7475 = vst [vmem:[%s7396 + $0x80] sm:$0x1] %v7474
        %v7476 = vld [vmem:[%s7396 + $0x84] sm:$0xf]
        %v7477 = vsel %vm7398, %v7269, %v7476
        %7478 = vst [vmem:[%s7396 + $0x84] sm:$0xf] %v7477
        %7479 = vst.msk [vmem:[%s7396 + $0x88] sm:$0xf] %vm562, %v7278
        %v7480 = vld [vmem:[%s7396 + $0x8c] sm:$0x1]
        %v7481 = vsel %vm572, %v7279, %v7480
        %7482 = vst [vmem:[%s7396 + $0x8c] sm:$0x1] %v7481
        %v7483 = vld [vmem:[%s7396 + $0x90] sm:$0xf]
        %v7484 = vsel %vm7398, %v7286, %v7483
        %7485 = vst [vmem:[%s7396 + $0x90] sm:$0xf] %v7484
        %7486 = vst.msk [vmem:[%s7396 + $0x94] sm:$0xf] %vm562, %v7295
        %v7487 = vld [vmem:[%s7396 + $0x98] sm:$0x1]
        %v7488 = vsel %vm572, %v7296, %v7487
        %7489 = vst [vmem:[%s7396 + $0x98] sm:$0x1] %v7488
        %v7490 = vld [vmem:[%s7396 + $0x9c] sm:$0xf]
        %v7491 = vsel %vm7398, %v7303, %v7490
        %7492 = vst [vmem:[%s7396 + $0x9c] sm:$0xf] %v7491
        %7493 = vst.msk [vmem:[%s7396 + $0xa0] sm:$0xf] %vm562, %v7312
        %v7494 = vld [vmem:[%s7396 + $0xa4] sm:$0x1]
        %v7495 = vsel %vm572, %v7313, %v7494
        %7496 = vst [vmem:[%s7396 + $0xa4] sm:$0x1] %v7495
        %v7497 = vld [vmem:[%s7396 + $0xa8] sm:$0xf]
        %v7498 = vsel %vm7398, %v7320, %v7497
        %7499 = vst [vmem:[%s7396 + $0xa8] sm:$0xf] %v7498
        %7500 = vst.msk [vmem:[%s7396 + $0xac] sm:$0xf] %vm562, %v7329
        %v7501 = vld [vmem:[%s7396 + $0xb0] sm:$0x1]
        %v7502 = vsel %vm572, %v7330, %v7501
        %7503 = vst [vmem:[%s7396 + $0xb0] sm:$0x1] %v7502
        %v7504 = vld [vmem:[%s7396 + $0xb4] sm:$0xf]
        %v7505 = vsel %vm7398, %v7337, %v7504
        %7506 = vst [vmem:[%s7396 + $0xb4] sm:$0xf] %v7505
        %7507 = vst.msk [vmem:[%s7396 + $0xb8] sm:$0xf] %vm562, %v7346
        %v7508 = vld [vmem:[%s7396 + $0xbc] sm:$0x1]
        %v7509 = vsel %vm572, %v7347, %v7508
        %7510 = vst [vmem:[%s7396 + $0xbc] sm:$0x1] %v7509
        %v7511 = vld [vmem:[#allocation3] sm:$0xf]
        %v7512 = vld [vmem:[#allocation3 + $0x4] sm:$0xf]
        %v7513 = vld [vmem:[#allocation3 + $0xc] sm:$0xf]
        %v7514 = vld [vmem:[#allocation3 + $0x10] sm:$0xf]
        %v7515 = vld [vmem:[#allocation3 + $0x18] sm:$0xf]
        %v7516 = vld [vmem:[#allocation3 + $0x1c] sm:$0xf]
        %v7517 = vld [vmem:[#allocation3 + $0x24] sm:$0xf]
        %v7518 = vld [vmem:[#allocation3 + $0x28] sm:$0xf]
        %v7519 = vld [vmem:[#allocation3 + $0x30] sm:$0xf]
        %v7520 = vld [vmem:[#allocation3 + $0x34] sm:$0xf]
        %v7521 = vld [vmem:[#allocation3 + $0x3c] sm:$0xf]
        %v7522 = vld [vmem:[#allocation3 + $0x40] sm:$0xf]
        %v7523 = vld [vmem:[#allocation3 + $0x48] sm:$0xf]
        %v7524 = vld [vmem:[#allocation3 + $0x4c] sm:$0xf]
        %v7525 = vld [vmem:[#allocation3 + $0x54] sm:$0xf]
        %v7526 = vld [vmem:[#allocation3 + $0x58] sm:$0xf]
        %v7527 = vld [vmem:[#allocation3 + $0x60] sm:$0xf]
        %v7528 = vld [vmem:[#allocation3 + $0x64] sm:$0xf]
        %v7529 = vld [vmem:[#allocation3 + $0x6c] sm:$0xf]
        %v7530 = vld [vmem:[#allocation3 + $0x70] sm:$0xf]
        %v7531 = vld [vmem:[#allocation3 + $0x78] sm:$0xf]
        %v7532 = vld [vmem:[#allocation3 + $0x7c] sm:$0xf]
        %v7533 = vld [vmem:[#allocation3 + $0x84] sm:$0xf]
        %v7534 = vld [vmem:[#allocation3 + $0x88] sm:$0xf]
        %v7535 = vld [vmem:[#allocation3 + $0x90] sm:$0xf]
        %v7536 = vld [vmem:[#allocation3 + $0x94] sm:$0xf]
        %v7537 = vld [vmem:[#allocation3 + $0x9c] sm:$0xf]
        %v7538 = vld [vmem:[#allocation3 + $0xa0] sm:$0xf]
        %v7539 = vld [vmem:[#allocation3 + $0xa8] sm:$0xf]
        %v7540 = vld [vmem:[#allocation3 + $0xac] sm:$0xf]
        %v7541 = vld [vmem:[#allocation3 + $0xb4] sm:$0xf]
        %v7542 = vld [vmem:[#allocation3 + $0xb8] sm:$0xf]
        %v7543 = vld [vmem:[%s9] sm:$0xf]
        %v7544 = vld [vmem:[%s9 + $0x4] sm:$0xf]
        %v7545 = vld [vmem:[#allocation3 + $0x8] sm:$0x1]
        %v7546 = vld [vmem:[#allocation3 + $0x14] sm:$0x1]
        %v7547 = vld [vmem:[#allocation3 + $0x20] sm:$0x1]
        %v7548 = vld [vmem:[#allocation3 + $0x2c] sm:$0x1]
        %v7549 = vld [vmem:[#allocation3 + $0x38] sm:$0x1]
        %v7550 = vld [vmem:[#allocation3 + $0x44] sm:$0x1]
        %v7551 = vld [vmem:[#allocation3 + $0x50] sm:$0x1]
        %v7552 = vld [vmem:[#allocation3 + $0x5c] sm:$0x1]
        %v7553 = vld [vmem:[#allocation3 + $0x68] sm:$0x1]
        %v7554 = vld [vmem:[#allocation3 + $0x74] sm:$0x1]
        %v7555 = vld [vmem:[#allocation3 + $0x80] sm:$0x1]
        %v7556 = vld [vmem:[#allocation3 + $0x8c] sm:$0x1]
        %v7557 = vld [vmem:[#allocation3 + $0x98] sm:$0x1]
        %v7558 = vld [vmem:[#allocation3 + $0xa4] sm:$0x1]
        %v7559 = vld [vmem:[#allocation3 + $0xb0] sm:$0x1]
        %v7560 = vld [vmem:[#allocation3 + $0xbc] sm:$0x1]
        %v7562 = vshrl.u32 %v7511, 16
        %v7564 = vrot.slane %v7562, 4
        %v7565 = vshll.u32 %v7511, 16
        %v7567 = vrot.slane %v7565, 5
        %v7568 = vor.u32 %v7564, %v7567
        %v7569 = vrot.slane %v7568, 4
        %v7571 = vshll.u32 %v7512, 16
        %v7573 = vrot.slane %v7571, 5
        %v7574 = vsel %vm2196, %v7569, %v7573
        %v7575 = vshrl.u32 %v7512, 16
        %v7577 = vrot.slane %v7575, 4
        %v7578 = vor.u32 %v7577, %v7573
        %v7579 = vrot.slane %v7578, 4
        %v7581 = vshll.u32 %v7545, 16
        %v7583 = vrot.slane %v7581, 5
        %v7584 = vsel %vm2196, %v7579, %v7583
        %v7586 = vshrl.u32 %v7513, 16
        %v7588 = vrot.slane %v7586, 4
        %v7589 = vshll.u32 %v7513, 16
        %v7591 = vrot.slane %v7589, 5
        %v7592 = vor.u32 %v7588, %v7591
        %v7593 = vrot.slane %v7592, 4
        %v7595 = vshll.u32 %v7514, 16
        %v7597 = vrot.slane %v7595, 5
        %v7598 = vsel %vm2196, %v7593, %v7597
        %v7599 = vshrl.u32 %v7514, 16
        %v7601 = vrot.slane %v7599, 4
        %v7602 = vor.u32 %v7601, %v7597
        %v7603 = vrot.slane %v7602, 4
        %v7605 = vshll.u32 %v7546, 16
        %v7607 = vrot.slane %v7605, 5
        %v7608 = vsel %vm2196, %v7603, %v7607
        %v7610 = vshrl.u32 %v7515, 16
        %v7612 = vrot.slane %v7610, 4
        %v7613 = vshll.u32 %v7515, 16
        %v7615 = vrot.slane %v7613, 5
        %v7616 = vor.u32 %v7612, %v7615
        %v7617 = vrot.slane %v7616, 4
        %v7619 = vshll.u32 %v7516, 16
        %v7621 = vrot.slane %v7619, 5
        %v7622 = vsel %vm2196, %v7617, %v7621
        %v7623 = vshrl.u32 %v7516, 16
        %v7625 = vrot.slane %v7623, 4
        %v7626 = vor.u32 %v7625, %v7621
        %v7627 = vrot.slane %v7626, 4
        %v7629 = vshll.u32 %v7547, 16
        %v7631 = vrot.slane %v7629, 5
        %v7632 = vsel %vm2196, %v7627, %v7631
        %v7634 = vshrl.u32 %v7517, 16
        %v7636 = vrot.slane %v7634, 4
        %v7637 = vshll.u32 %v7517, 16
        %v7639 = vrot.slane %v7637, 5
        %v7640 = vor.u32 %v7636, %v7639
        %v7641 = vrot.slane %v7640, 4
        %v7643 = vshll.u32 %v7518, 16
        %v7645 = vrot.slane %v7643, 5
        %v7646 = vsel %vm2196, %v7641, %v7645
        %v7647 = vshrl.u32 %v7518, 16
        %v7649 = vrot.slane %v7647, 4
        %v7650 = vor.u32 %v7649, %v7645
        %v7651 = vrot.slane %v7650, 4
        %v7653 = vshll.u32 %v7548, 16
        %v7655 = vrot.slane %v7653, 5
        %v7656 = vsel %vm2196, %v7651, %v7655
        %v7658 = vshrl.u32 %v7519, 16
        %v7660 = vrot.slane %v7658, 4
        %v7661 = vshll.u32 %v7519, 16
        %v7663 = vrot.slane %v7661, 5
        %v7664 = vor.u32 %v7660, %v7663
        %v7665 = vrot.slane %v7664, 4
        %v7667 = vshll.u32 %v7520, 16
        %v7669 = vrot.slane %v7667, 5
        %v7670 = vsel %vm2196, %v7665, %v7669
        %v7671 = vshrl.u32 %v7520, 16
        %v7673 = vrot.slane %v7671, 4
        %v7674 = vor.u32 %v7673, %v7669
        %v7675 = vrot.slane %v7674, 4
        %v7677 = vshll.u32 %v7549, 16
        %v7679 = vrot.slane %v7677, 5
        %v7680 = vsel %vm2196, %v7675, %v7679
        %v7682 = vshrl.u32 %v7521, 16
        %v7684 = vrot.slane %v7682, 4
        %v7685 = vshll.u32 %v7521, 16
        %v7687 = vrot.slane %v7685, 5
        %v7688 = vor.u32 %v7684, %v7687
        %v7689 = vrot.slane %v7688, 4
        %v7691 = vshll.u32 %v7522, 16
        %v7693 = vrot.slane %v7691, 5
        %v7694 = vsel %vm2196, %v7689, %v7693
        %v7695 = vshrl.u32 %v7522, 16
        %v7697 = vrot.slane %v7695, 4
        %v7698 = vor.u32 %v7697, %v7693
        %v7699 = vrot.slane %v7698, 4
        %v7701 = vshll.u32 %v7550, 16
        %v7703 = vrot.slane %v7701, 5
        %v7704 = vsel %vm2196, %v7699, %v7703
        %v7706 = vshrl.u32 %v7523, 16
        %v7708 = vrot.slane %v7706, 4
        %v7709 = vshll.u32 %v7523, 16
        %v7711 = vrot.slane %v7709, 5
        %v7712 = vor.u32 %v7708, %v7711
        %v7713 = vrot.slane %v7712, 4
        %v7715 = vshll.u32 %v7524, 16
        %v7717 = vrot.slane %v7715, 5
        %v7718 = vsel %vm2196, %v7713, %v7717
        %v7719 = vshrl.u32 %v7524, 16
        %v7721 = vrot.slane %v7719, 4
        %v7722 = vor.u32 %v7721, %v7717
        %v7723 = vrot.slane %v7722, 4
        %v7725 = vshll.u32 %v7551, 16
        %v7727 = vrot.slane %v7725, 5
        %v7728 = vsel %vm2196, %v7723, %v7727
        %v7730 = vshrl.u32 %v7525, 16
        %v7732 = vrot.slane %v7730, 4
        %v7733 = vshll.u32 %v7525, 16
        %v7735 = vrot.slane %v7733, 5
        %v7736 = vor.u32 %v7732, %v7735
        %v7737 = vrot.slane %v7736, 4
        %v7739 = vshll.u32 %v7526, 16
        %v7741 = vrot.slane %v7739, 5
        %v7742 = vsel %vm2196, %v7737, %v7741
        %v7743 = vshrl.u32 %v7526, 16
        %v7745 = vrot.slane %v7743, 4
        %v7746 = vor.u32 %v7745, %v7741
        %v7747 = vrot.slane %v7746, 4
        %v7749 = vshll.u32 %v7552, 16
        %v7751 = vrot.slane %v7749, 5
        %v7752 = vsel %vm2196, %v7747, %v7751
        %v7754 = vshrl.u32 %v7527, 16
        %v7756 = vrot.slane %v7754, 4
        %v7757 = vshll.u32 %v7527, 16
        %v7759 = vrot.slane %v7757, 5
        %v7760 = vor.u32 %v7756, %v7759
        %v7761 = vrot.slane %v7760, 4
        %v7763 = vshll.u32 %v7528, 16
        %v7765 = vrot.slane %v7763, 5
        %v7766 = vsel %vm2196, %v7761, %v7765
        %v7767 = vshrl.u32 %v7528, 16
        %v7769 = vrot.slane %v7767, 4
        %v7770 = vor.u32 %v7769, %v7765
        %v7771 = vrot.slane %v7770, 4
        %v7773 = vshll.u32 %v7553, 16
        %v7775 = vrot.slane %v7773, 5
        %v7776 = vsel %vm2196, %v7771, %v7775
        %v7778 = vshrl.u32 %v7529, 16
        %v7780 = vrot.slane %v7778, 4
        %v7781 = vshll.u32 %v7529, 16
        %v7783 = vrot.slane %v7781, 5
        %v7784 = vor.u32 %v7780, %v7783
        %v7785 = vrot.slane %v7784, 4
        %v7787 = vshll.u32 %v7530, 16
        %v7789 = vrot.slane %v7787, 5
        %v7790 = vsel %vm2196, %v7785, %v7789
        %v7791 = vshrl.u32 %v7530, 16
        %v7793 = vrot.slane %v7791, 4
        %v7794 = vor.u32 %v7793, %v7789
        %v7795 = vrot.slane %v7794, 4
        %v7797 = vshll.u32 %v7554, 16
        %v7799 = vrot.slane %v7797, 5
        %v7800 = vsel %vm2196, %v7795, %v7799
        %v7802 = vshrl.u32 %v7531, 16
        %v7804 = vrot.slane %v7802, 4
        %v7805 = vshll.u32 %v7531, 16
        %v7807 = vrot.slane %v7805, 5
        %v7808 = vor.u32 %v7804, %v7807
        %v7809 = vrot.slane %v7808, 4
        %v7811 = vshll.u32 %v7532, 16
        %v7813 = vrot.slane %v7811, 5
        %v7814 = vsel %vm2196, %v7809, %v7813
        %v7815 = vshrl.u32 %v7532, 16
        %v7817 = vrot.slane %v7815, 4
        %v7818 = vor.u32 %v7817, %v7813
        %v7819 = vrot.slane %v7818, 4
        %v7821 = vshll.u32 %v7555, 16
        %v7823 = vrot.slane %v7821, 5
        %v7824 = vsel %vm2196, %v7819, %v7823
        %v7826 = vshrl.u32 %v7533, 16
        %v7828 = vrot.slane %v7826, 4
        %v7829 = vshll.u32 %v7533, 16
        %v7831 = vrot.slane %v7829, 5
        %v7832 = vor.u32 %v7828, %v7831
        %v7833 = vrot.slane %v7832, 4
        %v7835 = vshll.u32 %v7534, 16
        %v7837 = vrot.slane %v7835, 5
        %v7838 = vsel %vm2196, %v7833, %v7837
        %v7839 = vshrl.u32 %v7534, 16
        %v7841 = vrot.slane %v7839, 4
        %v7842 = vor.u32 %v7841, %v7837
        %v7843 = vrot.slane %v7842, 4
        %v7845 = vshll.u32 %v7556, 16
        %v7847 = vrot.slane %v7845, 5
        %v7848 = vsel %vm2196, %v7843, %v7847
        %v7850 = vshrl.u32 %v7535, 16
        %v7852 = vrot.slane %v7850, 4
        %v7853 = vshll.u32 %v7535, 16
        %v7855 = vrot.slane %v7853, 5
        %v7856 = vor.u32 %v7852, %v7855
        %v7857 = vrot.slane %v7856, 4
        %v7859 = vshll.u32 %v7536, 16
        %v7861 = vrot.slane %v7859, 5
        %v7862 = vsel %vm2196, %v7857, %v7861
        %v7863 = vshrl.u32 %v7536, 16
        %v7865 = vrot.slane %v7863, 4
        %v7866 = vor.u32 %v7865, %v7861
        %v7867 = vrot.slane %v7866, 4
        %v7869 = vshll.u32 %v7557, 16
        %v7871 = vrot.slane %v7869, 5
        %v7872 = vsel %vm2196, %v7867, %v7871
        %v7874 = vshrl.u32 %v7537, 16
        %v7876 = vrot.slane %v7874, 4
        %v7877 = vshll.u32 %v7537, 16
        %v7879 = vrot.slane %v7877, 5
        %v7880 = vor.u32 %v7876, %v7879
        %v7881 = vrot.slane %v7880, 4
        %v7883 = vshll.u32 %v7538, 16
        %v7885 = vrot.slane %v7883, 5
        %v7886 = vsel %vm2196, %v7881, %v7885
        %v7887 = vshrl.u32 %v7538, 16
        %v7889 = vrot.slane %v7887, 4
        %v7890 = vor.u32 %v7889, %v7885
        %v7891 = vrot.slane %v7890, 4
        %v7893 = vshll.u32 %v7558, 16
        %v7895 = vrot.slane %v7893, 5
        %v7896 = vsel %vm2196, %v7891, %v7895
        %v7898 = vshrl.u32 %v7539, 16
        %v7900 = vrot.slane %v7898, 4
        %v7901 = vshll.u32 %v7539, 16
        %v7903 = vrot.slane %v7901, 5
        %v7904 = vor.u32 %v7900, %v7903
        %v7905 = vrot.slane %v7904, 4
        %v7907 = vshll.u32 %v7540, 16
        %v7909 = vrot.slane %v7907, 5
        %v7910 = vsel %vm2196, %v7905, %v7909
        %v7911 = vshrl.u32 %v7540, 16
        %v7913 = vrot.slane %v7911, 4
        %v7914 = vor.u32 %v7913, %v7909
        %v7915 = vrot.slane %v7914, 4
        %v7917 = vshll.u32 %v7559, 16
        %v7919 = vrot.slane %v7917, 5
        %v7920 = vsel %vm2196, %v7915, %v7919
        %v7922 = vshrl.u32 %v7541, 16
        %v7924 = vrot.slane %v7922, 4
        %v7925 = vshll.u32 %v7541, 16
        %v7927 = vrot.slane %v7925, 5
        %v7928 = vor.u32 %v7924, %v7927
        %v7929 = vrot.slane %v7928, 4
        %v7931 = vshll.u32 %v7542, 16
        %v7933 = vrot.slane %v7931, 5
        %v7934 = vsel %vm2196, %v7929, %v7933
        %v7935 = vshrl.u32 %v7542, 16
        %v7937 = vrot.slane %v7935, 4
        %v7938 = vor.u32 %v7937, %v7933
        %v7939 = vrot.slane %v7938, 4
        %v7941 = vshll.u32 %v7560, 16
        %v7943 = vrot.slane %v7941, 5
        %v7944 = vsel %vm2196, %v7939, %v7943
        %v7945 = vld [vmem:[%s9 + $0x8] sm:$0xf]
        %v7946 = vld [vmem:[%s9 + $0xc] sm:$0xf]
        %v7947 = vunpack.c.l.b16 %v7574
        %v7948 = vunpack.c.l.b16 %v7584
        %v7949 = vunpack.c.l.b16 %v7598
        %v7950 = vunpack.c.l.b16 %v7608
        %v7951 = vunpack.c.l.b16 %v7622
        %v7952 = vunpack.c.l.b16 %v7632
        %v7953 = vunpack.c.l.b16 %v7646
        %v7954 = vunpack.c.l.b16 %v7656
        %v7955 = vunpack.c.l.b16 %v7670
        %v7956 = vunpack.c.l.b16 %v7680
        %v7957 = vunpack.c.l.b16 %v7694
        %v7958 = vunpack.c.l.b16 %v7704
        %v7959 = vunpack.c.l.b16 %v7718
        %v7960 = vunpack.c.l.b16 %v7728
        %v7961 = vunpack.c.l.b16 %v7742
        %v7962 = vunpack.c.l.b16 %v7752
        %v7963 = vunpack.c.l.b16 %v7766
        %v7964 = vunpack.c.l.b16 %v7776
        %v7965 = vunpack.c.l.b16 %v7790
        %v7966 = vunpack.c.l.b16 %v7800
        %v7967 = vunpack.c.l.b16 %v7814
        %v7968 = vunpack.c.l.b16 %v7824
        %v7969 = vunpack.c.l.b16 %v7838
        %v7970 = vunpack.c.l.b16 %v7848
        %v7971 = vunpack.c.l.b16 %v7862
        %v7972 = vunpack.c.l.b16 %v7872
        %v7973 = vunpack.c.l.b16 %v7886
        %v7974 = vunpack.c.l.b16 %v7896
        %v7975 = vunpack.c.l.b16 %v7910
        %v7976 = vunpack.c.l.b16 %v7920
        %v7977 = vunpack.c.l.b16 %v7934
        %v7978 = vunpack.c.l.b16 %v7944
        %v7979 = vpack.c.b16 %v7948, %v7947
        %v7980 = vpack.c.b16 %v7950, %v7949
        %v7981 = vpack.c.b16 %v7952, %v7951
        %v7982 = vpack.c.b16 %v7954, %v7953
        %v7983 = vpack.c.b16 %v7956, %v7955
        %v7984 = vpack.c.b16 %v7958, %v7957
        %v7985 = vpack.c.b16 %v7960, %v7959
        %v7986 = vpack.c.b16 %v7962, %v7961
        %v7987 = vpack.c.b16 %v7964, %v7963
        %v7988 = vpack.c.b16 %v7966, %v7965
        %v7989 = vpack.c.b16 %v7968, %v7967
        %v7990 = vpack.c.b16 %v7970, %v7969
        %v7991 = vpack.c.b16 %v7972, %v7971
        %v7992 = vpack.c.b16 %v7974, %v7973
        %v7993 = vpack.c.b16 %v7976, %v7975
        %v7994 = vpack.c.b16 %v7978, %v7977
        %v7997 = vunpack.c.l.b16 %v7945
        %v7998 = vunpack.c.l.b16 %v7946
        %v7999 = vpack.c.b16 %v7998, %v7997
        %v8002 = vsel %vm6086, %v7979, 0
        %v8005 = vsel %vm6086, %v7980, 0
        %v8008 = vsel %vm6086, %v7981, 0
        %v8011 = vsel %vm6086, %v7982, 0
        %v8014 = vsel %vm6086, %v7983, 0
        %v8017 = vsel %vm6086, %v7984, 0
        %v8020 = vsel %vm6086, %v7985, 0
        %v8023 = vsel %vm6086, %v7986, 0
        %v8026 = vsel %vm6086, %v7987, 0
        %v8029 = vsel %vm6086, %v7988, 0
        %v8032 = vsel %vm6086, %v7989, 0
        %v8035 = vsel %vm6086, %v7990, 0
        %v8038 = vsel %vm6086, %v7991, 0
        %v8041 = vsel %vm6086, %v7992, 0
        %v8044 = vsel %vm6086, %v7993, 0
        %v8047 = vsel %vm6086, %v7994, 0
        %8049 = vmatpush.bf16.msra.mxu0 0
        %8050 = vmatpush.bf16.msra.mxu0 0
        %8051 = vmatpush.bf16.msra.mxu0 0
        %8052 = vmatpush.bf16.msra.mxu0 0
        %8053 = vmatpush.bf16.msra.mxu0 0
        %8054 = vmatpush.bf16.msra.mxu0 0
        %8055 = vmatpush.bf16.msra.mxu0 0
        %8056 = vmatpush.bf16.msra.mxu0 %v7999
        %8057 = vmatmul.bf16.gmra.mxu0 %v8002
        %v8058 = vpop.f32.mrf.mxu0
        %v8059 = vadd.f32 0.0, %v8058
        %v8060 = vpop.f32.mrf.mxu0
        %v8061 = vadd.f32 0.0, %v8060
        %8062 = vmatmul.bf16.gmra.mxu0 %v8005
        %v8063 = vpop.f32.mrf.mxu0
        %v8064 = vadd.f32 0.0, %v8063
        %v8065 = vpop.f32.mrf.mxu0
        %v8066 = vadd.f32 0.0, %v8065
        %8067 = vmatmul.bf16.gmra.mxu0 %v8008
        %v8068 = vpop.f32.mrf.mxu0
        %v8069 = vadd.f32 0.0, %v8068
        %v8070 = vpop.f32.mrf.mxu0
        %v8071 = vadd.f32 0.0, %v8070
        %8072 = vmatmul.bf16.gmra.mxu0 %v8011
        %v8073 = vpop.f32.mrf.mxu0
        %v8074 = vadd.f32 0.0, %v8073
        %v8075 = vpop.f32.mrf.mxu0
        %v8076 = vadd.f32 0.0, %v8075
        %8077 = vmatmul.bf16.gmra.mxu0 %v8014
        %v8078 = vpop.f32.mrf.mxu0
        %v8079 = vadd.f32 0.0, %v8078
        %v8080 = vpop.f32.mrf.mxu0
        %v8081 = vadd.f32 0.0, %v8080
        %8082 = vmatmul.bf16.gmra.mxu0 %v8017
        %v8083 = vpop.f32.mrf.mxu0
        %v8084 = vadd.f32 0.0, %v8083
        %v8085 = vpop.f32.mrf.mxu0
        %v8086 = vadd.f32 0.0, %v8085
        %8087 = vmatmul.bf16.gmra.mxu0 %v8020
        %v8088 = vpop.f32.mrf.mxu0
        %v8089 = vadd.f32 0.0, %v8088
        %v8090 = vpop.f32.mrf.mxu0
        %v8091 = vadd.f32 0.0, %v8090
        %8092 = vmatmul.bf16.gmra.mxu0 %v8023
        %v8093 = vpop.f32.mrf.mxu0
        %v8094 = vadd.f32 0.0, %v8093
        %v8095 = vpop.f32.mrf.mxu0
        %v8096 = vadd.f32 0.0, %v8095
        %8097 = vmatmul.bf16.gmra.mxu0 %v8026
        %v8098 = vpop.f32.mrf.mxu0
        %v8099 = vadd.f32 0.0, %v8098
        %v8100 = vpop.f32.mrf.mxu0
        %v8101 = vadd.f32 0.0, %v8100
        %8102 = vmatmul.bf16.gmra.mxu0 %v8029
        %v8103 = vpop.f32.mrf.mxu0
        %v8104 = vadd.f32 0.0, %v8103
        %v8105 = vpop.f32.mrf.mxu0
        %v8106 = vadd.f32 0.0, %v8105
        %8107 = vmatmul.bf16.gmra.mxu0 %v8032
        %v8108 = vpop.f32.mrf.mxu0
        %v8109 = vadd.f32 0.0, %v8108
        %v8110 = vpop.f32.mrf.mxu0
        %v8111 = vadd.f32 0.0, %v8110
        %8112 = vmatmul.bf16.gmra.mxu0 %v8035
        %v8113 = vpop.f32.mrf.mxu0
        %v8114 = vadd.f32 0.0, %v8113
        %v8115 = vpop.f32.mrf.mxu0
        %v8116 = vadd.f32 0.0, %v8115
        %8117 = vmatmul.bf16.gmra.mxu0 %v8038
        %v8118 = vpop.f32.mrf.mxu0
        %v8119 = vadd.f32 0.0, %v8118
        %v8120 = vpop.f32.mrf.mxu0
        %v8121 = vadd.f32 0.0, %v8120
        %8122 = vmatmul.bf16.gmra.mxu0 %v8041
        %v8123 = vpop.f32.mrf.mxu0
        %v8124 = vadd.f32 0.0, %v8123
        %v8125 = vpop.f32.mrf.mxu0
        %v8126 = vadd.f32 0.0, %v8125
        %8127 = vmatmul.bf16.gmra.mxu0 %v8044
        %v8128 = vpop.f32.mrf.mxu0
        %v8129 = vadd.f32 0.0, %v8128
        %v8130 = vpop.f32.mrf.mxu0
        %v8131 = vadd.f32 0.0, %v8130
        %8132 = vmatmul.bf16.gmra.mxu0 %v8047
        %v8133 = vpop.f32.mrf.mxu0
        %v8134 = vadd.f32 0.0, %v8133
        %v8135 = vpop.f32.mrf.mxu0
        %v8136 = vadd.f32 0.0, %v8135
        %8137 = vdwg.mxu0
        %v8170 = vunpack.c.l.b16 %v7511
        %v8171 = vunpack.c.l.b16 %v7512
        %v8172 = vunpack.c.l.b16 %v7513
        %v8173 = vunpack.c.l.b16 %v7514
        %v8174 = vunpack.c.l.b16 %v7515
        %v8175 = vunpack.c.l.b16 %v7516
        %v8176 = vunpack.c.l.b16 %v7517
        %v8177 = vunpack.c.l.b16 %v7518
        %v8178 = vunpack.c.l.b16 %v7519
        %v8179 = vunpack.c.l.b16 %v7520
        %v8180 = vunpack.c.l.b16 %v7521
        %v8181 = vunpack.c.l.b16 %v7522
        %v8182 = vunpack.c.l.b16 %v7523
        %v8183 = vunpack.c.l.b16 %v7524
        %v8184 = vunpack.c.l.b16 %v7525
        %v8185 = vunpack.c.l.b16 %v7526
        %v8186 = vunpack.c.l.b16 %v7527
        %v8187 = vunpack.c.l.b16 %v7528
        %v8188 = vunpack.c.l.b16 %v7529
        %v8189 = vunpack.c.l.b16 %v7530
        %v8190 = vunpack.c.l.b16 %v7531
        %v8191 = vunpack.c.l.b16 %v7532
        %v8192 = vunpack.c.l.b16 %v7533
        %v8193 = vunpack.c.l.b16 %v7534
        %v8194 = vunpack.c.l.b16 %v7535
        %v8195 = vunpack.c.l.b16 %v7536
        %v8196 = vunpack.c.l.b16 %v7537
        %v8197 = vunpack.c.l.b16 %v7538
        %v8198 = vunpack.c.l.b16 %v7539
        %v8199 = vunpack.c.l.b16 %v7540
        %v8200 = vunpack.c.l.b16 %v7541
        %v8201 = vunpack.c.l.b16 %v7542
        %v8202 = vpack.c.b16 %v8171, %v8170
        %v8203 = vpack.c.b16 %v8173, %v8172
        %v8204 = vpack.c.b16 %v8175, %v8174
        %v8205 = vpack.c.b16 %v8177, %v8176
        %v8206 = vpack.c.b16 %v8179, %v8178
        %v8207 = vpack.c.b16 %v8181, %v8180
        %v8208 = vpack.c.b16 %v8183, %v8182
        %v8209 = vpack.c.b16 %v8185, %v8184
        %v8210 = vpack.c.b16 %v8187, %v8186
        %v8211 = vpack.c.b16 %v8189, %v8188
        %v8212 = vpack.c.b16 %v8191, %v8190
        %v8213 = vpack.c.b16 %v8193, %v8192
        %v8214 = vpack.c.b16 %v8195, %v8194
        %v8215 = vpack.c.b16 %v8197, %v8196
        %v8216 = vpack.c.b16 %v8199, %v8198
        %v8217 = vpack.c.b16 %v8201, %v8200
        %v8220 = vunpack.c.l.b16 %v7543
        %v8221 = vunpack.c.l.b16 %v7544
        %v8222 = vpack.c.b16 %v8221, %v8220
        %v8225 = vsel %vm6086, %v8202, 0
        %v8228 = vsel %vm6086, %v8203, 0
        %v8231 = vsel %vm6086, %v8204, 0
        %v8234 = vsel %vm6086, %v8205, 0
        %v8237 = vsel %vm6086, %v8206, 0
        %v8240 = vsel %vm6086, %v8207, 0
        %v8243 = vsel %vm6086, %v8208, 0
        %v8246 = vsel %vm6086, %v8209, 0
        %v8249 = vsel %vm6086, %v8210, 0
        %v8252 = vsel %vm6086, %v8211, 0
        %v8255 = vsel %vm6086, %v8212, 0
        %v8258 = vsel %vm6086, %v8213, 0
        %v8261 = vsel %vm6086, %v8214, 0
        %v8264 = vsel %vm6086, %v8215, 0
        %v8267 = vsel %vm6086, %v8216, 0
        %v8270 = vsel %vm6086, %v8217, 0
        %8272 = vmatpush.bf16.msra.mxu0 0
        %8273 = vmatpush.bf16.msra.mxu0 0
        %8274 = vmatpush.bf16.msra.mxu0 0
        %8275 = vmatpush.bf16.msra.mxu0 0
        %8276 = vmatpush.bf16.msra.mxu0 0
        %8277 = vmatpush.bf16.msra.mxu0 0
        %8278 = vmatpush.bf16.msra.mxu0 0
        %8279 = vmatpush.bf16.msra.mxu0 %v8222
        %8280 = vmatmul.bf16.gmra.mxu0 %v8225
        %v8281 = vpop.f32.mrf.mxu0
        %v8282 = vadd.f32 %v8059, %v8281
        %v8283 = vpop.f32.mrf.mxu0
        %v8284 = vadd.f32 %v8061, %v8283
        %8285 = vmatmul.bf16.gmra.mxu0 %v8228
        %v8286 = vpop.f32.mrf.mxu0
        %v8287 = vadd.f32 %v8064, %v8286
        %v8288 = vpop.f32.mrf.mxu0
        %v8289 = vadd.f32 %v8066, %v8288
        %8290 = vmatmul.bf16.gmra.mxu0 %v8231
        %v8291 = vpop.f32.mrf.mxu0
        %v8292 = vadd.f32 %v8069, %v8291
        %v8293 = vpop.f32.mrf.mxu0
        %v8294 = vadd.f32 %v8071, %v8293
        %8295 = vmatmul.bf16.gmra.mxu0 %v8234
        %v8296 = vpop.f32.mrf.mxu0
        %v8297 = vadd.f32 %v8074, %v8296
        %v8298 = vpop.f32.mrf.mxu0
        %v8299 = vadd.f32 %v8076, %v8298
        %8300 = vmatmul.bf16.gmra.mxu0 %v8237
        %v8301 = vpop.f32.mrf.mxu0
        %v8302 = vadd.f32 %v8079, %v8301
        %v8303 = vpop.f32.mrf.mxu0
        %v8304 = vadd.f32 %v8081, %v8303
        %8305 = vmatmul.bf16.gmra.mxu0 %v8240
        %v8306 = vpop.f32.mrf.mxu0
        %v8307 = vadd.f32 %v8084, %v8306
        %v8308 = vpop.f32.mrf.mxu0
        %v8309 = vadd.f32 %v8086, %v8308
        %8310 = vmatmul.bf16.gmra.mxu0 %v8243
        %v8311 = vpop.f32.mrf.mxu0
        %v8312 = vadd.f32 %v8089, %v8311
        %v8313 = vpop.f32.mrf.mxu0
        %v8314 = vadd.f32 %v8091, %v8313
        %8315 = vmatmul.bf16.gmra.mxu0 %v8246
        %v8316 = vpop.f32.mrf.mxu0
        %v8317 = vadd.f32 %v8094, %v8316
        %v8318 = vpop.f32.mrf.mxu0
        %v8319 = vadd.f32 %v8096, %v8318
        %8320 = vmatmul.bf16.gmra.mxu0 %v8249
        %v8321 = vpop.f32.mrf.mxu0
        %v8322 = vadd.f32 %v8099, %v8321
        %v8323 = vpop.f32.mrf.mxu0
        %v8324 = vadd.f32 %v8101, %v8323
        %8325 = vmatmul.bf16.gmra.mxu0 %v8252
        %v8326 = vpop.f32.mrf.mxu0
        %v8327 = vadd.f32 %v8104, %v8326
        %v8328 = vpop.f32.mrf.mxu0
        %v8329 = vadd.f32 %v8106, %v8328
        %8330 = vmatmul.bf16.gmra.mxu0 %v8255
        %v8331 = vpop.f32.mrf.mxu0
        %v8332 = vadd.f32 %v8109, %v8331
        %v8333 = vpop.f32.mrf.mxu0
        %v8334 = vadd.f32 %v8111, %v8333
        %8335 = vmatmul.bf16.gmra.mxu0 %v8258
        %v8336 = vpop.f32.mrf.mxu0
        %v8337 = vadd.f32 %v8114, %v8336
        %v8338 = vpop.f32.mrf.mxu0
        %v8339 = vadd.f32 %v8116, %v8338
        %8340 = vmatmul.bf16.gmra.mxu0 %v8261
        %v8341 = vpop.f32.mrf.mxu0
        %v8342 = vadd.f32 %v8119, %v8341
        %v8343 = vpop.f32.mrf.mxu0
        %v8344 = vadd.f32 %v8121, %v8343
        %8345 = vmatmul.bf16.gmra.mxu0 %v8264
        %v8346 = vpop.f32.mrf.mxu0
        %v8347 = vadd.f32 %v8124, %v8346
        %v8348 = vpop.f32.mrf.mxu0
        %v8349 = vadd.f32 %v8126, %v8348
        %8350 = vmatmul.bf16.gmra.mxu0 %v8267
        %v8351 = vpop.f32.mrf.mxu0
        %v8352 = vadd.f32 %v8129, %v8351
        %v8353 = vpop.f32.mrf.mxu0
        %v8354 = vadd.f32 %v8131, %v8353
        %8355 = vmatmul.bf16.gmra.mxu0 %v8270
        %v8356 = vpop.f32.mrf.mxu0
        %v8357 = vadd.f32 %v8134, %v8356
        %v8358 = vpop.f32.mrf.mxu0
        %v8359 = vadd.f32 %v8136, %v8358
        %8360 = vdwg.mxu0
        %v8361 = vld [vmem:[#allocation3] sm:$0xe]
        %v8362 = vld [vmem:[#allocation3 + $0xc] sm:$0xe]
        %v8363 = vld [vmem:[#allocation3 + $0x18] sm:$0xe]
        %v8364 = vld [vmem:[#allocation3 + $0x24] sm:$0xe]
        %v8365 = vld [vmem:[#allocation3 + $0x30] sm:$0xe]
        %v8366 = vld [vmem:[#allocation3 + $0x3c] sm:$0xe]
        %v8367 = vld [vmem:[#allocation3 + $0x48] sm:$0xe]
        %v8368 = vld [vmem:[#allocation3 + $0x54] sm:$0xe]
        %v8369 = vld [vmem:[#allocation3 + $0x60] sm:$0xe]
        %v8370 = vld [vmem:[#allocation3 + $0x6c] sm:$0xe]
        %v8371 = vld [vmem:[#allocation3 + $0x78] sm:$0xe]
        %v8372 = vld [vmem:[#allocation3 + $0x84] sm:$0xe]
        %v8373 = vld [vmem:[#allocation3 + $0x90] sm:$0xe]
        %v8374 = vld [vmem:[#allocation3 + $0x9c] sm:$0xe]
        %v8375 = vld [vmem:[#allocation3 + $0xa8] sm:$0xe]
        %v8376 = vld [vmem:[#allocation3 + $0xb4] sm:$0xe]
        %v8409 = vrot.slane %v8361, 5
        %v8410 = vrot.slane %v8409, 4
        %v8411 = vrot.slane %v7512, 5
        %v8412 = vsel %vm3041, %v8410, %v8411
        %v8413 = vrot.slane %v8411, 4
        %v8414 = vrot.slane %v7545, 5
        %v8415 = vsel %vm3041, %v8413, %v8414
        %v8416 = vrot.slane %v8362, 5
        %v8417 = vrot.slane %v8416, 4
        %v8418 = vrot.slane %v7514, 5
        %v8419 = vsel %vm3041, %v8417, %v8418
        %v8420 = vrot.slane %v8418, 4
        %v8421 = vrot.slane %v7546, 5
        %v8422 = vsel %vm3041, %v8420, %v8421
        %v8423 = vrot.slane %v8363, 5
        %v8424 = vrot.slane %v8423, 4
        %v8425 = vrot.slane %v7516, 5
        %v8426 = vsel %vm3041, %v8424, %v8425
        %v8427 = vrot.slane %v8425, 4
        %v8428 = vrot.slane %v7547, 5
        %v8429 = vsel %vm3041, %v8427, %v8428
        %v8430 = vrot.slane %v8364, 5
        %v8431 = vrot.slane %v8430, 4
        %v8432 = vrot.slane %v7518, 5
        %v8433 = vsel %vm3041, %v8431, %v8432
        %v8434 = vrot.slane %v8432, 4
        %v8435 = vrot.slane %v7548, 5
        %v8436 = vsel %vm3041, %v8434, %v8435
        %v8437 = vrot.slane %v8365, 5
        %v8438 = vrot.slane %v8437, 4
        %v8439 = vrot.slane %v7520, 5
        %v8440 = vsel %vm3041, %v8438, %v8439
        %v8441 = vrot.slane %v8439, 4
        %v8442 = vrot.slane %v7549, 5
        %v8443 = vsel %vm3041, %v8441, %v8442
        %v8444 = vrot.slane %v8366, 5
        %v8445 = vrot.slane %v8444, 4
        %v8446 = vrot.slane %v7522, 5
        %v8447 = vsel %vm3041, %v8445, %v8446
        %v8448 = vrot.slane %v8446, 4
        %v8449 = vrot.slane %v7550, 5
        %v8450 = vsel %vm3041, %v8448, %v8449
        %v8451 = vrot.slane %v8367, 5
        %v8452 = vrot.slane %v8451, 4
        %v8453 = vrot.slane %v7524, 5
        %v8454 = vsel %vm3041, %v8452, %v8453
        %v8455 = vrot.slane %v8453, 4
        %v8456 = vrot.slane %v7551, 5
        %v8457 = vsel %vm3041, %v8455, %v8456
        %v8458 = vrot.slane %v8368, 5
        %v8459 = vrot.slane %v8458, 4
        %v8460 = vrot.slane %v7526, 5
        %v8461 = vsel %vm3041, %v8459, %v8460
        %v8462 = vrot.slane %v8460, 4
        %v8463 = vrot.slane %v7552, 5
        %v8464 = vsel %vm3041, %v8462, %v8463
        %v8465 = vrot.slane %v8369, 5
        %v8466 = vrot.slane %v8465, 4
        %v8467 = vrot.slane %v7528, 5
        %v8468 = vsel %vm3041, %v8466, %v8467
        %v8469 = vrot.slane %v8467, 4
        %v8470 = vrot.slane %v7553, 5
        %v8471 = vsel %vm3041, %v8469, %v8470
        %v8472 = vrot.slane %v8370, 5
        %v8473 = vrot.slane %v8472, 4
        %v8474 = vrot.slane %v7530, 5
        %v8475 = vsel %vm3041, %v8473, %v8474
        %v8476 = vrot.slane %v8474, 4
        %v8477 = vrot.slane %v7554, 5
        %v8478 = vsel %vm3041, %v8476, %v8477
        %v8479 = vrot.slane %v8371, 5
        %v8480 = vrot.slane %v8479, 4
        %v8481 = vrot.slane %v7532, 5
        %v8482 = vsel %vm3041, %v8480, %v8481
        %v8483 = vrot.slane %v8481, 4
        %v8484 = vrot.slane %v7555, 5
        %v8485 = vsel %vm3041, %v8483, %v8484
        %v8486 = vrot.slane %v8372, 5
        %v8487 = vrot.slane %v8486, 4
        %v8488 = vrot.slane %v7534, 5
        %v8489 = vsel %vm3041, %v8487, %v8488
        %v8490 = vrot.slane %v8488, 4
        %v8491 = vrot.slane %v7556, 5
        %v8492 = vsel %vm3041, %v8490, %v8491
        %v8493 = vrot.slane %v8373, 5
        %v8494 = vrot.slane %v8493, 4
        %v8495 = vrot.slane %v7536, 5
        %v8496 = vsel %vm3041, %v8494, %v8495
        %v8497 = vrot.slane %v8495, 4
        %v8498 = vrot.slane %v7557, 5
        %v8499 = vsel %vm3041, %v8497, %v8498
        %v8500 = vrot.slane %v8374, 5
        %v8501 = vrot.slane %v8500, 4
        %v8502 = vrot.slane %v7538, 5
        %v8503 = vsel %vm3041, %v8501, %v8502
        %v8504 = vrot.slane %v8502, 4
        %v8505 = vrot.slane %v7558, 5
        %v8506 = vsel %vm3041, %v8504, %v8505
        %v8507 = vrot.slane %v8375, 5
        %v8508 = vrot.slane %v8507, 4
        %v8509 = vrot.slane %v7540, 5
        %v8510 = vsel %vm3041, %v8508, %v8509
        %v8511 = vrot.slane %v8509, 4
        %v8512 = vrot.slane %v7559, 5
        %v8513 = vsel %vm3041, %v8511, %v8512
        %v8514 = vrot.slane %v8376, 5
        %v8515 = vrot.slane %v8514, 4
        %v8516 = vrot.slane %v7542, 5
        %v8517 = vsel %vm3041, %v8515, %v8516
        %v8518 = vrot.slane %v8516, 4
        %v8519 = vrot.slane %v7560, 5
        %v8520 = vsel %vm3041, %v8518, %v8519
        %v8521 = vld [vmem:[%s9 + $0x10] sm:$0xf]
        %v8522 = vld [vmem:[%s9 + $0x14] sm:$0xf]
        %v8523 = vunpack.c.l.b16 %v8412
        %v8524 = vunpack.c.l.b16 %v8415
        %v8525 = vunpack.c.l.b16 %v8419
        %v8526 = vunpack.c.l.b16 %v8422
        %v8527 = vunpack.c.l.b16 %v8426
        %v8528 = vunpack.c.l.b16 %v8429
        %v8529 = vunpack.c.l.b16 %v8433
        %v8530 = vunpack.c.l.b16 %v8436
        %v8531 = vunpack.c.l.b16 %v8440
        %v8532 = vunpack.c.l.b16 %v8443
        %v8533 = vunpack.c.l.b16 %v8447
        %v8534 = vunpack.c.l.b16 %v8450
        %v8535 = vunpack.c.l.b16 %v8454
        %v8536 = vunpack.c.l.b16 %v8457
        %v8537 = vunpack.c.l.b16 %v8461
        %v8538 = vunpack.c.l.b16 %v8464
        %v8539 = vunpack.c.l.b16 %v8468
        %v8540 = vunpack.c.l.b16 %v8471
        %v8541 = vunpack.c.l.b16 %v8475
        %v8542 = vunpack.c.l.b16 %v8478
        %v8543 = vunpack.c.l.b16 %v8482
        %v8544 = vunpack.c.l.b16 %v8485
        %v8545 = vunpack.c.l.b16 %v8489
        %v8546 = vunpack.c.l.b16 %v8492
        %v8547 = vunpack.c.l.b16 %v8496
        %v8548 = vunpack.c.l.b16 %v8499
        %v8549 = vunpack.c.l.b16 %v8503
        %v8550 = vunpack.c.l.b16 %v8506
        %v8551 = vunpack.c.l.b16 %v8510
        %v8552 = vunpack.c.l.b16 %v8513
        %v8553 = vunpack.c.l.b16 %v8517
        %v8554 = vunpack.c.l.b16 %v8520
        %v8555 = vpack.c.b16 %v8524, %v8523
        %v8556 = vpack.c.b16 %v8526, %v8525
        %v8557 = vpack.c.b16 %v8528, %v8527
        %v8558 = vpack.c.b16 %v8530, %v8529
        %v8559 = vpack.c.b16 %v8532, %v8531
        %v8560 = vpack.c.b16 %v8534, %v8533
        %v8561 = vpack.c.b16 %v8536, %v8535
        %v8562 = vpack.c.b16 %v8538, %v8537
        %v8563 = vpack.c.b16 %v8540, %v8539
        %v8564 = vpack.c.b16 %v8542, %v8541
        %v8565 = vpack.c.b16 %v8544, %v8543
        %v8566 = vpack.c.b16 %v8546, %v8545
        %v8567 = vpack.c.b16 %v8548, %v8547
        %v8568 = vpack.c.b16 %v8550, %v8549
        %v8569 = vpack.c.b16 %v8552, %v8551
        %v8570 = vpack.c.b16 %v8554, %v8553
        %v8573 = vunpack.c.l.b16 %v8521
        %v8574 = vunpack.c.l.b16 %v8522
        %v8575 = vpack.c.b16 %v8574, %v8573
        %v8578 = vsel %vm6086, %v8555, 0
        %v8581 = vsel %vm6086, %v8556, 0
        %v8584 = vsel %vm6086, %v8557, 0
        %v8587 = vsel %vm6086, %v8558, 0
        %v8590 = vsel %vm6086, %v8559, 0
        %v8593 = vsel %vm6086, %v8560, 0
        %v8596 = vsel %vm6086, %v8561, 0
        %v8599 = vsel %vm6086, %v8562, 0
        %v8602 = vsel %vm6086, %v8563, 0
        %v8605 = vsel %vm6086, %v8564, 0
        %v8608 = vsel %vm6086, %v8565, 0
        %v8611 = vsel %vm6086, %v8566, 0
        %v8614 = vsel %vm6086, %v8567, 0
        %v8617 = vsel %vm6086, %v8568, 0
        %v8620 = vsel %vm6086, %v8569, 0
        %v8623 = vsel %vm6086, %v8570, 0
        %8625 = vmatpush.bf16.msra.mxu0 0
        %8626 = vmatpush.bf16.msra.mxu0 0
        %8627 = vmatpush.bf16.msra.mxu0 0
        %8628 = vmatpush.bf16.msra.mxu0 0
        %8629 = vmatpush.bf16.msra.mxu0 0
        %8630 = vmatpush.bf16.msra.mxu0 0
        %8631 = vmatpush.bf16.msra.mxu0 0
        %8632 = vmatpush.bf16.msra.mxu0 %v8575
        %8633 = vmatmul.bf16.gmra.mxu0 %v8578
        %v8634 = vpop.f32.mrf.mxu0
        %v8635 = vadd.f32 0.0, %v8634
        %v8636 = vpop.f32.mrf.mxu0
        %v8637 = vadd.f32 0.0, %v8636
        %8638 = vmatmul.bf16.gmra.mxu0 %v8581
        %v8639 = vpop.f32.mrf.mxu0
        %v8640 = vadd.f32 0.0, %v8639
        %v8641 = vpop.f32.mrf.mxu0
        %v8642 = vadd.f32 0.0, %v8641
        %8643 = vmatmul.bf16.gmra.mxu0 %v8584
        %v8644 = vpop.f32.mrf.mxu0
        %v8645 = vadd.f32 0.0, %v8644
        %v8646 = vpop.f32.mrf.mxu0
        %v8647 = vadd.f32 0.0, %v8646
        %8648 = vmatmul.bf16.gmra.mxu0 %v8587
        %v8649 = vpop.f32.mrf.mxu0
        %v8650 = vadd.f32 0.0, %v8649
        %v8651 = vpop.f32.mrf.mxu0
        %v8652 = vadd.f32 0.0, %v8651
        %8653 = vmatmul.bf16.gmra.mxu0 %v8590
        %v8654 = vpop.f32.mrf.mxu0
        %v8655 = vadd.f32 0.0, %v8654
        %v8656 = vpop.f32.mrf.mxu0
        %v8657 = vadd.f32 0.0, %v8656
        %8658 = vmatmul.bf16.gmra.mxu0 %v8593
        %v8659 = vpop.f32.mrf.mxu0
        %v8660 = vadd.f32 0.0, %v8659
        %v8661 = vpop.f32.mrf.mxu0
        %v8662 = vadd.f32 0.0, %v8661
        %8663 = vmatmul.bf16.gmra.mxu0 %v8596
        %v8664 = vpop.f32.mrf.mxu0
        %v8665 = vadd.f32 0.0, %v8664
        %v8666 = vpop.f32.mrf.mxu0
        %v8667 = vadd.f32 0.0, %v8666
        %8668 = vmatmul.bf16.gmra.mxu0 %v8599
        %v8669 = vpop.f32.mrf.mxu0
        %v8670 = vadd.f32 0.0, %v8669
        %v8671 = vpop.f32.mrf.mxu0
        %v8672 = vadd.f32 0.0, %v8671
        %8673 = vmatmul.bf16.gmra.mxu0 %v8602
        %v8674 = vpop.f32.mrf.mxu0
        %v8675 = vadd.f32 0.0, %v8674
        %v8676 = vpop.f32.mrf.mxu0
        %v8677 = vadd.f32 0.0, %v8676
        %8678 = vmatmul.bf16.gmra.mxu0 %v8605
        %v8679 = vpop.f32.mrf.mxu0
        %v8680 = vadd.f32 0.0, %v8679
        %v8681 = vpop.f32.mrf.mxu0
        %v8682 = vadd.f32 0.0, %v8681
        %8683 = vmatmul.bf16.gmra.mxu0 %v8608
        %v8684 = vpop.f32.mrf.mxu0
        %v8685 = vadd.f32 0.0, %v8684
        %v8686 = vpop.f32.mrf.mxu0
        %v8687 = vadd.f32 0.0, %v8686
        %8688 = vmatmul.bf16.gmra.mxu0 %v8611
        %v8689 = vpop.f32.mrf.mxu0
        %v8690 = vadd.f32 0.0, %v8689
        %v8691 = vpop.f32.mrf.mxu0
        %v8692 = vadd.f32 0.0, %v8691
        %8693 = vmatmul.bf16.gmra.mxu0 %v8614
        %v8694 = vpop.f32.mrf.mxu0
        %v8695 = vadd.f32 0.0, %v8694
        %v8696 = vpop.f32.mrf.mxu0
        %v8697 = vadd.f32 0.0, %v8696
        %8698 = vmatmul.bf16.gmra.mxu0 %v8617
        %v8699 = vpop.f32.mrf.mxu0
        %v8700 = vadd.f32 0.0, %v8699
        %v8701 = vpop.f32.mrf.mxu0
        %v8702 = vadd.f32 0.0, %v8701
        %8703 = vmatmul.bf16.gmra.mxu0 %v8620
        %v8704 = vpop.f32.mrf.mxu0
        %v8705 = vadd.f32 0.0, %v8704
        %v8706 = vpop.f32.mrf.mxu0
        %v8707 = vadd.f32 0.0, %v8706
        %8708 = vmatmul.bf16.gmra.mxu0 %v8623
        %v8709 = vpop.f32.mrf.mxu0
        %v8710 = vadd.f32 0.0, %v8709
        %v8711 = vpop.f32.mrf.mxu0
        %v8712 = vadd.f32 0.0, %v8711
        %8713 = vdwg.mxu0
        %v8714 = vadd.f32 %v8282, %v8635
        %v8715 = vadd.f32 %v8284, %v8637
        %v8716 = vadd.f32 %v8287, %v8640
        %v8717 = vadd.f32 %v8289, %v8642
        %v8718 = vadd.f32 %v8292, %v8645
        %v8719 = vadd.f32 %v8294, %v8647
        %v8720 = vadd.f32 %v8297, %v8650
        %v8721 = vadd.f32 %v8299, %v8652
        %v8722 = vadd.f32 %v8302, %v8655
        %v8723 = vadd.f32 %v8304, %v8657
        %v8724 = vadd.f32 %v8307, %v8660
        %v8725 = vadd.f32 %v8309, %v8662
        %v8726 = vadd.f32 %v8312, %v8665
        %v8727 = vadd.f32 %v8314, %v8667
        %v8728 = vadd.f32 %v8317, %v8670
        %v8729 = vadd.f32 %v8319, %v8672
        %v8730 = vadd.f32 %v8322, %v8675
        %v8731 = vadd.f32 %v8324, %v8677
        %v8732 = vadd.f32 %v8327, %v8680
        %v8733 = vadd.f32 %v8329, %v8682
        %v8734 = vadd.f32 %v8332, %v8685
        %v8735 = vadd.f32 %v8334, %v8687
        %v8736 = vadd.f32 %v8337, %v8690
        %v8737 = vadd.f32 %v8339, %v8692
        %v8738 = vadd.f32 %v8342, %v8695
        %v8739 = vadd.f32 %v8344, %v8697
        %v8740 = vadd.f32 %v8347, %v8700
        %v8741 = vadd.f32 %v8349, %v8702
        %v8742 = vadd.f32 %v8352, %v8705
        %v8743 = vadd.f32 %v8354, %v8707
        %v8744 = vadd.f32 %v8357, %v8710
        %v8745 = vadd.f32 %v8359, %v8712
        %v8746 = vld [vmem:[%s7396] sm:$0xf]
        %v8747 = vld [vmem:[%s7396 + $0x4] sm:$0xf]
        %v8748 = vld [vmem:[%s7396 + $0xc] sm:$0xf]
        %v8749 = vld [vmem:[%s7396 + $0x10] sm:$0xf]
        %v8750 = vld [vmem:[%s7396 + $0x18] sm:$0xf]
        %v8751 = vld [vmem:[%s7396 + $0x1c] sm:$0xf]
        %v8752 = vld [vmem:[%s7396 + $0x24] sm:$0xf]
        %v8753 = vld [vmem:[%s7396 + $0x28] sm:$0xf]
        %v8754 = vld [vmem:[%s7396 + $0x30] sm:$0xf]
        %v8755 = vld [vmem:[%s7396 + $0x34] sm:$0xf]
        %v8756 = vld [vmem:[%s7396 + $0x3c] sm:$0xf]
        %v8757 = vld [vmem:[%s7396 + $0x40] sm:$0xf]
        %v8758 = vld [vmem:[%s7396 + $0x48] sm:$0xf]
        %v8759 = vld [vmem:[%s7396 + $0x4c] sm:$0xf]
        %v8760 = vld [vmem:[%s7396 + $0x54] sm:$0xf]
        %v8761 = vld [vmem:[%s7396 + $0x58] sm:$0xf]
        %v8762 = vld [vmem:[%s7396 + $0x60] sm:$0xf]
        %v8763 = vld [vmem:[%s7396 + $0x64] sm:$0xf]
        %v8764 = vld [vmem:[%s7396 + $0x6c] sm:$0xf]
        %v8765 = vld [vmem:[%s7396 + $0x70] sm:$0xf]
        %v8766 = vld [vmem:[%s7396 + $0x78] sm:$0xf]
        %v8767 = vld [vmem:[%s7396 + $0x7c] sm:$0xf]
        %v8768 = vld [vmem:[%s7396 + $0x84] sm:$0xf]
        %v8769 = vld [vmem:[%s7396 + $0x88] sm:$0xf]
        %v8770 = vld [vmem:[%s7396 + $0x90] sm:$0xf]
        %v8771 = vld [vmem:[%s7396 + $0x94] sm:$0xf]
        %v8772 = vld [vmem:[%s7396 + $0x9c] sm:$0xf]
        %v8773 = vld [vmem:[%s7396 + $0xa0] sm:$0xf]
        %v8774 = vld [vmem:[%s7396 + $0xa8] sm:$0xf]
        %v8775 = vld [vmem:[%s7396 + $0xac] sm:$0xf]
        %v8776 = vld [vmem:[%s7396 + $0xb4] sm:$0xf]
        %v8777 = vld [vmem:[%s7396 + $0xb8] sm:$0xf]
        %v8778 = vld [vmem:[%s9 + $0x18] sm:$0xf]
        %v8779 = vld [vmem:[%s9 + $0x1c] sm:$0xf]
        %v8812 = vunpack.c.l.b16 %v8746
        %v8813 = vunpack.c.l.b16 %v8747
        %v8814 = vunpack.c.l.b16 %v8748
        %v8815 = vunpack.c.l.b16 %v8749
        %v8816 = vunpack.c.l.b16 %v8750
        %v8817 = vunpack.c.l.b16 %v8751
        %v8818 = vunpack.c.l.b16 %v8752
        %v8819 = vunpack.c.l.b16 %v8753
        %v8820 = vunpack.c.l.b16 %v8754
        %v8821 = vunpack.c.l.b16 %v8755
        %v8822 = vunpack.c.l.b16 %v8756
        %v8823 = vunpack.c.l.b16 %v8757
        %v8824 = vunpack.c.l.b16 %v8758
        %v8825 = vunpack.c.l.b16 %v8759
        %v8826 = vunpack.c.l.b16 %v8760
        %v8827 = vunpack.c.l.b16 %v8761
        %v8828 = vunpack.c.l.b16 %v8762
        %v8829 = vunpack.c.l.b16 %v8763
        %v8830 = vunpack.c.l.b16 %v8764
        %v8831 = vunpack.c.l.b16 %v8765
        %v8832 = vunpack.c.l.b16 %v8766
        %v8833 = vunpack.c.l.b16 %v8767
        %v8834 = vunpack.c.l.b16 %v8768
        %v8835 = vunpack.c.l.b16 %v8769
        %v8836 = vunpack.c.l.b16 %v8770
        %v8837 = vunpack.c.l.b16 %v8771
        %v8838 = vunpack.c.l.b16 %v8772
        %v8839 = vunpack.c.l.b16 %v8773
        %v8840 = vunpack.c.l.b16 %v8774
        %v8841 = vunpack.c.l.b16 %v8775
        %v8842 = vunpack.c.l.b16 %v8776
        %v8843 = vunpack.c.l.b16 %v8777
        %v8844 = vpack.c.b16 %v8813, %v8812
        %v8845 = vpack.c.b16 %v8815, %v8814
        %v8846 = vpack.c.b16 %v8817, %v8816
        %v8847 = vpack.c.b16 %v8819, %v8818
        %v8848 = vpack.c.b16 %v8821, %v8820
        %v8849 = vpack.c.b16 %v8823, %v8822
        %v8850 = vpack.c.b16 %v8825, %v8824
        %v8851 = vpack.c.b16 %v8827, %v8826
        %v8852 = vpack.c.b16 %v8829, %v8828
        %v8853 = vpack.c.b16 %v8831, %v8830
        %v8854 = vpack.c.b16 %v8833, %v8832
        %v8855 = vpack.c.b16 %v8835, %v8834
        %v8856 = vpack.c.b16 %v8837, %v8836
        %v8857 = vpack.c.b16 %v8839, %v8838
        %v8858 = vpack.c.b16 %v8841, %v8840
        %v8859 = vpack.c.b16 %v8843, %v8842
        %v8862 = vunpack.c.l.b16 %v8778
        %v8863 = vunpack.c.l.b16 %v8779
        %v8864 = vpack.c.b16 %v8863, %v8862
        %v8867 = vsel %vm6086, %v8844, 0
        %v8870 = vsel %vm6086, %v8845, 0
        %v8873 = vsel %vm6086, %v8846, 0
        %v8876 = vsel %vm6086, %v8847, 0
        %v8879 = vsel %vm6086, %v8848, 0
        %v8882 = vsel %vm6086, %v8849, 0
        %v8885 = vsel %vm6086, %v8850, 0
        %v8888 = vsel %vm6086, %v8851, 0
        %v8891 = vsel %vm6086, %v8852, 0
        %v8894 = vsel %vm6086, %v8853, 0
        %v8897 = vsel %vm6086, %v8854, 0
        %v8900 = vsel %vm6086, %v8855, 0
        %v8903 = vsel %vm6086, %v8856, 0
        %v8906 = vsel %vm6086, %v8857, 0
        %v8909 = vsel %vm6086, %v8858, 0
        %v8912 = vsel %vm6086, %v8859, 0
        %8914 = vmatpush.bf16.msra.mxu0 0
        %8915 = vmatpush.bf16.msra.mxu0 0
        %8916 = vmatpush.bf16.msra.mxu0 0
        %8917 = vmatpush.bf16.msra.mxu0 0
        %8918 = vmatpush.bf16.msra.mxu0 0
        %8919 = vmatpush.bf16.msra.mxu0 0
        %8920 = vmatpush.bf16.msra.mxu0 0
        %8921 = vmatpush.bf16.msra.mxu0 %v8864
        %8922 = vmatmul.bf16.gmra.mxu0 %v8867
        %v8923 = vpop.f32.mrf.mxu0
        %v8924 = vadd.f32 0.0, %v8923
        %v8925 = vpop.f32.mrf.mxu0
        %v8926 = vadd.f32 0.0, %v8925
        %8927 = vmatmul.bf16.gmra.mxu0 %v8870
        %v8928 = vpop.f32.mrf.mxu0
        %v8929 = vadd.f32 0.0, %v8928
        %v8930 = vpop.f32.mrf.mxu0
        %v8931 = vadd.f32 0.0, %v8930
        %8932 = vmatmul.bf16.gmra.mxu0 %v8873
        %v8933 = vpop.f32.mrf.mxu0
        %v8934 = vadd.f32 0.0, %v8933
        %v8935 = vpop.f32.mrf.mxu0
        %v8936 = vadd.f32 0.0, %v8935
        %8937 = vmatmul.bf16.gmra.mxu0 %v8876
        %v8938 = vpop.f32.mrf.mxu0
        %v8939 = vadd.f32 0.0, %v8938
        %v8940 = vpop.f32.mrf.mxu0
        %v8941 = vadd.f32 0.0, %v8940
        %8942 = vmatmul.bf16.gmra.mxu0 %v8879
        %v8943 = vpop.f32.mrf.mxu0
        %v8944 = vadd.f32 0.0, %v8943
        %v8945 = vpop.f32.mrf.mxu0
        %v8946 = vadd.f32 0.0, %v8945
        %8947 = vmatmul.bf16.gmra.mxu0 %v8882
        %v8948 = vpop.f32.mrf.mxu0
        %v8949 = vadd.f32 0.0, %v8948
        %v8950 = vpop.f32.mrf.mxu0
        %v8951 = vadd.f32 0.0, %v8950
        %8952 = vmatmul.bf16.gmra.mxu0 %v8885
        %v8953 = vpop.f32.mrf.mxu0
        %v8954 = vadd.f32 0.0, %v8953
        %v8955 = vpop.f32.mrf.mxu0
        %v8956 = vadd.f32 0.0, %v8955
        %8957 = vmatmul.bf16.gmra.mxu0 %v8888
        %v8958 = vpop.f32.mrf.mxu0
        %v8959 = vadd.f32 0.0, %v8958
        %v8960 = vpop.f32.mrf.mxu0
        %v8961 = vadd.f32 0.0, %v8960
        %8962 = vmatmul.bf16.gmra.mxu0 %v8891
        %v8963 = vpop.f32.mrf.mxu0
        %v8964 = vadd.f32 0.0, %v8963
        %v8965 = vpop.f32.mrf.mxu0
        %v8966 = vadd.f32 0.0, %v8965
        %8967 = vmatmul.bf16.gmra.mxu0 %v8894
        %v8968 = vpop.f32.mrf.mxu0
        %v8969 = vadd.f32 0.0, %v8968
        %v8970 = vpop.f32.mrf.mxu0
        %v8971 = vadd.f32 0.0, %v8970
        %8972 = vmatmul.bf16.gmra.mxu0 %v8897
        %v8973 = vpop.f32.mrf.mxu0
        %v8974 = vadd.f32 0.0, %v8973
        %v8975 = vpop.f32.mrf.mxu0
        %v8976 = vadd.f32 0.0, %v8975
        %8977 = vmatmul.bf16.gmra.mxu0 %v8900
        %v8978 = vpop.f32.mrf.mxu0
        %v8979 = vadd.f32 0.0, %v8978
        %v8980 = vpop.f32.mrf.mxu0
        %v8981 = vadd.f32 0.0, %v8980
        %8982 = vmatmul.bf16.gmra.mxu0 %v8903
        %v8983 = vpop.f32.mrf.mxu0
        %v8984 = vadd.f32 0.0, %v8983
        %v8985 = vpop.f32.mrf.mxu0
        %v8986 = vadd.f32 0.0, %v8985
        %8987 = vmatmul.bf16.gmra.mxu0 %v8906
        %v8988 = vpop.f32.mrf.mxu0
        %v8989 = vadd.f32 0.0, %v8988
        %v8990 = vpop.f32.mrf.mxu0
        %v8991 = vadd.f32 0.0, %v8990
        %8992 = vmatmul.bf16.gmra.mxu0 %v8909
        %v8993 = vpop.f32.mrf.mxu0
        %v8994 = vadd.f32 0.0, %v8993
        %v8995 = vpop.f32.mrf.mxu0
        %v8996 = vadd.f32 0.0, %v8995
        %8997 = vmatmul.bf16.gmra.mxu0 %v8912
        %v8998 = vpop.f32.mrf.mxu0
        %v8999 = vadd.f32 0.0, %v8998
        %v9000 = vpop.f32.mrf.mxu0
        %v9001 = vadd.f32 0.0, %v9000
        %9002 = vdwg.mxu0
        %v9003 = vadd.f32 %v8714, %v8924
        %v9004 = vadd.f32 %v8715, %v8926
        %v9005 = vadd.f32 %v8716, %v8929
        %v9006 = vadd.f32 %v8717, %v8931
        %v9007 = vadd.f32 %v8718, %v8934
        %v9008 = vadd.f32 %v8719, %v8936
        %v9009 = vadd.f32 %v8720, %v8939
        %v9010 = vadd.f32 %v8721, %v8941
        %v9011 = vadd.f32 %v8722, %v8944
        %v9012 = vadd.f32 %v8723, %v8946
        %v9013 = vadd.f32 %v8724, %v8949
        %v9014 = vadd.f32 %v8725, %v8951
        %v9015 = vadd.f32 %v8726, %v8954
        %v9016 = vadd.f32 %v8727, %v8956
        %v9017 = vadd.f32 %v8728, %v8959
        %v9018 = vadd.f32 %v8729, %v8961
        %v9019 = vadd.f32 %v8730, %v8964
        %v9020 = vadd.f32 %v8731, %v8966
        %v9021 = vadd.f32 %v8732, %v8969
        %v9022 = vadd.f32 %v8733, %v8971
        %v9023 = vadd.f32 %v8734, %v8974
        %v9024 = vadd.f32 %v8735, %v8976
        %v9025 = vadd.f32 %v8736, %v8979
        %v9026 = vadd.f32 %v8737, %v8981
        %v9027 = vadd.f32 %v8738, %v8984
        %v9028 = vadd.f32 %v8739, %v8986
        %v9029 = vadd.f32 %v8740, %v8989
        %v9030 = vadd.f32 %v8741, %v8991
        %v9031 = vadd.f32 %v8742, %v8994
        %v9032 = vadd.f32 %v8743, %v8996
        %v9033 = vadd.f32 %v8744, %v8999
        %v9034 = vadd.f32 %v8745, %v9001
        %v9035 = vld [vmem:[%s7396] sm:$0xf]
        %v9036 = vld [vmem:[%s7396 + $0x4] sm:$0xf]
        %v9037 = vld [vmem:[%s7396 + $0x8] sm:$0x1]
        %v9038 = vld [vmem:[%s7396 + $0xc] sm:$0xf]
        %v9039 = vld [vmem:[%s7396 + $0x10] sm:$0xf]
        %v9040 = vld [vmem:[%s7396 + $0x14] sm:$0x1]
        %v9041 = vld [vmem:[%s7396 + $0x18] sm:$0xf]
        %v9042 = vld [vmem:[%s7396 + $0x1c] sm:$0xf]
        %v9043 = vld [vmem:[%s7396 + $0x20] sm:$0x1]
        %v9044 = vld [vmem:[%s7396 + $0x24] sm:$0xf]
        %v9045 = vld [vmem:[%s7396 + $0x28] sm:$0xf]
        %v9046 = vld [vmem:[%s7396 + $0x2c] sm:$0x1]
        %v9047 = vld [vmem:[%s7396 + $0x30] sm:$0xf]
        %v9048 = vld [vmem:[%s7396 + $0x34] sm:$0xf]
        %v9049 = vld [vmem:[%s7396 + $0x38] sm:$0x1]
        %v9050 = vld [vmem:[%s7396 + $0x3c] sm:$0xf]
        %v9051 = vld [vmem:[%s7396 + $0x40] sm:$0xf]
        %v9052 = vld [vmem:[%s7396 + $0x44] sm:$0x1]
        %v9053 = vld [vmem:[%s7396 + $0x48] sm:$0xf]
        %v9054 = vld [vmem:[%s7396 + $0x4c] sm:$0xf]
        %v9055 = vld [vmem:[%s7396 + $0x50] sm:$0x1]
        %v9056 = vld [vmem:[%s7396 + $0x54] sm:$0xf]
        %v9057 = vld [vmem:[%s7396 + $0x58] sm:$0xf]
        %v9058 = vld [vmem:[%s7396 + $0x5c] sm:$0x1]
        %v9059 = vld [vmem:[%s7396 + $0x60] sm:$0xf]
        %v9060 = vld [vmem:[%s7396 + $0x64] sm:$0xf]
        %v9061 = vld [vmem:[%s7396 + $0x68] sm:$0x1]
        %v9062 = vld [vmem:[%s7396 + $0x6c] sm:$0xf]
        %v9063 = vld [vmem:[%s7396 + $0x70] sm:$0xf]
        %v9064 = vld [vmem:[%s7396 + $0x74] sm:$0x1]
        %v9065 = vld [vmem:[%s7396 + $0x78] sm:$0xf]
        %v9066 = vld [vmem:[%s7396 + $0x7c] sm:$0xf]
        %v9067 = vld [vmem:[%s7396 + $0x80] sm:$0x1]
        %v9068 = vld [vmem:[%s7396 + $0x84] sm:$0xf]
        %v9069 = vld [vmem:[%s7396 + $0x88] sm:$0xf]
        %v9070 = vld [vmem:[%s7396 + $0x8c] sm:$0x1]
        %v9071 = vld [vmem:[%s7396 + $0x90] sm:$0xf]
        %v9072 = vld [vmem:[%s7396 + $0x94] sm:$0xf]
        %v9073 = vld [vmem:[%s7396 + $0x98] sm:$0x1]
        %v9074 = vld [vmem:[%s7396 + $0x9c] sm:$0xf]
        %v9075 = vld [vmem:[%s7396 + $0xa0] sm:$0xf]
        %v9076 = vld [vmem:[%s7396 + $0xa4] sm:$0x1]
        %v9077 = vld [vmem:[%s7396 + $0xa8] sm:$0xf]
        %v9078 = vld [vmem:[%s7396 + $0xac] sm:$0xf]
        %v9079 = vld [vmem:[%s7396 + $0xb0] sm:$0x1]
        %v9080 = vld [vmem:[%s7396 + $0xb4] sm:$0xf]
        %v9081 = vld [vmem:[%s7396 + $0xb8] sm:$0xf]
        %v9082 = vld [vmem:[%s7396 + $0xbc] sm:$0x1]
        %v9084 = vshrl.u32 %v9035, 16
        %v9086 = vrot.slane %v9084, 4
        %v9087 = vshll.u32 %v9035, 16
        %v9089 = vrot.slane %v9087, 5
        %v9090 = vor.u32 %v9086, %v9089
        %v9091 = vrot.slane %v9090, 4
        %v9093 = vshll.u32 %v9036, 16
        %v9095 = vrot.slane %v9093, 5
        %v9096 = vsel %vm2196, %v9091, %v9095
        %v9097 = vshrl.u32 %v9036, 16
        %v9099 = vrot.slane %v9097, 4
        %v9100 = vor.u32 %v9099, %v9095
        %v9101 = vrot.slane %v9100, 4
        %v9103 = vshll.u32 %v9037, 16
        %v9105 = vrot.slane %v9103, 5
        %v9106 = vsel %vm2196, %v9101, %v9105
        %v9108 = vshrl.u32 %v9038, 16
        %v9110 = vrot.slane %v9108, 4
        %v9111 = vshll.u32 %v9038, 16
        %v9113 = vrot.slane %v9111, 5
        %v9114 = vor.u32 %v9110, %v9113
        %v9115 = vrot.slane %v9114, 4
        %v9117 = vshll.u32 %v9039, 16
        %v9119 = vrot.slane %v9117, 5
        %v9120 = vsel %vm2196, %v9115, %v9119
        %v9121 = vshrl.u32 %v9039, 16
        %v9123 = vrot.slane %v9121, 4
        %v9124 = vor.u32 %v9123, %v9119
        %v9125 = vrot.slane %v9124, 4
        %v9127 = vshll.u32 %v9040, 16
        %v9129 = vrot.slane %v9127, 5
        %v9130 = vsel %vm2196, %v9125, %v9129
        %v9132 = vshrl.u32 %v9041, 16
        %v9134 = vrot.slane %v9132, 4
        %v9135 = vshll.u32 %v9041, 16
        %v9137 = vrot.slane %v9135, 5
        %v9138 = vor.u32 %v9134, %v9137
        %v9139 = vrot.slane %v9138, 4
        %v9141 = vshll.u32 %v9042, 16
        %v9143 = vrot.slane %v9141, 5
        %v9144 = vsel %vm2196, %v9139, %v9143
        %v9145 = vshrl.u32 %v9042, 16
        %v9147 = vrot.slane %v9145, 4
        %v9148 = vor.u32 %v9147, %v9143
        %v9149 = vrot.slane %v9148, 4
        %v9151 = vshll.u32 %v9043, 16
        %v9153 = vrot.slane %v9151, 5
        %v9154 = vsel %vm2196, %v9149, %v9153
        %v9156 = vshrl.u32 %v9044, 16
        %v9158 = vrot.slane %v9156, 4
        %v9159 = vshll.u32 %v9044, 16
        %v9161 = vrot.slane %v9159, 5
        %v9162 = vor.u32 %v9158, %v9161
        %v9163 = vrot.slane %v9162, 4
        %v9165 = vshll.u32 %v9045, 16
        %v9167 = vrot.slane %v9165, 5
        %v9168 = vsel %vm2196, %v9163, %v9167
        %v9169 = vshrl.u32 %v9045, 16
        %v9171 = vrot.slane %v9169, 4
        %v9172 = vor.u32 %v9171, %v9167
        %v9173 = vrot.slane %v9172, 4
        %v9175 = vshll.u32 %v9046, 16
        %v9177 = vrot.slane %v9175, 5
        %v9178 = vsel %vm2196, %v9173, %v9177
        %v9180 = vshrl.u32 %v9047, 16
        %v9182 = vrot.slane %v9180, 4
        %v9183 = vshll.u32 %v9047, 16
        %v9185 = vrot.slane %v9183, 5
        %v9186 = vor.u32 %v9182, %v9185
        %v9187 = vrot.slane %v9186, 4
        %v9189 = vshll.u32 %v9048, 16
        %v9191 = vrot.slane %v9189, 5
        %v9192 = vsel %vm2196, %v9187, %v9191
        %v9193 = vshrl.u32 %v9048, 16
        %v9195 = vrot.slane %v9193, 4
        %v9196 = vor.u32 %v9195, %v9191
        %v9197 = vrot.slane %v9196, 4
        %v9199 = vshll.u32 %v9049, 16
        %v9201 = vrot.slane %v9199, 5
        %v9202 = vsel %vm2196, %v9197, %v9201
        %v9204 = vshrl.u32 %v9050, 16
        %v9206 = vrot.slane %v9204, 4
        %v9207 = vshll.u32 %v9050, 16
        %v9209 = vrot.slane %v9207, 5
        %v9210 = vor.u32 %v9206, %v9209
        %v9211 = vrot.slane %v9210, 4
        %v9213 = vshll.u32 %v9051, 16
        %v9215 = vrot.slane %v9213, 5
        %v9216 = vsel %vm2196, %v9211, %v9215
        %v9217 = vshrl.u32 %v9051, 16
        %v9219 = vrot.slane %v9217, 4
        %v9220 = vor.u32 %v9219, %v9215
        %v9221 = vrot.slane %v9220, 4
        %v9223 = vshll.u32 %v9052, 16
        %v9225 = vrot.slane %v9223, 5
        %v9226 = vsel %vm2196, %v9221, %v9225
        %v9228 = vshrl.u32 %v9053, 16
        %v9230 = vrot.slane %v9228, 4
        %v9231 = vshll.u32 %v9053, 16
        %v9233 = vrot.slane %v9231, 5
        %v9234 = vor.u32 %v9230, %v9233
        %v9235 = vrot.slane %v9234, 4
        %v9237 = vshll.u32 %v9054, 16
        %v9239 = vrot.slane %v9237, 5
        %v9240 = vsel %vm2196, %v9235, %v9239
        %v9241 = vshrl.u32 %v9054, 16
        %v9243 = vrot.slane %v9241, 4
        %v9244 = vor.u32 %v9243, %v9239
        %v9245 = vrot.slane %v9244, 4
        %v9247 = vshll.u32 %v9055, 16
        %v9249 = vrot.slane %v9247, 5
        %v9250 = vsel %vm2196, %v9245, %v9249
        %v9252 = vshrl.u32 %v9056, 16
        %v9254 = vrot.slane %v9252, 4
        %v9255 = vshll.u32 %v9056, 16
        %v9257 = vrot.slane %v9255, 5
        %v9258 = vor.u32 %v9254, %v9257
        %v9259 = vrot.slane %v9258, 4
        %v9261 = vshll.u32 %v9057, 16
        %v9263 = vrot.slane %v9261, 5
        %v9264 = vsel %vm2196, %v9259, %v9263
        %v9265 = vshrl.u32 %v9057, 16
        %v9267 = vrot.slane %v9265, 4
        %v9268 = vor.u32 %v9267, %v9263
        %v9269 = vrot.slane %v9268, 4
        %v9271 = vshll.u32 %v9058, 16
        %v9273 = vrot.slane %v9271, 5
        %v9274 = vsel %vm2196, %v9269, %v9273
        %v9276 = vshrl.u32 %v9059, 16
        %v9278 = vrot.slane %v9276, 4
        %v9279 = vshll.u32 %v9059, 16
        %v9281 = vrot.slane %v9279, 5
        %v9282 = vor.u32 %v9278, %v9281
        %v9283 = vrot.slane %v9282, 4
        %v9285 = vshll.u32 %v9060, 16
        %v9287 = vrot.slane %v9285, 5
        %v9288 = vsel %vm2196, %v9283, %v9287
        %v9289 = vshrl.u32 %v9060, 16
        %v9291 = vrot.slane %v9289, 4
        %v9292 = vor.u32 %v9291, %v9287
        %v9293 = vrot.slane %v9292, 4
        %v9295 = vshll.u32 %v9061, 16
        %v9297 = vrot.slane %v9295, 5
        %v9298 = vsel %vm2196, %v9293, %v9297
        %v9300 = vshrl.u32 %v9062, 16
        %v9302 = vrot.slane %v9300, 4
        %v9303 = vshll.u32 %v9062, 16
        %v9305 = vrot.slane %v9303, 5
        %v9306 = vor.u32 %v9302, %v9305
        %v9307 = vrot.slane %v9306, 4
        %v9309 = vshll.u32 %v9063, 16
        %v9311 = vrot.slane %v9309, 5
        %v9312 = vsel %vm2196, %v9307, %v9311
        %v9313 = vshrl.u32 %v9063, 16
        %v9315 = vrot.slane %v9313, 4
        %v9316 = vor.u32 %v9315, %v9311
        %v9317 = vrot.slane %v9316, 4
        %v9319 = vshll.u32 %v9064, 16
        %v9321 = vrot.slane %v9319, 5
        %v9322 = vsel %vm2196, %v9317, %v9321
        %v9324 = vshrl.u32 %v9065, 16
        %v9326 = vrot.slane %v9324, 4
        %v9327 = vshll.u32 %v9065, 16
        %v9329 = vrot.slane %v9327, 5
        %v9330 = vor.u32 %v9326, %v9329
        %v9331 = vrot.slane %v9330, 4
        %v9333 = vshll.u32 %v9066, 16
        %v9335 = vrot.slane %v9333, 5
        %v9336 = vsel %vm2196, %v9331, %v9335
        %v9337 = vshrl.u32 %v9066, 16
        %v9339 = vrot.slane %v9337, 4
        %v9340 = vor.u32 %v9339, %v9335
        %v9341 = vrot.slane %v9340, 4
        %v9343 = vshll.u32 %v9067, 16
        %v9345 = vrot.slane %v9343, 5
        %v9346 = vsel %vm2196, %v9341, %v9345
        %v9348 = vshrl.u32 %v9068, 16
        %v9350 = vrot.slane %v9348, 4
        %v9351 = vshll.u32 %v9068, 16
        %v9353 = vrot.slane %v9351, 5
        %v9354 = vor.u32 %v9350, %v9353
        %v9355 = vrot.slane %v9354, 4
        %v9357 = vshll.u32 %v9069, 16
        %v9359 = vrot.slane %v9357, 5
        %v9360 = vsel %vm2196, %v9355, %v9359
        %v9361 = vshrl.u32 %v9069, 16
        %v9363 = vrot.slane %v9361, 4
        %v9364 = vor.u32 %v9363, %v9359
        %v9365 = vrot.slane %v9364, 4
        %v9367 = vshll.u32 %v9070, 16
        %v9369 = vrot.slane %v9367, 5
        %v9370 = vsel %vm2196, %v9365, %v9369
        %v9372 = vshrl.u32 %v9071, 16
        %v9374 = vrot.slane %v9372, 4
        %v9375 = vshll.u32 %v9071, 16
        %v9377 = vrot.slane %v9375, 5
        %v9378 = vor.u32 %v9374, %v9377
        %v9379 = vrot.slane %v9378, 4
        %v9381 = vshll.u32 %v9072, 16
        %v9383 = vrot.slane %v9381, 5
        %v9384 = vsel %vm2196, %v9379, %v9383
        %v9385 = vshrl.u32 %v9072, 16
        %v9387 = vrot.slane %v9385, 4
        %v9388 = vor.u32 %v9387, %v9383
        %v9389 = vrot.slane %v9388, 4
        %v9391 = vshll.u32 %v9073, 16
        %v9393 = vrot.slane %v9391, 5
        %v9394 = vsel %vm2196, %v9389, %v9393
        %v9396 = vshrl.u32 %v9074, 16
        %v9398 = vrot.slane %v9396, 4
        %v9399 = vshll.u32 %v9074, 16
        %v9401 = vrot.slane %v9399, 5
        %v9402 = vor.u32 %v9398, %v9401
        %v9403 = vrot.slane %v9402, 4
        %v9405 = vshll.u32 %v9075, 16
        %v9407 = vrot.slane %v9405, 5
        %v9408 = vsel %vm2196, %v9403, %v9407
        %v9409 = vshrl.u32 %v9075, 16
        %v9411 = vrot.slane %v9409, 4
        %v9412 = vor.u32 %v9411, %v9407
        %v9413 = vrot.slane %v9412, 4
        %v9415 = vshll.u32 %v9076, 16
        %v9417 = vrot.slane %v9415, 5
        %v9418 = vsel %vm2196, %v9413, %v9417
        %v9420 = vshrl.u32 %v9077, 16
        %v9422 = vrot.slane %v9420, 4
        %v9423 = vshll.u32 %v9077, 16
        %v9425 = vrot.slane %v9423, 5
        %v9426 = vor.u32 %v9422, %v9425
        %v9427 = vrot.slane %v9426, 4
        %v9429 = vshll.u32 %v9078, 16
        %v9431 = vrot.slane %v9429, 5
        %v9432 = vsel %vm2196, %v9427, %v9431
        %v9433 = vshrl.u32 %v9078, 16
        %v9435 = vrot.slane %v9433, 4
        %v9436 = vor.u32 %v9435, %v9431
        %v9437 = vrot.slane %v9436, 4
        %v9439 = vshll.u32 %v9079, 16
        %v9441 = vrot.slane %v9439, 5
        %v9442 = vsel %vm2196, %v9437, %v9441
        %v9444 = vshrl.u32 %v9080, 16
        %v9446 = vrot.slane %v9444, 4
        %v9447 = vshll.u32 %v9080, 16
        %v9449 = vrot.slane %v9447, 5
        %v9450 = vor.u32 %v9446, %v9449
        %v9451 = vrot.slane %v9450, 4
        %v9453 = vshll.u32 %v9081, 16
        %v9455 = vrot.slane %v9453, 5
        %v9456 = vsel %vm2196, %v9451, %v9455
        %v9457 = vshrl.u32 %v9081, 16
        %v9459 = vrot.slane %v9457, 4
        %v9460 = vor.u32 %v9459, %v9455
        %v9461 = vrot.slane %v9460, 4
        %v9463 = vshll.u32 %v9082, 16
        %v9465 = vrot.slane %v9463, 5
        %v9466 = vsel %vm2196, %v9461, %v9465
        %v9467 = vld [vmem:[%s9 + $0x20] sm:$0xf]
        %v9468 = vld [vmem:[%s9 + $0x24] sm:$0xf]
        %v9469 = vunpack.c.l.b16 %v9096
        %v9470 = vunpack.c.l.b16 %v9106
        %v9471 = vunpack.c.l.b16 %v9120
        %v9472 = vunpack.c.l.b16 %v9130
        %v9473 = vunpack.c.l.b16 %v9144
        %v9474 = vunpack.c.l.b16 %v9154
        %v9475 = vunpack.c.l.b16 %v9168
        %v9476 = vunpack.c.l.b16 %v9178
        %v9477 = vunpack.c.l.b16 %v9192
        %v9478 = vunpack.c.l.b16 %v9202
        %v9479 = vunpack.c.l.b16 %v9216
        %v9480 = vunpack.c.l.b16 %v9226
        %v9481 = vunpack.c.l.b16 %v9240
        %v9482 = vunpack.c.l.b16 %v9250
        %v9483 = vunpack.c.l.b16 %v9264
        %v9484 = vunpack.c.l.b16 %v9274
        %v9485 = vunpack.c.l.b16 %v9288
        %v9486 = vunpack.c.l.b16 %v9298
        %v9487 = vunpack.c.l.b16 %v9312
        %v9488 = vunpack.c.l.b16 %v9322
        %v9489 = vunpack.c.l.b16 %v9336
        %v9490 = vunpack.c.l.b16 %v9346
        %v9491 = vunpack.c.l.b16 %v9360
        %v9492 = vunpack.c.l.b16 %v9370
        %v9493 = vunpack.c.l.b16 %v9384
        %v9494 = vunpack.c.l.b16 %v9394
        %v9495 = vunpack.c.l.b16 %v9408
        %v9496 = vunpack.c.l.b16 %v9418
        %v9497 = vunpack.c.l.b16 %v9432
        %v9498 = vunpack.c.l.b16 %v9442
        %v9499 = vunpack.c.l.b16 %v9456
        %v9500 = vunpack.c.l.b16 %v9466
        %v9501 = vpack.c.b16 %v9470, %v9469
        %v9502 = vpack.c.b16 %v9472, %v9471
        %v9503 = vpack.c.b16 %v9474, %v9473
        %v9504 = vpack.c.b16 %v9476, %v9475
        %v9505 = vpack.c.b16 %v9478, %v9477
        %v9506 = vpack.c.b16 %v9480, %v9479
        %v9507 = vpack.c.b16 %v9482, %v9481
        %v9508 = vpack.c.b16 %v9484, %v9483
        %v9509 = vpack.c.b16 %v9486, %v9485
        %v9510 = vpack.c.b16 %v9488, %v9487
        %v9511 = vpack.c.b16 %v9490, %v9489
        %v9512 = vpack.c.b16 %v9492, %v9491
        %v9513 = vpack.c.b16 %v9494, %v9493
        %v9514 = vpack.c.b16 %v9496, %v9495
        %v9515 = vpack.c.b16 %v9498, %v9497
        %v9516 = vpack.c.b16 %v9500, %v9499
        %v9519 = vunpack.c.l.b16 %v9467
        %v9520 = vunpack.c.l.b16 %v9468
        %v9521 = vpack.c.b16 %v9520, %v9519
        %v9524 = vsel %vm6086, %v9501, 0
        %v9527 = vsel %vm6086, %v9502, 0
        %v9530 = vsel %vm6086, %v9503, 0
        %v9533 = vsel %vm6086, %v9504, 0
        %v9536 = vsel %vm6086, %v9505, 0
        %v9539 = vsel %vm6086, %v9506, 0
        %v9542 = vsel %vm6086, %v9507, 0
        %v9545 = vsel %vm6086, %v9508, 0
        %v9548 = vsel %vm6086, %v9509, 0
        %v9551 = vsel %vm6086, %v9510, 0
        %v9554 = vsel %vm6086, %v9511, 0
        %v9557 = vsel %vm6086, %v9512, 0
        %v9560 = vsel %vm6086, %v9513, 0
        %v9563 = vsel %vm6086, %v9514, 0
        %v9566 = vsel %vm6086, %v9515, 0
        %v9569 = vsel %vm6086, %v9516, 0
        %9571 = vmatpush.bf16.msra.mxu0 0
        %9572 = vmatpush.bf16.msra.mxu0 0
        %9573 = vmatpush.bf16.msra.mxu0 0
        %9574 = vmatpush.bf16.msra.mxu0 0
        %9575 = vmatpush.bf16.msra.mxu0 0
        %9576 = vmatpush.bf16.msra.mxu0 0
        %9577 = vmatpush.bf16.msra.mxu0 0
        %9578 = vmatpush.bf16.msra.mxu0 %v9521
        %9579 = vmatmul.bf16.gmra.mxu0 %v9524
        %v9580 = vpop.f32.mrf.mxu0
        %v9581 = vadd.f32 0.0, %v9580
        %v9582 = vpop.f32.mrf.mxu0
        %v9583 = vadd.f32 0.0, %v9582
        %9584 = vmatmul.bf16.gmra.mxu0 %v9527
        %v9585 = vpop.f32.mrf.mxu0
        %v9586 = vadd.f32 0.0, %v9585
        %v9587 = vpop.f32.mrf.mxu0
        %v9588 = vadd.f32 0.0, %v9587
        %9589 = vmatmul.bf16.gmra.mxu0 %v9530
        %v9590 = vpop.f32.mrf.mxu0
        %v9591 = vadd.f32 0.0, %v9590
        %v9592 = vpop.f32.mrf.mxu0
        %v9593 = vadd.f32 0.0, %v9592
        %9594 = vmatmul.bf16.gmra.mxu0 %v9533
        %v9595 = vpop.f32.mrf.mxu0
        %v9596 = vadd.f32 0.0, %v9595
        %v9597 = vpop.f32.mrf.mxu0
        %v9598 = vadd.f32 0.0, %v9597
        %9599 = vmatmul.bf16.gmra.mxu0 %v9536
        %v9600 = vpop.f32.mrf.mxu0
        %v9601 = vadd.f32 0.0, %v9600
        %v9602 = vpop.f32.mrf.mxu0
        %v9603 = vadd.f32 0.0, %v9602
        %9604 = vmatmul.bf16.gmra.mxu0 %v9539
        %v9605 = vpop.f32.mrf.mxu0
        %v9606 = vadd.f32 0.0, %v9605
        %v9607 = vpop.f32.mrf.mxu0
        %v9608 = vadd.f32 0.0, %v9607
        %9609 = vmatmul.bf16.gmra.mxu0 %v9542
        %v9610 = vpop.f32.mrf.mxu0
        %v9611 = vadd.f32 0.0, %v9610
        %v9612 = vpop.f32.mrf.mxu0
        %v9613 = vadd.f32 0.0, %v9612
        %9614 = vmatmul.bf16.gmra.mxu0 %v9545
        %v9615 = vpop.f32.mrf.mxu0
        %v9616 = vadd.f32 0.0, %v9615
        %v9617 = vpop.f32.mrf.mxu0
        %v9618 = vadd.f32 0.0, %v9617
        %9619 = vmatmul.bf16.gmra.mxu0 %v9548
        %v9620 = vpop.f32.mrf.mxu0
        %v9621 = vadd.f32 0.0, %v9620
        %v9622 = vpop.f32.mrf.mxu0
        %v9623 = vadd.f32 0.0, %v9622
        %9624 = vmatmul.bf16.gmra.mxu0 %v9551
        %v9625 = vpop.f32.mrf.mxu0
        %v9626 = vadd.f32 0.0, %v9625
        %v9627 = vpop.f32.mrf.mxu0
        %v9628 = vadd.f32 0.0, %v9627
        %9629 = vmatmul.bf16.gmra.mxu0 %v9554
        %v9630 = vpop.f32.mrf.mxu0
        %v9631 = vadd.f32 0.0, %v9630
        %v9632 = vpop.f32.mrf.mxu0
        %v9633 = vadd.f32 0.0, %v9632
        %9634 = vmatmul.bf16.gmra.mxu0 %v9557
        %v9635 = vpop.f32.mrf.mxu0
        %v9636 = vadd.f32 0.0, %v9635
        %v9637 = vpop.f32.mrf.mxu0
        %v9638 = vadd.f32 0.0, %v9637
        %9639 = vmatmul.bf16.gmra.mxu0 %v9560
        %v9640 = vpop.f32.mrf.mxu0
        %v9641 = vadd.f32 0.0, %v9640
        %v9642 = vpop.f32.mrf.mxu0
        %v9643 = vadd.f32 0.0, %v9642
        %9644 = vmatmul.bf16.gmra.mxu0 %v9563
        %v9645 = vpop.f32.mrf.mxu0
        %v9646 = vadd.f32 0.0, %v9645
        %v9647 = vpop.f32.mrf.mxu0
        %v9648 = vadd.f32 0.0, %v9647
        %9649 = vmatmul.bf16.gmra.mxu0 %v9566
        %v9650 = vpop.f32.mrf.mxu0
        %v9651 = vadd.f32 0.0, %v9650
        %v9652 = vpop.f32.mrf.mxu0
        %v9653 = vadd.f32 0.0, %v9652
        %9654 = vmatmul.bf16.gmra.mxu0 %v9569
        %v9655 = vpop.f32.mrf.mxu0
        %v9656 = vadd.f32 0.0, %v9655
        %v9657 = vpop.f32.mrf.mxu0
        %v9658 = vadd.f32 0.0, %v9657
        %9659 = vdwg.mxu0
        %v9660 = vadd.f32 %v9003, %v9581
        %v9661 = vadd.f32 %v9004, %v9583
        %v9662 = vadd.f32 %v9005, %v9586
        %v9663 = vadd.f32 %v9006, %v9588
        %v9664 = vadd.f32 %v9007, %v9591
        %v9665 = vadd.f32 %v9008, %v9593
        %v9666 = vadd.f32 %v9009, %v9596
        %v9667 = vadd.f32 %v9010, %v9598
        %v9668 = vadd.f32 %v9011, %v9601
        %v9669 = vadd.f32 %v9012, %v9603
        %v9670 = vadd.f32 %v9013, %v9606
        %v9671 = vadd.f32 %v9014, %v9608
        %v9672 = vadd.f32 %v9015, %v9611
        %v9673 = vadd.f32 %v9016, %v9613
        %v9674 = vadd.f32 %v9017, %v9616
        %v9675 = vadd.f32 %v9018, %v9618
        %v9676 = vadd.f32 %v9019, %v9621
        %v9677 = vadd.f32 %v9020, %v9623
        %v9678 = vadd.f32 %v9021, %v9626
        %v9679 = vadd.f32 %v9022, %v9628
        %v9680 = vadd.f32 %v9023, %v9631
        %v9681 = vadd.f32 %v9024, %v9633
        %v9682 = vadd.f32 %v9025, %v9636
        %v9683 = vadd.f32 %v9026, %v9638
        %v9684 = vadd.f32 %v9027, %v9641
        %v9685 = vadd.f32 %v9028, %v9643
        %v9686 = vadd.f32 %v9029, %v9646
        %v9687 = vadd.f32 %v9030, %v9648
        %v9688 = vadd.f32 %v9031, %v9651
        %v9689 = vadd.f32 %v9032, %v9653
        %v9690 = vadd.f32 %v9033, %v9656
        %v9691 = vadd.f32 %v9034, %v9658
        %v9692 = vld [vmem:[%s7396] sm:$0xe]
        %v9693 = vld [vmem:[%s7396 + $0xc] sm:$0xe]
        %v9694 = vld [vmem:[%s7396 + $0x18] sm:$0xe]
        %v9695 = vld [vmem:[%s7396 + $0x24] sm:$0xe]
        %v9696 = vld [vmem:[%s7396 + $0x30] sm:$0xe]
        %v9697 = vld [vmem:[%s7396 + $0x3c] sm:$0xe]
        %v9698 = vld [vmem:[%s7396 + $0x48] sm:$0xe]
        %v9699 = vld [vmem:[%s7396 + $0x54] sm:$0xe]
        %v9700 = vld [vmem:[%s7396 + $0x60] sm:$0xe]
        %v9701 = vld [vmem:[%s7396 + $0x6c] sm:$0xe]
        %v9702 = vld [vmem:[%s7396 + $0x78] sm:$0xe]
        %v9703 = vld [vmem:[%s7396 + $0x84] sm:$0xe]
        %v9704 = vld [vmem:[%s7396 + $0x90] sm:$0xe]
        %v9705 = vld [vmem:[%s7396 + $0x9c] sm:$0xe]
        %v9706 = vld [vmem:[%s7396 + $0xa8] sm:$0xe]
        %v9707 = vld [vmem:[%s7396 + $0xb4] sm:$0xe]
        %v9756 = vrot.slane %v9692, 5
        %v9757 = vrot.slane %v9756, 4
        %v9758 = vrot.slane %v9036, 5
        %v9759 = vsel %vm3041, %v9757, %v9758
        %v9760 = vrot.slane %v9758, 4
        %v9761 = vrot.slane %v9037, 5
        %v9762 = vsel %vm3041, %v9760, %v9761
        %v9763 = vrot.slane %v9693, 5
        %v9764 = vrot.slane %v9763, 4
        %v9765 = vrot.slane %v9039, 5
        %v9766 = vsel %vm3041, %v9764, %v9765
        %v9767 = vrot.slane %v9765, 4
        %v9768 = vrot.slane %v9040, 5
        %v9769 = vsel %vm3041, %v9767, %v9768
        %v9770 = vrot.slane %v9694, 5
        %v9771 = vrot.slane %v9770, 4
        %v9772 = vrot.slane %v9042, 5
        %v9773 = vsel %vm3041, %v9771, %v9772
        %v9774 = vrot.slane %v9772, 4
        %v9775 = vrot.slane %v9043, 5
        %v9776 = vsel %vm3041, %v9774, %v9775
        %v9777 = vrot.slane %v9695, 5
        %v9778 = vrot.slane %v9777, 4
        %v9779 = vrot.slane %v9045, 5
        %v9780 = vsel %vm3041, %v9778, %v9779
        %v9781 = vrot.slane %v9779, 4
        %v9782 = vrot.slane %v9046, 5
        %v9783 = vsel %vm3041, %v9781, %v9782
        %v9784 = vrot.slane %v9696, 5
        %v9785 = vrot.slane %v9784, 4
        %v9786 = vrot.slane %v9048, 5
        %v9787 = vsel %vm3041, %v9785, %v9786
        %v9788 = vrot.slane %v9786, 4
        %v9789 = vrot.slane %v9049, 5
        %v9790 = vsel %vm3041, %v9788, %v9789
        %v9791 = vrot.slane %v9697, 5
        %v9792 = vrot.slane %v9791, 4
        %v9793 = vrot.slane %v9051, 5
        %v9794 = vsel %vm3041, %v9792, %v9793
        %v9795 = vrot.slane %v9793, 4
        %v9796 = vrot.slane %v9052, 5
        %v9797 = vsel %vm3041, %v9795, %v9796
        %v9798 = vrot.slane %v9698, 5
        %v9799 = vrot.slane %v9798, 4
        %v9800 = vrot.slane %v9054, 5
        %v9801 = vsel %vm3041, %v9799, %v9800
        %v9802 = vrot.slane %v9800, 4
        %v9803 = vrot.slane %v9055, 5
        %v9804 = vsel %vm3041, %v9802, %v9803
        %v9805 = vrot.slane %v9699, 5
        %v9806 = vrot.slane %v9805, 4
        %v9807 = vrot.slane %v9057, 5
        %v9808 = vsel %vm3041, %v9806, %v9807
        %v9809 = vrot.slane %v9807, 4
        %v9810 = vrot.slane %v9058, 5
        %v9811 = vsel %vm3041, %v9809, %v9810
        %v9812 = vrot.slane %v9700, 5
        %v9813 = vrot.slane %v9812, 4
        %v9814 = vrot.slane %v9060, 5
        %v9815 = vsel %vm3041, %v9813, %v9814
        %v9816 = vrot.slane %v9814, 4
        %v9817 = vrot.slane %v9061, 5
        %v9818 = vsel %vm3041, %v9816, %v9817
        %v9819 = vrot.slane %v9701, 5
        %v9820 = vrot.slane %v9819, 4
        %v9821 = vrot.slane %v9063, 5
        %v9822 = vsel %vm3041, %v9820, %v9821
        %v9823 = vrot.slane %v9821, 4
        %v9824 = vrot.slane %v9064, 5
        %v9825 = vsel %vm3041, %v9823, %v9824
        %v9826 = vrot.slane %v9702, 5
        %v9827 = vrot.slane %v9826, 4
        %v9828 = vrot.slane %v9066, 5
        %v9829 = vsel %vm3041, %v9827, %v9828
        %v9830 = vrot.slane %v9828, 4
        %v9831 = vrot.slane %v9067, 5
        %v9832 = vsel %vm3041, %v9830, %v9831
        %v9833 = vrot.slane %v9703, 5
        %v9834 = vrot.slane %v9833, 4
        %v9835 = vrot.slane %v9069, 5
        %v9836 = vsel %vm3041, %v9834, %v9835
        %v9837 = vrot.slane %v9835, 4
        %v9838 = vrot.slane %v9070, 5
        %v9839 = vsel %vm3041, %v9837, %v9838
        %v9840 = vrot.slane %v9704, 5
        %v9841 = vrot.slane %v9840, 4
        %v9842 = vrot.slane %v9072, 5
        %v9843 = vsel %vm3041, %v9841, %v9842
        %v9844 = vrot.slane %v9842, 4
        %v9845 = vrot.slane %v9073, 5
        %v9846 = vsel %vm3041, %v9844, %v9845
        %v9847 = vrot.slane %v9705, 5
        %v9848 = vrot.slane %v9847, 4
        %v9849 = vrot.slane %v9075, 5
        %v9850 = vsel %vm3041, %v9848, %v9849
        %v9851 = vrot.slane %v9849, 4
        %v9852 = vrot.slane %v9076, 5
        %v9853 = vsel %vm3041, %v9851, %v9852
        %v9854 = vrot.slane %v9706, 5
        %v9855 = vrot.slane %v9854, 4
        %v9856 = vrot.slane %v9078, 5
        %v9857 = vsel %vm3041, %v9855, %v9856
        %v9858 = vrot.slane %v9856, 4
        %v9859 = vrot.slane %v9079, 5
        %v9860 = vsel %vm3041, %v9858, %v9859
        %v9861 = vrot.slane %v9707, 5
        %v9862 = vrot.slane %v9861, 4
        %v9863 = vrot.slane %v9081, 5
        %v9864 = vsel %vm3041, %v9862, %v9863
        %v9865 = vrot.slane %v9863, 4
        %v9866 = vrot.slane %v9082, 5
        %v9867 = vsel %vm3041, %v9865, %v9866
        %v9868 = vld [vmem:[%s9 + $0x28] sm:$0xf]
        %v9869 = vld [vmem:[%s9 + $0x2c] sm:$0xf]
        %v9870 = vunpack.c.l.b16 %v9759
        %v9871 = vunpack.c.l.b16 %v9762
        %v9872 = vunpack.c.l.b16 %v9766
        %v9873 = vunpack.c.l.b16 %v9769
        %v9874 = vunpack.c.l.b16 %v9773
        %v9875 = vunpack.c.l.b16 %v9776
        %v9876 = vunpack.c.l.b16 %v9780
        %v9877 = vunpack.c.l.b16 %v9783
        %v9878 = vunpack.c.l.b16 %v9787
        %v9879 = vunpack.c.l.b16 %v9790
        %v9880 = vunpack.c.l.b16 %v9794
        %v9881 = vunpack.c.l.b16 %v9797
        %v9882 = vunpack.c.l.b16 %v9801
        %v9883 = vunpack.c.l.b16 %v9804
        %v9884 = vunpack.c.l.b16 %v9808
        %v9885 = vunpack.c.l.b16 %v9811
        %v9886 = vunpack.c.l.b16 %v9815
        %v9887 = vunpack.c.l.b16 %v9818
        %v9888 = vunpack.c.l.b16 %v9822
        %v9889 = vunpack.c.l.b16 %v9825
        %v9890 = vunpack.c.l.b16 %v9829
        %v9891 = vunpack.c.l.b16 %v9832
        %v9892 = vunpack.c.l.b16 %v9836
        %v9893 = vunpack.c.l.b16 %v9839
        %v9894 = vunpack.c.l.b16 %v9843
        %v9895 = vunpack.c.l.b16 %v9846
        %v9896 = vunpack.c.l.b16 %v9850
        %v9897 = vunpack.c.l.b16 %v9853
        %v9898 = vunpack.c.l.b16 %v9857
        %v9899 = vunpack.c.l.b16 %v9860
        %v9900 = vunpack.c.l.b16 %v9864
        %v9901 = vunpack.c.l.b16 %v9867
        %v9902 = vpack.c.b16 %v9871, %v9870
        %v9903 = vpack.c.b16 %v9873, %v9872
        %v9904 = vpack.c.b16 %v9875, %v9874
        %v9905 = vpack.c.b16 %v9877, %v9876
        %v9906 = vpack.c.b16 %v9879, %v9878
        %v9907 = vpack.c.b16 %v9881, %v9880
        %v9908 = vpack.c.b16 %v9883, %v9882
        %v9909 = vpack.c.b16 %v9885, %v9884
        %v9910 = vpack.c.b16 %v9887, %v9886
        %v9911 = vpack.c.b16 %v9889, %v9888
        %v9912 = vpack.c.b16 %v9891, %v9890
        %v9913 = vpack.c.b16 %v9893, %v9892
        %v9914 = vpack.c.b16 %v9895, %v9894
        %v9915 = vpack.c.b16 %v9897, %v9896
        %v9916 = vpack.c.b16 %v9899, %v9898
        %v9917 = vpack.c.b16 %v9901, %v9900
        %v9920 = vunpack.c.l.b16 %v9868
        %v9921 = vunpack.c.l.b16 %v9869
        %v9922 = vpack.c.b16 %v9921, %v9920
        %v9925 = vsel %vm6086, %v9902, 0
        %v9928 = vsel %vm6086, %v9903, 0
        %v9931 = vsel %vm6086, %v9904, 0
        %v9934 = vsel %vm6086, %v9905, 0
        %v9937 = vsel %vm6086, %v9906, 0
        %v9940 = vsel %vm6086, %v9907, 0
        %v9943 = vsel %vm6086, %v9908, 0
        %v9946 = vsel %vm6086, %v9909, 0
        %v9949 = vsel %vm6086, %v9910, 0
        %v9952 = vsel %vm6086, %v9911, 0
        %v9955 = vsel %vm6086, %v9912, 0
        %v9958 = vsel %vm6086, %v9913, 0
        %v9961 = vsel %vm6086, %v9914, 0
        %v9964 = vsel %vm6086, %v9915, 0
        %v9967 = vsel %vm6086, %v9916, 0
        %v9970 = vsel %vm6086, %v9917, 0
        %9972 = vmatpush.bf16.msra.mxu0 0
        %9973 = vmatpush.bf16.msra.mxu0 0
        %9974 = vmatpush.bf16.msra.mxu0 0
        %9975 = vmatpush.bf16.msra.mxu0 0
        %9976 = vmatpush.bf16.msra.mxu0 0
        %9977 = vmatpush.bf16.msra.mxu0 0
        %9978 = vmatpush.bf16.msra.mxu0 0
        %9979 = vmatpush.bf16.msra.mxu0 %v9922
        %9980 = vmatmul.bf16.gmra.mxu0 %v9925
        %v9981 = vpop.f32.mrf.mxu0
        %v9982 = vadd.f32 0.0, %v9981
        %v9983 = vpop.f32.mrf.mxu0
        %v9984 = vadd.f32 0.0, %v9983
        %9985 = vmatmul.bf16.gmra.mxu0 %v9928
        %v9986 = vpop.f32.mrf.mxu0
        %v9987 = vadd.f32 0.0, %v9986
        %v9988 = vpop.f32.mrf.mxu0
        %v9989 = vadd.f32 0.0, %v9988
        %9990 = vmatmul.bf16.gmra.mxu0 %v9931
        %v9991 = vpop.f32.mrf.mxu0
        %v9992 = vadd.f32 0.0, %v9991
        %v9993 = vpop.f32.mrf.mxu0
        %v9994 = vadd.f32 0.0, %v9993
        %9995 = vmatmul.bf16.gmra.mxu0 %v9934
        %v9996 = vpop.f32.mrf.mxu0
        %v9997 = vadd.f32 0.0, %v9996
        %v9998 = vpop.f32.mrf.mxu0
        %v9999 = vadd.f32 0.0, %v9998
        %10000 = vmatmul.bf16.gmra.mxu0 %v9937
        %v10001 = vpop.f32.mrf.mxu0
        %v10002 = vadd.f32 0.0, %v10001
        %v10003 = vpop.f32.mrf.mxu0
        %v10004 = vadd.f32 0.0, %v10003
        %10005 = vmatmul.bf16.gmra.mxu0 %v9940
        %v10006 = vpop.f32.mrf.mxu0
        %v10007 = vadd.f32 0.0, %v10006
        %v10008 = vpop.f32.mrf.mxu0
        %v10009 = vadd.f32 0.0, %v10008
        %10010 = vmatmul.bf16.gmra.mxu0 %v9943
        %v10011 = vpop.f32.mrf.mxu0
        %v10012 = vadd.f32 0.0, %v10011
        %v10013 = vpop.f32.mrf.mxu0
        %v10014 = vadd.f32 0.0, %v10013
        %10015 = vmatmul.bf16.gmra.mxu0 %v9946
        %v10016 = vpop.f32.mrf.mxu0
        %v10017 = vadd.f32 0.0, %v10016
        %v10018 = vpop.f32.mrf.mxu0
        %v10019 = vadd.f32 0.0, %v10018
        %10020 = vmatmul.bf16.gmra.mxu0 %v9949
        %v10021 = vpop.f32.mrf.mxu0
        %v10022 = vadd.f32 0.0, %v10021
        %v10023 = vpop.f32.mrf.mxu0
        %v10024 = vadd.f32 0.0, %v10023
        %10025 = vmatmul.bf16.gmra.mxu0 %v9952
        %v10026 = vpop.f32.mrf.mxu0
        %v10027 = vadd.f32 0.0, %v10026
        %v10028 = vpop.f32.mrf.mxu0
        %v10029 = vadd.f32 0.0, %v10028
        %10030 = vmatmul.bf16.gmra.mxu0 %v9955
        %v10031 = vpop.f32.mrf.mxu0
        %v10032 = vadd.f32 0.0, %v10031
        %v10033 = vpop.f32.mrf.mxu0
        %v10034 = vadd.f32 0.0, %v10033
        %10035 = vmatmul.bf16.gmra.mxu0 %v9958
        %v10036 = vpop.f32.mrf.mxu0
        %v10037 = vadd.f32 0.0, %v10036
        %v10038 = vpop.f32.mrf.mxu0
        %v10039 = vadd.f32 0.0, %v10038
        %10040 = vmatmul.bf16.gmra.mxu0 %v9961
        %v10041 = vpop.f32.mrf.mxu0
        %v10042 = vadd.f32 0.0, %v10041
        %v10043 = vpop.f32.mrf.mxu0
        %v10044 = vadd.f32 0.0, %v10043
        %10045 = vmatmul.bf16.gmra.mxu0 %v9964
        %v10046 = vpop.f32.mrf.mxu0
        %v10047 = vadd.f32 0.0, %v10046
        %v10048 = vpop.f32.mrf.mxu0
        %v10049 = vadd.f32 0.0, %v10048
        %10050 = vmatmul.bf16.gmra.mxu0 %v9967
        %v10051 = vpop.f32.mrf.mxu0
        %v10052 = vadd.f32 0.0, %v10051
        %v10053 = vpop.f32.mrf.mxu0
        %v10054 = vadd.f32 0.0, %v10053
        %10055 = vmatmul.bf16.gmra.mxu0 %v9970
        %v10056 = vpop.f32.mrf.mxu0
        %v10057 = vadd.f32 0.0, %v10056
        %v10058 = vpop.f32.mrf.mxu0
        %v10059 = vadd.f32 0.0, %v10058
        %10060 = vdwg.mxu0
        %v10061 = vadd.f32 %v9660, %v9982
        %v10062 = vadd.f32 %v9661, %v9984
        %v10063 = vadd.f32 %v9662, %v9987
        %v10064 = vadd.f32 %v9663, %v9989
        %v10065 = vadd.f32 %v9664, %v9992
        %v10066 = vadd.f32 %v9665, %v9994
        %v10067 = vadd.f32 %v9666, %v9997
        %v10068 = vadd.f32 %v9667, %v9999
        %v10069 = vadd.f32 %v9668, %v10002
        %v10070 = vadd.f32 %v9669, %v10004
        %v10071 = vadd.f32 %v9670, %v10007
        %v10072 = vadd.f32 %v9671, %v10009
        %v10073 = vadd.f32 %v9672, %v10012
        %v10074 = vadd.f32 %v9673, %v10014
        %v10075 = vadd.f32 %v9674, %v10017
        %v10076 = vadd.f32 %v9675, %v10019
        %v10077 = vadd.f32 %v9676, %v10022
        %v10078 = vadd.f32 %v9677, %v10024
        %v10079 = vadd.f32 %v9678, %v10027
        %v10080 = vadd.f32 %v9679, %v10029
        %v10081 = vadd.f32 %v9680, %v10032
        %v10082 = vadd.f32 %v9681, %v10034
        %v10083 = vadd.f32 %v9682, %v10037
        %v10084 = vadd.f32 %v9683, %v10039
        %v10085 = vadd.f32 %v9684, %v10042
        %v10086 = vadd.f32 %v9685, %v10044
        %v10087 = vadd.f32 %v9686, %v10047
        %v10088 = vadd.f32 %v9687, %v10049
        %v10089 = vadd.f32 %v9688, %v10052
        %v10090 = vadd.f32 %v9689, %v10054
        %v10091 = vadd.f32 %v9690, %v10057
        %v10092 = vadd.f32 %v9691, %v10059
        %s10093 = scalar_lea.vmem [#allocation3], 24
        %v10094 = vld [vmem:[%s10093] sm:$0xf]
        %v10095 = vld [vmem:[%s10093 + $0x4] sm:$0xf]
        %v10096 = vld [vmem:[%s10093 + $0xc] sm:$0xf]
        %v10097 = vld [vmem:[%s10093 + $0x10] sm:$0xf]
        %v10098 = vld [vmem:[%s10093 + $0x18] sm:$0xf]
        %v10099 = vld [vmem:[%s10093 + $0x1c] sm:$0xf]
        %v10100 = vld [vmem:[%s10093 + $0x24] sm:$0xf]
        %v10101 = vld [vmem:[%s10093 + $0x28] sm:$0xf]
        %v10102 = vld [vmem:[%s10093 + $0x30] sm:$0xf]
        %v10103 = vld [vmem:[%s10093 + $0x34] sm:$0xf]
        %v10104 = vld [vmem:[%s10093 + $0x3c] sm:$0xf]
        %v10105 = vld [vmem:[%s10093 + $0x40] sm:$0xf]
        %v10106 = vld [vmem:[%s10093 + $0x48] sm:$0xf]
        %v10107 = vld [vmem:[%s10093 + $0x4c] sm:$0xf]
        %v10108 = vld [vmem:[%s10093 + $0x54] sm:$0xf]
        %v10109 = vld [vmem:[%s10093 + $0x58] sm:$0xf]
        %v10110 = vld [vmem:[%s10093 + $0x60] sm:$0xf]
        %v10111 = vld [vmem:[%s10093 + $0x64] sm:$0xf]
        %v10112 = vld [vmem:[%s10093 + $0x6c] sm:$0xf]
        %v10113 = vld [vmem:[%s10093 + $0x70] sm:$0xf]
        %v10114 = vld [vmem:[%s10093 + $0x78] sm:$0xf]
        %v10115 = vld [vmem:[%s10093 + $0x7c] sm:$0xf]
        %v10116 = vld [vmem:[%s10093 + $0x84] sm:$0xf]
        %v10117 = vld [vmem:[%s10093 + $0x88] sm:$0xf]
        %v10118 = vld [vmem:[%s10093 + $0x90] sm:$0xf]
        %v10119 = vld [vmem:[%s10093 + $0x94] sm:$0xf]
        %v10120 = vld [vmem:[%s10093 + $0x9c] sm:$0xf]
        %v10121 = vld [vmem:[%s10093 + $0xa0] sm:$0xf]
        %v10122 = vld [vmem:[%s10093 + $0xa8] sm:$0xf]
        %v10123 = vld [vmem:[%s10093 + $0xac] sm:$0xf]
        %v10124 = vld [vmem:[%s10093 + $0xb4] sm:$0xf]
        %v10125 = vld [vmem:[%s10093 + $0xb8] sm:$0xf]
        %v10126 = vld [vmem:[%s9 + $0x30] sm:$0xf]
        %v10127 = vld [vmem:[%s9 + $0x34] sm:$0xf]
        %v10160 = vunpack.c.l.b16 %v10094
        %v10161 = vunpack.c.l.b16 %v10095
        %v10162 = vunpack.c.l.b16 %v10096
        %v10163 = vunpack.c.l.b16 %v10097
        %v10164 = vunpack.c.l.b16 %v10098
        %v10165 = vunpack.c.l.b16 %v10099
        %v10166 = vunpack.c.l.b16 %v10100
        %v10167 = vunpack.c.l.b16 %v10101
        %v10168 = vunpack.c.l.b16 %v10102
        %v10169 = vunpack.c.l.b16 %v10103
        %v10170 = vunpack.c.l.b16 %v10104
        %v10171 = vunpack.c.l.b16 %v10105
        %v10172 = vunpack.c.l.b16 %v10106
        %v10173 = vunpack.c.l.b16 %v10107
        %v10174 = vunpack.c.l.b16 %v10108
        %v10175 = vunpack.c.l.b16 %v10109
        %v10176 = vunpack.c.l.b16 %v10110
        %v10177 = vunpack.c.l.b16 %v10111
        %v10178 = vunpack.c.l.b16 %v10112
        %v10179 = vunpack.c.l.b16 %v10113
        %v10180 = vunpack.c.l.b16 %v10114
        %v10181 = vunpack.c.l.b16 %v10115
        %v10182 = vunpack.c.l.b16 %v10116
        %v10183 = vunpack.c.l.b16 %v10117
        %v10184 = vunpack.c.l.b16 %v10118
        %v10185 = vunpack.c.l.b16 %v10119
        %v10186 = vunpack.c.l.b16 %v10120
        %v10187 = vunpack.c.l.b16 %v10121
        %v10188 = vunpack.c.l.b16 %v10122
        %v10189 = vunpack.c.l.b16 %v10123
        %v10190 = vunpack.c.l.b16 %v10124
        %v10191 = vunpack.c.l.b16 %v10125
        %v10192 = vpack.c.b16 %v10161, %v10160
        %v10193 = vpack.c.b16 %v10163, %v10162
        %v10194 = vpack.c.b16 %v10165, %v10164
        %v10195 = vpack.c.b16 %v10167, %v10166
        %v10196 = vpack.c.b16 %v10169, %v10168
        %v10197 = vpack.c.b16 %v10171, %v10170
        %v10198 = vpack.c.b16 %v10173, %v10172
        %v10199 = vpack.c.b16 %v10175, %v10174
        %v10200 = vpack.c.b16 %v10177, %v10176
        %v10201 = vpack.c.b16 %v10179, %v10178
        %v10202 = vpack.c.b16 %v10181, %v10180
        %v10203 = vpack.c.b16 %v10183, %v10182
        %v10204 = vpack.c.b16 %v10185, %v10184
        %v10205 = vpack.c.b16 %v10187, %v10186
        %v10206 = vpack.c.b16 %v10189, %v10188
        %v10207 = vpack.c.b16 %v10191, %v10190
        %v10210 = vunpack.c.l.b16 %v10126
        %v10211 = vunpack.c.l.b16 %v10127
        %v10212 = vpack.c.b16 %v10211, %v10210
        %v10215 = vsel %vm6086, %v10192, 0
        %v10218 = vsel %vm6086, %v10193, 0
        %v10221 = vsel %vm6086, %v10194, 0
        %v10224 = vsel %vm6086, %v10195, 0
        %v10227 = vsel %vm6086, %v10196, 0
        %v10230 = vsel %vm6086, %v10197, 0
        %v10233 = vsel %vm6086, %v10198, 0
        %v10236 = vsel %vm6086, %v10199, 0
        %v10239 = vsel %vm6086, %v10200, 0
        %v10242 = vsel %vm6086, %v10201, 0
        %v10245 = vsel %vm6086, %v10202, 0
        %v10248 = vsel %vm6086, %v10203, 0
        %v10251 = vsel %vm6086, %v10204, 0
        %v10254 = vsel %vm6086, %v10205, 0
        %v10257 = vsel %vm6086, %v10206, 0
        %v10260 = vsel %vm6086, %v10207, 0
        %10262 = vmatpush.bf16.msra.mxu0 0
        %10263 = vmatpush.bf16.msra.mxu0 0
        %10264 = vmatpush.bf16.msra.mxu0 0
        %10265 = vmatpush.bf16.msra.mxu0 0
        %10266 = vmatpush.bf16.msra.mxu0 0
        %10267 = vmatpush.bf16.msra.mxu0 0
        %10268 = vmatpush.bf16.msra.mxu0 0
        %10269 = vmatpush.bf16.msra.mxu0 %v10212
        %10270 = vmatmul.bf16.gmra.mxu0 %v10215
        %v10271 = vpop.f32.mrf.mxu0
        %v10272 = vadd.f32 0.0, %v10271
        %v10273 = vpop.f32.mrf.mxu0
        %v10274 = vadd.f32 0.0, %v10273
        %10275 = vmatmul.bf16.gmra.mxu0 %v10218
        %v10276 = vpop.f32.mrf.mxu0
        %v10277 = vadd.f32 0.0, %v10276
        %v10278 = vpop.f32.mrf.mxu0
        %v10279 = vadd.f32 0.0, %v10278
        %10280 = vmatmul.bf16.gmra.mxu0 %v10221
        %v10281 = vpop.f32.mrf.mxu0
        %v10282 = vadd.f32 0.0, %v10281
        %v10283 = vpop.f32.mrf.mxu0
        %v10284 = vadd.f32 0.0, %v10283
        %10285 = vmatmul.bf16.gmra.mxu0 %v10224
        %v10286 = vpop.f32.mrf.mxu0
        %v10287 = vadd.f32 0.0, %v10286
        %v10288 = vpop.f32.mrf.mxu0
        %v10289 = vadd.f32 0.0, %v10288
        %10290 = vmatmul.bf16.gmra.mxu0 %v10227
        %v10291 = vpop.f32.mrf.mxu0
        %v10292 = vadd.f32 0.0, %v10291
        %v10293 = vpop.f32.mrf.mxu0
        %v10294 = vadd.f32 0.0, %v10293
        %10295 = vmatmul.bf16.gmra.mxu0 %v10230
        %v10296 = vpop.f32.mrf.mxu0
        %v10297 = vadd.f32 0.0, %v10296
        %v10298 = vpop.f32.mrf.mxu0
        %v10299 = vadd.f32 0.0, %v10298
        %10300 = vmatmul.bf16.gmra.mxu0 %v10233
        %v10301 = vpop.f32.mrf.mxu0
        %v10302 = vadd.f32 0.0, %v10301
        %v10303 = vpop.f32.mrf.mxu0
        %v10304 = vadd.f32 0.0, %v10303
        %10305 = vmatmul.bf16.gmra.mxu0 %v10236
        %v10306 = vpop.f32.mrf.mxu0
        %v10307 = vadd.f32 0.0, %v10306
        %v10308 = vpop.f32.mrf.mxu0
        %v10309 = vadd.f32 0.0, %v10308
        %10310 = vmatmul.bf16.gmra.mxu0 %v10239
        %v10311 = vpop.f32.mrf.mxu0
        %v10312 = vadd.f32 0.0, %v10311
        %v10313 = vpop.f32.mrf.mxu0
        %v10314 = vadd.f32 0.0, %v10313
        %10315 = vmatmul.bf16.gmra.mxu0 %v10242
        %v10316 = vpop.f32.mrf.mxu0
        %v10317 = vadd.f32 0.0, %v10316
        %v10318 = vpop.f32.mrf.mxu0
        %v10319 = vadd.f32 0.0, %v10318
        %10320 = vmatmul.bf16.gmra.mxu0 %v10245
        %v10321 = vpop.f32.mrf.mxu0
        %v10322 = vadd.f32 0.0, %v10321
        %v10323 = vpop.f32.mrf.mxu0
        %v10324 = vadd.f32 0.0, %v10323
        %10325 = vmatmul.bf16.gmra.mxu0 %v10248
        %v10326 = vpop.f32.mrf.mxu0
        %v10327 = vadd.f32 0.0, %v10326
        %v10328 = vpop.f32.mrf.mxu0
        %v10329 = vadd.f32 0.0, %v10328
        %10330 = vmatmul.bf16.gmra.mxu0 %v10251
        %v10331 = vpop.f32.mrf.mxu0
        %v10332 = vadd.f32 0.0, %v10331
        %v10333 = vpop.f32.mrf.mxu0
        %v10334 = vadd.f32 0.0, %v10333
        %10335 = vmatmul.bf16.gmra.mxu0 %v10254
        %v10336 = vpop.f32.mrf.mxu0
        %v10337 = vadd.f32 0.0, %v10336
        %v10338 = vpop.f32.mrf.mxu0
        %v10339 = vadd.f32 0.0, %v10338
        %10340 = vmatmul.bf16.gmra.mxu0 %v10257
        %v10341 = vpop.f32.mrf.mxu0
        %v10342 = vadd.f32 0.0, %v10341
        %v10343 = vpop.f32.mrf.mxu0
        %v10344 = vadd.f32 0.0, %v10343
        %10345 = vmatmul.bf16.gmra.mxu0 %v10260
        %v10346 = vpop.f32.mrf.mxu0
        %v10347 = vadd.f32 0.0, %v10346
        %v10348 = vpop.f32.mrf.mxu0
        %v10349 = vadd.f32 0.0, %v10348
        %10350 = vdwg.mxu0
        %v10351 = vadd.f32 %v10061, %v10272
        %v10352 = vadd.f32 %v10062, %v10274
        %v10353 = vadd.f32 %v10063, %v10277
        %v10354 = vadd.f32 %v10064, %v10279
        %v10355 = vadd.f32 %v10065, %v10282
        %v10356 = vadd.f32 %v10066, %v10284
        %v10357 = vadd.f32 %v10067, %v10287
        %v10358 = vadd.f32 %v10068, %v10289
        %v10359 = vadd.f32 %v10069, %v10292
        %v10360 = vadd.f32 %v10070, %v10294
        %v10361 = vadd.f32 %v10071, %v10297
        %v10362 = vadd.f32 %v10072, %v10299
        %v10363 = vadd.f32 %v10073, %v10302
        %v10364 = vadd.f32 %v10074, %v10304
        %v10365 = vadd.f32 %v10075, %v10307
        %v10366 = vadd.f32 %v10076, %v10309
        %v10367 = vadd.f32 %v10077, %v10312
        %v10368 = vadd.f32 %v10078, %v10314
        %v10369 = vadd.f32 %v10079, %v10317
        %v10370 = vadd.f32 %v10080, %v10319
        %v10371 = vadd.f32 %v10081, %v10322
        %v10372 = vadd.f32 %v10082, %v10324
        %v10373 = vadd.f32 %v10083, %v10327
        %v10374 = vadd.f32 %v10084, %v10329
        %v10375 = vadd.f32 %v10085, %v10332
        %v10376 = vadd.f32 %v10086, %v10334
        %v10377 = vadd.f32 %v10087, %v10337
        %v10378 = vadd.f32 %v10088, %v10339
        %v10379 = vadd.f32 %v10089, %v10342
        %v10380 = vadd.f32 %v10090, %v10344
        %v10381 = vadd.f32 %v10091, %v10347
        %v10382 = vadd.f32 %v10092, %v10349
        %v10383 = vld [vmem:[%s10093] sm:$0xf]
        %v10384 = vld [vmem:[%s10093 + $0x4] sm:$0xf]
        %v10385 = vld [vmem:[%s10093 + $0x8] sm:$0x1]
        %v10386 = vld [vmem:[%s10093 + $0xc] sm:$0xf]
        %v10387 = vld [vmem:[%s10093 + $0x10] sm:$0xf]
        %v10388 = vld [vmem:[%s10093 + $0x14] sm:$0x1]
        %v10389 = vld [vmem:[%s10093 + $0x18] sm:$0xf]
        %v10390 = vld [vmem:[%s10093 + $0x1c] sm:$0xf]
        %v10391 = vld [vmem:[%s10093 + $0x20] sm:$0x1]
        %v10392 = vld [vmem:[%s10093 + $0x24] sm:$0xf]
        %v10393 = vld [vmem:[%s10093 + $0x28] sm:$0xf]
        %v10394 = vld [vmem:[%s10093 + $0x2c] sm:$0x1]
        %v10395 = vld [vmem:[%s10093 + $0x30] sm:$0xf]
        %v10396 = vld [vmem:[%s10093 + $0x34] sm:$0xf]
        %v10397 = vld [vmem:[%s10093 + $0x38] sm:$0x1]
        %v10398 = vld [vmem:[%s10093 + $0x3c] sm:$0xf]
        %v10399 = vld [vmem:[%s10093 + $0x40] sm:$0xf]
        %v10400 = vld [vmem:[%s10093 + $0x44] sm:$0x1]
        %v10401 = vld [vmem:[%s10093 + $0x48] sm:$0xf]
        %v10402 = vld [vmem:[%s10093 + $0x4c] sm:$0xf]
        %v10403 = vld [vmem:[%s10093 + $0x50] sm:$0x1]
        %v10404 = vld [vmem:[%s10093 + $0x54] sm:$0xf]
        %v10405 = vld [vmem:[%s10093 + $0x58] sm:$0xf]
        %v10406 = vld [vmem:[%s10093 + $0x5c] sm:$0x1]
        %v10407 = vld [vmem:[%s10093 + $0x60] sm:$0xf]
        %v10408 = vld [vmem:[%s10093 + $0x64] sm:$0xf]
        %v10409 = vld [vmem:[%s10093 + $0x68] sm:$0x1]
        %v10410 = vld [vmem:[%s10093 + $0x6c] sm:$0xf]
        %v10411 = vld [vmem:[%s10093 + $0x70] sm:$0xf]
        %v10412 = vld [vmem:[%s10093 + $0x74] sm:$0x1]
        %v10413 = vld [vmem:[%s10093 + $0x78] sm:$0xf]
        %v10414 = vld [vmem:[%s10093 + $0x7c] sm:$0xf]
        %v10415 = vld [vmem:[%s10093 + $0x80] sm:$0x1]
        %v10416 = vld [vmem:[%s10093 + $0x84] sm:$0xf]
        %v10417 = vld [vmem:[%s10093 + $0x88] sm:$0xf]
        %v10418 = vld [vmem:[%s10093 + $0x8c] sm:$0x1]
        %v10419 = vld [vmem:[%s10093 + $0x90] sm:$0xf]
        %v10420 = vld [vmem:[%s10093 + $0x94] sm:$0xf]
        %v10421 = vld [vmem:[%s10093 + $0x98] sm:$0x1]
        %v10422 = vld [vmem:[%s10093 + $0x9c] sm:$0xf]
        %v10423 = vld [vmem:[%s10093 + $0xa0] sm:$0xf]
        %v10424 = vld [vmem:[%s10093 + $0xa4] sm:$0x1]
        %v10425 = vld [vmem:[%s10093 + $0xa8] sm:$0xf]
        %v10426 = vld [vmem:[%s10093 + $0xac] sm:$0xf]
        %v10427 = vld [vmem:[%s10093 + $0xb0] sm:$0x1]
        %v10428 = vld [vmem:[%s10093 + $0xb4] sm:$0xf]
        %v10429 = vld [vmem:[%s10093 + $0xb8] sm:$0xf]
        %v10430 = vld [vmem:[%s10093 + $0xbc] sm:$0x1]
        %v10432 = vshrl.u32 %v10383, 16
        %v10434 = vrot.slane %v10432, 4
        %v10435 = vshll.u32 %v10383, 16
        %v10437 = vrot.slane %v10435, 5
        %v10438 = vor.u32 %v10434, %v10437
        %v10439 = vrot.slane %v10438, 4
        %v10441 = vshll.u32 %v10384, 16
        %v10443 = vrot.slane %v10441, 5
        %v10444 = vsel %vm2196, %v10439, %v10443
        %v10445 = vshrl.u32 %v10384, 16
        %v10447 = vrot.slane %v10445, 4
        %v10448 = vor.u32 %v10447, %v10443
        %v10449 = vrot.slane %v10448, 4
        %v10451 = vshll.u32 %v10385, 16
        %v10453 = vrot.slane %v10451, 5
        %v10454 = vsel %vm2196, %v10449, %v10453
        %v10456 = vshrl.u32 %v10386, 16
        %v10458 = vrot.slane %v10456, 4
        %v10459 = vshll.u32 %v10386, 16
        %v10461 = vrot.slane %v10459, 5
        %v10462 = vor.u32 %v10458, %v10461
        %v10463 = vrot.slane %v10462, 4
        %v10465 = vshll.u32 %v10387, 16
        %v10467 = vrot.slane %v10465, 5
        %v10468 = vsel %vm2196, %v10463, %v10467
        %v10469 = vshrl.u32 %v10387, 16
        %v10471 = vrot.slane %v10469, 4
        %v10472 = vor.u32 %v10471, %v10467
        %v10473 = vrot.slane %v10472, 4
        %v10475 = vshll.u32 %v10388, 16
        %v10477 = vrot.slane %v10475, 5
        %v10478 = vsel %vm2196, %v10473, %v10477
        %v10480 = vshrl.u32 %v10389, 16
        %v10482 = vrot.slane %v10480, 4
        %v10483 = vshll.u32 %v10389, 16
        %v10485 = vrot.slane %v10483, 5
        %v10486 = vor.u32 %v10482, %v10485
        %v10487 = vrot.slane %v10486, 4
        %v10489 = vshll.u32 %v10390, 16
        %v10491 = vrot.slane %v10489, 5
        %v10492 = vsel %vm2196, %v10487, %v10491
        %v10493 = vshrl.u32 %v10390, 16
        %v10495 = vrot.slane %v10493, 4
        %v10496 = vor.u32 %v10495, %v10491
        %v10497 = vrot.slane %v10496, 4
        %v10499 = vshll.u32 %v10391, 16
        %v10501 = vrot.slane %v10499, 5
        %v10502 = vsel %vm2196, %v10497, %v10501
        %v10504 = vshrl.u32 %v10392, 16
        %v10506 = vrot.slane %v10504, 4
        %v10507 = vshll.u32 %v10392, 16
        %v10509 = vrot.slane %v10507, 5
        %v10510 = vor.u32 %v10506, %v10509
        %v10511 = vrot.slane %v10510, 4
        %v10513 = vshll.u32 %v10393, 16
        %v10515 = vrot.slane %v10513, 5
        %v10516 = vsel %vm2196, %v10511, %v10515
        %v10517 = vshrl.u32 %v10393, 16
        %v10519 = vrot.slane %v10517, 4
        %v10520 = vor.u32 %v10519, %v10515
        %v10521 = vrot.slane %v10520, 4
        %v10523 = vshll.u32 %v10394, 16
        %v10525 = vrot.slane %v10523, 5
        %v10526 = vsel %vm2196, %v10521, %v10525
        %v10528 = vshrl.u32 %v10395, 16
        %v10530 = vrot.slane %v10528, 4
        %v10531 = vshll.u32 %v10395, 16
        %v10533 = vrot.slane %v10531, 5
        %v10534 = vor.u32 %v10530, %v10533
        %v10535 = vrot.slane %v10534, 4
        %v10537 = vshll.u32 %v10396, 16
        %v10539 = vrot.slane %v10537, 5
        %v10540 = vsel %vm2196, %v10535, %v10539
        %v10541 = vshrl.u32 %v10396, 16
        %v10543 = vrot.slane %v10541, 4
        %v10544 = vor.u32 %v10543, %v10539
        %v10545 = vrot.slane %v10544, 4
        %v10547 = vshll.u32 %v10397, 16
        %v10549 = vrot.slane %v10547, 5
        %v10550 = vsel %vm2196, %v10545, %v10549
        %v10552 = vshrl.u32 %v10398, 16
        %v10554 = vrot.slane %v10552, 4
        %v10555 = vshll.u32 %v10398, 16
        %v10557 = vrot.slane %v10555, 5
        %v10558 = vor.u32 %v10554, %v10557
        %v10559 = vrot.slane %v10558, 4
        %v10561 = vshll.u32 %v10399, 16
        %v10563 = vrot.slane %v10561, 5
        %v10564 = vsel %vm2196, %v10559, %v10563
        %v10565 = vshrl.u32 %v10399, 16
        %v10567 = vrot.slane %v10565, 4
        %v10568 = vor.u32 %v10567, %v10563
        %v10569 = vrot.slane %v10568, 4
        %v10571 = vshll.u32 %v10400, 16
        %v10573 = vrot.slane %v10571, 5
        %v10574 = vsel %vm2196, %v10569, %v10573
        %v10576 = vshrl.u32 %v10401, 16
        %v10578 = vrot.slane %v10576, 4
        %v10579 = vshll.u32 %v10401, 16
        %v10581 = vrot.slane %v10579, 5
        %v10582 = vor.u32 %v10578, %v10581
        %v10583 = vrot.slane %v10582, 4
        %v10585 = vshll.u32 %v10402, 16
        %v10587 = vrot.slane %v10585, 5
        %v10588 = vsel %vm2196, %v10583, %v10587
        %v10589 = vshrl.u32 %v10402, 16
        %v10591 = vrot.slane %v10589, 4
        %v10592 = vor.u32 %v10591, %v10587
        %v10593 = vrot.slane %v10592, 4
        %v10595 = vshll.u32 %v10403, 16
        %v10597 = vrot.slane %v10595, 5
        %v10598 = vsel %vm2196, %v10593, %v10597
        %v10600 = vshrl.u32 %v10404, 16
        %v10602 = vrot.slane %v10600, 4
        %v10603 = vshll.u32 %v10404, 16
        %v10605 = vrot.slane %v10603, 5
        %v10606 = vor.u32 %v10602, %v10605
        %v10607 = vrot.slane %v10606, 4
        %v10609 = vshll.u32 %v10405, 16
        %v10611 = vrot.slane %v10609, 5
        %v10612 = vsel %vm2196, %v10607, %v10611
        %v10613 = vshrl.u32 %v10405, 16
        %v10615 = vrot.slane %v10613, 4
        %v10616 = vor.u32 %v10615, %v10611
        %v10617 = vrot.slane %v10616, 4
        %v10619 = vshll.u32 %v10406, 16
        %v10621 = vrot.slane %v10619, 5
        %v10622 = vsel %vm2196, %v10617, %v10621
        %v10624 = vshrl.u32 %v10407, 16
        %v10626 = vrot.slane %v10624, 4
        %v10627 = vshll.u32 %v10407, 16
        %v10629 = vrot.slane %v10627, 5
        %v10630 = vor.u32 %v10626, %v10629
        %v10631 = vrot.slane %v10630, 4
        %v10633 = vshll.u32 %v10408, 16
        %v10635 = vrot.slane %v10633, 5
        %v10636 = vsel %vm2196, %v10631, %v10635
        %v10637 = vshrl.u32 %v10408, 16
        %v10639 = vrot.slane %v10637, 4
        %v10640 = vor.u32 %v10639, %v10635
        %v10641 = vrot.slane %v10640, 4
        %v10643 = vshll.u32 %v10409, 16
        %v10645 = vrot.slane %v10643, 5
        %v10646 = vsel %vm2196, %v10641, %v10645
        %v10648 = vshrl.u32 %v10410, 16
        %v10650 = vrot.slane %v10648, 4
        %v10651 = vshll.u32 %v10410, 16
        %v10653 = vrot.slane %v10651, 5
        %v10654 = vor.u32 %v10650, %v10653
        %v10655 = vrot.slane %v10654, 4
        %v10657 = vshll.u32 %v10411, 16
        %v10659 = vrot.slane %v10657, 5
        %v10660 = vsel %vm2196, %v10655, %v10659
        %v10661 = vshrl.u32 %v10411, 16
        %v10663 = vrot.slane %v10661, 4
        %v10664 = vor.u32 %v10663, %v10659
        %v10665 = vrot.slane %v10664, 4
        %v10667 = vshll.u32 %v10412, 16
        %v10669 = vrot.slane %v10667, 5
        %v10670 = vsel %vm2196, %v10665, %v10669
        %v10672 = vshrl.u32 %v10413, 16
        %v10674 = vrot.slane %v10672, 4
        %v10675 = vshll.u32 %v10413, 16
        %v10677 = vrot.slane %v10675, 5
        %v10678 = vor.u32 %v10674, %v10677
        %v10679 = vrot.slane %v10678, 4
        %v10681 = vshll.u32 %v10414, 16
        %v10683 = vrot.slane %v10681, 5
        %v10684 = vsel %vm2196, %v10679, %v10683
        %v10685 = vshrl.u32 %v10414, 16
        %v10687 = vrot.slane %v10685, 4
        %v10688 = vor.u32 %v10687, %v10683
        %v10689 = vrot.slane %v10688, 4
        %v10691 = vshll.u32 %v10415, 16
        %v10693 = vrot.slane %v10691, 5
        %v10694 = vsel %vm2196, %v10689, %v10693
        %v10696 = vshrl.u32 %v10416, 16
        %v10698 = vrot.slane %v10696, 4
        %v10699 = vshll.u32 %v10416, 16
        %v10701 = vrot.slane %v10699, 5
        %v10702 = vor.u32 %v10698, %v10701
        %v10703 = vrot.slane %v10702, 4
        %v10705 = vshll.u32 %v10417, 16
        %v10707 = vrot.slane %v10705, 5
        %v10708 = vsel %vm2196, %v10703, %v10707
        %v10709 = vshrl.u32 %v10417, 16
        %v10711 = vrot.slane %v10709, 4
        %v10712 = vor.u32 %v10711, %v10707
        %v10713 = vrot.slane %v10712, 4
        %v10715 = vshll.u32 %v10418, 16
        %v10717 = vrot.slane %v10715, 5
        %v10718 = vsel %vm2196, %v10713, %v10717
        %v10720 = vshrl.u32 %v10419, 16
        %v10722 = vrot.slane %v10720, 4
        %v10723 = vshll.u32 %v10419, 16
        %v10725 = vrot.slane %v10723, 5
        %v10726 = vor.u32 %v10722, %v10725
        %v10727 = vrot.slane %v10726, 4
        %v10729 = vshll.u32 %v10420, 16
        %v10731 = vrot.slane %v10729, 5
        %v10732 = vsel %vm2196, %v10727, %v10731
        %v10733 = vshrl.u32 %v10420, 16
        %v10735 = vrot.slane %v10733, 4
        %v10736 = vor.u32 %v10735, %v10731
        %v10737 = vrot.slane %v10736, 4
        %v10739 = vshll.u32 %v10421, 16
        %v10741 = vrot.slane %v10739, 5
        %v10742 = vsel %vm2196, %v10737, %v10741
        %v10744 = vshrl.u32 %v10422, 16
        %v10746 = vrot.slane %v10744, 4
        %v10747 = vshll.u32 %v10422, 16
        %v10749 = vrot.slane %v10747, 5
        %v10750 = vor.u32 %v10746, %v10749
        %v10751 = vrot.slane %v10750, 4
        %v10753 = vshll.u32 %v10423, 16
        %v10755 = vrot.slane %v10753, 5
        %v10756 = vsel %vm2196, %v10751, %v10755
        %v10757 = vshrl.u32 %v10423, 16
        %v10759 = vrot.slane %v10757, 4
        %v10760 = vor.u32 %v10759, %v10755
        %v10761 = vrot.slane %v10760, 4
        %v10763 = vshll.u32 %v10424, 16
        %v10765 = vrot.slane %v10763, 5
        %v10766 = vsel %vm2196, %v10761, %v10765
        %v10768 = vshrl.u32 %v10425, 16
        %v10770 = vrot.slane %v10768, 4
        %v10771 = vshll.u32 %v10425, 16
        %v10773 = vrot.slane %v10771, 5
        %v10774 = vor.u32 %v10770, %v10773
        %v10775 = vrot.slane %v10774, 4
        %v10777 = vshll.u32 %v10426, 16
        %v10779 = vrot.slane %v10777, 5
        %v10780 = vsel %vm2196, %v10775, %v10779
        %v10781 = vshrl.u32 %v10426, 16
        %v10783 = vrot.slane %v10781, 4
        %v10784 = vor.u32 %v10783, %v10779
        %v10785 = vrot.slane %v10784, 4
        %v10787 = vshll.u32 %v10427, 16
        %v10789 = vrot.slane %v10787, 5
        %v10790 = vsel %vm2196, %v10785, %v10789
        %v10792 = vshrl.u32 %v10428, 16
        %v10794 = vrot.slane %v10792, 4
        %v10795 = vshll.u32 %v10428, 16
        %v10797 = vrot.slane %v10795, 5
        %v10798 = vor.u32 %v10794, %v10797
        %v10799 = vrot.slane %v10798, 4
        %v10801 = vshll.u32 %v10429, 16
        %v10803 = vrot.slane %v10801, 5
        %v10804 = vsel %vm2196, %v10799, %v10803
        %v10805 = vshrl.u32 %v10429, 16
        %v10807 = vrot.slane %v10805, 4
        %v10808 = vor.u32 %v10807, %v10803
        %v10809 = vrot.slane %v10808, 4
        %v10811 = vshll.u32 %v10430, 16
        %v10813 = vrot.slane %v10811, 5
        %v10814 = vsel %vm2196, %v10809, %v10813
        %v10815 = vld [vmem:[%s9 + $0x38] sm:$0xf]
        %v10816 = vld [vmem:[%s9 + $0x3c] sm:$0xf]
        %v10817 = vunpack.c.l.b16 %v10444
        %v10818 = vunpack.c.l.b16 %v10454
        %v10819 = vunpack.c.l.b16 %v10468
        %v10820 = vunpack.c.l.b16 %v10478
        %v10821 = vunpack.c.l.b16 %v10492
        %v10822 = vunpack.c.l.b16 %v10502
        %v10823 = vunpack.c.l.b16 %v10516
        %v10824 = vunpack.c.l.b16 %v10526
        %v10825 = vunpack.c.l.b16 %v10540
        %v10826 = vunpack.c.l.b16 %v10550
        %v10827 = vunpack.c.l.b16 %v10564
        %v10828 = vunpack.c.l.b16 %v10574
        %v10829 = vunpack.c.l.b16 %v10588
        %v10830 = vunpack.c.l.b16 %v10598
        %v10831 = vunpack.c.l.b16 %v10612
        %v10832 = vunpack.c.l.b16 %v10622
        %v10833 = vunpack.c.l.b16 %v10636
        %v10834 = vunpack.c.l.b16 %v10646
        %v10835 = vunpack.c.l.b16 %v10660
        %v10836 = vunpack.c.l.b16 %v10670
        %v10837 = vunpack.c.l.b16 %v10684
        %v10838 = vunpack.c.l.b16 %v10694
        %v10839 = vunpack.c.l.b16 %v10708
        %v10840 = vunpack.c.l.b16 %v10718
        %v10841 = vunpack.c.l.b16 %v10732
        %v10842 = vunpack.c.l.b16 %v10742
        %v10843 = vunpack.c.l.b16 %v10756
        %v10844 = vunpack.c.l.b16 %v10766
        %v10845 = vunpack.c.l.b16 %v10780
        %v10846 = vunpack.c.l.b16 %v10790
        %v10847 = vunpack.c.l.b16 %v10804
        %v10848 = vunpack.c.l.b16 %v10814
        %v10849 = vpack.c.b16 %v10818, %v10817
        %v10850 = vpack.c.b16 %v10820, %v10819
        %v10851 = vpack.c.b16 %v10822, %v10821
        %v10852 = vpack.c.b16 %v10824, %v10823
        %v10853 = vpack.c.b16 %v10826, %v10825
        %v10854 = vpack.c.b16 %v10828, %v10827
        %v10855 = vpack.c.b16 %v10830, %v10829
        %v10856 = vpack.c.b16 %v10832, %v10831
        %v10857 = vpack.c.b16 %v10834, %v10833
        %v10858 = vpack.c.b16 %v10836, %v10835
        %v10859 = vpack.c.b16 %v10838, %v10837
        %v10860 = vpack.c.b16 %v10840, %v10839
        %v10861 = vpack.c.b16 %v10842, %v10841
        %v10862 = vpack.c.b16 %v10844, %v10843
        %v10863 = vpack.c.b16 %v10846, %v10845
        %v10864 = vpack.c.b16 %v10848, %v10847
        %v10867 = vunpack.c.l.b16 %v10815
        %v10868 = vunpack.c.l.b16 %v10816
        %v10869 = vpack.c.b16 %v10868, %v10867
        %v10872 = vsel %vm6086, %v10849, 0
        %v10875 = vsel %vm6086, %v10850, 0
        %v10878 = vsel %vm6086, %v10851, 0
        %v10881 = vsel %vm6086, %v10852, 0
        %v10884 = vsel %vm6086, %v10853, 0
        %v10887 = vsel %vm6086, %v10854, 0
        %v10890 = vsel %vm6086, %v10855, 0
        %v10893 = vsel %vm6086, %v10856, 0
        %v10896 = vsel %vm6086, %v10857, 0
        %v10899 = vsel %vm6086, %v10858, 0
        %v10902 = vsel %vm6086, %v10859, 0
        %v10905 = vsel %vm6086, %v10860, 0
        %v10908 = vsel %vm6086, %v10861, 0
        %v10911 = vsel %vm6086, %v10862, 0
        %v10914 = vsel %vm6086, %v10863, 0
        %v10917 = vsel %vm6086, %v10864, 0
        %10919 = vmatpush.bf16.msra.mxu0 0
        %10920 = vmatpush.bf16.msra.mxu0 0
        %10921 = vmatpush.bf16.msra.mxu0 0
        %10922 = vmatpush.bf16.msra.mxu0 0
        %10923 = vmatpush.bf16.msra.mxu0 0
        %10924 = vmatpush.bf16.msra.mxu0 0
        %10925 = vmatpush.bf16.msra.mxu0 0
        %10926 = vmatpush.bf16.msra.mxu0 %v10869
        %10927 = vmatmul.bf16.gmra.mxu0 %v10872
        %v10928 = vpop.f32.mrf.mxu0
        %v10929 = vadd.f32 0.0, %v10928
        %v10930 = vpop.f32.mrf.mxu0
        %v10931 = vadd.f32 0.0, %v10930
        %10932 = vmatmul.bf16.gmra.mxu0 %v10875
        %v10933 = vpop.f32.mrf.mxu0
        %v10934 = vadd.f32 0.0, %v10933
        %v10935 = vpop.f32.mrf.mxu0
        %v10936 = vadd.f32 0.0, %v10935
        %10937 = vmatmul.bf16.gmra.mxu0 %v10878
        %v10938 = vpop.f32.mrf.mxu0
        %v10939 = vadd.f32 0.0, %v10938
        %v10940 = vpop.f32.mrf.mxu0
        %v10941 = vadd.f32 0.0, %v10940
        %10942 = vmatmul.bf16.gmra.mxu0 %v10881
        %v10943 = vpop.f32.mrf.mxu0
        %v10944 = vadd.f32 0.0, %v10943
        %v10945 = vpop.f32.mrf.mxu0
        %v10946 = vadd.f32 0.0, %v10945
        %10947 = vmatmul.bf16.gmra.mxu0 %v10884
        %v10948 = vpop.f32.mrf.mxu0
        %v10949 = vadd.f32 0.0, %v10948
        %v10950 = vpop.f32.mrf.mxu0
        %v10951 = vadd.f32 0.0, %v10950
        %10952 = vmatmul.bf16.gmra.mxu0 %v10887
        %v10953 = vpop.f32.mrf.mxu0
        %v10954 = vadd.f32 0.0, %v10953
        %v10955 = vpop.f32.mrf.mxu0
        %v10956 = vadd.f32 0.0, %v10955
        %10957 = vmatmul.bf16.gmra.mxu0 %v10890
        %v10958 = vpop.f32.mrf.mxu0
        %v10959 = vadd.f32 0.0, %v10958
        %v10960 = vpop.f32.mrf.mxu0
        %v10961 = vadd.f32 0.0, %v10960
        %10962 = vmatmul.bf16.gmra.mxu0 %v10893
        %v10963 = vpop.f32.mrf.mxu0
        %v10964 = vadd.f32 0.0, %v10963
        %v10965 = vpop.f32.mrf.mxu0
        %v10966 = vadd.f32 0.0, %v10965
        %10967 = vmatmul.bf16.gmra.mxu0 %v10896
        %v10968 = vpop.f32.mrf.mxu0
        %v10969 = vadd.f32 0.0, %v10968
        %v10970 = vpop.f32.mrf.mxu0
        %v10971 = vadd.f32 0.0, %v10970
        %10972 = vmatmul.bf16.gmra.mxu0 %v10899
        %v10973 = vpop.f32.mrf.mxu0
        %v10974 = vadd.f32 0.0, %v10973
        %v10975 = vpop.f32.mrf.mxu0
        %v10976 = vadd.f32 0.0, %v10975
        %10977 = vmatmul.bf16.gmra.mxu0 %v10902
        %v10978 = vpop.f32.mrf.mxu0
        %v10979 = vadd.f32 0.0, %v10978
        %v10980 = vpop.f32.mrf.mxu0
        %v10981 = vadd.f32 0.0, %v10980
        %10982 = vmatmul.bf16.gmra.mxu0 %v10905
        %v10983 = vpop.f32.mrf.mxu0
        %v10984 = vadd.f32 0.0, %v10983
        %v10985 = vpop.f32.mrf.mxu0
        %v10986 = vadd.f32 0.0, %v10985
        %10987 = vmatmul.bf16.gmra.mxu0 %v10908
        %v10988 = vpop.f32.mrf.mxu0
        %v10989 = vadd.f32 0.0, %v10988
        %v10990 = vpop.f32.mrf.mxu0
        %v10991 = vadd.f32 0.0, %v10990
        %10992 = vmatmul.bf16.gmra.mxu0 %v10911
        %v10993 = vpop.f32.mrf.mxu0
        %v10994 = vadd.f32 0.0, %v10993
        %v10995 = vpop.f32.mrf.mxu0
        %v10996 = vadd.f32 0.0, %v10995
        %10997 = vmatmul.bf16.gmra.mxu0 %v10914
        %v10998 = vpop.f32.mrf.mxu0
        %v10999 = vadd.f32 0.0, %v10998
        %v11000 = vpop.f32.mrf.mxu0
        %v11001 = vadd.f32 0.0, %v11000
        %11002 = vmatmul.bf16.gmra.mxu0 %v10917
        %v11003 = vpop.f32.mrf.mxu0
        %v11004 = vadd.f32 0.0, %v11003
        %v11005 = vpop.f32.mrf.mxu0
        %v11006 = vadd.f32 0.0, %v11005
        %11007 = vdwg.mxu0
        %v11008 = vadd.f32 %v10351, %v10929
        %v11009 = vadd.f32 %v10352, %v10931
        %v11010 = vadd.f32 %v10353, %v10934
        %v11011 = vadd.f32 %v10354, %v10936
        %v11012 = vadd.f32 %v10355, %v10939
        %v11013 = vadd.f32 %v10356, %v10941
        %v11014 = vadd.f32 %v10357, %v10944
        %v11015 = vadd.f32 %v10358, %v10946
        %v11016 = vadd.f32 %v10359, %v10949
        %v11017 = vadd.f32 %v10360, %v10951
        %v11018 = vadd.f32 %v10361, %v10954
        %v11019 = vadd.f32 %v10362, %v10956
        %v11020 = vadd.f32 %v10363, %v10959
        %v11021 = vadd.f32 %v10364, %v10961
        %v11022 = vadd.f32 %v10365, %v10964
        %v11023 = vadd.f32 %v10366, %v10966
        %v11024 = vadd.f32 %v10367, %v10969
        %v11025 = vadd.f32 %v10368, %v10971
        %v11026 = vadd.f32 %v10369, %v10974
        %v11027 = vadd.f32 %v10370, %v10976
        %v11028 = vadd.f32 %v10371, %v10979
        %v11029 = vadd.f32 %v10372, %v10981
        %v11030 = vadd.f32 %v10373, %v10984
        %v11031 = vadd.f32 %v10374, %v10986
        %v11032 = vadd.f32 %v10375, %v10989
        %v11033 = vadd.f32 %v10376, %v10991
        %v11034 = vadd.f32 %v10377, %v10994
        %v11035 = vadd.f32 %v10378, %v10996
        %v11036 = vadd.f32 %v10379, %v10999
        %v11037 = vadd.f32 %v10380, %v11001
        %v11038 = vadd.f32 %v10381, %v11004
        %v11039 = vadd.f32 %v10382, %v11006
        %v11040 = vld [vmem:[%s10093] sm:$0xe]
        %v11041 = vld [vmem:[%s10093 + $0xc] sm:$0xe]
        %v11042 = vld [vmem:[%s10093 + $0x18] sm:$0xe]
        %v11043 = vld [vmem:[%s10093 + $0x24] sm:$0xe]
        %v11044 = vld [vmem:[%s10093 + $0x30] sm:$0xe]
        %v11045 = vld [vmem:[%s10093 + $0x3c] sm:$0xe]
        %v11046 = vld [vmem:[%s10093 + $0x48] sm:$0xe]
        %v11047 = vld [vmem:[%s10093 + $0x54] sm:$0xe]
        %v11048 = vld [vmem:[%s10093 + $0x60] sm:$0xe]
        %v11049 = vld [vmem:[%s10093 + $0x6c] sm:$0xe]
        %v11050 = vld [vmem:[%s10093 + $0x78] sm:$0xe]
        %v11051 = vld [vmem:[%s10093 + $0x84] sm:$0xe]
        %v11052 = vld [vmem:[%s10093 + $0x90] sm:$0xe]
        %v11053 = vld [vmem:[%s10093 + $0x9c] sm:$0xe]
        %v11054 = vld [vmem:[%s10093 + $0xa8] sm:$0xe]
        %v11055 = vld [vmem:[%s10093 + $0xb4] sm:$0xe]
        %v11104 = vrot.slane %v11040, 5
        %v11105 = vrot.slane %v11104, 4
        %v11106 = vrot.slane %v10384, 5
        %v11107 = vsel %vm3041, %v11105, %v11106
        %v11108 = vrot.slane %v11106, 4
        %v11109 = vrot.slane %v10385, 5
        %v11110 = vsel %vm3041, %v11108, %v11109
        %v11111 = vrot.slane %v11041, 5
        %v11112 = vrot.slane %v11111, 4
        %v11113 = vrot.slane %v10387, 5
        %v11114 = vsel %vm3041, %v11112, %v11113
        %v11115 = vrot.slane %v11113, 4
        %v11116 = vrot.slane %v10388, 5
        %v11117 = vsel %vm3041, %v11115, %v11116
        %v11118 = vrot.slane %v11042, 5
        %v11119 = vrot.slane %v11118, 4
        %v11120 = vrot.slane %v10390, 5
        %v11121 = vsel %vm3041, %v11119, %v11120
        %v11122 = vrot.slane %v11120, 4
        %v11123 = vrot.slane %v10391, 5
        %v11124 = vsel %vm3041, %v11122, %v11123
        %v11125 = vrot.slane %v11043, 5
        %v11126 = vrot.slane %v11125, 4
        %v11127 = vrot.slane %v10393, 5
        %v11128 = vsel %vm3041, %v11126, %v11127
        %v11129 = vrot.slane %v11127, 4
        %v11130 = vrot.slane %v10394, 5
        %v11131 = vsel %vm3041, %v11129, %v11130
        %v11132 = vrot.slane %v11044, 5
        %v11133 = vrot.slane %v11132, 4
        %v11134 = vrot.slane %v10396, 5
        %v11135 = vsel %vm3041, %v11133, %v11134
        %v11136 = vrot.slane %v11134, 4
        %v11137 = vrot.slane %v10397, 5
        %v11138 = vsel %vm3041, %v11136, %v11137
        %v11139 = vrot.slane %v11045, 5
        %v11140 = vrot.slane %v11139, 4
        %v11141 = vrot.slane %v10399, 5
        %v11142 = vsel %vm3041, %v11140, %v11141
        %v11143 = vrot.slane %v11141, 4
        %v11144 = vrot.slane %v10400, 5
        %v11145 = vsel %vm3041, %v11143, %v11144
        %v11146 = vrot.slane %v11046, 5
        %v11147 = vrot.slane %v11146, 4
        %v11148 = vrot.slane %v10402, 5
        %v11149 = vsel %vm3041, %v11147, %v11148
        %v11150 = vrot.slane %v11148, 4
        %v11151 = vrot.slane %v10403, 5
        %v11152 = vsel %vm3041, %v11150, %v11151
        %v11153 = vrot.slane %v11047, 5
        %v11154 = vrot.slane %v11153, 4
        %v11155 = vrot.slane %v10405, 5
        %v11156 = vsel %vm3041, %v11154, %v11155
        %v11157 = vrot.slane %v11155, 4
        %v11158 = vrot.slane %v10406, 5
        %v11159 = vsel %vm3041, %v11157, %v11158
        %v11160 = vrot.slane %v11048, 5
        %v11161 = vrot.slane %v11160, 4
        %v11162 = vrot.slane %v10408, 5
        %v11163 = vsel %vm3041, %v11161, %v11162
        %v11164 = vrot.slane %v11162, 4
        %v11165 = vrot.slane %v10409, 5
        %v11166 = vsel %vm3041, %v11164, %v11165
        %v11167 = vrot.slane %v11049, 5
        %v11168 = vrot.slane %v11167, 4
        %v11169 = vrot.slane %v10411, 5
        %v11170 = vsel %vm3041, %v11168, %v11169
        %v11171 = vrot.slane %v11169, 4
        %v11172 = vrot.slane %v10412, 5
        %v11173 = vsel %vm3041, %v11171, %v11172
        %v11174 = vrot.slane %v11050, 5
        %v11175 = vrot.slane %v11174, 4
        %v11176 = vrot.slane %v10414, 5
        %v11177 = vsel %vm3041, %v11175, %v11176
        %v11178 = vrot.slane %v11176, 4
        %v11179 = vrot.slane %v10415, 5
        %v11180 = vsel %vm3041, %v11178, %v11179
        %v11181 = vrot.slane %v11051, 5
        %v11182 = vrot.slane %v11181, 4
        %v11183 = vrot.slane %v10417, 5
        %v11184 = vsel %vm3041, %v11182, %v11183
        %v11185 = vrot.slane %v11183, 4
        %v11186 = vrot.slane %v10418, 5
        %v11187 = vsel %vm3041, %v11185, %v11186
        %v11188 = vrot.slane %v11052, 5
        %v11189 = vrot.slane %v11188, 4
        %v11190 = vrot.slane %v10420, 5
        %v11191 = vsel %vm3041, %v11189, %v11190
        %v11192 = vrot.slane %v11190, 4
        %v11193 = vrot.slane %v10421, 5
        %v11194 = vsel %vm3041, %v11192, %v11193
        %v11195 = vrot.slane %v11053, 5
        %v11196 = vrot.slane %v11195, 4
        %v11197 = vrot.slane %v10423, 5
        %v11198 = vsel %vm3041, %v11196, %v11197
        %v11199 = vrot.slane %v11197, 4
        %v11200 = vrot.slane %v10424, 5
        %v11201 = vsel %vm3041, %v11199, %v11200
        %v11202 = vrot.slane %v11054, 5
        %v11203 = vrot.slane %v11202, 4
        %v11204 = vrot.slane %v10426, 5
        %v11205 = vsel %vm3041, %v11203, %v11204
        %v11206 = vrot.slane %v11204, 4
        %v11207 = vrot.slane %v10427, 5
        %v11208 = vsel %vm3041, %v11206, %v11207
        %v11209 = vrot.slane %v11055, 5
        %v11210 = vrot.slane %v11209, 4
        %v11211 = vrot.slane %v10429, 5
        %v11212 = vsel %vm3041, %v11210, %v11211
        %v11213 = vrot.slane %v11211, 4
        %v11214 = vrot.slane %v10430, 5
        %v11215 = vsel %vm3041, %v11213, %v11214
        %v11216 = vld [vmem:[%s9 + $0x40] sm:$0xf]
        %v11217 = vld [vmem:[%s9 + $0x44] sm:$0xf]
        %v11218 = vunpack.c.l.b16 %v11107
        %v11219 = vunpack.c.l.b16 %v11110
        %v11220 = vunpack.c.l.b16 %v11114
        %v11221 = vunpack.c.l.b16 %v11117
        %v11222 = vunpack.c.l.b16 %v11121
        %v11223 = vunpack.c.l.b16 %v11124
        %v11224 = vunpack.c.l.b16 %v11128
        %v11225 = vunpack.c.l.b16 %v11131
        %v11226 = vunpack.c.l.b16 %v11135
        %v11227 = vunpack.c.l.b16 %v11138
        %v11228 = vunpack.c.l.b16 %v11142
        %v11229 = vunpack.c.l.b16 %v11145
        %v11230 = vunpack.c.l.b16 %v11149
        %v11231 = vunpack.c.l.b16 %v11152
        %v11232 = vunpack.c.l.b16 %v11156
        %v11233 = vunpack.c.l.b16 %v11159
        %v11234 = vunpack.c.l.b16 %v11163
        %v11235 = vunpack.c.l.b16 %v11166
        %v11236 = vunpack.c.l.b16 %v11170
        %v11237 = vunpack.c.l.b16 %v11173
        %v11238 = vunpack.c.l.b16 %v11177
        %v11239 = vunpack.c.l.b16 %v11180
        %v11240 = vunpack.c.l.b16 %v11184
        %v11241 = vunpack.c.l.b16 %v11187
        %v11242 = vunpack.c.l.b16 %v11191
        %v11243 = vunpack.c.l.b16 %v11194
        %v11244 = vunpack.c.l.b16 %v11198
        %v11245 = vunpack.c.l.b16 %v11201
        %v11246 = vunpack.c.l.b16 %v11205
        %v11247 = vunpack.c.l.b16 %v11208
        %v11248 = vunpack.c.l.b16 %v11212
        %v11249 = vunpack.c.l.b16 %v11215
        %v11250 = vpack.c.b16 %v11219, %v11218
        %v11251 = vpack.c.b16 %v11221, %v11220
        %v11252 = vpack.c.b16 %v11223, %v11222
        %v11253 = vpack.c.b16 %v11225, %v11224
        %v11254 = vpack.c.b16 %v11227, %v11226
        %v11255 = vpack.c.b16 %v11229, %v11228
        %v11256 = vpack.c.b16 %v11231, %v11230
        %v11257 = vpack.c.b16 %v11233, %v11232
        %v11258 = vpack.c.b16 %v11235, %v11234
        %v11259 = vpack.c.b16 %v11237, %v11236
        %v11260 = vpack.c.b16 %v11239, %v11238
        %v11261 = vpack.c.b16 %v11241, %v11240
        %v11262 = vpack.c.b16 %v11243, %v11242
        %v11263 = vpack.c.b16 %v11245, %v11244
        %v11264 = vpack.c.b16 %v11247, %v11246
        %v11265 = vpack.c.b16 %v11249, %v11248
        %v11268 = vunpack.c.l.b16 %v11216
        %v11269 = vunpack.c.l.b16 %v11217
        %v11270 = vpack.c.b16 %v11269, %v11268
        %v11273 = vsel %vm6086, %v11250, 0
        %v11276 = vsel %vm6086, %v11251, 0
        %v11279 = vsel %vm6086, %v11252, 0
        %v11282 = vsel %vm6086, %v11253, 0
        %v11285 = vsel %vm6086, %v11254, 0
        %v11288 = vsel %vm6086, %v11255, 0
        %v11291 = vsel %vm6086, %v11256, 0
        %v11294 = vsel %vm6086, %v11257, 0
        %v11297 = vsel %vm6086, %v11258, 0
        %v11300 = vsel %vm6086, %v11259, 0
        %v11303 = vsel %vm6086, %v11260, 0
        %v11306 = vsel %vm6086, %v11261, 0
        %v11309 = vsel %vm6086, %v11262, 0
        %v11312 = vsel %vm6086, %v11263, 0
        %v11315 = vsel %vm6086, %v11264, 0
        %v11318 = vsel %vm6086, %v11265, 0
        %11320 = vmatpush.bf16.msra.mxu0 0
        %11321 = vmatpush.bf16.msra.mxu0 0
        %11322 = vmatpush.bf16.msra.mxu0 0
        %11323 = vmatpush.bf16.msra.mxu0 0
        %11324 = vmatpush.bf16.msra.mxu0 0
        %11325 = vmatpush.bf16.msra.mxu0 0
        %11326 = vmatpush.bf16.msra.mxu0 0
        %11327 = vmatpush.bf16.msra.mxu0 %v11270
        %11328 = vmatmul.bf16.gmra.mxu0 %v11273
        %v11329 = vpop.f32.mrf.mxu0
        %v11330 = vadd.f32 0.0, %v11329
        %v11331 = vpop.f32.mrf.mxu0
        %v11332 = vadd.f32 0.0, %v11331
        %11333 = vmatmul.bf16.gmra.mxu0 %v11276
        %v11334 = vpop.f32.mrf.mxu0
        %v11335 = vadd.f32 0.0, %v11334
        %v11336 = vpop.f32.mrf.mxu0
        %v11337 = vadd.f32 0.0, %v11336
        %11338 = vmatmul.bf16.gmra.mxu0 %v11279
        %v11339 = vpop.f32.mrf.mxu0
        %v11340 = vadd.f32 0.0, %v11339
        %v11341 = vpop.f32.mrf.mxu0
        %v11342 = vadd.f32 0.0, %v11341
        %11343 = vmatmul.bf16.gmra.mxu0 %v11282
        %v11344 = vpop.f32.mrf.mxu0
        %v11345 = vadd.f32 0.0, %v11344
        %v11346 = vpop.f32.mrf.mxu0
        %v11347 = vadd.f32 0.0, %v11346
        %11348 = vmatmul.bf16.gmra.mxu0 %v11285
        %v11349 = vpop.f32.mrf.mxu0
        %v11350 = vadd.f32 0.0, %v11349
        %v11351 = vpop.f32.mrf.mxu0
        %v11352 = vadd.f32 0.0, %v11351
        %11353 = vmatmul.bf16.gmra.mxu0 %v11288
        %v11354 = vpop.f32.mrf.mxu0
        %v11355 = vadd.f32 0.0, %v11354
        %v11356 = vpop.f32.mrf.mxu0
        %v11357 = vadd.f32 0.0, %v11356
        %11358 = vmatmul.bf16.gmra.mxu0 %v11291
        %v11359 = vpop.f32.mrf.mxu0
        %v11360 = vadd.f32 0.0, %v11359
        %v11361 = vpop.f32.mrf.mxu0
        %v11362 = vadd.f32 0.0, %v11361
        %11363 = vmatmul.bf16.gmra.mxu0 %v11294
        %v11364 = vpop.f32.mrf.mxu0
        %v11365 = vadd.f32 0.0, %v11364
        %v11366 = vpop.f32.mrf.mxu0
        %v11367 = vadd.f32 0.0, %v11366
        %11368 = vmatmul.bf16.gmra.mxu0 %v11297
        %v11369 = vpop.f32.mrf.mxu0
        %v11370 = vadd.f32 0.0, %v11369
        %v11371 = vpop.f32.mrf.mxu0
        %v11372 = vadd.f32 0.0, %v11371
        %11373 = vmatmul.bf16.gmra.mxu0 %v11300
        %v11374 = vpop.f32.mrf.mxu0
        %v11375 = vadd.f32 0.0, %v11374
        %v11376 = vpop.f32.mrf.mxu0
        %v11377 = vadd.f32 0.0, %v11376
        %11378 = vmatmul.bf16.gmra.mxu0 %v11303
        %v11379 = vpop.f32.mrf.mxu0
        %v11380 = vadd.f32 0.0, %v11379
        %v11381 = vpop.f32.mrf.mxu0
        %v11382 = vadd.f32 0.0, %v11381
        %11383 = vmatmul.bf16.gmra.mxu0 %v11306
        %v11384 = vpop.f32.mrf.mxu0
        %v11385 = vadd.f32 0.0, %v11384
        %v11386 = vpop.f32.mrf.mxu0
        %v11387 = vadd.f32 0.0, %v11386
        %11388 = vmatmul.bf16.gmra.mxu0 %v11309
        %v11389 = vpop.f32.mrf.mxu0
        %v11390 = vadd.f32 0.0, %v11389
        %v11391 = vpop.f32.mrf.mxu0
        %v11392 = vadd.f32 0.0, %v11391
        %11393 = vmatmul.bf16.gmra.mxu0 %v11312
        %v11394 = vpop.f32.mrf.mxu0
        %v11395 = vadd.f32 0.0, %v11394
        %v11396 = vpop.f32.mrf.mxu0
        %v11397 = vadd.f32 0.0, %v11396
        %11398 = vmatmul.bf16.gmra.mxu0 %v11315
        %v11399 = vpop.f32.mrf.mxu0
        %v11400 = vadd.f32 0.0, %v11399
        %v11401 = vpop.f32.mrf.mxu0
        %v11402 = vadd.f32 0.0, %v11401
        %11403 = vmatmul.bf16.gmra.mxu0 %v11318
        %v11404 = vpop.f32.mrf.mxu0
        %v11405 = vadd.f32 0.0, %v11404
        %v11406 = vpop.f32.mrf.mxu0
        %v11407 = vadd.f32 0.0, %v11406
        %11408 = vdwg.mxu0
        %v11409 = vadd.f32 %v11008, %v11330
        %v11410 = vadd.f32 %v11009, %v11332
        %v11411 = vadd.f32 %v11010, %v11335
        %v11412 = vadd.f32 %v11011, %v11337
        %v11413 = vadd.f32 %v11012, %v11340
        %v11414 = vadd.f32 %v11013, %v11342
        %v11415 = vadd.f32 %v11014, %v11345
        %v11416 = vadd.f32 %v11015, %v11347
        %v11417 = vadd.f32 %v11016, %v11350
        %v11418 = vadd.f32 %v11017, %v11352
        %v11419 = vadd.f32 %v11018, %v11355
        %v11420 = vadd.f32 %v11019, %v11357
        %v11421 = vadd.f32 %v11020, %v11360
        %v11422 = vadd.f32 %v11021, %v11362
        %v11423 = vadd.f32 %v11022, %v11365
        %v11424 = vadd.f32 %v11023, %v11367
        %v11425 = vadd.f32 %v11024, %v11370
        %v11426 = vadd.f32 %v11025, %v11372
        %v11427 = vadd.f32 %v11026, %v11375
        %v11428 = vadd.f32 %v11027, %v11377
        %v11429 = vadd.f32 %v11028, %v11380
        %v11430 = vadd.f32 %v11029, %v11382
        %v11431 = vadd.f32 %v11030, %v11385
        %v11432 = vadd.f32 %v11031, %v11387
        %v11433 = vadd.f32 %v11032, %v11390
        %v11434 = vadd.f32 %v11033, %v11392
        %v11435 = vadd.f32 %v11034, %v11395
        %v11436 = vadd.f32 %v11035, %v11397
        %v11437 = vadd.f32 %v11036, %v11400
        %v11438 = vadd.f32 %v11037, %v11402
        %v11439 = vadd.f32 %v11038, %v11405
        %v11440 = vadd.f32 %v11039, %v11407
        %v11441 = vld [vmem:[%s10] sm:$0x1]
        %v11443 = vperm.slane %v11441, 0
        %v11445 = vadd.f32 %v11409, %v11443
        %v11446 = vadd.f32 %v11410, %v11443
        %v11447 = vadd.f32 %v11411, %v11443
        %v11448 = vadd.f32 %v11412, %v11443
        %v11449 = vadd.f32 %v11413, %v11443
        %v11450 = vadd.f32 %v11414, %v11443
        %v11451 = vadd.f32 %v11415, %v11443
        %v11452 = vadd.f32 %v11416, %v11443
        %v11453 = vadd.f32 %v11417, %v11443
        %v11454 = vadd.f32 %v11418, %v11443
        %v11455 = vadd.f32 %v11419, %v11443
        %v11456 = vadd.f32 %v11420, %v11443
        %v11457 = vadd.f32 %v11421, %v11443
        %v11458 = vadd.f32 %v11422, %v11443
        %v11459 = vadd.f32 %v11423, %v11443
        %v11460 = vadd.f32 %v11424, %v11443
        %v11461 = vadd.f32 %v11425, %v11443
        %v11462 = vadd.f32 %v11426, %v11443
        %v11463 = vadd.f32 %v11427, %v11443
        %v11464 = vadd.f32 %v11428, %v11443
        %v11465 = vadd.f32 %v11429, %v11443
        %v11466 = vadd.f32 %v11430, %v11443
        %v11467 = vadd.f32 %v11431, %v11443
        %v11468 = vadd.f32 %v11432, %v11443
        %v11469 = vadd.f32 %v11433, %v11443
        %v11470 = vadd.f32 %v11434, %v11443
        %v11471 = vadd.f32 %v11435, %v11443
        %v11472 = vadd.f32 %v11436, %v11443
        %v11473 = vadd.f32 %v11437, %v11443
        %v11474 = vadd.f32 %v11438, %v11443
        %v11475 = vadd.f32 %v11439, %v11443
        %v11476 = vadd.f32 %v11440, %v11443
        %v11477 = vpack.c.bf16 %v683, %v682
        %v11478 = vpack.c.bf16 %v685, %v684
        %v11479 = vpack.c.bf16 %v687, %v686
        %v11480 = vpack.c.bf16 %v689, %v688
        %v11481 = vpack.c.bf16 %v691, %v690
        %v11482 = vpack.c.bf16 %v693, %v692
        %v11483 = vpack.c.bf16 %v695, %v694
        %v11484 = vpack.c.bf16 %v697, %v696
        %v11485 = vpack.c.bf16 %v699, %v698
        %v11486 = vpack.c.bf16 %v701, %v700
        %v11487 = vpack.c.bf16 %v703, %v702
        %v11488 = vpack.c.bf16 %v705, %v704
        %v11489 = vpack.c.bf16 %v707, %v706
        %v11490 = vpack.c.bf16 %v709, %v708
        %v11491 = vpack.c.bf16 %v711, %v710
        %v11492 = vpack.c.bf16 %v713, %v712
        %v11493 = vld [vmem:[%s11] sm:$0xf]
        %v11494 = vld [vmem:[%s12] sm:$0x1]
        %v11496 = vperm.slane %v11494, 0
        %v11499 = vsel %vm717, %v11477, 0
        %v11502 = vsel %vm717, %v11478, 0
        %v11505 = vsel %vm717, %v11479, 0
        %v11508 = vsel %vm717, %v11480, 0
        %v11511 = vsel %vm717, %v11481, 0
        %v11514 = vsel %vm717, %v11482, 0
        %v11517 = vsel %vm717, %v11483, 0
        %v11520 = vsel %vm717, %v11484, 0
        %v11523 = vsel %vm717, %v11485, 0
        %v11526 = vsel %vm717, %v11486, 0
        %v11529 = vsel %vm717, %v11487, 0
        %v11532 = vsel %vm717, %v11488, 0
        %v11535 = vsel %vm717, %v11489, 0
        %v11538 = vsel %vm717, %v11490, 0
        %v11541 = vsel %vm717, %v11491, 0
        %v11544 = vsel %vm717, %v11492, 0
        %v11547 = vsel %vm2678, %v11493, 0
        %11549 = vmatpush.bf16.msra.mxu0 0
        %11550 = vmatpush.bf16.msra.mxu0 0
        %11551 = vmatpush.bf16.msra.mxu0 0
        %11552 = vmatpush.bf16.msra.mxu0 0
        %11553 = vmatpush.bf16.msra.mxu0 0
        %11554 = vmatpush.bf16.msra.mxu0 0
        %11555 = vmatpush.bf16.msra.mxu0 0
        %11556 = vmatpush.bf16.msra.mxu0 %v11547
        %11557 = vmatmul.bf16.gmra.mxu0 %v11499
        %v11558 = vpop.f32.mrf.mxu0
        %v11559 = vadd.f32 %v11496, %v11558
        %v11560 = vpop.f32.mrf.mxu0
        %v11561 = vadd.f32 %v11496, %v11560
        %11562 = vmatmul.bf16.gmra.mxu0 %v11502
        %v11563 = vpop.f32.mrf.mxu0
        %v11564 = vadd.f32 %v11496, %v11563
        %v11565 = vpop.f32.mrf.mxu0
        %v11566 = vadd.f32 %v11496, %v11565
        %11567 = vmatmul.bf16.gmra.mxu0 %v11505
        %v11568 = vpop.f32.mrf.mxu0
        %v11569 = vadd.f32 %v11496, %v11568
        %v11570 = vpop.f32.mrf.mxu0
        %v11571 = vadd.f32 %v11496, %v11570
        %11572 = vmatmul.bf16.gmra.mxu0 %v11508
        %v11573 = vpop.f32.mrf.mxu0
        %v11574 = vadd.f32 %v11496, %v11573
        %v11575 = vpop.f32.mrf.mxu0
        %v11576 = vadd.f32 %v11496, %v11575
        %11577 = vmatmul.bf16.gmra.mxu0 %v11511
        %v11578 = vpop.f32.mrf.mxu0
        %v11579 = vadd.f32 %v11496, %v11578
        %v11580 = vpop.f32.mrf.mxu0
        %v11581 = vadd.f32 %v11496, %v11580
        %11582 = vmatmul.bf16.gmra.mxu0 %v11514
        %v11583 = vpop.f32.mrf.mxu0
        %v11584 = vadd.f32 %v11496, %v11583
        %v11585 = vpop.f32.mrf.mxu0
        %v11586 = vadd.f32 %v11496, %v11585
        %11587 = vmatmul.bf16.gmra.mxu0 %v11517
        %v11588 = vpop.f32.mrf.mxu0
        %v11589 = vadd.f32 %v11496, %v11588
        %v11590 = vpop.f32.mrf.mxu0
        %v11591 = vadd.f32 %v11496, %v11590
        %11592 = vmatmul.bf16.gmra.mxu0 %v11520
        %v11593 = vpop.f32.mrf.mxu0
        %v11594 = vadd.f32 %v11496, %v11593
        %v11595 = vpop.f32.mrf.mxu0
        %v11596 = vadd.f32 %v11496, %v11595
        %11597 = vmatmul.bf16.gmra.mxu0 %v11523
        %v11598 = vpop.f32.mrf.mxu0
        %v11599 = vadd.f32 %v11496, %v11598
        %v11600 = vpop.f32.mrf.mxu0
        %v11601 = vadd.f32 %v11496, %v11600
        %11602 = vmatmul.bf16.gmra.mxu0 %v11526
        %v11603 = vpop.f32.mrf.mxu0
        %v11604 = vadd.f32 %v11496, %v11603
        %v11605 = vpop.f32.mrf.mxu0
        %v11606 = vadd.f32 %v11496, %v11605
        %11607 = vmatmul.bf16.gmra.mxu0 %v11529
        %v11608 = vpop.f32.mrf.mxu0
        %v11609 = vadd.f32 %v11496, %v11608
        %v11610 = vpop.f32.mrf.mxu0
        %v11611 = vadd.f32 %v11496, %v11610
        %11612 = vmatmul.bf16.gmra.mxu0 %v11532
        %v11613 = vpop.f32.mrf.mxu0
        %v11614 = vadd.f32 %v11496, %v11613
        %v11615 = vpop.f32.mrf.mxu0
        %v11616 = vadd.f32 %v11496, %v11615
        %11617 = vmatmul.bf16.gmra.mxu0 %v11535
        %v11618 = vpop.f32.mrf.mxu0
        %v11619 = vadd.f32 %v11496, %v11618
        %v11620 = vpop.f32.mrf.mxu0
        %v11621 = vadd.f32 %v11496, %v11620
        %11622 = vmatmul.bf16.gmra.mxu0 %v11538
        %v11623 = vpop.f32.mrf.mxu0
        %v11624 = vadd.f32 %v11496, %v11623
        %v11625 = vpop.f32.mrf.mxu0
        %v11626 = vadd.f32 %v11496, %v11625
        %11627 = vmatmul.bf16.gmra.mxu0 %v11541
        %v11628 = vpop.f32.mrf.mxu0
        %v11629 = vadd.f32 %v11496, %v11628
        %v11630 = vpop.f32.mrf.mxu0
        %v11631 = vadd.f32 %v11496, %v11630
        %11632 = vmatmul.bf16.gmra.mxu0 %v11544
        %v11633 = vpop.f32.mrf.mxu0
        %v11634 = vadd.f32 %v11496, %v11633
        %v11635 = vpop.f32.mrf.mxu0
        %v11636 = vadd.f32 %v11496, %v11635
        %11637 = vdwg.mxu0
        %v11638 = vadd.f32 %v11445, %v11559
        %v11639 = vadd.f32 %v11446, %v11561
        %v11640 = vadd.f32 %v11447, %v11564
        %v11641 = vadd.f32 %v11448, %v11566
        %v11642 = vadd.f32 %v11449, %v11569
        %v11643 = vadd.f32 %v11450, %v11571
        %v11644 = vadd.f32 %v11451, %v11574
        %v11645 = vadd.f32 %v11452, %v11576
        %v11646 = vadd.f32 %v11453, %v11579
        %v11647 = vadd.f32 %v11454, %v11581
        %v11648 = vadd.f32 %v11455, %v11584
        %v11649 = vadd.f32 %v11456, %v11586
        %v11650 = vadd.f32 %v11457, %v11589
        %v11651 = vadd.f32 %v11458, %v11591
        %v11652 = vadd.f32 %v11459, %v11594
        %v11653 = vadd.f32 %v11460, %v11596
        %v11654 = vadd.f32 %v11461, %v11599
        %v11655 = vadd.f32 %v11462, %v11601
        %v11656 = vadd.f32 %v11463, %v11604
        %v11657 = vadd.f32 %v11464, %v11606
        %v11658 = vadd.f32 %v11465, %v11609
        %v11659 = vadd.f32 %v11466, %v11611
        %v11660 = vadd.f32 %v11467, %v11614
        %v11661 = vadd.f32 %v11468, %v11616
        %v11662 = vadd.f32 %v11469, %v11619
        %v11663 = vadd.f32 %v11470, %v11621
        %v11664 = vadd.f32 %v11471, %v11624
        %v11665 = vadd.f32 %v11472, %v11626
        %v11666 = vadd.f32 %v11473, %v11629
        %v11667 = vadd.f32 %v11474, %v11631
        %v11668 = vadd.f32 %v11475, %v11634
        %v11669 = vadd.f32 %v11476, %v11636
        %v11670 = vmul.f32 %v11638, 0.70710677
        %v11671 = vmul.f32 %v11639, 0.70710677
        %v11672 = vmul.f32 %v11640, 0.70710677
        %v11673 = vmul.f32 %v11641, 0.70710677
        %v11674 = vmul.f32 %v11642, 0.70710677
        %v11675 = vmul.f32 %v11643, 0.70710677
        %v11676 = vmul.f32 %v11644, 0.70710677
        %v11677 = vmul.f32 %v11645, 0.70710677
        %v11678 = vmul.f32 %v11646, 0.70710677
        %v11679 = vmul.f32 %v11647, 0.70710677
        %v11680 = vmul.f32 %v11648, 0.70710677
        %v11681 = vmul.f32 %v11649, 0.70710677
        %v11682 = vmul.f32 %v11650, 0.70710677
        %v11683 = vmul.f32 %v11651, 0.70710677
        %v11684 = vmul.f32 %v11652, 0.70710677
        %v11685 = vmul.f32 %v11653, 0.70710677
        %v11686 = vmul.f32 %v11654, 0.70710677
        %v11687 = vmul.f32 %v11655, 0.70710677
        %v11688 = vmul.f32 %v11656, 0.70710677
        %v11689 = vmul.f32 %v11657, 0.70710677
        %v11690 = vmul.f32 %v11658, 0.70710677
        %v11691 = vmul.f32 %v11659, 0.70710677
        %v11692 = vmul.f32 %v11660, 0.70710677
        %v11693 = vmul.f32 %v11661, 0.70710677
        %v11694 = vmul.f32 %v11662, 0.70710677
        %v11695 = vmul.f32 %v11663, 0.70710677
        %v11696 = vmul.f32 %v11664, 0.70710677
        %v11697 = vmul.f32 %v11665, 0.70710677
        %v11698 = vmul.f32 %v11666, 0.70710677
        %v11699 = vmul.f32 %v11667, 0.70710677
        %v11700 = vmul.f32 %v11668, 0.70710677
        %v11701 = vmul.f32 %v11669, 0.70710677
        %v11718 = vrot.slane %v11672, 7
        %vm11719 = vcmask 1041409
        %v11720 = vsel %vm11719, %v11718, %v11670
        %v11721 = vrot.slane %v11674, 6
        %vm11722 = vcmask 1042434
        %v11723 = vsel %vm11722, %v11721, %v11720
        %v11724 = vrot.slane %v11676, 5
        %vm11725 = vcmask 1043459
        %v11726 = vsel %vm11725, %v11724, %v11723
        %v11727 = vrot.slane %v11678, 4
        %vm11728 = vcmask 1044484
        %v11729 = vsel %vm11728, %v11727, %v11726
        %v11730 = vrot.slane %v11680, 3
        %vm11731 = vcmask 1045509
        %v11732 = vsel %vm11731, %v11730, %v11729
        %v11733 = vrot.slane %v11682, 2
        %vm11734 = vcmask 1046534
        %v11735 = vsel %vm11734, %v11733, %v11732
        %v11736 = vrot.slane %v11684, 1
        %vm11737 = vcmask 1047559
        %v11738 = vsel %vm11737, %v11736, %v11735
        %v11739 = vrot.slane %v11688, 7
        %v11740 = vsel %vm11719, %v11739, %v11686
        %v11741 = vrot.slane %v11690, 6
        %v11742 = vsel %vm11722, %v11741, %v11740
        %v11743 = vrot.slane %v11692, 5
        %v11744 = vsel %vm11725, %v11743, %v11742
        %v11745 = vrot.slane %v11694, 4
        %v11746 = vsel %vm11728, %v11745, %v11744
        %v11747 = vrot.slane %v11696, 3
        %v11748 = vsel %vm11731, %v11747, %v11746
        %v11749 = vrot.slane %v11698, 2
        %v11750 = vsel %vm11734, %v11749, %v11748
        %v11751 = vrot.slane %v11700, 1
        %v11752 = vsel %vm11737, %v11751, %v11750
        %11755 = vst.msk [vmem:[%s433] sm:$0xff] %vm6086, %v11738
        %11756 = vst.msk [vmem:[%s433 + $0x10] sm:$0xff] %vm6086, %v11752
        %v11757 = vrot.slane %v11670, 1
        %v11758 = vsel %vm11719, %v11672, %v11757
        %v11759 = vrot.slane %v11674, 7
        %v11760 = vsel %vm11722, %v11759, %v11758
        %v11761 = vrot.slane %v11676, 6
        %v11762 = vsel %vm11725, %v11761, %v11760
        %v11763 = vrot.slane %v11678, 5
        %v11764 = vsel %vm11728, %v11763, %v11762
        %v11765 = vrot.slane %v11680, 4
        %v11766 = vsel %vm11731, %v11765, %v11764
        %v11767 = vrot.slane %v11682, 3
        %v11768 = vsel %vm11734, %v11767, %v11766
        %v11769 = vrot.slane %v11684, 2
        %v11770 = vsel %vm11737, %v11769, %v11768
        %v11771 = vrot.slane %v11686, 1
        %v11772 = vsel %vm11719, %v11688, %v11771
        %v11773 = vrot.slane %v11690, 7
        %v11774 = vsel %vm11722, %v11773, %v11772
        %v11775 = vrot.slane %v11692, 6
        %v11776 = vsel %vm11725, %v11775, %v11774
        %v11777 = vrot.slane %v11694, 5
        %v11778 = vsel %vm11728, %v11777, %v11776
        %v11779 = vrot.slane %v11696, 4
        %v11780 = vsel %vm11731, %v11779, %v11778
        %v11781 = vrot.slane %v11698, 3
        %v11782 = vsel %vm11734, %v11781, %v11780
        %v11783 = vrot.slane %v11700, 2
        %v11784 = vsel %vm11737, %v11783, %v11782
        %11785 = vrot.lane.b32.xlu0 %v11770, 16
        %v11786 = vpop.permute.xlu0 %11785
        %11787 = vrot.lane.b32.xlu0 %v11784, 16
        %v11788 = vpop.permute.xlu0 %11787
        %vm11791 = vcmask 261248
        %11792 = vst.msk [vmem:[%s433] sm:$0xff] %vm11791, %v11786
        %11793 = vst.msk [vmem:[%s433 + $0x10] sm:$0xff] %vm11791, %v11788
        %v11794 = vrot.slane %v11670, 2
        %v11795 = vrot.slane %v11672, 1
        %v11796 = vsel %vm11719, %v11795, %v11794
        %v11797 = vsel %vm11722, %v11674, %v11796
        %v11798 = vrot.slane %v11676, 7
        %v11799 = vsel %vm11725, %v11798, %v11797
        %v11800 = vrot.slane %v11678, 6
        %v11801 = vsel %vm11728, %v11800, %v11799
        %v11802 = vrot.slane %v11680, 5
        %v11803 = vsel %vm11731, %v11802, %v11801
        %v11804 = vrot.slane %v11682, 4
        %v11805 = vsel %vm11734, %v11804, %v11803
        %v11806 = vrot.slane %v11684, 3
        %v11807 = vsel %vm11737, %v11806, %v11805
        %v11808 = vrot.slane %v11686, 2
        %v11809 = vrot.slane %v11688, 1
        %v11810 = vsel %vm11719, %v11809, %v11808
        %v11811 = vsel %vm11722, %v11690, %v11810
        %v11812 = vrot.slane %v11692, 7
        %v11813 = vsel %vm11725, %v11812, %v11811
        %v11814 = vrot.slane %v11694, 6
        %v11815 = vsel %vm11728, %v11814, %v11813
        %v11816 = vrot.slane %v11696, 5
        %v11817 = vsel %vm11731, %v11816, %v11815
        %v11818 = vrot.slane %v11698, 4
        %v11819 = vsel %vm11734, %v11818, %v11817
        %v11820 = vrot.slane %v11700, 3
        %v11821 = vsel %vm11737, %v11820, %v11819
        %11822 = vrot.lane.b32.xlu0 %v11807, 32
        %v11823 = vpop.permute.xlu0 %11822
        %11824 = vrot.lane.b32.xlu0 %v11821, 32
        %v11825 = vpop.permute.xlu0 %11824
        %vm11828 = vcmask 392448
        %11829 = vst.msk [vmem:[%s433] sm:$0xff] %vm11828, %v11823
        %11830 = vst.msk [vmem:[%s433 + $0x10] sm:$0xff] %vm11828, %v11825
        %v11831 = vrot.slane %v11670, 3
        %v11832 = vrot.slane %v11672, 2
        %v11833 = vsel %vm11719, %v11832, %v11831
        %v11834 = vrot.slane %v11674, 1
        %v11835 = vsel %vm11722, %v11834, %v11833
        %v11836 = vsel %vm11725, %v11676, %v11835
        %v11837 = vrot.slane %v11678, 7
        %v11838 = vsel %vm11728, %v11837, %v11836
        %v11839 = vrot.slane %v11680, 6
        %v11840 = vsel %vm11731, %v11839, %v11838
        %v11841 = vrot.slane %v11682, 5
        %v11842 = vsel %vm11734, %v11841, %v11840
        %v11843 = vrot.slane %v11684, 4
        %v11844 = vsel %vm11737, %v11843, %v11842
        %v11845 = vrot.slane %v11686, 3
        %v11846 = vrot.slane %v11688, 2
        %v11847 = vsel %vm11719, %v11846, %v11845
        %v11848 = vrot.slane %v11690, 1
        %v11849 = vsel %vm11722, %v11848, %v11847
        %v11850 = vsel %vm11725, %v11692, %v11849
        %v11851 = vrot.slane %v11694, 7
        %v11852 = vsel %vm11728, %v11851, %v11850
        %v11853 = vrot.slane %v11696, 6
        %v11854 = vsel %vm11731, %v11853, %v11852
        %v11855 = vrot.slane %v11698, 5
        %v11856 = vsel %vm11734, %v11855, %v11854
        %v11857 = vrot.slane %v11700, 4
        %v11858 = vsel %vm11737, %v11857, %v11856
        %11859 = vrot.lane.b32.xlu0 %v11844, 48
        %v11860 = vpop.permute.xlu0 %11859
        %11861 = vrot.lane.b32.xlu0 %v11858, 48
        %v11862 = vpop.permute.xlu0 %11861
        %vm11865 = vcmask 523648
        %11866 = vst.msk [vmem:[%s433] sm:$0xff] %vm11865, %v11860
        %11867 = vst.msk [vmem:[%s433 + $0x10] sm:$0xff] %vm11865, %v11862
        %v11868 = vrot.slane %v11670, 4
        %v11869 = vrot.slane %v11672, 3
        %v11870 = vsel %vm11719, %v11869, %v11868
        %v11871 = vrot.slane %v11674, 2
        %v11872 = vsel %vm11722, %v11871, %v11870
        %v11873 = vrot.slane %v11676, 1
        %v11874 = vsel %vm11725, %v11873, %v11872
        %v11875 = vsel %vm11728, %v11678, %v11874
        %v11876 = vrot.slane %v11680, 7
        %v11877 = vsel %vm11731, %v11876, %v11875
        %v11878 = vrot.slane %v11682, 6
        %v11879 = vsel %vm11734, %v11878, %v11877
        %v11880 = vrot.slane %v11684, 5
        %v11881 = vsel %vm11737, %v11880, %v11879
        %v11882 = vrot.slane %v11686, 4
        %v11883 = vrot.slane %v11688, 3
        %v11884 = vsel %vm11719, %v11883, %v11882
        %v11885 = vrot.slane %v11690, 2
        %v11886 = vsel %vm11722, %v11885, %v11884
        %v11887 = vrot.slane %v11692, 1
        %v11888 = vsel %vm11725, %v11887, %v11886
        %v11889 = vsel %vm11728, %v11694, %v11888
        %v11890 = vrot.slane %v11696, 7
        %v11891 = vsel %vm11731, %v11890, %v11889
        %v11892 = vrot.slane %v11698, 6
        %v11893 = vsel %vm11734, %v11892, %v11891
        %v11894 = vrot.slane %v11700, 5
        %v11895 = vsel %vm11737, %v11894, %v11893
        %11896 = vrot.lane.b32.xlu0 %v11881, 64
        %v11897 = vpop.permute.xlu0 %11896
        %11898 = vrot.lane.b32.xlu0 %v11895, 64
        %v11899 = vpop.permute.xlu0 %11898
        %vm11902 = vcmask 654848
        %11903 = vst.msk [vmem:[%s433] sm:$0xff] %vm11902, %v11897
        %11904 = vst.msk [vmem:[%s433 + $0x10] sm:$0xff] %vm11902, %v11899
        %v11905 = vrot.slane %v11670, 5
        %v11906 = vrot.slane %v11672, 4
        %v11907 = vsel %vm11719, %v11906, %v11905
        %v11908 = vrot.slane %v11674, 3
        %v11909 = vsel %vm11722, %v11908, %v11907
        %v11910 = vrot.slane %v11676, 2
        %v11911 = vsel %vm11725, %v11910, %v11909
        %v11912 = vrot.slane %v11678, 1
        %v11913 = vsel %vm11728, %v11912, %v11911
        %v11914 = vsel %vm11731, %v11680, %v11913
        %v11915 = vrot.slane %v11682, 7
        %v11916 = vsel %vm11734, %v11915, %v11914
        %v11917 = vrot.slane %v11684, 6
        %v11918 = vsel %vm11737, %v11917, %v11916
        %v11919 = vrot.slane %v11686, 5
        %v11920 = vrot.slane %v11688, 4
        %v11921 = vsel %vm11719, %v11920, %v11919
        %v11922 = vrot.slane %v11690, 3
        %v11923 = vsel %vm11722, %v11922, %v11921
        %v11924 = vrot.slane %v11692, 2
        %v11925 = vsel %vm11725, %v11924, %v11923
        %v11926 = vrot.slane %v11694, 1
        %v11927 = vsel %vm11728, %v11926, %v11925
        %v11928 = vsel %vm11731, %v11696, %v11927
        %v11929 = vrot.slane %v11698, 7
        %v11930 = vsel %vm11734, %v11929, %v11928
        %v11931 = vrot.slane %v11700, 6
        %v11932 = vsel %vm11737, %v11931, %v11930
        %11933 = vrot.lane.b32.xlu0 %v11918, 80
        %v11934 = vpop.permute.xlu0 %11933
        %11935 = vrot.lane.b32.xlu0 %v11932, 80
        %v11936 = vpop.permute.xlu0 %11935
        %vm11939 = vcmask 786048
        %11940 = vst.msk [vmem:[%s433] sm:$0xff] %vm11939, %v11934
        %11941 = vst.msk [vmem:[%s433 + $0x10] sm:$0xff] %vm11939, %v11936
        %v11942 = vrot.slane %v11670, 6
        %v11943 = vrot.slane %v11672, 5
        %v11944 = vsel %vm11719, %v11943, %v11942
        %v11945 = vrot.slane %v11674, 4
        %v11946 = vsel %vm11722, %v11945, %v11944
        %v11947 = vrot.slane %v11676, 3
        %v11948 = vsel %vm11725, %v11947, %v11946
        %v11949 = vrot.slane %v11678, 2
        %v11950 = vsel %vm11728, %v11949, %v11948
        %v11951 = vrot.slane %v11680, 1
        %v11952 = vsel %vm11731, %v11951, %v11950
        %v11953 = vsel %vm11734, %v11682, %v11952
        %v11954 = vrot.slane %v11684, 7
        %v11955 = vsel %vm11737, %v11954, %v11953
        %v11956 = vrot.slane %v11686, 6
        %v11957 = vrot.slane %v11688, 5
        %v11958 = vsel %vm11719, %v11957, %v11956
        %v11959 = vrot.slane %v11690, 4
        %v11960 = vsel %vm11722, %v11959, %v11958
        %v11961 = vrot.slane %v11692, 3
        %v11962 = vsel %vm11725, %v11961, %v11960
        %v11963 = vrot.slane %v11694, 2
        %v11964 = vsel %vm11728, %v11963, %v11962
        %v11965 = vrot.slane %v11696, 1
        %v11966 = vsel %vm11731, %v11965, %v11964
        %v11967 = vsel %vm11734, %v11698, %v11966
        %v11968 = vrot.slane %v11700, 7
        %v11969 = vsel %vm11737, %v11968, %v11967
        %11970 = vrot.lane.b32.xlu0 %v11955, 96
        %v11971 = vpop.permute.xlu0 %11970
        %11972 = vrot.lane.b32.xlu0 %v11969, 96
        %v11973 = vpop.permute.xlu0 %11972
        %vm11976 = vcmask 917248
        %11977 = vst.msk [vmem:[%s433] sm:$0xff] %vm11976, %v11971
        %11978 = vst.msk [vmem:[%s433 + $0x10] sm:$0xff] %vm11976, %v11973
        %v11979 = vrot.slane %v11670, 7
        %v11980 = vrot.slane %v11672, 6
        %v11981 = vsel %vm11719, %v11980, %v11979
        %v11982 = vrot.slane %v11674, 5
        %v11983 = vsel %vm11722, %v11982, %v11981
        %v11984 = vrot.slane %v11676, 4
        %v11985 = vsel %vm11725, %v11984, %v11983
        %v11986 = vrot.slane %v11678, 3
        %v11987 = vsel %vm11728, %v11986, %v11985
        %v11988 = vrot.slane %v11680, 2
        %v11989 = vsel %vm11731, %v11988, %v11987
        %v11990 = vrot.slane %v11682, 1
        %v11991 = vsel %vm11734, %v11990, %v11989
        %v11992 = vsel %vm11737, %v11684, %v11991
        %v11993 = vrot.slane %v11686, 7
        %v11994 = vrot.slane %v11688, 6
        %v11995 = vsel %vm11719, %v11994, %v11993
        %v11996 = vrot.slane %v11690, 5
        %v11997 = vsel %vm11722, %v11996, %v11995
        %v11998 = vrot.slane %v11692, 4
        %v11999 = vsel %vm11725, %v11998, %v11997
        %v12000 = vrot.slane %v11694, 3
        %v12001 = vsel %vm11728, %v12000, %v11999
        %v12002 = vrot.slane %v11696, 2
        %v12003 = vsel %vm11731, %v12002, %v12001
        %v12004 = vrot.slane %v11698, 1
        %v12005 = vsel %vm11734, %v12004, %v12003
        %v12006 = vsel %vm11737, %v11700, %v12005
        %12007 = vrot.lane.b32.xlu0 %v11992, 112
        %v12008 = vpop.permute.xlu0 %12007
        %12009 = vrot.lane.b32.xlu0 %v12006, 112
        %v12010 = vpop.permute.xlu0 %12009
        %vm12013 = vcmask 1048448
        %12014 = vst.msk [vmem:[%s433] sm:$0xff] %vm12013, %v12008
        %12015 = vst.msk [vmem:[%s433 + $0x10] sm:$0xff] %vm12013, %v12010
        %v12032 = vrot.slane %v11673, 7
        %v12033 = vsel %vm11719, %v12032, %v11671
        %v12034 = vrot.slane %v11675, 6
        %v12035 = vsel %vm11722, %v12034, %v12033
        %v12036 = vrot.slane %v11677, 5
        %v12037 = vsel %vm11725, %v12036, %v12035
        %v12038 = vrot.slane %v11679, 4
        %v12039 = vsel %vm11728, %v12038, %v12037
        %v12040 = vrot.slane %v11681, 3
        %v12041 = vsel %vm11731, %v12040, %v12039
        %v12042 = vrot.slane %v11683, 2
        %v12043 = vsel %vm11734, %v12042, %v12041
        %v12044 = vrot.slane %v11685, 1
        %v12045 = vsel %vm11737, %v12044, %v12043
        %v12046 = vrot.slane %v11689, 7
        %v12047 = vsel %vm11719, %v12046, %v11687
        %v12048 = vrot.slane %v11691, 6
        %v12049 = vsel %vm11722, %v12048, %v12047
        %v12050 = vrot.slane %v11693, 5
        %v12051 = vsel %vm11725, %v12050, %v12049
        %v12052 = vrot.slane %v11695, 4
        %v12053 = vsel %vm11728, %v12052, %v12051
        %v12054 = vrot.slane %v11697, 3
        %v12055 = vsel %vm11731, %v12054, %v12053
        %v12056 = vrot.slane %v11699, 2
        %v12057 = vsel %vm11734, %v12056, %v12055
        %v12058 = vrot.slane %v11701, 1
        %v12059 = vsel %vm11737, %v12058, %v12057
        %12062 = vst.msk [vmem:[%s433 + $0x8] sm:$0xff] %vm6086, %v12045
        %12063 = vst.msk [vmem:[%s433 + $0x18] sm:$0xff] %vm6086, %v12059
        %v12064 = vrot.slane %v11671, 1
        %v12065 = vsel %vm11719, %v11673, %v12064
        %v12066 = vrot.slane %v11675, 7
        %v12067 = vsel %vm11722, %v12066, %v12065
        %v12068 = vrot.slane %v11677, 6
        %v12069 = vsel %vm11725, %v12068, %v12067
        %v12070 = vrot.slane %v11679, 5
        %v12071 = vsel %vm11728, %v12070, %v12069
        %v12072 = vrot.slane %v11681, 4
        %v12073 = vsel %vm11731, %v12072, %v12071
        %v12074 = vrot.slane %v11683, 3
        %v12075 = vsel %vm11734, %v12074, %v12073
        %v12076 = vrot.slane %v11685, 2
        %v12077 = vsel %vm11737, %v12076, %v12075
        %v12078 = vrot.slane %v11687, 1
        %v12079 = vsel %vm11719, %v11689, %v12078
        %v12080 = vrot.slane %v11691, 7
        %v12081 = vsel %vm11722, %v12080, %v12079
        %v12082 = vrot.slane %v11693, 6
        %v12083 = vsel %vm11725, %v12082, %v12081
        %v12084 = vrot.slane %v11695, 5
        %v12085 = vsel %vm11728, %v12084, %v12083
        %v12086 = vrot.slane %v11697, 4
        %v12087 = vsel %vm11731, %v12086, %v12085
        %v12088 = vrot.slane %v11699, 3
        %v12089 = vsel %vm11734, %v12088, %v12087
        %v12090 = vrot.slane %v11701, 2
        %v12091 = vsel %vm11737, %v12090, %v12089
        %12092 = vrot.lane.b32.xlu0 %v12077, 16
        %v12093 = vpop.permute.xlu0 %12092
        %12094 = vrot.lane.b32.xlu0 %v12091, 16
        %v12095 = vpop.permute.xlu0 %12094
        %12098 = vst.msk [vmem:[%s433 + $0x8] sm:$0xff] %vm11791, %v12093
        %12099 = vst.msk [vmem:[%s433 + $0x18] sm:$0xff] %vm11791, %v12095
        %v12100 = vrot.slane %v11671, 2
        %v12101 = vrot.slane %v11673, 1
        %v12102 = vsel %vm11719, %v12101, %v12100
        %v12103 = vsel %vm11722, %v11675, %v12102
        %v12104 = vrot.slane %v11677, 7
        %v12105 = vsel %vm11725, %v12104, %v12103
        %v12106 = vrot.slane %v11679, 6
        %v12107 = vsel %vm11728, %v12106, %v12105
        %v12108 = vrot.slane %v11681, 5
        %v12109 = vsel %vm11731, %v12108, %v12107
        %v12110 = vrot.slane %v11683, 4
        %v12111 = vsel %vm11734, %v12110, %v12109
        %v12112 = vrot.slane %v11685, 3
        %v12113 = vsel %vm11737, %v12112, %v12111
        %v12114 = vrot.slane %v11687, 2
        %v12115 = vrot.slane %v11689, 1
        %v12116 = vsel %vm11719, %v12115, %v12114
        %v12117 = vsel %vm11722, %v11691, %v12116
        %v12118 = vrot.slane %v11693, 7
        %v12119 = vsel %vm11725, %v12118, %v12117
        %v12120 = vrot.slane %v11695, 6
        %v12121 = vsel %vm11728, %v12120, %v12119
        %v12122 = vrot.slane %v11697, 5
        %v12123 = vsel %vm11731, %v12122, %v12121
        %v12124 = vrot.slane %v11699, 4
        %v12125 = vsel %vm11734, %v12124, %v12123
        %v12126 = vrot.slane %v11701, 3
        %v12127 = vsel %vm11737, %v12126, %v12125
        %12128 = vrot.lane.b32.xlu0 %v12113, 32
        %v12129 = vpop.permute.xlu0 %12128
        %12130 = vrot.lane.b32.xlu0 %v12127, 32
        %v12131 = vpop.permute.xlu0 %12130
        %12134 = vst.msk [vmem:[%s433 + $0x8] sm:$0xff] %vm11828, %v12129
        %12135 = vst.msk [vmem:[%s433 + $0x18] sm:$0xff] %vm11828, %v12131
        %v12136 = vrot.slane %v11671, 3
        %v12137 = vrot.slane %v11673, 2
        %v12138 = vsel %vm11719, %v12137, %v12136
        %v12139 = vrot.slane %v11675, 1
        %v12140 = vsel %vm11722, %v12139, %v12138
        %v12141 = vsel %vm11725, %v11677, %v12140
        %v12142 = vrot.slane %v11679, 7
        %v12143 = vsel %vm11728, %v12142, %v12141
        %v12144 = vrot.slane %v11681, 6
        %v12145 = vsel %vm11731, %v12144, %v12143
        %v12146 = vrot.slane %v11683, 5
        %v12147 = vsel %vm11734, %v12146, %v12145
        %v12148 = vrot.slane %v11685, 4
        %v12149 = vsel %vm11737, %v12148, %v12147
        %v12150 = vrot.slane %v11687, 3
        %v12151 = vrot.slane %v11689, 2
        %v12152 = vsel %vm11719, %v12151, %v12150
        %v12153 = vrot.slane %v11691, 1
        %v12154 = vsel %vm11722, %v12153, %v12152
        %v12155 = vsel %vm11725, %v11693, %v12154
        %v12156 = vrot.slane %v11695, 7
        %v12157 = vsel %vm11728, %v12156, %v12155
        %v12158 = vrot.slane %v11697, 6
        %v12159 = vsel %vm11731, %v12158, %v12157
        %v12160 = vrot.slane %v11699, 5
        %v12161 = vsel %vm11734, %v12160, %v12159
        %v12162 = vrot.slane %v11701, 4
        %v12163 = vsel %vm11737, %v12162, %v12161
        %12164 = vrot.lane.b32.xlu0 %v12149, 48
        %v12165 = vpop.permute.xlu0 %12164
        %12166 = vrot.lane.b32.xlu0 %v12163, 48
        %v12167 = vpop.permute.xlu0 %12166
        %12170 = vst.msk [vmem:[%s433 + $0x8] sm:$0xff] %vm11865, %v12165
        %12171 = vst.msk [vmem:[%s433 + $0x18] sm:$0xff] %vm11865, %v12167
        %v12172 = vrot.slane %v11671, 4
        %v12173 = vrot.slane %v11673, 3
        %v12174 = vsel %vm11719, %v12173, %v12172
        %v12175 = vrot.slane %v11675, 2
        %v12176 = vsel %vm11722, %v12175, %v12174
        %v12177 = vrot.slane %v11677, 1
        %v12178 = vsel %vm11725, %v12177, %v12176
        %v12179 = vsel %vm11728, %v11679, %v12178
        %v12180 = vrot.slane %v11681, 7
        %v12181 = vsel %vm11731, %v12180, %v12179
        %v12182 = vrot.slane %v11683, 6
        %v12183 = vsel %vm11734, %v12182, %v12181
        %v12184 = vrot.slane %v11685, 5
        %v12185 = vsel %vm11737, %v12184, %v12183
        %v12186 = vrot.slane %v11687, 4
        %v12187 = vrot.slane %v11689, 3
        %v12188 = vsel %vm11719, %v12187, %v12186
        %v12189 = vrot.slane %v11691, 2
        %v12190 = vsel %vm11722, %v12189, %v12188
        %v12191 = vrot.slane %v11693, 1
        %v12192 = vsel %vm11725, %v12191, %v12190
        %v12193 = vsel %vm11728, %v11695, %v12192
        %v12194 = vrot.slane %v11697, 7
        %v12195 = vsel %vm11731, %v12194, %v12193
        %v12196 = vrot.slane %v11699, 6
        %v12197 = vsel %vm11734, %v12196, %v12195
        %v12198 = vrot.slane %v11701, 5
        %v12199 = vsel %vm11737, %v12198, %v12197
        %12200 = vrot.lane.b32.xlu0 %v12185, 64
        %v12201 = vpop.permute.xlu0 %12200
        %12202 = vrot.lane.b32.xlu0 %v12199, 64
        %v12203 = vpop.permute.xlu0 %12202
        %12206 = vst.msk [vmem:[%s433 + $0x8] sm:$0xff] %vm11902, %v12201
        %12207 = vst.msk [vmem:[%s433 + $0x18] sm:$0xff] %vm11902, %v12203
        %v12208 = vrot.slane %v11671, 5
        %v12209 = vrot.slane %v11673, 4
        %v12210 = vsel %vm11719, %v12209, %v12208
        %v12211 = vrot.slane %v11675, 3
        %v12212 = vsel %vm11722, %v12211, %v12210
        %v12213 = vrot.slane %v11677, 2
        %v12214 = vsel %vm11725, %v12213, %v12212
        %v12215 = vrot.slane %v11679, 1
        %v12216 = vsel %vm11728, %v12215, %v12214
        %v12217 = vsel %vm11731, %v11681, %v12216
        %v12218 = vrot.slane %v11683, 7
        %v12219 = vsel %vm11734, %v12218, %v12217
        %v12220 = vrot.slane %v11685, 6
        %v12221 = vsel %vm11737, %v12220, %v12219
        %v12222 = vrot.slane %v11687, 5
        %v12223 = vrot.slane %v11689, 4
        %v12224 = vsel %vm11719, %v12223, %v12222
        %v12225 = vrot.slane %v11691, 3
        %v12226 = vsel %vm11722, %v12225, %v12224
        %v12227 = vrot.slane %v11693, 2
        %v12228 = vsel %vm11725, %v12227, %v12226
        %v12229 = vrot.slane %v11695, 1
        %v12230 = vsel %vm11728, %v12229, %v12228
        %v12231 = vsel %vm11731, %v11697, %v12230
        %v12232 = vrot.slane %v11699, 7
        %v12233 = vsel %vm11734, %v12232, %v12231
        %v12234 = vrot.slane %v11701, 6
        %v12235 = vsel %vm11737, %v12234, %v12233
        %12236 = vrot.lane.b32.xlu0 %v12221, 80
        %v12237 = vpop.permute.xlu0 %12236
        %12238 = vrot.lane.b32.xlu0 %v12235, 80
        %v12239 = vpop.permute.xlu0 %12238
        %12242 = vst.msk [vmem:[%s433 + $0x8] sm:$0xff] %vm11939, %v12237
        %12243 = vst.msk [vmem:[%s433 + $0x18] sm:$0xff] %vm11939, %v12239
        %v12244 = vrot.slane %v11671, 6
        %v12245 = vrot.slane %v11673, 5
        %v12246 = vsel %vm11719, %v12245, %v12244
        %v12247 = vrot.slane %v11675, 4
        %v12248 = vsel %vm11722, %v12247, %v12246
        %v12249 = vrot.slane %v11677, 3
        %v12250 = vsel %vm11725, %v12249, %v12248
        %v12251 = vrot.slane %v11679, 2
        %v12252 = vsel %vm11728, %v12251, %v12250
        %v12253 = vrot.slane %v11681, 1
        %v12254 = vsel %vm11731, %v12253, %v12252
        %v12255 = vsel %vm11734, %v11683, %v12254
        %v12256 = vrot.slane %v11685, 7
        %v12257 = vsel %vm11737, %v12256, %v12255
        %v12258 = vrot.slane %v11687, 6
        %v12259 = vrot.slane %v11689, 5
        %v12260 = vsel %vm11719, %v12259, %v12258
        %v12261 = vrot.slane %v11691, 4
        %v12262 = vsel %vm11722, %v12261, %v12260
        %v12263 = vrot.slane %v11693, 3
        %v12264 = vsel %vm11725, %v12263, %v12262
        %v12265 = vrot.slane %v11695, 2
        %v12266 = vsel %vm11728, %v12265, %v12264
        %v12267 = vrot.slane %v11697, 1
        %v12268 = vsel %vm11731, %v12267, %v12266
        %v12269 = vsel %vm11734, %v11699, %v12268
        %v12270 = vrot.slane %v11701, 7
        %v12271 = vsel %vm11737, %v12270, %v12269
        %12272 = vrot.lane.b32.xlu0 %v12257, 96
        %v12273 = vpop.permute.xlu0 %12272
        %12274 = vrot.lane.b32.xlu0 %v12271, 96
        %v12275 = vpop.permute.xlu0 %12274
        %12278 = vst.msk [vmem:[%s433 + $0x8] sm:$0xff] %vm11976, %v12273
        %12279 = vst.msk [vmem:[%s433 + $0x18] sm:$0xff] %vm11976, %v12275
        %v12280 = vrot.slane %v11671, 7
        %v12281 = vrot.slane %v11673, 6
        %v12282 = vsel %vm11719, %v12281, %v12280
        %v12283 = vrot.slane %v11675, 5
        %v12284 = vsel %vm11722, %v12283, %v12282
        %v12285 = vrot.slane %v11677, 4
        %v12286 = vsel %vm11725, %v12285, %v12284
        %v12287 = vrot.slane %v11679, 3
        %v12288 = vsel %vm11728, %v12287, %v12286
        %v12289 = vrot.slane %v11681, 2
        %v12290 = vsel %vm11731, %v12289, %v12288
        %v12291 = vrot.slane %v11683, 1
        %v12292 = vsel %vm11734, %v12291, %v12290
        %v12293 = vsel %vm11737, %v11685, %v12292
        %v12294 = vrot.slane %v11687, 7
        %v12295 = vrot.slane %v11689, 6
        %v12296 = vsel %vm11719, %v12295, %v12294
        %v12297 = vrot.slane %v11691, 5
        %v12298 = vsel %vm11722, %v12297, %v12296
        %v12299 = vrot.slane %v11693, 4
        %v12300 = vsel %vm11725, %v12299, %v12298
        %v12301 = vrot.slane %v11695, 3
        %v12302 = vsel %vm11728, %v12301, %v12300
        %v12303 = vrot.slane %v11697, 2
        %v12304 = vsel %vm11731, %v12303, %v12302
        %v12305 = vrot.slane %v11699, 1
        %v12306 = vsel %vm11734, %v12305, %v12304
        %v12307 = vsel %vm11737, %v11701, %v12306
        %12308 = vrot.lane.b32.xlu0 %v12293, 112
        %v12309 = vpop.permute.xlu0 %12308
        %12310 = vrot.lane.b32.xlu0 %v12307, 112
        %v12311 = vpop.permute.xlu0 %12310
        %12314 = vst.msk [vmem:[%s433 + $0x8] sm:$0xff] %vm12013, %v12309
        %12315 = vst.msk [vmem:[%s433 + $0x18] sm:$0xff] %vm12013, %v12311
        %s12316 = sand.u32 %s313, 1
        %s12317 = scalar_lea.sflag [#allocation5], %s12316
        %s12318 = sand.u32 %s313, 1
        %s12319 = smul.addr %s12318, 32
        %s12320 = scalar_lea.vmem [#allocation4], %s12319
        // Predicated region
        $region73: #{tpu_custom_call.1} parent=71 // pred_check
          %p12321 = pneg %p323
        $region74: #{tpu_custom_call.1} parent=71 // pred_check_branch
          %12323 = sbr.rel (%p12321) target = $region76
        $region75: #{tpu_custom_call.1} parent=71 // pred_region
          %12325 = vsyncadd %s12317, 0
          %s12326 = smul.addr %s27, 4
          %s12327 = smul.addr %s12326, 8
          %s12328 = scalar_lea.hbm %s13, %s12327
          %s12329 = sshll.u32 %s12320, 4
          %s12330 = int_to_ptr.vmem [resolvable:$true] %s12329
          %s12331 = sshll.u32 %s12328, 4
          %s12332 = int_to_ptr.hbm [resolvable:$true] %s12331
          %12337 = dma.vmem_to_hbm [thread:$0]  %s12330, 512, %s12332, %s12317, 256, 256, 16
        $region76: #{tpu_custom_call.1} parent=71 // pred_fallthru
          _
      $region72: #{tpu_custom_call.1} parent=5 // pred_fallthru
        _
      %p12338 = scmp.le.s32.totalorder 2, %s22
      // Predicated region
      $region77: #{tpu_custom_call.1} parent=5 // pred_check
        %p12339 = pneg %p12338
      $region78: #{tpu_custom_call.1} parent=5 // pred_check_branch
        %12341 = sbr.rel (%p12339) target = $region80
      $region79: #{tpu_custom_call.1} parent=5 // pred_region
        %s12342 = ssub.s32 %s22, 2
        // Predicated region
        $region81: #{tpu_custom_call.1} parent=79 // pred_check
          %p12343 = pneg %p329
        $region82: #{tpu_custom_call.1} parent=79 // pred_check_branch
          %12345 = sbr.rel (%p12343) target = $region84
        $region83: #{tpu_custom_call.1} parent=79 // pred_region
          %s12346 = sand.u32 %s314, 1
          %s12347 = scalar_lea.sflag [#allocation5], %s12346
          %s12348 = sand.u32 %s314, 1
          %s12349 = smul.addr %s12348, 32
          %s12350 = scalar_lea.vmem [#allocation4], %s12349
          %12352 = dma.done %s12347, 512
        $region84: #{tpu_custom_call.1} parent=79 // pred_fallthru
          _
      $region80: #{tpu_custom_call.1} parent=5 // pred_fallthru
        _
    $region6: #{tpu_custom_call.1} parent=1 // loop_footer
      %s26 = sadd.s32 1, %s22
    $region7: #{tpu_custom_call.1} parent=1 // loop_footer_branch
      %21 = sbr.rel target = $region3
    $region8: #{tpu_custom_call.1} parent=1 // loop_exit
      _
    %12353 = vsyncpa [#allocation5], 1
    %s12354 = scalar_lea.sflag [#allocation5], 1
    %12355 = vsyncpa %s12354, 1

</llo_original>
